<compile_context>
chip_gen: v7x
topology: tpu7x:2x2x1
jax: 0.10.0
libtpu: 0.0.40
codegen_flags: <defaults>
</compile_context>

<pallas_src>
import functools
import math

import jax
import jax.numpy as jnp
import numpy as np
from jax import lax
from jax.experimental import pallas as pl
from jax.experimental.pallas import tpu as pltpu

EPS = 1e-6


# ----------------------------- in-kernel helpers -----------------------------
def _rmsnorm(v, scale):
    ms = jnp.mean(v * v, axis=-1, keepdims=True)
    return v * lax.rsqrt(ms + EPS) * scale


def _softmax_last(s):
    m = jnp.max(s, axis=-1, keepdims=True)
    e = jnp.exp(s - m)
    return e * pl.reciprocal(jnp.sum(e, axis=-1, keepdims=True), approx=True)


def _silu(x):
    # sigmoid via EUP exp + approx reciprocal (divide stays off the VALU slot)
    return x * pl.reciprocal(1.0 + jnp.exp(-x), approx=True)


def _mm(a, b):
    # dense, lane-aligned matmul: bf16 inputs, f32 MXU accumulation
    return jnp.dot(a.astype(jnp.bfloat16), b.astype(jnp.bfloat16),
                   preferred_element_type=jnp.float32)


def _bdot(a, b, dn):
    return lax.dot_general(a.astype(jnp.bfloat16), b.astype(jnp.bfloat16), dn,
                           preferred_element_type=jnp.float32)


# --------------------------------- kernel ------------------------------------
def _make_kernel(n_heads, d_head, tq):
    H, dh = n_heads, d_head
    scale = 1.0 / math.sqrt(dh)
    # (G,S,E) x (G,T,E) -> (G,S,T)   q @ k^T per head (leading batch, contract last)
    DN_QKT = (((2,), (2,)), ((0,), (0,)))
    # (G,S,T) x (G,T,E) -> (G,S,E)   attn @ v per head
    DN_AV = (((2,), (1,)), ((0,), (0,)))

    def split_heads(z, groups):
        # (rows, groups*dh) -> (groups, rows, dh); static lane slices (layout only).
        return jnp.stack([z[:, g * dh:(g + 1) * dh] for g in range(groups)], axis=0)

    def merge_heads(z):
        # (H, rows, dh) -> (rows, H*dh) concat-heads slab
        return jnp.concatenate([z[h] for h in range(H)], axis=-1)

    def diff_attn(xq, xkv, wq, wk, wv, wo, nscale, lam):
        # Dense lane-aligned projections: one MXU matmul each (N = 2*D / 2*D / D).
        q = _mm(xq, wq)                        # (tq,  2*H*dh)  cols: [q1 heads | q2 heads]
        k = _mm(xkv, wk)                       # (Skv, 2*H*dh)
        v = _mm(xkv, wv)                       # (Skv, H*dh)

        q_hm = split_heads(q, 2 * H)           # (2H, tq,  dh)
        k_hm = split_heads(k, 2 * H)           # (2H, Skv, dh)
        v_hm = split_heads(v, H)               # (H,  Skv, dh)

        s = _bdot(q_hm, k_hm, DN_QKT) * scale  # (2H, tq, Skv) f32
        a = _softmax_last(s)
        # TODO(synk): target_mask (masked_fill) path not implemented; matches mask=None.
        aw = _softmax_last(a[:H] - lam * a[H:])            # (H, tq, Skv)

        o_h = _bdot(aw, v_hm, DN_AV)           # (H, tq, dh) f32
        o = merge_heads(o_h)                   # (tq, H*dh)
        # attention-internal RMSNorm over d_model; (1 - mean(lambda)) folded into nscale
        o = _rmsnorm(o, nscale)
        return _mm(o, wo)                      # (tq, D): single dense output projection, K = D

    def kernel(x_ref, enc_ref,
               pn1_ref, pn2_ref, pn3_ref, sa_lnorm_ref,
               sa_wq_ref, sa_wk_ref, sa_wv_ref, sa_wo_ref, sa_ns_ref, sa_lam_ref,
               ca_wq_ref, ca_wk_ref, ca_wv_ref, ca_wo_ref, ca_ns_ref, ca_lam_ref,
               wl1_ref, bl1_ref, w12_ref, w3_ref, wl2_ref, bl2_ref,
               out_ref):
        q0 = pl.multiple_of(pl.program_id(1) * tq, tq)
        x_full = x_ref[0]                          # (S, D)  K/V source rows (self-attn)
        x_t = x_ref[0, pl.ds(q0, tq), :]           # (tq, D) query / residual rows
        enc = enc_ref[0]                           # (Sc, D)

        # ---- self attention: x = x + prenorm1(x) + attn(norm(prenorm1(x))) ----
        n1_t = _rmsnorm(x_t, pn1_ref[...])
        q_in = _rmsnorm(n1_t, sa_lnorm_ref[...])
        kv_in = _rmsnorm(_rmsnorm(x_full, pn1_ref[...]), sa_lnorm_ref[...])
        sa = diff_attn(q_in, kv_in,
                       sa_wq_ref[...], sa_wk_ref[...], sa_wv_ref[...],
                       sa_wo_ref[...], sa_ns_ref[...], sa_lam_ref[...])
        x_t = x_t + n1_t + sa

        # ---- cross attention: x = x + attn(prenorm2(x), ctx=encoder_out) ----
        n2_t = _rmsnorm(x_t, pn2_ref[...])
        ca = diff_attn(n2_t, enc,
                       ca_wq_ref[...], ca_wk_ref[...], ca_wv_ref[...],
                       ca_wo_ref[...], ca_ns_ref[...], ca_lam_ref[...])
        x_t = x_t + ca

        # ---- FFN: linear1 -> swiGLU (w1|w2 fused lane-wise) -> linear2 ----
        n3_t = _rmsnorm(x_t, pn3_ref[...])
        h1 = _mm(n3_t, wl1_ref[...]) + bl1_ref[...]        # (tq, d_ff)
        h12 = _mm(h1, w12_ref[...])                        # (tq, 2*d_inner)
        d_inner = w12_ref.shape[1] // 2
        g = _silu(h12[:, :d_inner]) * h12[:, d_inner:]     # (tq, d_inner)
        h2 = _mm(g, w3_ref[...])                           # (tq, d_ff)
        f = _mm(h2, wl2_ref[...]) + bl2_ref[...]           # (tq, D)
        x_t = x_t + f

        out_ref[0] = x_t.astype(out_ref.dtype)

    return kernel


# -------------------- wrapper-side parameter preparation ----------------------
def _prep_layer_params(P, *, n_heads, d_head):
    """Permute / concat / cast torch-layout weights once (hoisted out of the forward)."""
    H, dh = n_heads, d_head
    bf = lambda a: jnp.asarray(a, jnp.bfloat16)
    f32 = lambda a: jnp.asarray(a, jnp.float32)

    def attn_prep(a):
        D = a["wq"].shape[0]

        # torch column order of q_proj/k_proj is (head, which(1|2), dh); reorder to
        # (which, head, dh) so the dense output splits into [q1 heads | q2 heads].
        def reorder(w):
            return jnp.transpose(w.reshape(D, H, 2, dh), (0, 2, 1, 3)).reshape(D, 2 * H * dh)

        ns = f32(a["norm"] * (1.0 - jnp.mean(a["lam"])))    # fold (1 - mean(lambda))
        return dict(wq=bf(reorder(a["wq"])), wk=bf(reorder(a["wk"])),
                    wv=bf(a["wv"]), wo=bf(a["wo"]),
                    ns=ns, lam=f32(a["lam"].reshape(H, 1, 1)))

    sa, ca, f = attn_prep(P["sa"]), attn_prep(P["ca"]), P["ffn"]
    w12 = jnp.concatenate([f["w1"], f["w2"]], axis=1)       # fused swiGLU: (d_ff, 2*d_inner)
    return dict(
        pn1=f32(P["pn1"]), pn2=f32(P["pn2"]), pn3=f32(P["pn3"]),
        sa_lnorm=f32(P["sa_lnorm"]),
        sa_wq=sa["wq"], sa_wk=sa["wk"], sa_wv=sa["wv"], sa_wo=sa["wo"],
        sa_ns=sa["ns"], sa_lam=sa["lam"],
        ca_wq=ca["wq"], ca_wk=ca["wk"], ca_wv=ca["wv"], ca_wo=ca["wo"],
        ca_ns=ca["ns"], ca_lam=ca["lam"],
        wl1=bf(f["wl1"]), bl1=f32(f["bl1"]), w12=bf(w12), w3=bf(f["w3"]),
        wl2=bf(f["wl2"]), bl2=f32(f["bl2"]),
    )


def _pick_tq(S):
    if S <= 256:
        return S
    for t in (256, 128):
        if S % t == 0:
            return t
    return S  # fallback: single query tile


# --------------------------- pallas_call wrapper -------------------------------
def decoder_block(x, encoder_out, KP, *, n_heads, d_head):
    B, S, D = x.shape
    Bc, Sc, Dc = encoder_out.shape
    # torch's lambda expand to (B,H,S,S) requires Sc == S (and same batch / d_model)
    assert Bc == B and Dc == D and Sc == S
    H, dh = n_heads, d_head
    assert H * dh == D, "kernel assumes n_heads * d_head == d_model (RMSNorm pad path unused)"
    d_ff = KP["wl1"].shape[1]
    d_inner = KP["w12"].shape[1] // 2

    tq = _pick_tq(S)
    n_q = S // tq
    kernel = _make_kernel(H, dh, tq)

    inputs = [x, encoder_out,
              KP["pn1"], KP["pn2"], KP["pn3"], KP["sa_lnorm"],
              KP["sa_wq"], KP["sa_wk"], KP["sa_wv"], KP["sa_wo"], KP["sa_ns"], KP["sa_lam"],
              KP["ca_wq"], KP["ca_wk"], KP["ca_wv"], KP["ca_wo"], KP["ca_ns"], KP["ca_lam"],
              KP["wl1"], KP["bl1"], KP["w12"], KP["w3"], KP["wl2"], KP["bl2"]]

    # TODO(synk): at production d_model/d_ff, stream wl1/w12/w3/wl2 and the attention
    # projection stacks K-tile-wise (extra "arbitrary" grid axis or pltpu.emit_pipeline)
    # and single-buffer these constant-index weight specs (pipeline_mode=pl.Buffered(1))
    # instead of whole-weight, double-buffered VMEM residency.
    def const_spec(a):
        return pl.BlockSpec(a.shape, lambda b, qi, _n=a.ndim: (0,) * _n)

    in_specs = ([pl.BlockSpec((1, S, D), lambda b, qi: (b, 0, 0)),
                 pl.BlockSpec((1, Sc, D), lambda b, qi: (b, 0, 0))]
                + [const_spec(a) for a in inputs[2:]])
    out_specs = pl.BlockSpec((1, tq, D), lambda b, qi: (b, qi, 0))

    # Advisory cost estimate + explicit scoped-VMEM limit computed from residency.
    def attn_flops(sq, skv):
        return (2 * sq * D * (2 * D) + 2 * skv * D * (2 * D) + 2 * skv * D * D
                + 2 * (2 * H) * sq * skv * dh + 2 * H * sq * skv * dh + 2 * sq * D * D)

    ffn_flops = (2 * tq * D * d_ff + 2 * tq * d_ff * (2 * d_inner)
                 + 2 * tq * d_inner * d_ff + 2 * tq * d_ff * D)
    flops = B * n_q * (attn_flops(tq, S) + attn_flops(tq, Sc) + ffn_flops)
    transcendentals = B * n_q * (6 * H * tq * S + tq * d_inner + 8 * tq)
    weight_bytes = sum(int(np.prod(a.shape)) * a.dtype.itemsize for a in inputs[2:])
    bytes_accessed = B * n_q * (2 * S * D * 4) + weight_bytes + B * S * D * 4

    block_bytes = (S * D + Sc * D + tq * D) * 4
    tmp_bytes = 4 * (3 * S * 2 * D + 3 * 2 * H * tq * S + 2 * H * tq * dh
                     + tq * 2 * d_inner + 2 * tq * d_ff + 4 * tq * D)
    vmem_limit = int(min(64 << 20,
                         max(32 << 20,
                             2 * (weight_bytes + block_bytes) + 2 * tmp_bytes + (8 << 20))))

    return pl.pallas_call(
        kernel,
        out_shape=jax.ShapeDtypeStruct((B, S, D), jnp.float32),
        grid=(B, n_q),
        in_specs=in_specs,
        out_specs=out_specs,
        compiler_params=pltpu.CompilerParams(
            dimension_semantics=("parallel", "parallel"),
            vmem_limit_bytes=vmem_limit),
        cost_estimate=pl.CostEstimate(flops=int(flops),
                                      transcendentals=int(transcendentals),
                                      bytes_accessed=int(bytes_accessed)),
    )(*inputs)


def prepare_decoder_params(layer_params, *, n_heads, d_head):
    # Hoisted out of the forward path: done once, results reused every call.
    return [_prep_layer_params(P, n_heads=n_heads, d_head=d_head) for P in layer_params]


@functools.partial(jax.jit, static_argnames=("n_heads", "d_head"))
def decoder_forward(x, encoder_out, prepped, *, n_heads, d_head):
    # TODO(synk): optionally carry the residual stream in bf16 between layers to halve
    # activation HBM traffic (keep f32 accumulation inside the kernel).
    for KP in prepped:
        x = decoder_block(x, encoder_out, KP, n_heads=n_heads, d_head=d_head)
    return x


# --------------------------- deterministic params ------------------------------
def init_layer_params(key, d_model, d_head, n_heads, d_ff):
    H, dh, D = n_heads, d_head, d_model
    d_inner = int(d_ff * (8 / 3))
    keys = iter(jax.random.split(key, 24))

    def w(shape, fan_in):
        return jax.random.normal(next(keys), shape, jnp.float32) / math.sqrt(fan_in)

    def scale_vec(dim):
        return 1.0 + 0.1 * jax.random.normal(next(keys), (1, dim), jnp.float32)

    def attn():
        return dict(
            wq=w((D, 2 * H * dh), D),
            wk=w((D, 2 * H * dh), D),
            wv=w((D, H * dh), D),
            wo=w((H * dh, D), H * dh),
            norm=scale_vec(H * dh),                      # RMSNorm(d_model); H*dh == d_model
            lam=jnp.full((H,), 0.8, jnp.float32),        # lambda_param init
        )

    return dict(
        sa=attn(), ca=attn(),
        pn1=scale_vec(D), pn2=scale_vec(D), pn3=scale_vec(D),
        sa_lnorm=scale_vec(D),
        ffn=dict(
            wl1=w((D, d_ff), D),
            bl1=0.1 * jax.random.normal(next(keys), (1, d_ff), jnp.float32),
            w1=w((d_ff, d_inner), d_ff),
            w2=w((d_ff, d_inner), d_ff),
            w3=w((d_inner, d_ff), d_inner),
            wl2=w((d_ff, D), d_ff),
            bl2=0.1 * jax.random.normal(next(keys), (1, D), jnp.float32),
        ),
    )


def init_params(key, n_layers, d_model, d_head, n_heads, d_ff):
    return [init_layer_params(k, d_model, d_head, n_heads, d_ff)
            for k in jax.random.split(key, n_layers)]


# --------------------------- pure-JAX f32 reference ----------------------------
def _reference_block(x, enc, P, *, n_heads, d_head):
    H, dh = n_heads, d_head

    def rms(v, s):
        return v / jnp.sqrt(jnp.mean(v * v, -1, keepdims=True) + EPS) * s

    def dattn(xq, xkv, a):
        S, Sc = xq.shape[0], xkv.shape[0]
        lam = a["lam"]
        q = (xq @ a["wq"]).reshape(S, H, 2, dh)
        k = (xkv @ a["wk"]).reshape(Sc, H, 2, dh)
        v = (xkv @ a["wv"]).reshape(Sc, H, dh).transpose(1, 0, 2)
        q1, q2 = q[:, :, 0, :].transpose(1, 0, 2), q[:, :, 1, :].transpose(1, 0, 2)
        k1, k2 = k[:, :, 0, :].transpose(1, 0, 2), k[:, :, 1, :].transpose(1, 0, 2)
        sc = 1.0 / math.sqrt(dh)
        s1 = jnp.einsum("hqd,hkd->hqk", q1, k1) * sc
        s2 = jnp.einsum("hqd,hkd->hqk", q2, k2) * sc
        a1 = jax.nn.softmax(s1, -1)
        a2 = jax.nn.softmax(s2, -1)
        aw = jax.nn.softmax(a1 - lam[:, None, None] * a2, -1)
        o = jnp.einsum("hqk,hkd->hqd", aw, v).transpose(1, 0, 2).reshape(S, H * dh)
        o = rms(o, a["norm"])
        o = o * (1.0 - jnp.mean(lam))
        return o @ a["wo"]

    def ffn(v, f):
        h1 = v @ f["wl1"] + f["bl1"]
        g = jax.nn.silu(h1 @ f["w1"]) * (h1 @ f["w2"])
        return (g @ f["w3"]) @ f["wl2"] + f["bl2"]

    def one(x1, e1):
        n1 = rms(x1, P["pn1"])
        n1b = rms(n1, P["sa_lnorm"])
        x1 = x1 + n1 + dattn(n1b, n1b, P["sa"])
        n2 = rms(x1, P["pn2"])
        x1 = x1 + dattn(n2, e1, P["ca"])
        n3 = rms(x1, P["pn3"])
        return x1 + ffn(n3, P["ffn"])

    return jax.vmap(one)(x, enc)


def reference(x, enc, layer_params, *, n_heads, d_head):
    for P in layer_params:
        x = _reference_block(x, enc, P, n_heads=n_heads, d_head=d_head)
    return x


# ----------------------------------- main --------------------------------------
if __name__ == "__main__":
    d_model, d_head, n_heads, d_ff = 32, 8, 4, 64   # n_heads * d_head == d_model
    n_layers = 2
    B, S = 2, 8

    key = jax.random.PRNGKey(0)
    kx, ke, kp = jax.random.split(key, 3)
    x = jax.random.normal(kx, (B, S, d_model), jnp.float32)
    encoder_out = jax.random.normal(ke, (B, S, d_model), jnp.float32)
    layers = init_params(kp, n_layers, d_model, d_head, n_heads, d_ff)

    prepped = prepare_decoder_params(layers, n_heads=n_heads, d_head=d_head)
    out = decoder_forward(x, encoder_out, prepped, n_heads=n_heads, d_head=d_head)
    out = jax.block_until_ready(out)

    # f32 reference of the PyTorch module; kernel runs its matmuls in bf16
    # (f32 accumulation) and uses approx EUP reciprocals, hence the looser tolerance.
    ref = reference(x, encoder_out, layers, n_heads=n_heads, d_head=d_head)
    np.testing.assert_allclose(np.asarray(out), np.asarray(ref), rtol=5e-2, atol=5e-2)

    print("KERNEL_OK")
</pallas_src>

<mosaic_0001>
module attributes {stable_mosaic.version = 11 : i64} {
  func.func @kernel(%arg0: i32, %arg1: i32, %arg2: memref<1x8x32xf32, #tpu.memory_space<vmem>>, %arg3: memref<1x8x32xf32, #tpu.memory_space<vmem>>, %arg4: memref<1x32xf32, #tpu.memory_space<vmem>>, %arg5: memref<1x32xf32, #tpu.memory_space<vmem>>, %arg6: memref<1x32xf32, #tpu.memory_space<vmem>>, %arg7: memref<1x32xf32, #tpu.memory_space<vmem>>, %arg8: memref<32x64xbf16, #tpu.memory_space<vmem>>, %arg9: memref<32x64xbf16, #tpu.memory_space<vmem>>, %arg10: memref<32x32xbf16, #tpu.memory_space<vmem>>, %arg11: memref<32x32xbf16, #tpu.memory_space<vmem>>, %arg12: memref<1x32xf32, #tpu.memory_space<vmem>>, %arg13: memref<4x1x1xf32, #tpu.memory_space<vmem>>, %arg14: memref<32x64xbf16, #tpu.memory_space<vmem>>, %arg15: memref<32x64xbf16, #tpu.memory_space<vmem>>, %arg16: memref<32x32xbf16, #tpu.memory_space<vmem>>, %arg17: memref<32x32xbf16, #tpu.memory_space<vmem>>, %arg18: memref<1x32xf32, #tpu.memory_space<vmem>>, %arg19: memref<4x1x1xf32, #tpu.memory_space<vmem>>, %arg20: memref<32x64xbf16, #tpu.memory_space<vmem>>, %arg21: memref<1x64xf32, #tpu.memory_space<vmem>>, %arg22: memref<64x340xbf16, #tpu.memory_space<vmem>>, %arg23: memref<170x64xbf16, #tpu.memory_space<vmem>>, %arg24: memref<64x32xbf16, #tpu.memory_space<vmem>>, %arg25: memref<1x32xf32, #tpu.memory_space<vmem>>, %arg26: memref<1x8x32xf32, #tpu.memory_space<vmem>>) attributes {dimension_semantics = [#tpu.dimension_semantics<parallel>, #tpu.dimension_semantics<parallel>], iteration_bounds = array<i64: 2, 1>, scalar_prefetch = 0 : i64, scratch_operands = 0 : i64, tpu.core_type = #tpu.core_type<tc>, window_params = [{transform_indices = @transform_0, window_bounds = array<i64: 1, 8, 32>}, {transform_indices = @transform_1, window_bounds = array<i64: 1, 8, 32>}, {pipeline_mode = #tpu.pipeline_mode<synchronous>, transform_indices = @transform_2, window_bounds = array<i64: 1, 32>}, {pipeline_mode = #tpu.pipeline_mode<synchronous>, transform_indices = @transform_3, window_bounds = array<i64: 1, 32>}, {pipeline_mode = #tpu.pipeline_mode<synchronous>, transform_indices = @transform_4, window_bounds = array<i64: 1, 32>}, {pipeline_mode = #tpu.pipeline_mode<synchronous>, transform_indices = @transform_5, window_bounds = array<i64: 1, 32>}, {pipeline_mode = #tpu.pipeline_mode<synchronous>, transform_indices = @transform_6, window_bounds = array<i64: 32, 64>}, {pipeline_mode = #tpu.pipeline_mode<synchronous>, transform_indices = @transform_7, window_bounds = array<i64: 32, 64>}, {pipeline_mode = #tpu.pipeline_mode<synchronous>, transform_indices = @transform_8, window_bounds = array<i64: 32, 32>}, {pipeline_mode = #tpu.pipeline_mode<synchronous>, transform_indices = @transform_9, window_bounds = array<i64: 32, 32>}, {pipeline_mode = #tpu.pipeline_mode<synchronous>, transform_indices = @transform_10, window_bounds = array<i64: 1, 32>}, {pipeline_mode = #tpu.pipeline_mode<synchronous>, transform_indices = @transform_11, window_bounds = array<i64: 4, 1, 1>}, {pipeline_mode = #tpu.pipeline_mode<synchronous>, transform_indices = @transform_12, window_bounds = array<i64: 32, 64>}, {pipeline_mode = #tpu.pipeline_mode<synchronous>, transform_indices = @transform_13, window_bounds = array<i64: 32, 64>}, {pipeline_mode = #tpu.pipeline_mode<synchronous>, transform_indices = @transform_14, window_bounds = array<i64: 32, 32>}, {pipeline_mode = #tpu.pipeline_mode<synchronous>, transform_indices = @transform_15, window_bounds = array<i64: 32, 32>}, {pipeline_mode = #tpu.pipeline_mode<synchronous>, transform_indices = @transform_16, window_bounds = array<i64: 1, 32>}, {pipeline_mode = #tpu.pipeline_mode<synchronous>, transform_indices = @transform_17, window_bounds = array<i64: 4, 1, 1>}, {pipeline_mode = #tpu.pipeline_mode<synchronous>, transform_indices = @transform_18, window_bounds = array<i64: 32, 64>}, {pipeline_mode = #tpu.pipeline_mode<synchronous>, transform_indices = @transform_19, window_bounds = array<i64: 1, 64>}, {pipeline_mode = #tpu.pipeline_mode<synchronous>, transform_indices = @transform_20, window_bounds = array<i64: 64, 340>}, {pipeline_mode = #tpu.pipeline_mode<synchronous>, transform_indices = @transform_21, window_bounds = array<i64: 170, 64>}, {pipeline_mode = #tpu.pipeline_mode<synchronous>, transform_indices = @transform_22, window_bounds = array<i64: 64, 32>}, {pipeline_mode = #tpu.pipeline_mode<synchronous>, transform_indices = @transform_23, window_bounds = array<i64: 1, 32>}, {transform_indices = @transform_24, window_bounds = array<i64: 1, 8, 32>}]} {
    %c8_i32 = arith.constant 8 : i32
    %0 = arith.muli %arg1, %c8_i32 : i32
    %1 = tpu.assume_multiple %0, 8 : i32
    %c0 = arith.constant 0 : index
    %c0_0 = arith.constant 0 : index
    %c0_1 = arith.constant 0 : index
    %2 = vector.load %arg2[%c0, %c0_0, %c0_1] : memref<1x8x32xf32, #tpu.memory_space<vmem>>, vector<1x8x32xf32>
    %3 = vector.shape_cast %2 : vector<1x8x32xf32> to vector<8x32xf32>
    %c0_2 = arith.constant 0 : index
    %4 = arith.index_cast %1 : i32 to index
    %c0_3 = arith.constant 0 : index
    %5 = vector.load %arg2[%c0_2, %4, %c0_3] : memref<1x8x32xf32, #tpu.memory_space<vmem>>, vector<1x8x32xf32>
    %6 = vector.shape_cast %5 : vector<1x8x32xf32> to vector<8x32xf32>
    %c0_4 = arith.constant 0 : index
    %c0_5 = arith.constant 0 : index
    %c0_6 = arith.constant 0 : index
    %7 = vector.load %arg3[%c0_4, %c0_5, %c0_6] : memref<1x8x32xf32, #tpu.memory_space<vmem>>, vector<1x8x32xf32>
    %8 = vector.shape_cast %7 : vector<1x8x32xf32> to vector<8x32xf32>
    %c0_7 = arith.constant 0 : index
    %c0_8 = arith.constant 0 : index
    %9 = vector.load %arg4[%c0_7, %c0_8] : memref<1x32xf32, #tpu.memory_space<vmem>>, vector<1x32xf32>
    %10 = arith.mulf %6, %6 : vector<8x32xf32>
    %cst = arith.constant dense<0.000000e+00> : vector<8xf32>
    %11 = vector.multi_reduction <add>, %10, %cst [1] : vector<8x32xf32> to vector<8xf32>
    %12 = vector.shape_cast %11 : vector<8xf32> to vector<8x1xf32>
    %cst_9 = arith.constant 3.200000e+01 : f32
    %13 = vector.broadcast %cst_9 : f32 to vector<8x1xf32>
    %14 = arith.divf %12, %13 : vector<8x1xf32>
    %cst_10 = arith.constant 9.99999997E-7 : f32
    %15 = vector.broadcast %cst_10 : f32 to vector<8x1xf32>
    %16 = arith.addf %14, %15 : vector<8x1xf32>
    %17 = math.rsqrt %16 : vector<8x1xf32>
    %18 = vector.broadcast %17 : vector<8x1xf32> to vector<8x32xf32>
    %19 = arith.mulf %6, %18 : vector<8x32xf32>
    %20 = vector.broadcast %9 : vector<1x32xf32> to vector<8x32xf32>
    %21 = arith.mulf %19, %20 : vector<8x32xf32>
    %c0_11 = arith.constant 0 : index
    %c0_12 = arith.constant 0 : index
    %22 = vector.load %arg7[%c0_11, %c0_12] : memref<1x32xf32, #tpu.memory_space<vmem>>, vector<1x32xf32>
    %23 = arith.mulf %21, %21 : vector<8x32xf32>
    %cst_13 = arith.constant dense<0.000000e+00> : vector<8xf32>
    %24 = vector.multi_reduction <add>, %23, %cst_13 [1] : vector<8x32xf32> to vector<8xf32>
    %25 = vector.shape_cast %24 : vector<8xf32> to vector<8x1xf32>
    %cst_14 = arith.constant 3.200000e+01 : f32
    %26 = vector.broadcast %cst_14 : f32 to vector<8x1xf32>
    %27 = arith.divf %25, %26 : vector<8x1xf32>
    %cst_15 = arith.constant 9.99999997E-7 : f32
    %28 = vector.broadcast %cst_15 : f32 to vector<8x1xf32>
    %29 = arith.addf %27, %28 : vector<8x1xf32>
    %30 = math.rsqrt %29 : vector<8x1xf32>
    %31 = vector.broadcast %30 : vector<8x1xf32> to vector<8x32xf32>
    %32 = arith.mulf %21, %31 : vector<8x32xf32>
    %33 = vector.broadcast %22 : vector<1x32xf32> to vector<8x32xf32>
    %34 = arith.mulf %32, %33 : vector<8x32xf32>
    %c0_16 = arith.constant 0 : index
    %c0_17 = arith.constant 0 : index
    %35 = vector.load %arg4[%c0_16, %c0_17] : memref<1x32xf32, #tpu.memory_space<vmem>>, vector<1x32xf32>
    %36 = arith.mulf %3, %3 : vector<8x32xf32>
    %cst_18 = arith.constant dense<0.000000e+00> : vector<8xf32>
    %37 = vector.multi_reduction <add>, %36, %cst_18 [1] : vector<8x32xf32> to vector<8xf32>
    %38 = vector.shape_cast %37 : vector<8xf32> to vector<8x1xf32>
    %cst_19 = arith.constant 3.200000e+01 : f32
    %39 = vector.broadcast %cst_19 : f32 to vector<8x1xf32>
    %40 = arith.divf %38, %39 : vector<8x1xf32>
    %cst_20 = arith.constant 9.99999997E-7 : f32
    %41 = vector.broadcast %cst_20 : f32 to vector<8x1xf32>
    %42 = arith.addf %40, %41 : vector<8x1xf32>
    %43 = math.rsqrt %42 : vector<8x1xf32>
    %44 = vector.broadcast %43 : vector<8x1xf32> to vector<8x32xf32>
    %45 = arith.mulf %3, %44 : vector<8x32xf32>
    %46 = vector.broadcast %35 : vector<1x32xf32> to vector<8x32xf32>
    %47 = arith.mulf %45, %46 : vector<8x32xf32>
    %c0_21 = arith.constant 0 : index
    %c0_22 = arith.constant 0 : index
    %48 = vector.load %arg7[%c0_21, %c0_22] : memref<1x32xf32, #tpu.memory_space<vmem>>, vector<1x32xf32>
    %49 = arith.mulf %47, %47 : vector<8x32xf32>
    %cst_23 = arith.constant dense<0.000000e+00> : vector<8xf32>
    %50 = vector.multi_reduction <add>, %49, %cst_23 [1] : vector<8x32xf32> to vector<8xf32>
    %51 = vector.shape_cast %50 : vector<8xf32> to vector<8x1xf32>
    %cst_24 = arith.constant 3.200000e+01 : f32
    %52 = vector.broadcast %cst_24 : f32 to vector<8x1xf32>
    %53 = arith.divf %51, %52 : vector<8x1xf32>
    %cst_25 = arith.constant 9.99999997E-7 : f32
    %54 = vector.broadcast %cst_25 : f32 to vector<8x1xf32>
    %55 = arith.addf %53, %54 : vector<8x1xf32>
    %56 = math.rsqrt %55 : vector<8x1xf32>
    %57 = vector.broadcast %56 : vector<8x1xf32> to vector<8x32xf32>
    %58 = arith.mulf %47, %57 : vector<8x32xf32>
    %59 = vector.broadcast %48 : vector<1x32xf32> to vector<8x32xf32>
    %60 = arith.mulf %58, %59 : vector<8x32xf32>
    %c0_26 = arith.constant 0 : index
    %c0_27 = arith.constant 0 : index
    %61 = vector.load %arg8[%c0_26, %c0_27] : memref<32x64xbf16, #tpu.memory_space<vmem>>, vector<32x64xbf16>
    %c0_28 = arith.constant 0 : index
    %c0_29 = arith.constant 0 : index
    %62 = vector.load %arg9[%c0_28, %c0_29] : memref<32x64xbf16, #tpu.memory_space<vmem>>, vector<32x64xbf16>
    %c0_30 = arith.constant 0 : index
    %c0_31 = arith.constant 0 : index
    %63 = vector.load %arg10[%c0_30, %c0_31] : memref<32x32xbf16, #tpu.memory_space<vmem>>, vector<32x32xbf16>
    %c0_32 = arith.constant 0 : index
    %c0_33 = arith.constant 0 : index
    %64 = vector.load %arg11[%c0_32, %c0_33] : memref<32x32xbf16, #tpu.memory_space<vmem>>, vector<32x32xbf16>
    %c0_34 = arith.constant 0 : index
    %c0_35 = arith.constant 0 : index
    %65 = vector.load %arg12[%c0_34, %c0_35] : memref<1x32xf32, #tpu.memory_space<vmem>>, vector<1x32xf32>
    %c0_36 = arith.constant 0 : index
    %c0_37 = arith.constant 0 : index
    %c0_38 = arith.constant 0 : index
    %66 = vector.load %arg13[%c0_36, %c0_37, %c0_38] : memref<4x1x1xf32, #tpu.memory_space<vmem>>, vector<4x1x1xf32>
    %67 = arith.truncf %34 : vector<8x32xf32> to vector<8x32xbf16>
    %cst_39 = arith.constant dense<0.000000e+00> : vector<8x64xf32>
    %68 = tpu.matmul %67, %61, %cst_39 {dimension_numbers = #tpu.dot_dimension_numbers<[1], [0], [0], [1], [0, 0, 1, 1], [], []>} : vector<8x32xbf16>, vector<32x64xbf16>, vector<8x64xf32> -> vector<8x64xf32>
    %69 = arith.truncf %60 : vector<8x32xf32> to vector<8x32xbf16>
    %cst_40 = arith.constant dense<0.000000e+00> : vector<8x64xf32>
    %70 = tpu.matmul %69, %62, %cst_40 {dimension_numbers = #tpu.dot_dimension_numbers<[1], [0], [0], [1], [0, 0, 1, 1], [], []>} : vector<8x32xbf16>, vector<32x64xbf16>, vector<8x64xf32> -> vector<8x64xf32>
    %71 = arith.truncf %60 : vector<8x32xf32> to vector<8x32xbf16>
    %cst_41 = arith.constant dense<0.000000e+00> : vector<8x32xf32>
    %72 = tpu.matmul %71, %63, %cst_41 {dimension_numbers = #tpu.dot_dimension_numbers<[1], [0], [0], [1], [0, 0, 1, 1], [], []>} : vector<8x32xbf16>, vector<32x32xbf16>, vector<8x32xf32> -> vector<8x32xf32>
    %73 = vector.extract_strided_slice %68 {offsets = [0, 0], sizes = [8, 8], strides = [1, 1]} : vector<8x64xf32> to vector<8x8xf32>
    %74 = vector.extract_strided_slice %68 {offsets = [0, 8], sizes = [8, 8], strides = [1, 1]} : vector<8x64xf32> to vector<8x8xf32>
    %75 = vector.extract_strided_slice %68 {offsets = [0, 16], sizes = [8, 8], strides = [1, 1]} : vector<8x64xf32> to vector<8x8xf32>
    %76 = vector.extract_strided_slice %68 {offsets = [0, 24], sizes = [8, 8], strides = [1, 1]} : vector<8x64xf32> to vector<8x8xf32>
    %77 = vector.extract_strided_slice %68 {offsets = [0, 32], sizes = [8, 8], strides = [1, 1]} : vector<8x64xf32> to vector<8x8xf32>
    %78 = vector.extract_strided_slice %68 {offsets = [0, 40], sizes = [8, 8], strides = [1, 1]} : vector<8x64xf32> to vector<8x8xf32>
    %79 = vector.extract_strided_slice %68 {offsets = [0, 48], sizes = [8, 8], strides = [1, 1]} : vector<8x64xf32> to vector<8x8xf32>
    %80 = vector.extract_strided_slice %68 {offsets = [0, 56], sizes = [8, 8], strides = [1, 1]} : vector<8x64xf32> to vector<8x8xf32>
    %81 = vector.shape_cast %73 : vector<8x8xf32> to vector<1x8x8xf32>
    %82 = vector.shape_cast %74 : vector<8x8xf32> to vector<1x8x8xf32>
    %83 = vector.shape_cast %75 : vector<8x8xf32> to vector<1x8x8xf32>
    %84 = vector.shape_cast %76 : vector<8x8xf32> to vector<1x8x8xf32>
    %85 = vector.shape_cast %77 : vector<8x8xf32> to vector<1x8x8xf32>
    %86 = vector.shape_cast %78 : vector<8x8xf32> to vector<1x8x8xf32>
    %87 = vector.shape_cast %79 : vector<8x8xf32> to vector<1x8x8xf32>
    %88 = vector.shape_cast %80 : vector<8x8xf32> to vector<1x8x8xf32>
    %89 = tpu.concatenate %81, %82, %83, %84, %85, %86, %87, %88 in 0 : vector<1x8x8xf32>, vector<1x8x8xf32>, vector<1x8x8xf32>, vector<1x8x8xf32>, vector<1x8x8xf32>, vector<1x8x8xf32>, vector<1x8x8xf32>, vector<1x8x8xf32> -> vector<8x8x8xf32>
    %90 = vector.extract_strided_slice %70 {offsets = [0, 0], sizes = [8, 8], strides = [1, 1]} : vector<8x64xf32> to vector<8x8xf32>
    %91 = vector.extract_strided_slice %70 {offsets = [0, 8], sizes = [8, 8], strides = [1, 1]} : vector<8x64xf32> to vector<8x8xf32>
    %92 = vector.extract_strided_slice %70 {offsets = [0, 16], sizes = [8, 8], strides = [1, 1]} : vector<8x64xf32> to vector<8x8xf32>
    %93 = vector.extract_strided_slice %70 {offsets = [0, 24], sizes = [8, 8], strides = [1, 1]} : vector<8x64xf32> to vector<8x8xf32>
    %94 = vector.extract_strided_slice %70 {offsets = [0, 32], sizes = [8, 8], strides = [1, 1]} : vector<8x64xf32> to vector<8x8xf32>
    %95 = vector.extract_strided_slice %70 {offsets = [0, 40], sizes = [8, 8], strides = [1, 1]} : vector<8x64xf32> to vector<8x8xf32>
    %96 = vector.extract_strided_slice %70 {offsets = [0, 48], sizes = [8, 8], strides = [1, 1]} : vector<8x64xf32> to vector<8x8xf32>
    %97 = vector.extract_strided_slice %70 {offsets = [0, 56], sizes = [8, 8], strides = [1, 1]} : vector<8x64xf32> to vector<8x8xf32>
    %98 = vector.shape_cast %90 : vector<8x8xf32> to vector<1x8x8xf32>
    %99 = vector.shape_cast %91 : vector<8x8xf32> to vector<1x8x8xf32>
    %100 = vector.shape_cast %92 : vector<8x8xf32> to vector<1x8x8xf32>
    %101 = vector.shape_cast %93 : vector<8x8xf32> to vector<1x8x8xf32>
    %102 = vector.shape_cast %94 : vector<8x8xf32> to vector<1x8x8xf32>
    %103 = vector.shape_cast %95 : vector<8x8xf32> to vector<1x8x8xf32>
    %104 = vector.shape_cast %96 : vector<8x8xf32> to vector<1x8x8xf32>
    %105 = vector.shape_cast %97 : vector<8x8xf32> to vector<1x8x8xf32>
    %106 = tpu.concatenate %98, %99, %100, %101, %102, %103, %104, %105 in 0 : vector<1x8x8xf32>, vector<1x8x8xf32>, vector<1x8x8xf32>, vector<1x8x8xf32>, vector<1x8x8xf32>, vector<1x8x8xf32>, vector<1x8x8xf32>, vector<1x8x8xf32> -> vector<8x8x8xf32>
    %107 = vector.extract_strided_slice %72 {offsets = [0, 0], sizes = [8, 8], strides = [1, 1]} : vector<8x32xf32> to vector<8x8xf32>
    %108 = vector.extract_strided_slice %72 {offsets = [0, 8], sizes = [8, 8], strides = [1, 1]} : vector<8x32xf32> to vector<8x8xf32>
    %109 = vector.extract_strided_slice %72 {offsets = [0, 16], sizes = [8, 8], strides = [1, 1]} : vector<8x32xf32> to vector<8x8xf32>
    %110 = vector.extract_strided_slice %72 {offsets = [0, 24], sizes = [8, 8], strides = [1, 1]} : vector<8x32xf32> to vector<8x8xf32>
    %111 = vector.shape_cast %107 : vector<8x8xf32> to vector<1x8x8xf32>
    %112 = vector.shape_cast %108 : vector<8x8xf32> to vector<1x8x8xf32>
    %113 = vector.shape_cast %109 : vector<8x8xf32> to vector<1x8x8xf32>
    %114 = vector.shape_cast %110 : vector<8x8xf32> to vector<1x8x8xf32>
    %115 = tpu.concatenate %111, %112, %113, %114 in 0 : vector<1x8x8xf32>, vector<1x8x8xf32>, vector<1x8x8xf32>, vector<1x8x8xf32> -> vector<4x8x8xf32>
    %116 = arith.truncf %89 : vector<8x8x8xf32> to vector<8x8x8xbf16>
    %117 = arith.truncf %106 : vector<8x8x8xf32> to vector<8x8x8xbf16>
    %cst_42 = arith.constant dense<0.000000e+00> : vector<8x8x8xf32>
    %118 = tpu.matmul %116, %117, %cst_42 {dimension_numbers = #tpu.dot_dimension_numbers<[2], [2], [1], [1], [0, 0, 0, 1, 1, 1], [0], [0]>} : vector<8x8x8xbf16>, vector<8x8x8xbf16>, vector<8x8x8xf32> -> vector<8x8x8xf32>
    %cst_43 = arith.constant 0.353553385 : f32
    %119 = vector.broadcast %cst_43 : f32 to vector<8x8x8xf32>
    %120 = arith.mulf %118, %119 : vector<8x8x8xf32>
    %cst_44 = arith.constant dense<0xFF800000> : vector<8x8xf32>
    %121 = vector.multi_reduction <maximumf>, %120, %cst_44 [2] : vector<8x8x8xf32> to vector<8x8xf32>
    %122 = vector.shape_cast %121 : vector<8x8xf32> to vector<8x8x1xf32>
    %123 = vector.broadcast %122 : vector<8x8x1xf32> to vector<8x8x8xf32>
    %124 = arith.subf %120, %123 : vector<8x8x8xf32>
    %125 = math.exp %124 : vector<8x8x8xf32>
    %cst_45 = arith.constant dense<0.000000e+00> : vector<8x8xf32>
    %126 = vector.multi_reduction <add>, %125, %cst_45 [2] : vector<8x8x8xf32> to vector<8x8xf32>
    %127 = vector.shape_cast %126 : vector<8x8xf32> to vector<8x8x1xf32>
    %128 = tpu.reciprocal %127 {approx = true} : vector<8x8x1xf32> -> vector<8x8x1xf32>
    %129 = vector.broadcast %128 : vector<8x8x1xf32> to vector<8x8x8xf32>
    %130 = arith.mulf %125, %129 : vector<8x8x8xf32>
    %131 = vector.extract_strided_slice %130 {offsets = [0, 0, 0], sizes = [4, 8, 8], strides = [1, 1, 1]} : vector<8x8x8xf32> to vector<4x8x8xf32>
    %132 = vector.extract_strided_slice %130 {offsets = [4, 0, 0], sizes = [4, 8, 8], strides = [1, 1, 1]} : vector<8x8x8xf32> to vector<4x8x8xf32>
    %133 = vector.broadcast %66 : vector<4x1x1xf32> to vector<4x8x8xf32>
    %134 = arith.mulf %133, %132 : vector<4x8x8xf32>
    %135 = arith.subf %131, %134 : vector<4x8x8xf32>
    %cst_46 = arith.constant dense<0xFF800000> : vector<4x8xf32>
    %136 = vector.multi_reduction <maximumf>, %135, %cst_46 [2] : vector<4x8x8xf32> to vector<4x8xf32>
    %137 = vector.shape_cast %136 : vector<4x8xf32> to vector<4x8x1xf32>
    %138 = vector.broadcast %137 : vector<4x8x1xf32> to vector<4x8x8xf32>
    %139 = arith.subf %135, %138 : vector<4x8x8xf32>
    %140 = math.exp %139 : vector<4x8x8xf32>
    %cst_47 = arith.constant dense<0.000000e+00> : vector<4x8xf32>
    %141 = vector.multi_reduction <add>, %140, %cst_47 [2] : vector<4x8x8xf32> to vector<4x8xf32>
    %142 = vector.shape_cast %141 : vector<4x8xf32> to vector<4x8x1xf32>
    %143 = tpu.reciprocal %142 {approx = true} : vector<4x8x1xf32> -> vector<4x8x1xf32>
    %144 = vector.broadcast %143 : vector<4x8x1xf32> to vector<4x8x8xf32>
    %145 = arith.mulf %140, %144 : vector<4x8x8xf32>
    %146 = arith.truncf %145 : vector<4x8x8xf32> to vector<4x8x8xbf16>
    %147 = arith.truncf %115 : vector<4x8x8xf32> to vector<4x8x8xbf16>
    %cst_48 = arith.constant dense<0.000000e+00> : vector<4x8x8xf32>
    %148 = tpu.matmul %146, %147, %cst_48 {dimension_numbers = #tpu.dot_dimension_numbers<[2], [1], [1], [2], [0, 0, 0, 1, 1, 2], [0], [0]>} : vector<4x8x8xbf16>, vector<4x8x8xbf16>, vector<4x8x8xf32> -> vector<4x8x8xf32>
    %149 = vector.extract_strided_slice %148 {offsets = [0, 0, 0], sizes = [1, 8, 8], strides = [1, 1, 1]} : vector<4x8x8xf32> to vector<1x8x8xf32>
    %150 = vector.shape_cast %149 : vector<1x8x8xf32> to vector<8x8xf32>
    %151 = vector.extract_strided_slice %148 {offsets = [1, 0, 0], sizes = [1, 8, 8], strides = [1, 1, 1]} : vector<4x8x8xf32> to vector<1x8x8xf32>
    %152 = vector.shape_cast %151 : vector<1x8x8xf32> to vector<8x8xf32>
    %153 = vector.extract_strided_slice %148 {offsets = [2, 0, 0], sizes = [1, 8, 8], strides = [1, 1, 1]} : vector<4x8x8xf32> to vector<1x8x8xf32>
    %154 = vector.shape_cast %153 : vector<1x8x8xf32> to vector<8x8xf32>
    %155 = vector.extract_strided_slice %148 {offsets = [3, 0, 0], sizes = [1, 8, 8], strides = [1, 1, 1]} : vector<4x8x8xf32> to vector<1x8x8xf32>
    %156 = vector.shape_cast %155 : vector<1x8x8xf32> to vector<8x8xf32>
    %157 = tpu.concatenate %150, %152, %154, %156 in 1 : vector<8x8xf32>, vector<8x8xf32>, vector<8x8xf32>, vector<8x8xf32> -> vector<8x32xf32>
    %158 = arith.mulf %157, %157 : vector<8x32xf32>
    %cst_49 = arith.constant dense<0.000000e+00> : vector<8xf32>
    %159 = vector.multi_reduction <add>, %158, %cst_49 [1] : vector<8x32xf32> to vector<8xf32>
    %160 = vector.shape_cast %159 : vector<8xf32> to vector<8x1xf32>
    %cst_50 = arith.constant 3.200000e+01 : f32
    %161 = vector.broadcast %cst_50 : f32 to vector<8x1xf32>
    %162 = arith.divf %160, %161 : vector<8x1xf32>
    %cst_51 = arith.constant 9.99999997E-7 : f32
    %163 = vector.broadcast %cst_51 : f32 to vector<8x1xf32>
    %164 = arith.addf %162, %163 : vector<8x1xf32>
    %165 = math.rsqrt %164 : vector<8x1xf32>
    %166 = vector.broadcast %165 : vector<8x1xf32> to vector<8x32xf32>
    %167 = arith.mulf %157, %166 : vector<8x32xf32>
    %168 = vector.broadcast %65 : vector<1x32xf32> to vector<8x32xf32>
    %169 = arith.mulf %167, %168 : vector<8x32xf32>
    %170 = arith.truncf %169 : vector<8x32xf32> to vector<8x32xbf16>
    %cst_52 = arith.constant dense<0.000000e+00> : vector<8x32xf32>
    %171 = tpu.matmul %170, %64, %cst_52 {dimension_numbers = #tpu.dot_dimension_numbers<[1], [0], [0], [1], [0, 0, 1, 1], [], []>} : vector<8x32xbf16>, vector<32x32xbf16>, vector<8x32xf32> -> vector<8x32xf32>
    %172 = arith.addf %6, %21 : vector<8x32xf32>
    %173 = arith.addf %172, %171 : vector<8x32xf32>
    %c0_53 = arith.constant 0 : index
    %c0_54 = arith.constant 0 : index
    %174 = vector.load %arg5[%c0_53, %c0_54] : memref<1x32xf32, #tpu.memory_space<vmem>>, vector<1x32xf32>
    %175 = arith.mulf %173, %173 : vector<8x32xf32>
    %cst_55 = arith.constant dense<0.000000e+00> : vector<8xf32>
    %176 = vector.multi_reduction <add>, %175, %cst_55 [1] : vector<8x32xf32> to vector<8xf32>
    %177 = vector.shape_cast %176 : vector<8xf32> to vector<8x1xf32>
    %cst_56 = arith.constant 3.200000e+01 : f32
    %178 = vector.broadcast %cst_56 : f32 to vector<8x1xf32>
    %179 = arith.divf %177, %178 : vector<8x1xf32>
    %cst_57 = arith.constant 9.99999997E-7 : f32
    %180 = vector.broadcast %cst_57 : f32 to vector<8x1xf32>
    %181 = arith.addf %179, %180 : vector<8x1xf32>
    %182 = math.rsqrt %181 : vector<8x1xf32>
    %183 = vector.broadcast %182 : vector<8x1xf32> to vector<8x32xf32>
    %184 = arith.mulf %173, %183 : vector<8x32xf32>
    %185 = vector.broadcast %174 : vector<1x32xf32> to vector<8x32xf32>
    %186 = arith.mulf %184, %185 : vector<8x32xf32>
    %c0_58 = arith.constant 0 : index
    %c0_59 = arith.constant 0 : index
    %187 = vector.load %arg14[%c0_58, %c0_59] : memref<32x64xbf16, #tpu.memory_space<vmem>>, vector<32x64xbf16>
    %c0_60 = arith.constant 0 : index
    %c0_61 = arith.constant 0 : index
    %188 = vector.load %arg15[%c0_60, %c0_61] : memref<32x64xbf16, #tpu.memory_space<vmem>>, vector<32x64xbf16>
    %c0_62 = arith.constant 0 : index
    %c0_63 = arith.constant 0 : index
    %189 = vector.load %arg16[%c0_62, %c0_63] : memref<32x32xbf16, #tpu.memory_space<vmem>>, vector<32x32xbf16>
    %c0_64 = arith.constant 0 : index
    %c0_65 = arith.constant 0 : index
    %190 = vector.load %arg17[%c0_64, %c0_65] : memref<32x32xbf16, #tpu.memory_space<vmem>>, vector<32x32xbf16>
    %c0_66 = arith.constant 0 : index
    %c0_67 = arith.constant 0 : index
    %191 = vector.load %arg18[%c0_66, %c0_67] : memref<1x32xf32, #tpu.memory_space<vmem>>, vector<1x32xf32>
    %c0_68 = arith.constant 0 : index
    %c0_69 = arith.constant 0 : index
    %c0_70 = arith.constant 0 : index
    %192 = vector.load %arg19[%c0_68, %c0_69, %c0_70] : memref<4x1x1xf32, #tpu.memory_space<vmem>>, vector<4x1x1xf32>
    %193 = arith.truncf %186 : vector<8x32xf32> to vector<8x32xbf16>
    %cst_71 = arith.constant dense<0.000000e+00> : vector<8x64xf32>
    %194 = tpu.matmul %193, %187, %cst_71 {dimension_numbers = #tpu.dot_dimension_numbers<[1], [0], [0], [1], [0, 0, 1, 1], [], []>} : vector<8x32xbf16>, vector<32x64xbf16>, vector<8x64xf32> -> vector<8x64xf32>
    %195 = arith.truncf %8 : vector<8x32xf32> to vector<8x32xbf16>
    %cst_72 = arith.constant dense<0.000000e+00> : vector<8x64xf32>
    %196 = tpu.matmul %195, %188, %cst_72 {dimension_numbers = #tpu.dot_dimension_numbers<[1], [0], [0], [1], [0, 0, 1, 1], [], []>} : vector<8x32xbf16>, vector<32x64xbf16>, vector<8x64xf32> -> vector<8x64xf32>
    %197 = arith.truncf %8 : vector<8x32xf32> to vector<8x32xbf16>
    %cst_73 = arith.constant dense<0.000000e+00> : vector<8x32xf32>
    %198 = tpu.matmul %197, %189, %cst_73 {dimension_numbers = #tpu.dot_dimension_numbers<[1], [0], [0], [1], [0, 0, 1, 1], [], []>} : vector<8x32xbf16>, vector<32x32xbf16>, vector<8x32xf32> -> vector<8x32xf32>
    %199 = vector.extract_strided_slice %194 {offsets = [0, 0], sizes = [8, 8], strides = [1, 1]} : vector<8x64xf32> to vector<8x8xf32>
    %200 = vector.extract_strided_slice %194 {offsets = [0, 8], sizes = [8, 8], strides = [1, 1]} : vector<8x64xf32> to vector<8x8xf32>
    %201 = vector.extract_strided_slice %194 {offsets = [0, 16], sizes = [8, 8], strides = [1, 1]} : vector<8x64xf32> to vector<8x8xf32>
    %202 = vector.extract_strided_slice %194 {offsets = [0, 24], sizes = [8, 8], strides = [1, 1]} : vector<8x64xf32> to vector<8x8xf32>
    %203 = vector.extract_strided_slice %194 {offsets = [0, 32], sizes = [8, 8], strides = [1, 1]} : vector<8x64xf32> to vector<8x8xf32>
    %204 = vector.extract_strided_slice %194 {offsets = [0, 40], sizes = [8, 8], strides = [1, 1]} : vector<8x64xf32> to vector<8x8xf32>
    %205 = vector.extract_strided_slice %194 {offsets = [0, 48], sizes = [8, 8], strides = [1, 1]} : vector<8x64xf32> to vector<8x8xf32>
    %206 = vector.extract_strided_slice %194 {offsets = [0, 56], sizes = [8, 8], strides = [1, 1]} : vector<8x64xf32> to vector<8x8xf32>
    %207 = vector.shape_cast %199 : vector<8x8xf32> to vector<1x8x8xf32>
    %208 = vector.shape_cast %200 : vector<8x8xf32> to vector<1x8x8xf32>
    %209 = vector.shape_cast %201 : vector<8x8xf32> to vector<1x8x8xf32>
    %210 = vector.shape_cast %202 : vector<8x8xf32> to vector<1x8x8xf32>
    %211 = vector.shape_cast %203 : vector<8x8xf32> to vector<1x8x8xf32>
    %212 = vector.shape_cast %204 : vector<8x8xf32> to vector<1x8x8xf32>
    %213 = vector.shape_cast %205 : vector<8x8xf32> to vector<1x8x8xf32>
    %214 = vector.shape_cast %206 : vector<8x8xf32> to vector<1x8x8xf32>
    %215 = tpu.concatenate %207, %208, %209, %210, %211, %212, %213, %214 in 0 : vector<1x8x8xf32>, vector<1x8x8xf32>, vector<1x8x8xf32>, vector<1x8x8xf32>, vector<1x8x8xf32>, vector<1x8x8xf32>, vector<1x8x8xf32>, vector<1x8x8xf32> -> vector<8x8x8xf32>
    %216 = vector.extract_strided_slice %196 {offsets = [0, 0], sizes = [8, 8], strides = [1, 1]} : vector<8x64xf32> to vector<8x8xf32>
    %217 = vector.extract_strided_slice %196 {offsets = [0, 8], sizes = [8, 8], strides = [1, 1]} : vector<8x64xf32> to vector<8x8xf32>
    %218 = vector.extract_strided_slice %196 {offsets = [0, 16], sizes = [8, 8], strides = [1, 1]} : vector<8x64xf32> to vector<8x8xf32>
    %219 = vector.extract_strided_slice %196 {offsets = [0, 24], sizes = [8, 8], strides = [1, 1]} : vector<8x64xf32> to vector<8x8xf32>
    %220 = vector.extract_strided_slice %196 {offsets = [0, 32], sizes = [8, 8], strides = [1, 1]} : vector<8x64xf32> to vector<8x8xf32>
    %221 = vector.extract_strided_slice %196 {offsets = [0, 40], sizes = [8, 8], strides = [1, 1]} : vector<8x64xf32> to vector<8x8xf32>
    %222 = vector.extract_strided_slice %196 {offsets = [0, 48], sizes = [8, 8], strides = [1, 1]} : vector<8x64xf32> to vector<8x8xf32>
    %223 = vector.extract_strided_slice %196 {offsets = [0, 56], sizes = [8, 8], strides = [1, 1]} : vector<8x64xf32> to vector<8x8xf32>
    %224 = vector.shape_cast %216 : vector<8x8xf32> to vector<1x8x8xf32>
    %225 = vector.shape_cast %217 : vector<8x8xf32> to vector<1x8x8xf32>
    %226 = vector.shape_cast %218 : vector<8x8xf32> to vector<1x8x8xf32>
    %227 = vector.shape_cast %219 : vector<8x8xf32> to vector<1x8x8xf32>
    %228 = vector.shape_cast %220 : vector<8x8xf32> to vector<1x8x8xf32>
    %229 = vector.shape_cast %221 : vector<8x8xf32> to vector<1x8x8xf32>
    %230 = vector.shape_cast %222 : vector<8x8xf32> to vector<1x8x8xf32>
    %231 = vector.shape_cast %223 : vector<8x8xf32> to vector<1x8x8xf32>
    %232 = tpu.concatenate %224, %225, %226, %227, %228, %229, %230, %231 in 0 : vector<1x8x8xf32>, vector<1x8x8xf32>, vector<1x8x8xf32>, vector<1x8x8xf32>, vector<1x8x8xf32>, vector<1x8x8xf32>, vector<1x8x8xf32>, vector<1x8x8xf32> -> vector<8x8x8xf32>
    %233 = vector.extract_strided_slice %198 {offsets = [0, 0], sizes = [8, 8], strides = [1, 1]} : vector<8x32xf32> to vector<8x8xf32>
    %234 = vector.extract_strided_slice %198 {offsets = [0, 8], sizes = [8, 8], strides = [1, 1]} : vector<8x32xf32> to vector<8x8xf32>
    %235 = vector.extract_strided_slice %198 {offsets = [0, 16], sizes = [8, 8], strides = [1, 1]} : vector<8x32xf32> to vector<8x8xf32>
    %236 = vector.extract_strided_slice %198 {offsets = [0, 24], sizes = [8, 8], strides = [1, 1]} : vector<8x32xf32> to vector<8x8xf32>
    %237 = vector.shape_cast %233 : vector<8x8xf32> to vector<1x8x8xf32>
    %238 = vector.shape_cast %234 : vector<8x8xf32> to vector<1x8x8xf32>
    %239 = vector.shape_cast %235 : vector<8x8xf32> to vector<1x8x8xf32>
    %240 = vector.shape_cast %236 : vector<8x8xf32> to vector<1x8x8xf32>
    %241 = tpu.concatenate %237, %238, %239, %240 in 0 : vector<1x8x8xf32>, vector<1x8x8xf32>, vector<1x8x8xf32>, vector<1x8x8xf32> -> vector<4x8x8xf32>
    %242 = arith.truncf %215 : vector<8x8x8xf32> to vector<8x8x8xbf16>
    %243 = arith.truncf %232 : vector<8x8x8xf32> to vector<8x8x8xbf16>
    %cst_74 = arith.constant dense<0.000000e+00> : vector<8x8x8xf32>
    %244 = tpu.matmul %242, %243, %cst_74 {dimension_numbers = #tpu.dot_dimension_numbers<[2], [2], [1], [1], [0, 0, 0, 1, 1, 1], [0], [0]>} : vector<8x8x8xbf16>, vector<8x8x8xbf16>, vector<8x8x8xf32> -> vector<8x8x8xf32>
    %cst_75 = arith.constant 0.353553385 : f32
    %245 = vector.broadcast %cst_75 : f32 to vector<8x8x8xf32>
    %246 = arith.mulf %244, %245 : vector<8x8x8xf32>
    %cst_76 = arith.constant dense<0xFF800000> : vector<8x8xf32>
    %247 = vector.multi_reduction <maximumf>, %246, %cst_76 [2] : vector<8x8x8xf32> to vector<8x8xf32>
    %248 = vector.shape_cast %247 : vector<8x8xf32> to vector<8x8x1xf32>
    %249 = vector.broadcast %248 : vector<8x8x1xf32> to vector<8x8x8xf32>
    %250 = arith.subf %246, %249 : vector<8x8x8xf32>
    %251 = math.exp %250 : vector<8x8x8xf32>
    %cst_77 = arith.constant dense<0.000000e+00> : vector<8x8xf32>
    %252 = vector.multi_reduction <add>, %251, %cst_77 [2] : vector<8x8x8xf32> to vector<8x8xf32>
    %253 = vector.shape_cast %252 : vector<8x8xf32> to vector<8x8x1xf32>
    %254 = tpu.reciprocal %253 {approx = true} : vector<8x8x1xf32> -> vector<8x8x1xf32>
    %255 = vector.broadcast %254 : vector<8x8x1xf32> to vector<8x8x8xf32>
    %256 = arith.mulf %251, %255 : vector<8x8x8xf32>
    %257 = vector.extract_strided_slice %256 {offsets = [0, 0, 0], sizes = [4, 8, 8], strides = [1, 1, 1]} : vector<8x8x8xf32> to vector<4x8x8xf32>
    %258 = vector.extract_strided_slice %256 {offsets = [4, 0, 0], sizes = [4, 8, 8], strides = [1, 1, 1]} : vector<8x8x8xf32> to vector<4x8x8xf32>
    %259 = vector.broadcast %192 : vector<4x1x1xf32> to vector<4x8x8xf32>
    %260 = arith.mulf %259, %258 : vector<4x8x8xf32>
    %261 = arith.subf %257, %260 : vector<4x8x8xf32>
    %cst_78 = arith.constant dense<0xFF800000> : vector<4x8xf32>
    %262 = vector.multi_reduction <maximumf>, %261, %cst_78 [2] : vector<4x8x8xf32> to vector<4x8xf32>
    %263 = vector.shape_cast %262 : vector<4x8xf32> to vector<4x8x1xf32>
    %264 = vector.broadcast %263 : vector<4x8x1xf32> to vector<4x8x8xf32>
    %265 = arith.subf %261, %264 : vector<4x8x8xf32>
    %266 = math.exp %265 : vector<4x8x8xf32>
    %cst_79 = arith.constant dense<0.000000e+00> : vector<4x8xf32>
    %267 = vector.multi_reduction <add>, %266, %cst_79 [2] : vector<4x8x8xf32> to vector<4x8xf32>
    %268 = vector.shape_cast %267 : vector<4x8xf32> to vector<4x8x1xf32>
    %269 = tpu.reciprocal %268 {approx = true} : vector<4x8x1xf32> -> vector<4x8x1xf32>
    %270 = vector.broadcast %269 : vector<4x8x1xf32> to vector<4x8x8xf32>
    %271 = arith.mulf %266, %270 : vector<4x8x8xf32>
    %272 = arith.truncf %271 : vector<4x8x8xf32> to vector<4x8x8xbf16>
    %273 = arith.truncf %241 : vector<4x8x8xf32> to vector<4x8x8xbf16>
    %cst_80 = arith.constant dense<0.000000e+00> : vector<4x8x8xf32>
    %274 = tpu.matmul %272, %273, %cst_80 {dimension_numbers = #tpu.dot_dimension_numbers<[2], [1], [1], [2], [0, 0, 0, 1, 1, 2], [0], [0]>} : vector<4x8x8xbf16>, vector<4x8x8xbf16>, vector<4x8x8xf32> -> vector<4x8x8xf32>
    %275 = vector.extract_strided_slice %274 {offsets = [0, 0, 0], sizes = [1, 8, 8], strides = [1, 1, 1]} : vector<4x8x8xf32> to vector<1x8x8xf32>
    %276 = vector.shape_cast %275 : vector<1x8x8xf32> to vector<8x8xf32>
    %277 = vector.extract_strided_slice %274 {offsets = [1, 0, 0], sizes = [1, 8, 8], strides = [1, 1, 1]} : vector<4x8x8xf32> to vector<1x8x8xf32>
    %278 = vector.shape_cast %277 : vector<1x8x8xf32> to vector<8x8xf32>
    %279 = vector.extract_strided_slice %274 {offsets = [2, 0, 0], sizes = [1, 8, 8], strides = [1, 1, 1]} : vector<4x8x8xf32> to vector<1x8x8xf32>
    %280 = vector.shape_cast %279 : vector<1x8x8xf32> to vector<8x8xf32>
    %281 = vector.extract_strided_slice %274 {offsets = [3, 0, 0], sizes = [1, 8, 8], strides = [1, 1, 1]} : vector<4x8x8xf32> to vector<1x8x8xf32>
    %282 = vector.shape_cast %281 : vector<1x8x8xf32> to vector<8x8xf32>
    %283 = tpu.concatenate %276, %278, %280, %282 in 1 : vector<8x8xf32>, vector<8x8xf32>, vector<8x8xf32>, vector<8x8xf32> -> vector<8x32xf32>
    %284 = arith.mulf %283, %283 : vector<8x32xf32>
    %cst_81 = arith.constant dense<0.000000e+00> : vector<8xf32>
    %285 = vector.multi_reduction <add>, %284, %cst_81 [1] : vector<8x32xf32> to vector<8xf32>
    %286 = vector.shape_cast %285 : vector<8xf32> to vector<8x1xf32>
    %cst_82 = arith.constant 3.200000e+01 : f32
    %287 = vector.broadcast %cst_82 : f32 to vector<8x1xf32>
    %288 = arith.divf %286, %287 : vector<8x1xf32>
    %cst_83 = arith.constant 9.99999997E-7 : f32
    %289 = vector.broadcast %cst_83 : f32 to vector<8x1xf32>
    %290 = arith.addf %288, %289 : vector<8x1xf32>
    %291 = math.rsqrt %290 : vector<8x1xf32>
    %292 = vector.broadcast %291 : vector<8x1xf32> to vector<8x32xf32>
    %293 = arith.mulf %283, %292 : vector<8x32xf32>
    %294 = vector.broadcast %191 : vector<1x32xf32> to vector<8x32xf32>
    %295 = arith.mulf %293, %294 : vector<8x32xf32>
    %296 = arith.truncf %295 : vector<8x32xf32> to vector<8x32xbf16>
    %cst_84 = arith.constant dense<0.000000e+00> : vector<8x32xf32>
    %297 = tpu.matmul %296, %190, %cst_84 {dimension_numbers = #tpu.dot_dimension_numbers<[1], [0], [0], [1], [0, 0, 1, 1], [], []>} : vector<8x32xbf16>, vector<32x32xbf16>, vector<8x32xf32> -> vector<8x32xf32>
    %298 = arith.addf %173, %297 : vector<8x32xf32>
    %c0_85 = arith.constant 0 : index
    %c0_86 = arith.constant 0 : index
    %299 = vector.load %arg6[%c0_85, %c0_86] : memref<1x32xf32, #tpu.memory_space<vmem>>, vector<1x32xf32>
    %300 = arith.mulf %298, %298 : vector<8x32xf32>
    %cst_87 = arith.constant dense<0.000000e+00> : vector<8xf32>
    %301 = vector.multi_reduction <add>, %300, %cst_87 [1] : vector<8x32xf32> to vector<8xf32>
    %302 = vector.shape_cast %301 : vector<8xf32> to vector<8x1xf32>
    %cst_88 = arith.constant 3.200000e+01 : f32
    %303 = vector.broadcast %cst_88 : f32 to vector<8x1xf32>
    %304 = arith.divf %302, %303 : vector<8x1xf32>
    %cst_89 = arith.constant 9.99999997E-7 : f32
    %305 = vector.broadcast %cst_89 : f32 to vector<8x1xf32>
    %306 = arith.addf %304, %305 : vector<8x1xf32>
    %307 = math.rsqrt %306 : vector<8x1xf32>
    %308 = vector.broadcast %307 : vector<8x1xf32> to vector<8x32xf32>
    %309 = arith.mulf %298, %308 : vector<8x32xf32>
    %310 = vector.broadcast %299 : vector<1x32xf32> to vector<8x32xf32>
    %311 = arith.mulf %309, %310 : vector<8x32xf32>
    %c0_90 = arith.constant 0 : index
    %c0_91 = arith.constant 0 : index
    %312 = vector.load %arg20[%c0_90, %c0_91] : memref<32x64xbf16, #tpu.memory_space<vmem>>, vector<32x64xbf16>
    %313 = arith.truncf %311 : vector<8x32xf32> to vector<8x32xbf16>
    %cst_92 = arith.constant dense<0.000000e+00> : vector<8x64xf32>
    %314 = tpu.matmul %313, %312, %cst_92 {dimension_numbers = #tpu.dot_dimension_numbers<[1], [0], [0], [1], [0, 0, 1, 1], [], []>} : vector<8x32xbf16>, vector<32x64xbf16>, vector<8x64xf32> -> vector<8x64xf32>
    %c0_93 = arith.constant 0 : index
    %c0_94 = arith.constant 0 : index
    %315 = vector.load %arg21[%c0_93, %c0_94] : memref<1x64xf32, #tpu.memory_space<vmem>>, vector<1x64xf32>
    %316 = vector.broadcast %315 : vector<1x64xf32> to vector<8x64xf32>
    %317 = arith.addf %314, %316 : vector<8x64xf32>
    %c0_95 = arith.constant 0 : index
    %c0_96 = arith.constant 0 : index
    %318 = vector.load %arg22[%c0_95, %c0_96] : memref<64x340xbf16, #tpu.memory_space<vmem>>, vector<64x340xbf16>
    %319 = arith.truncf %317 : vector<8x64xf32> to vector<8x64xbf16>
    %cst_97 = arith.constant dense<0.000000e+00> : vector<8x340xf32>
    %320 = tpu.matmul %319, %318, %cst_97 {dimension_numbers = #tpu.dot_dimension_numbers<[1], [0], [0], [1], [0, 0, 1, 1], [], []>} : vector<8x64xbf16>, vector<64x340xbf16>, vector<8x340xf32> -> vector<8x340xf32>
    %321 = vector.extract_strided_slice %320 {offsets = [0, 0], sizes = [8, 170], strides = [1, 1]} : vector<8x340xf32> to vector<8x170xf32>
    %cst_98 = arith.constant 0.000000e+00 : f32
    %322 = vector.broadcast %cst_98 : f32 to vector<8x170xf32>
    %323 = arith.subf %322, %321 : vector<8x170xf32>
    %324 = math.exp %323 : vector<8x170xf32>
    %cst_99 = arith.constant 1.000000e+00 : f32
    %325 = vector.broadcast %cst_99 : f32 to vector<8x170xf32>
    %326 = arith.addf %325, %324 : vector<8x170xf32>
    %327 = tpu.reciprocal %326 {approx = true} : vector<8x170xf32> -> vector<8x170xf32>
    %328 = arith.mulf %321, %327 : vector<8x170xf32>
    %329 = vector.extract_strided_slice %320 {offsets = [0, 170], sizes = [8, 170], strides = [1, 1]} : vector<8x340xf32> to vector<8x170xf32>
    %330 = arith.mulf %328, %329 : vector<8x170xf32>
    %c0_100 = arith.constant 0 : index
    %c0_101 = arith.constant 0 : index
    %331 = vector.load %arg23[%c0_100, %c0_101] : memref<170x64xbf16, #tpu.memory_space<vmem>>, vector<170x64xbf16>
    %332 = arith.truncf %330 : vector<8x170xf32> to vector<8x170xbf16>
    %cst_102 = arith.constant dense<0.000000e+00> : vector<8x64xf32>
    %333 = tpu.matmul %332, %331, %cst_102 {dimension_numbers = #tpu.dot_dimension_numbers<[1], [0], [0], [1], [0, 0, 1, 1], [], []>} : vector<8x170xbf16>, vector<170x64xbf16>, vector<8x64xf32> -> vector<8x64xf32>
    %c0_103 = arith.constant 0 : index
    %c0_104 = arith.constant 0 : index
    %334 = vector.load %arg24[%c0_103, %c0_104] : memref<64x32xbf16, #tpu.memory_space<vmem>>, vector<64x32xbf16>
    %335 = arith.truncf %333 : vector<8x64xf32> to vector<8x64xbf16>
    %cst_105 = arith.constant dense<0.000000e+00> : vector<8x32xf32>
    %336 = tpu.matmul %335, %334, %cst_105 {dimension_numbers = #tpu.dot_dimension_numbers<[1], [0], [0], [1], [0, 0, 1, 1], [], []>} : vector<8x64xbf16>, vector<64x32xbf16>, vector<8x32xf32> -> vector<8x32xf32>
    %c0_106 = arith.constant 0 : index
    %c0_107 = arith.constant 0 : index
    %337 = vector.load %arg25[%c0_106, %c0_107] : memref<1x32xf32, #tpu.memory_space<vmem>>, vector<1x32xf32>
    %338 = vector.broadcast %337 : vector<1x32xf32> to vector<8x32xf32>
    %339 = arith.addf %336, %338 : vector<8x32xf32>
    %340 = arith.addf %298, %339 : vector<8x32xf32>
    %c0_108 = arith.constant 0 : index
    %c0_109 = arith.constant 0 : index
    %c0_110 = arith.constant 0 : index
    %341 = vector.load %arg26[%c0_108, %c0_109, %c0_110] : memref<1x8x32xf32, #tpu.memory_space<vmem>>, vector<1x8x32xf32>
    %342 = vector.shape_cast %341 : vector<1x8x32xf32> to vector<8x32xf32>
    %343 = vector.shape_cast %340 : vector<8x32xf32> to vector<1x8x32xf32>
    tpu.vector_store %arg26[%c0_108, %c0_109, %c0_110], %343 {strides = array<i32>} : memref<1x8x32xf32, #tpu.memory_space<vmem>>, vector<1x8x32xf32>,
    return
  }
  func.func @transform_0(%arg0: i32, %arg1: i32) -> (i32, i32, i32) {
    %c0_i32 = arith.constant 0 : i32
    %c0_i32_0 = arith.constant 0 : i32
    %c0_i32_1 = arith.constant 0 : i32
    return %arg0, %c0_i32, %c0_i32_0 : i32, i32, i32
  }
  func.func @transform_1(%arg0: i32, %arg1: i32) -> (i32, i32, i32) {
    %c0_i32 = arith.constant 0 : i32
    %c0_i32_0 = arith.constant 0 : i32
    %c0_i32_1 = arith.constant 0 : i32
    return %arg0, %c0_i32, %c0_i32_0 : i32, i32, i32
  }
  func.func @transform_2(%arg0: i32, %arg1: i32) -> (i32, i32) {
    %c0_i32 = arith.constant 0 : i32
    %c0_i32_0 = arith.constant 0 : i32
    %c0_i32_1 = arith.constant 0 : i32
    return %c0_i32, %c0_i32_0 : i32, i32
  }
  func.func @transform_3(%arg0: i32, %arg1: i32) -> (i32, i32) {
    %c0_i32 = arith.constant 0 : i32
    %c0_i32_0 = arith.constant 0 : i32
    %c0_i32_1 = arith.constant 0 : i32
    return %c0_i32, %c0_i32_0 : i32, i32
  }
  func.func @transform_4(%arg0: i32, %arg1: i32) -> (i32, i32) {
    %c0_i32 = arith.constant 0 : i32
    %c0_i32_0 = arith.constant 0 : i32
    %c0_i32_1 = arith.constant 0 : i32
    return %c0_i32, %c0_i32_0 : i32, i32
  }
  func.func @transform_5(%arg0: i32, %arg1: i32) -> (i32, i32) {
    %c0_i32 = arith.constant 0 : i32
    %c0_i32_0 = arith.constant 0 : i32
    %c0_i32_1 = arith.constant 0 : i32
    return %c0_i32, %c0_i32_0 : i32, i32
  }
  func.func @transform_6(%arg0: i32, %arg1: i32) -> (i32, i32) {
    %c0_i32 = arith.constant 0 : i32
    %c0_i32_0 = arith.constant 0 : i32
    %c0_i32_1 = arith.constant 0 : i32
    return %c0_i32, %c0_i32_0 : i32, i32
  }
  func.func @transform_7(%arg0: i32, %arg1: i32) -> (i32, i32) {
    %c0_i32 = arith.constant 0 : i32
    %c0_i32_0 = arith.constant 0 : i32
    %c0_i32_1 = arith.constant 0 : i32
    return %c0_i32, %c0_i32_0 : i32, i32
  }
  func.func @transform_8(%arg0: i32, %arg1: i32) -> (i32, i32) {
    %c0_i32 = arith.constant 0 : i32
    %c0_i32_0 = arith.constant 0 : i32
    %c0_i32_1 = arith.constant 0 : i32
    return %c0_i32, %c0_i32_0 : i32, i32
  }
  func.func @transform_9(%arg0: i32, %arg1: i32) -> (i32, i32) {
    %c0_i32 = arith.constant 0 : i32
    %c0_i32_0 = arith.constant 0 : i32
    %c0_i32_1 = arith.constant 0 : i32
    return %c0_i32, %c0_i32_0 : i32, i32
  }
  func.func @transform_10(%arg0: i32, %arg1: i32) -> (i32, i32) {
    %c0_i32 = arith.constant 0 : i32
    %c0_i32_0 = arith.constant 0 : i32
    %c0_i32_1 = arith.constant 0 : i32
    return %c0_i32, %c0_i32_0 : i32, i32
  }
  func.func @transform_11(%arg0: i32, %arg1: i32) -> (i32, i32, i32) {
    %c0_i32 = arith.constant 0 : i32
    %c0_i32_0 = arith.constant 0 : i32
    %c0_i32_1 = arith.constant 0 : i32
    %c0_i32_2 = arith.constant 0 : i32
    return %c0_i32, %c0_i32_0, %c0_i32_1 : i32, i32, i32
  }
  func.func @transform_12(%arg0: i32, %arg1: i32) -> (i32, i32) {
    %c0_i32 = arith.constant 0 : i32
    %c0_i32_0 = arith.constant 0 : i32
    %c0_i32_1 = arith.constant 0 : i32
    return %c0_i32, %c0_i32_0 : i32, i32
  }
  func.func @transform_13(%arg0: i32, %arg1: i32) -> (i32, i32) {
    %c0_i32 = arith.constant 0 : i32
    %c0_i32_0 = arith.constant 0 : i32
    %c0_i32_1 = arith.constant 0 : i32
    return %c0_i32, %c0_i32_0 : i32, i32
  }
  func.func @transform_14(%arg0: i32, %arg1: i32) -> (i32, i32) {
    %c0_i32 = arith.constant 0 : i32
    %c0_i32_0 = arith.constant 0 : i32
    %c0_i32_1 = arith.constant 0 : i32
    return %c0_i32, %c0_i32_0 : i32, i32
  }
  func.func @transform_15(%arg0: i32, %arg1: i32) -> (i32, i32) {
    %c0_i32 = arith.constant 0 : i32
    %c0_i32_0 = arith.constant 0 : i32
    %c0_i32_1 = arith.constant 0 : i32
    return %c0_i32, %c0_i32_0 : i32, i32
  }
  func.func @transform_16(%arg0: i32, %arg1: i32) -> (i32, i32) {
    %c0_i32 = arith.constant 0 : i32
    %c0_i32_0 = arith.constant 0 : i32
    %c0_i32_1 = arith.constant 0 : i32
    return %c0_i32, %c0_i32_0 : i32, i32
  }
  func.func @transform_17(%arg0: i32, %arg1: i32) -> (i32, i32, i32) {
    %c0_i32 = arith.constant 0 : i32
    %c0_i32_0 = arith.constant 0 : i32
    %c0_i32_1 = arith.constant 0 : i32
    %c0_i32_2 = arith.constant 0 : i32
    return %c0_i32, %c0_i32_0, %c0_i32_1 : i32, i32, i32
  }
  func.func @transform_18(%arg0: i32, %arg1: i32) -> (i32, i32) {
    %c0_i32 = arith.constant 0 : i32
    %c0_i32_0 = arith.constant 0 : i32
    %c0_i32_1 = arith.constant 0 : i32
    return %c0_i32, %c0_i32_0 : i32, i32
  }
  func.func @transform_19(%arg0: i32, %arg1: i32) -> (i32, i32) {
    %c0_i32 = arith.constant 0 : i32
    %c0_i32_0 = arith.constant 0 : i32
    %c0_i32_1 = arith.constant 0 : i32
    return %c0_i32, %c0_i32_0 : i32, i32
  }
  func.func @transform_20(%arg0: i32, %arg1: i32) -> (i32, i32) {
    %c0_i32 = arith.constant 0 : i32
    %c0_i32_0 = arith.constant 0 : i32
    %c0_i32_1 = arith.constant 0 : i32
    return %c0_i32, %c0_i32_0 : i32, i32
  }
  func.func @transform_21(%arg0: i32, %arg1: i32) -> (i32, i32) {
    %c0_i32 = arith.constant 0 : i32
    %c0_i32_0 = arith.constant 0 : i32
    %c0_i32_1 = arith.constant 0 : i32
    return %c0_i32, %c0_i32_0 : i32, i32
  }
  func.func @transform_22(%arg0: i32, %arg1: i32) -> (i32, i32) {
    %c0_i32 = arith.constant 0 : i32
    %c0_i32_0 = arith.constant 0 : i32
    %c0_i32_1 = arith.constant 0 : i32
    return %c0_i32, %c0_i32_0 : i32, i32
  }
  func.func @transform_23(%arg0: i32, %arg1: i32) -> (i32, i32) {
    %c0_i32 = arith.constant 0 : i32
    %c0_i32_0 = arith.constant 0 : i32
    %c0_i32_1 = arith.constant 0 : i32
    return %c0_i32, %c0_i32_0 : i32, i32
  }
  func.func @transform_24(%arg0: i32, %arg1: i32) -> (i32, i32, i32) {
    %c0_i32 = arith.constant 0 : i32
    %c0_i32_0 = arith.constant 0 : i32
    return %arg0, %arg1, %c0_i32 : i32, i32, i32
  }
}

module attributes {stable_mosaic.version = 11 : i64} {
  func.func @kernel(%arg0: i32, %arg1: i32, %arg2: memref<1x8x32xf32, #tpu.memory_space<vmem>>, %arg3: memref<1x8x32xf32, #tpu.memory_space<vmem>>, %arg4: memref<1x32xf32, #tpu.memory_space<vmem>>, %arg5: memref<1x32xf32, #tpu.memory_space<vmem>>, %arg6: memref<1x32xf32, #tpu.memory_space<vmem>>, %arg7: memref<1x32xf32, #tpu.memory_space<vmem>>, %arg8: memref<32x64xbf16, #tpu.memory_space<vmem>>, %arg9: memref<32x64xbf16, #tpu.memory_space<vmem>>, %arg10: memref<32x32xbf16, #tpu.memory_space<vmem>>, %arg11: memref<32x32xbf16, #tpu.memory_space<vmem>>, %arg12: memref<1x32xf32, #tpu.memory_space<vmem>>, %arg13: memref<4x1x1xf32, #tpu.memory_space<vmem>>, %arg14: memref<32x64xbf16, #tpu.memory_space<vmem>>, %arg15: memref<32x64xbf16, #tpu.memory_space<vmem>>, %arg16: memref<32x32xbf16, #tpu.memory_space<vmem>>, %arg17: memref<32x32xbf16, #tpu.memory_space<vmem>>, %arg18: memref<1x32xf32, #tpu.memory_space<vmem>>, %arg19: memref<4x1x1xf32, #tpu.memory_space<vmem>>, %arg20: memref<32x64xbf16, #tpu.memory_space<vmem>>, %arg21: memref<1x64xf32, #tpu.memory_space<vmem>>, %arg22: memref<64x340xbf16, #tpu.memory_space<vmem>>, %arg23: memref<170x64xbf16, #tpu.memory_space<vmem>>, %arg24: memref<64x32xbf16, #tpu.memory_space<vmem>>, %arg25: memref<1x32xf32, #tpu.memory_space<vmem>>, %arg26: memref<1x8x32xf32, #tpu.memory_space<vmem>>) attributes {dimension_semantics = [#tpu.dimension_semantics<parallel>, #tpu.dimension_semantics<parallel>], iteration_bounds = array<i64: 2, 1>, scalar_prefetch = 0 : i64, scratch_operands = 0 : i64, tpu.core_type = #tpu.core_type<tc>, window_params = [{transform_indices = @transform_0, window_bounds = array<i64: 1, 8, 32>}, {transform_indices = @transform_1, window_bounds = array<i64: 1, 8, 32>}, {pipeline_mode = #tpu.pipeline_mode<synchronous>, transform_indices = @transform_2, window_bounds = array<i64: 1, 32>}, {pipeline_mode = #tpu.pipeline_mode<synchronous>, transform_indices = @transform_3, window_bounds = array<i64: 1, 32>}, {pipeline_mode = #tpu.pipeline_mode<synchronous>, transform_indices = @transform_4, window_bounds = array<i64: 1, 32>}, {pipeline_mode = #tpu.pipeline_mode<synchronous>, transform_indices = @transform_5, window_bounds = array<i64: 1, 32>}, {pipeline_mode = #tpu.pipeline_mode<synchronous>, transform_indices = @transform_6, window_bounds = array<i64: 32, 64>}, {pipeline_mode = #tpu.pipeline_mode<synchronous>, transform_indices = @transform_7, window_bounds = array<i64: 32, 64>}, {pipeline_mode = #tpu.pipeline_mode<synchronous>, transform_indices = @transform_8, window_bounds = array<i64: 32, 32>}, {pipeline_mode = #tpu.pipeline_mode<synchronous>, transform_indices = @transform_9, window_bounds = array<i64: 32, 32>}, {pipeline_mode = #tpu.pipeline_mode<synchronous>, transform_indices = @transform_10, window_bounds = array<i64: 1, 32>}, {pipeline_mode = #tpu.pipeline_mode<synchronous>, transform_indices = @transform_11, window_bounds = array<i64: 4, 1, 1>}, {pipeline_mode = #tpu.pipeline_mode<synchronous>, transform_indices = @transform_12, window_bounds = array<i64: 32, 64>}, {pipeline_mode = #tpu.pipeline_mode<synchronous>, transform_indices = @transform_13, window_bounds = array<i64: 32, 64>}, {pipeline_mode = #tpu.pipeline_mode<synchronous>, transform_indices = @transform_14, window_bounds = array<i64: 32, 32>}, {pipeline_mode = #tpu.pipeline_mode<synchronous>, transform_indices = @transform_15, window_bounds = array<i64: 32, 32>}, {pipeline_mode = #tpu.pipeline_mode<synchronous>, transform_indices = @transform_16, window_bounds = array<i64: 1, 32>}, {pipeline_mode = #tpu.pipeline_mode<synchronous>, transform_indices = @transform_17, window_bounds = array<i64: 4, 1, 1>}, {pipeline_mode = #tpu.pipeline_mode<synchronous>, transform_indices = @transform_18, window_bounds = array<i64: 32, 64>}, {pipeline_mode = #tpu.pipeline_mode<synchronous>, transform_indices = @transform_19, window_bounds = array<i64: 1, 64>}, {pipeline_mode = #tpu.pipeline_mode<synchronous>, transform_indices = @transform_20, window_bounds = array<i64: 64, 340>}, {pipeline_mode = #tpu.pipeline_mode<synchronous>, transform_indices = @transform_21, window_bounds = array<i64: 170, 64>}, {pipeline_mode = #tpu.pipeline_mode<synchronous>, transform_indices = @transform_22, window_bounds = array<i64: 64, 32>}, {pipeline_mode = #tpu.pipeline_mode<synchronous>, transform_indices = @transform_23, window_bounds = array<i64: 1, 32>}, {transform_indices = @transform_24, window_bounds = array<i64: 1, 8, 32>}]} {
    %c8_i32 = arith.constant 8 : i32
    %0 = arith.muli %arg1, %c8_i32 : i32
    %1 = tpu.assume_multiple %0, 8 : i32
    %c0 = arith.constant 0 : index
    %c0_0 = arith.constant 0 : index
    %c0_1 = arith.constant 0 : index
    %2 = vector.load %arg2[%c0, %c0_0, %c0_1] : memref<1x8x32xf32, #tpu.memory_space<vmem>>, vector<1x8x32xf32>
    %3 = vector.shape_cast %2 : vector<1x8x32xf32> to vector<8x32xf32>
    %c0_2 = arith.constant 0 : index
    %4 = arith.index_cast %1 : i32 to index
    %c0_3 = arith.constant 0 : index
    %5 = vector.load %arg2[%c0_2, %4, %c0_3] : memref<1x8x32xf32, #tpu.memory_space<vmem>>, vector<1x8x32xf32>
    %6 = vector.shape_cast %5 : vector<1x8x32xf32> to vector<8x32xf32>
    %c0_4 = arith.constant 0 : index
    %c0_5 = arith.constant 0 : index
    %c0_6 = arith.constant 0 : index
    %7 = vector.load %arg3[%c0_4, %c0_5, %c0_6] : memref<1x8x32xf32, #tpu.memory_space<vmem>>, vector<1x8x32xf32>
    %8 = vector.shape_cast %7 : vector<1x8x32xf32> to vector<8x32xf32>
    %c0_7 = arith.constant 0 : index
    %c0_8 = arith.constant 0 : index
    %9 = vector.load %arg4[%c0_7, %c0_8] : memref<1x32xf32, #tpu.memory_space<vmem>>, vector<1x32xf32>
    %10 = arith.mulf %6, %6 : vector<8x32xf32>
    %cst = arith.constant dense<0.000000e+00> : vector<8xf32>
    %11 = vector.multi_reduction <add>, %10, %cst [1] : vector<8x32xf32> to vector<8xf32>
    %12 = vector.shape_cast %11 : vector<8xf32> to vector<8x1xf32>
    %cst_9 = arith.constant 3.200000e+01 : f32
    %13 = vector.broadcast %cst_9 : f32 to vector<8x1xf32>
    %14 = arith.divf %12, %13 : vector<8x1xf32>
    %cst_10 = arith.constant 9.99999997E-7 : f32
    %15 = vector.broadcast %cst_10 : f32 to vector<8x1xf32>
    %16 = arith.addf %14, %15 : vector<8x1xf32>
    %17 = math.rsqrt %16 : vector<8x1xf32>
    %18 = vector.broadcast %17 : vector<8x1xf32> to vector<8x32xf32>
    %19 = arith.mulf %6, %18 : vector<8x32xf32>
    %20 = vector.broadcast %9 : vector<1x32xf32> to vector<8x32xf32>
    %21 = arith.mulf %19, %20 : vector<8x32xf32>
    %c0_11 = arith.constant 0 : index
    %c0_12 = arith.constant 0 : index
    %22 = vector.load %arg7[%c0_11, %c0_12] : memref<1x32xf32, #tpu.memory_space<vmem>>, vector<1x32xf32>
    %23 = arith.mulf %21, %21 : vector<8x32xf32>
    %cst_13 = arith.constant dense<0.000000e+00> : vector<8xf32>
    %24 = vector.multi_reduction <add>, %23, %cst_13 [1] : vector<8x32xf32> to vector<8xf32>
    %25 = vector.shape_cast %24 : vector<8xf32> to vector<8x1xf32>
    %cst_14 = arith.constant 3.200000e+01 : f32
    %26 = vector.broadcast %cst_14 : f32 to vector<8x1xf32>
    %27 = arith.divf %25, %26 : vector<8x1xf32>
    %cst_15 = arith.constant 9.99999997E-7 : f32
    %28 = vector.broadcast %cst_15 : f32 to vector<8x1xf32>
    %29 = arith.addf %27, %28 : vector<8x1xf32>
    %30 = math.rsqrt %29 : vector<8x1xf32>
    %31 = vector.broadcast %30 : vector<8x1xf32> to vector<8x32xf32>
    %32 = arith.mulf %21, %31 : vector<8x32xf32>
    %33 = vector.broadcast %22 : vector<1x32xf32> to vector<8x32xf32>
    %34 = arith.mulf %32, %33 : vector<8x32xf32>
    %c0_16 = arith.constant 0 : index
    %c0_17 = arith.constant 0 : index
    %35 = vector.load %arg4[%c0_16, %c0_17] : memref<1x32xf32, #tpu.memory_space<vmem>>, vector<1x32xf32>
    %36 = arith.mulf %3, %3 : vector<8x32xf32>
    %cst_18 = arith.constant dense<0.000000e+00> : vector<8xf32>
    %37 = vector.multi_reduction <add>, %36, %cst_18 [1] : vector<8x32xf32> to vector<8xf32>
    %38 = vector.shape_cast %37 : vector<8xf32> to vector<8x1xf32>
    %cst_19 = arith.constant 3.200000e+01 : f32
    %39 = vector.broadcast %cst_19 : f32 to vector<8x1xf32>
    %40 = arith.divf %38, %39 : vector<8x1xf32>
    %cst_20 = arith.constant 9.99999997E-7 : f32
    %41 = vector.broadcast %cst_20 : f32 to vector<8x1xf32>
    %42 = arith.addf %40, %41 : vector<8x1xf32>
    %43 = math.rsqrt %42 : vector<8x1xf32>
    %44 = vector.broadcast %43 : vector<8x1xf32> to vector<8x32xf32>
    %45 = arith.mulf %3, %44 : vector<8x32xf32>
    %46 = vector.broadcast %35 : vector<1x32xf32> to vector<8x32xf32>
    %47 = arith.mulf %45, %46 : vector<8x32xf32>
    %c0_21 = arith.constant 0 : index
    %c0_22 = arith.constant 0 : index
    %48 = vector.load %arg7[%c0_21, %c0_22] : memref<1x32xf32, #tpu.memory_space<vmem>>, vector<1x32xf32>
    %49 = arith.mulf %47, %47 : vector<8x32xf32>
    %cst_23 = arith.constant dense<0.000000e+00> : vector<8xf32>
    %50 = vector.multi_reduction <add>, %49, %cst_23 [1] : vector<8x32xf32> to vector<8xf32>
    %51 = vector.shape_cast %50 : vector<8xf32> to vector<8x1xf32>
    %cst_24 = arith.constant 3.200000e+01 : f32
    %52 = vector.broadcast %cst_24 : f32 to vector<8x1xf32>
    %53 = arith.divf %51, %52 : vector<8x1xf32>
    %cst_25 = arith.constant 9.99999997E-7 : f32
    %54 = vector.broadcast %cst_25 : f32 to vector<8x1xf32>
    %55 = arith.addf %53, %54 : vector<8x1xf32>
    %56 = math.rsqrt %55 : vector<8x1xf32>
    %57 = vector.broadcast %56 : vector<8x1xf32> to vector<8x32xf32>
    %58 = arith.mulf %47, %57 : vector<8x32xf32>
    %59 = vector.broadcast %48 : vector<1x32xf32> to vector<8x32xf32>
    %60 = arith.mulf %58, %59 : vector<8x32xf32>
    %c0_26 = arith.constant 0 : index
    %c0_27 = arith.constant 0 : index
    %61 = vector.load %arg8[%c0_26, %c0_27] : memref<32x64xbf16, #tpu.memory_space<vmem>>, vector<32x64xbf16>
    %c0_28 = arith.constant 0 : index
    %c0_29 = arith.constant 0 : index
    %62 = vector.load %arg9[%c0_28, %c0_29] : memref<32x64xbf16, #tpu.memory_space<vmem>>, vector<32x64xbf16>
    %c0_30 = arith.constant 0 : index
    %c0_31 = arith.constant 0 : index
    %63 = vector.load %arg10[%c0_30, %c0_31] : memref<32x32xbf16, #tpu.memory_space<vmem>>, vector<32x32xbf16>
    %c0_32 = arith.constant 0 : index
    %c0_33 = arith.constant 0 : index
    %64 = vector.load %arg11[%c0_32, %c0_33] : memref<32x32xbf16, #tpu.memory_space<vmem>>, vector<32x32xbf16>
    %c0_34 = arith.constant 0 : index
    %c0_35 = arith.constant 0 : index
    %65 = vector.load %arg12[%c0_34, %c0_35] : memref<1x32xf32, #tpu.memory_space<vmem>>, vector<1x32xf32>
    %c0_36 = arith.constant 0 : index
    %c0_37 = arith.constant 0 : index
    %c0_38 = arith.constant 0 : index
    %66 = vector.load %arg13[%c0_36, %c0_37, %c0_38] : memref<4x1x1xf32, #tpu.memory_space<vmem>>, vector<4x1x1xf32>
    %67 = arith.truncf %34 : vector<8x32xf32> to vector<8x32xbf16>
    %cst_39 = arith.constant dense<0.000000e+00> : vector<8x64xf32>
    %68 = tpu.matmul %67, %61, %cst_39 {dimension_numbers = #tpu.dot_dimension_numbers<[1], [0], [0], [1], [0, 0, 1, 1], [], []>} : vector<8x32xbf16>, vector<32x64xbf16>, vector<8x64xf32> -> vector<8x64xf32>
    %69 = arith.truncf %60 : vector<8x32xf32> to vector<8x32xbf16>
    %cst_40 = arith.constant dense<0.000000e+00> : vector<8x64xf32>
    %70 = tpu.matmul %69, %62, %cst_40 {dimension_numbers = #tpu.dot_dimension_numbers<[1], [0], [0], [1], [0, 0, 1, 1], [], []>} : vector<8x32xbf16>, vector<32x64xbf16>, vector<8x64xf32> -> vector<8x64xf32>
    %71 = arith.truncf %60 : vector<8x32xf32> to vector<8x32xbf16>
    %cst_41 = arith.constant dense<0.000000e+00> : vector<8x32xf32>
    %72 = tpu.matmul %71, %63, %cst_41 {dimension_numbers = #tpu.dot_dimension_numbers<[1], [0], [0], [1], [0, 0, 1, 1], [], []>} : vector<8x32xbf16>, vector<32x32xbf16>, vector<8x32xf32> -> vector<8x32xf32>
    %73 = vector.extract_strided_slice %68 {offsets = [0, 0], sizes = [8, 8], strides = [1, 1]} : vector<8x64xf32> to vector<8x8xf32>
    %74 = vector.extract_strided_slice %68 {offsets = [0, 8], sizes = [8, 8], strides = [1, 1]} : vector<8x64xf32> to vector<8x8xf32>
    %75 = vector.extract_strided_slice %68 {offsets = [0, 16], sizes = [8, 8], strides = [1, 1]} : vector<8x64xf32> to vector<8x8xf32>
    %76 = vector.extract_strided_slice %68 {offsets = [0, 24], sizes = [8, 8], strides = [1, 1]} : vector<8x64xf32> to vector<8x8xf32>
    %77 = vector.extract_strided_slice %68 {offsets = [0, 32], sizes = [8, 8], strides = [1, 1]} : vector<8x64xf32> to vector<8x8xf32>
    %78 = vector.extract_strided_slice %68 {offsets = [0, 40], sizes = [8, 8], strides = [1, 1]} : vector<8x64xf32> to vector<8x8xf32>
    %79 = vector.extract_strided_slice %68 {offsets = [0, 48], sizes = [8, 8], strides = [1, 1]} : vector<8x64xf32> to vector<8x8xf32>
    %80 = vector.extract_strided_slice %68 {offsets = [0, 56], sizes = [8, 8], strides = [1, 1]} : vector<8x64xf32> to vector<8x8xf32>
    %81 = vector.shape_cast %73 : vector<8x8xf32> to vector<1x8x8xf32>
    %82 = vector.shape_cast %74 : vector<8x8xf32> to vector<1x8x8xf32>
    %83 = vector.shape_cast %75 : vector<8x8xf32> to vector<1x8x8xf32>
    %84 = vector.shape_cast %76 : vector<8x8xf32> to vector<1x8x8xf32>
    %85 = vector.shape_cast %77 : vector<8x8xf32> to vector<1x8x8xf32>
    %86 = vector.shape_cast %78 : vector<8x8xf32> to vector<1x8x8xf32>
    %87 = vector.shape_cast %79 : vector<8x8xf32> to vector<1x8x8xf32>
    %88 = vector.shape_cast %80 : vector<8x8xf32> to vector<1x8x8xf32>
    %89 = tpu.concatenate %81, %82, %83, %84, %85, %86, %87, %88 in 0 : vector<1x8x8xf32>, vector<1x8x8xf32>, vector<1x8x8xf32>, vector<1x8x8xf32>, vector<1x8x8xf32>, vector<1x8x8xf32>, vector<1x8x8xf32>, vector<1x8x8xf32> -> vector<8x8x8xf32>
    %90 = vector.extract_strided_slice %70 {offsets = [0, 0], sizes = [8, 8], strides = [1, 1]} : vector<8x64xf32> to vector<8x8xf32>
    %91 = vector.extract_strided_slice %70 {offsets = [0, 8], sizes = [8, 8], strides = [1, 1]} : vector<8x64xf32> to vector<8x8xf32>
    %92 = vector.extract_strided_slice %70 {offsets = [0, 16], sizes = [8, 8], strides = [1, 1]} : vector<8x64xf32> to vector<8x8xf32>
    %93 = vector.extract_strided_slice %70 {offsets = [0, 24], sizes = [8, 8], strides = [1, 1]} : vector<8x64xf32> to vector<8x8xf32>
    %94 = vector.extract_strided_slice %70 {offsets = [0, 32], sizes = [8, 8], strides = [1, 1]} : vector<8x64xf32> to vector<8x8xf32>
    %95 = vector.extract_strided_slice %70 {offsets = [0, 40], sizes = [8, 8], strides = [1, 1]} : vector<8x64xf32> to vector<8x8xf32>
    %96 = vector.extract_strided_slice %70 {offsets = [0, 48], sizes = [8, 8], strides = [1, 1]} : vector<8x64xf32> to vector<8x8xf32>
    %97 = vector.extract_strided_slice %70 {offsets = [0, 56], sizes = [8, 8], strides = [1, 1]} : vector<8x64xf32> to vector<8x8xf32>
    %98 = vector.shape_cast %90 : vector<8x8xf32> to vector<1x8x8xf32>
    %99 = vector.shape_cast %91 : vector<8x8xf32> to vector<1x8x8xf32>
    %100 = vector.shape_cast %92 : vector<8x8xf32> to vector<1x8x8xf32>
    %101 = vector.shape_cast %93 : vector<8x8xf32> to vector<1x8x8xf32>
    %102 = vector.shape_cast %94 : vector<8x8xf32> to vector<1x8x8xf32>
    %103 = vector.shape_cast %95 : vector<8x8xf32> to vector<1x8x8xf32>
    %104 = vector.shape_cast %96 : vector<8x8xf32> to vector<1x8x8xf32>
    %105 = vector.shape_cast %97 : vector<8x8xf32> to vector<1x8x8xf32>
    %106 = tpu.concatenate %98, %99, %100, %101, %102, %103, %104, %105 in 0 : vector<1x8x8xf32>, vector<1x8x8xf32>, vector<1x8x8xf32>, vector<1x8x8xf32>, vector<1x8x8xf32>, vector<1x8x8xf32>, vector<1x8x8xf32>, vector<1x8x8xf32> -> vector<8x8x8xf32>
    %107 = vector.extract_strided_slice %72 {offsets = [0, 0], sizes = [8, 8], strides = [1, 1]} : vector<8x32xf32> to vector<8x8xf32>
    %108 = vector.extract_strided_slice %72 {offsets = [0, 8], sizes = [8, 8], strides = [1, 1]} : vector<8x32xf32> to vector<8x8xf32>
    %109 = vector.extract_strided_slice %72 {offsets = [0, 16], sizes = [8, 8], strides = [1, 1]} : vector<8x32xf32> to vector<8x8xf32>
    %110 = vector.extract_strided_slice %72 {offsets = [0, 24], sizes = [8, 8], strides = [1, 1]} : vector<8x32xf32> to vector<8x8xf32>
    %111 = vector.shape_cast %107 : vector<8x8xf32> to vector<1x8x8xf32>
    %112 = vector.shape_cast %108 : vector<8x8xf32> to vector<1x8x8xf32>
    %113 = vector.shape_cast %109 : vector<8x8xf32> to vector<1x8x8xf32>
    %114 = vector.shape_cast %110 : vector<8x8xf32> to vector<1x8x8xf32>
    %115 = tpu.concatenate %111, %112, %113, %114 in 0 : vector<1x8x8xf32>, vector<1x8x8xf32>, vector<1x8x8xf32>, vector<1x8x8xf32> -> vector<4x8x8xf32>
    %116 = arith.truncf %89 : vector<8x8x8xf32> to vector<8x8x8xbf16>
    %117 = arith.truncf %106 : vector<8x8x8xf32> to vector<8x8x8xbf16>
    %cst_42 = arith.constant dense<0.000000e+00> : vector<8x8x8xf32>
    %118 = tpu.matmul %116, %117, %cst_42 {dimension_numbers = #tpu.dot_dimension_numbers<[2], [2], [1], [1], [0, 0, 0, 1, 1, 1], [0], [0]>} : vector<8x8x8xbf16>, vector<8x8x8xbf16>, vector<8x8x8xf32> -> vector<8x8x8xf32>
    %cst_43 = arith.constant 0.353553385 : f32
    %119 = vector.broadcast %cst_43 : f32 to vector<8x8x8xf32>
    %120 = arith.mulf %118, %119 : vector<8x8x8xf32>
    %cst_44 = arith.constant dense<0xFF800000> : vector<8x8xf32>
    %121 = vector.multi_reduction <maximumf>, %120, %cst_44 [2] : vector<8x8x8xf32> to vector<8x8xf32>
    %122 = vector.shape_cast %121 : vector<8x8xf32> to vector<8x8x1xf32>
    %123 = vector.broadcast %122 : vector<8x8x1xf32> to vector<8x8x8xf32>
    %124 = arith.subf %120, %123 : vector<8x8x8xf32>
    %125 = math.exp %124 : vector<8x8x8xf32>
    %cst_45 = arith.constant dense<0.000000e+00> : vector<8x8xf32>
    %126 = vector.multi_reduction <add>, %125, %cst_45 [2] : vector<8x8x8xf32> to vector<8x8xf32>
    %127 = vector.shape_cast %126 : vector<8x8xf32> to vector<8x8x1xf32>
    %128 = tpu.reciprocal %127 {approx = true} : vector<8x8x1xf32> -> vector<8x8x1xf32>
    %129 = vector.broadcast %128 : vector<8x8x1xf32> to vector<8x8x8xf32>
    %130 = arith.mulf %125, %129 : vector<8x8x8xf32>
    %131 = vector.extract_strided_slice %130 {offsets = [0, 0, 0], sizes = [4, 8, 8], strides = [1, 1, 1]} : vector<8x8x8xf32> to vector<4x8x8xf32>
    %132 = vector.extract_strided_slice %130 {offsets = [4, 0, 0], sizes = [4, 8, 8], strides = [1, 1, 1]} : vector<8x8x8xf32> to vector<4x8x8xf32>
    %133 = vector.broadcast %66 : vector<4x1x1xf32> to vector<4x8x8xf32>
    %134 = arith.mulf %133, %132 : vector<4x8x8xf32>
    %135 = arith.subf %131, %134 : vector<4x8x8xf32>
    %cst_46 = arith.constant dense<0xFF800000> : vector<4x8xf32>
    %136 = vector.multi_reduction <maximumf>, %135, %cst_46 [2] : vector<4x8x8xf32> to vector<4x8xf32>
    %137 = vector.shape_cast %136 : vector<4x8xf32> to vector<4x8x1xf32>
    %138 = vector.broadcast %137 : vector<4x8x1xf32> to vector<4x8x8xf32>
    %139 = arith.subf %135, %138 : vector<4x8x8xf32>
    %140 = math.exp %139 : vector<4x8x8xf32>
    %cst_47 = arith.constant dense<0.000000e+00> : vector<4x8xf32>
    %141 = vector.multi_reduction <add>, %140, %cst_47 [2] : vector<4x8x8xf32> to vector<4x8xf32>
    %142 = vector.shape_cast %141 : vector<4x8xf32> to vector<4x8x1xf32>
    %143 = tpu.reciprocal %142 {approx = true} : vector<4x8x1xf32> -> vector<4x8x1xf32>
    %144 = vector.broadcast %143 : vector<4x8x1xf32> to vector<4x8x8xf32>
    %145 = arith.mulf %140, %144 : vector<4x8x8xf32>
    %146 = arith.truncf %145 : vector<4x8x8xf32> to vector<4x8x8xbf16>
    %147 = arith.truncf %115 : vector<4x8x8xf32> to vector<4x8x8xbf16>
    %cst_48 = arith.constant dense<0.000000e+00> : vector<4x8x8xf32>
    %148 = tpu.matmul %146, %147, %cst_48 {dimension_numbers = #tpu.dot_dimension_numbers<[2], [1], [1], [2], [0, 0, 0, 1, 1, 2], [0], [0]>} : vector<4x8x8xbf16>, vector<4x8x8xbf16>, vector<4x8x8xf32> -> vector<4x8x8xf32>
    %149 = vector.extract_strided_slice %148 {offsets = [0, 0, 0], sizes = [1, 8, 8], strides = [1, 1, 1]} : vector<4x8x8xf32> to vector<1x8x8xf32>
    %150 = vector.shape_cast %149 : vector<1x8x8xf32> to vector<8x8xf32>
    %151 = vector.extract_strided_slice %148 {offsets = [1, 0, 0], sizes = [1, 8, 8], strides = [1, 1, 1]} : vector<4x8x8xf32> to vector<1x8x8xf32>
    %152 = vector.shape_cast %151 : vector<1x8x8xf32> to vector<8x8xf32>
    %153 = vector.extract_strided_slice %148 {offsets = [2, 0, 0], sizes = [1, 8, 8], strides = [1, 1, 1]} : vector<4x8x8xf32> to vector<1x8x8xf32>
    %154 = vector.shape_cast %153 : vector<1x8x8xf32> to vector<8x8xf32>
    %155 = vector.extract_strided_slice %148 {offsets = [3, 0, 0], sizes = [1, 8, 8], strides = [1, 1, 1]} : vector<4x8x8xf32> to vector<1x8x8xf32>
    %156 = vector.shape_cast %155 : vector<1x8x8xf32> to vector<8x8xf32>
    %157 = tpu.concatenate %150, %152, %154, %156 in 1 : vector<8x8xf32>, vector<8x8xf32>, vector<8x8xf32>, vector<8x8xf32> -> vector<8x32xf32>
    %158 = arith.mulf %157, %157 : vector<8x32xf32>
    %cst_49 = arith.constant dense<0.000000e+00> : vector<8xf32>
    %159 = vector.multi_reduction <add>, %158, %cst_49 [1] : vector<8x32xf32> to vector<8xf32>
    %160 = vector.shape_cast %159 : vector<8xf32> to vector<8x1xf32>
    %cst_50 = arith.constant 3.200000e+01 : f32
    %161 = vector.broadcast %cst_50 : f32 to vector<8x1xf32>
    %162 = arith.divf %160, %161 : vector<8x1xf32>
    %cst_51 = arith.constant 9.99999997E-7 : f32
    %163 = vector.broadcast %cst_51 : f32 to vector<8x1xf32>
    %164 = arith.addf %162, %163 : vector<8x1xf32>
    %165 = math.rsqrt %164 : vector<8x1xf32>
    %166 = vector.broadcast %165 : vector<8x1xf32> to vector<8x32xf32>
    %167 = arith.mulf %157, %166 : vector<8x32xf32>
    %168 = vector.broadcast %65 : vector<1x32xf32> to vector<8x32xf32>
    %169 = arith.mulf %167, %168 : vector<8x32xf32>
    %170 = arith.truncf %169 : vector<8x32xf32> to vector<8x32xbf16>
    %cst_52 = arith.constant dense<0.000000e+00> : vector<8x32xf32>
    %171 = tpu.matmul %170, %64, %cst_52 {dimension_numbers = #tpu.dot_dimension_numbers<[1], [0], [0], [1], [0, 0, 1, 1], [], []>} : vector<8x32xbf16>, vector<32x32xbf16>, vector<8x32xf32> -> vector<8x32xf32>
    %172 = arith.addf %6, %21 : vector<8x32xf32>
    %173 = arith.addf %172, %171 : vector<8x32xf32>
    %c0_53 = arith.constant 0 : index
    %c0_54 = arith.constant 0 : index
    %174 = vector.load %arg5[%c0_53, %c0_54] : memref<1x32xf32, #tpu.memory_space<vmem>>, vector<1x32xf32>
    %175 = arith.mulf %173, %173 : vector<8x32xf32>
    %cst_55 = arith.constant dense<0.000000e+00> : vector<8xf32>
    %176 = vector.multi_reduction <add>, %175, %cst_55 [1] : vector<8x32xf32> to vector<8xf32>
    %177 = vector.shape_cast %176 : vector<8xf32> to vector<8x1xf32>
    %cst_56 = arith.constant 3.200000e+01 : f32
    %178 = vector.broadcast %cst_56 : f32 to vector<8x1xf32>
    %179 = arith.divf %177, %178 : vector<8x1xf32>
    %cst_57 = arith.constant 9.99999997E-7 : f32
    %180 = vector.broadcast %cst_57 : f32 to vector<8x1xf32>
    %181 = arith.addf %179, %180 : vector<8x1xf32>
    %182 = math.rsqrt %181 : vector<8x1xf32>
    %183 = vector.broadcast %182 : vector<8x1xf32> to vector<8x32xf32>
    %184 = arith.mulf %173, %183 : vector<8x32xf32>
    %185 = vector.broadcast %174 : vector<1x32xf32> to vector<8x32xf32>
    %186 = arith.mulf %184, %185 : vector<8x32xf32>
    %c0_58 = arith.constant 0 : index
    %c0_59 = arith.constant 0 : index
    %187 = vector.load %arg14[%c0_58, %c0_59] : memref<32x64xbf16, #tpu.memory_space<vmem>>, vector<32x64xbf16>
    %c0_60 = arith.constant 0 : index
    %c0_61 = arith.constant 0 : index
    %188 = vector.load %arg15[%c0_60, %c0_61] : memref<32x64xbf16, #tpu.memory_space<vmem>>, vector<32x64xbf16>
    %c0_62 = arith.constant 0 : index
    %c0_63 = arith.constant 0 : index
    %189 = vector.load %arg16[%c0_62, %c0_63] : memref<32x32xbf16, #tpu.memory_space<vmem>>, vector<32x32xbf16>
    %c0_64 = arith.constant 0 : index
    %c0_65 = arith.constant 0 : index
    %190 = vector.load %arg17[%c0_64, %c0_65] : memref<32x32xbf16, #tpu.memory_space<vmem>>, vector<32x32xbf16>
    %c0_66 = arith.constant 0 : index
    %c0_67 = arith.constant 0 : index
    %191 = vector.load %arg18[%c0_66, %c0_67] : memref<1x32xf32, #tpu.memory_space<vmem>>, vector<1x32xf32>
    %c0_68 = arith.constant 0 : index
    %c0_69 = arith.constant 0 : index
    %c0_70 = arith.constant 0 : index
    %192 = vector.load %arg19[%c0_68, %c0_69, %c0_70] : memref<4x1x1xf32, #tpu.memory_space<vmem>>, vector<4x1x1xf32>
    %193 = arith.truncf %186 : vector<8x32xf32> to vector<8x32xbf16>
    %cst_71 = arith.constant dense<0.000000e+00> : vector<8x64xf32>
    %194 = tpu.matmul %193, %187, %cst_71 {dimension_numbers = #tpu.dot_dimension_numbers<[1], [0], [0], [1], [0, 0, 1, 1], [], []>} : vector<8x32xbf16>, vector<32x64xbf16>, vector<8x64xf32> -> vector<8x64xf32>
    %195 = arith.truncf %8 : vector<8x32xf32> to vector<8x32xbf16>
    %cst_72 = arith.constant dense<0.000000e+00> : vector<8x64xf32>
    %196 = tpu.matmul %195, %188, %cst_72 {dimension_numbers = #tpu.dot_dimension_numbers<[1], [0], [0], [1], [0, 0, 1, 1], [], []>} : vector<8x32xbf16>, vector<32x64xbf16>, vector<8x64xf32> -> vector<8x64xf32>
    %197 = arith.truncf %8 : vector<8x32xf32> to vector<8x32xbf16>
    %cst_73 = arith.constant dense<0.000000e+00> : vector<8x32xf32>
    %198 = tpu.matmul %197, %189, %cst_73 {dimension_numbers = #tpu.dot_dimension_numbers<[1], [0], [0], [1], [0, 0, 1, 1], [], []>} : vector<8x32xbf16>, vector<32x32xbf16>, vector<8x32xf32> -> vector<8x32xf32>
    %199 = vector.extract_strided_slice %194 {offsets = [0, 0], sizes = [8, 8], strides = [1, 1]} : vector<8x64xf32> to vector<8x8xf32>
    %200 = vector.extract_strided_slice %194 {offsets = [0, 8], sizes = [8, 8], strides = [1, 1]} : vector<8x64xf32> to vector<8x8xf32>
    %201 = vector.extract_strided_slice %194 {offsets = [0, 16], sizes = [8, 8], strides = [1, 1]} : vector<8x64xf32> to vector<8x8xf32>
    %202 = vector.extract_strided_slice %194 {offsets = [0, 24], sizes = [8, 8], strides = [1, 1]} : vector<8x64xf32> to vector<8x8xf32>
    %203 = vector.extract_strided_slice %194 {offsets = [0, 32], sizes = [8, 8], strides = [1, 1]} : vector<8x64xf32> to vector<8x8xf32>
    %204 = vector.extract_strided_slice %194 {offsets = [0, 40], sizes = [8, 8], strides = [1, 1]} : vector<8x64xf32> to vector<8x8xf32>
    %205 = vector.extract_strided_slice %194 {offsets = [0, 48], sizes = [8, 8], strides = [1, 1]} : vector<8x64xf32> to vector<8x8xf32>
    %206 = vector.extract_strided_slice %194 {offsets = [0, 56], sizes = [8, 8], strides = [1, 1]} : vector<8x64xf32> to vector<8x8xf32>
    %207 = vector.shape_cast %199 : vector<8x8xf32> to vector<1x8x8xf32>
    %208 = vector.shape_cast %200 : vector<8x8xf32> to vector<1x8x8xf32>
    %209 = vector.shape_cast %201 : vector<8x8xf32> to vector<1x8x8xf32>
    %210 = vector.shape_cast %202 : vector<8x8xf32> to vector<1x8x8xf32>
    %211 = vector.shape_cast %203 : vector<8x8xf32> to vector<1x8x8xf32>
    %212 = vector.shape_cast %204 : vector<8x8xf32> to vector<1x8x8xf32>
    %213 = vector.shape_cast %205 : vector<8x8xf32> to vector<1x8x8xf32>
    %214 = vector.shape_cast %206 : vector<8x8xf32> to vector<1x8x8xf32>
    %215 = tpu.concatenate %207, %208, %209, %210, %211, %212, %213, %214 in 0 : vector<1x8x8xf32>, vector<1x8x8xf32>, vector<1x8x8xf32>, vector<1x8x8xf32>, vector<1x8x8xf32>, vector<1x8x8xf32>, vector<1x8x8xf32>, vector<1x8x8xf32> -> vector<8x8x8xf32>
    %216 = vector.extract_strided_slice %196 {offsets = [0, 0], sizes = [8, 8], strides = [1, 1]} : vector<8x64xf32> to vector<8x8xf32>
    %217 = vector.extract_strided_slice %196 {offsets = [0, 8], sizes = [8, 8], strides = [1, 1]} : vector<8x64xf32> to vector<8x8xf32>
    %218 = vector.extract_strided_slice %196 {offsets = [0, 16], sizes = [8, 8], strides = [1, 1]} : vector<8x64xf32> to vector<8x8xf32>
    %219 = vector.extract_strided_slice %196 {offsets = [0, 24], sizes = [8, 8], strides = [1, 1]} : vector<8x64xf32> to vector<8x8xf32>
    %220 = vector.extract_strided_slice %196 {offsets = [0, 32], sizes = [8, 8], strides = [1, 1]} : vector<8x64xf32> to vector<8x8xf32>
    %221 = vector.extract_strided_slice %196 {offsets = [0, 40], sizes = [8, 8], strides = [1, 1]} : vector<8x64xf32> to vector<8x8xf32>
    %222 = vector.extract_strided_slice %196 {offsets = [0, 48], sizes = [8, 8], strides = [1, 1]} : vector<8x64xf32> to vector<8x8xf32>
    %223 = vector.extract_strided_slice %196 {offsets = [0, 56], sizes = [8, 8], strides = [1, 1]} : vector<8x64xf32> to vector<8x8xf32>
    %224 = vector.shape_cast %216 : vector<8x8xf32> to vector<1x8x8xf32>
    %225 = vector.shape_cast %217 : vector<8x8xf32> to vector<1x8x8xf32>
    %226 = vector.shape_cast %218 : vector<8x8xf32> to vector<1x8x8xf32>
    %227 = vector.shape_cast %219 : vector<8x8xf32> to vector<1x8x8xf32>
    %228 = vector.shape_cast %220 : vector<8x8xf32> to vector<1x8x8xf32>
    %229 = vector.shape_cast %221 : vector<8x8xf32> to vector<1x8x8xf32>
    %230 = vector.shape_cast %222 : vector<8x8xf32> to vector<1x8x8xf32>
    %231 = vector.shape_cast %223 : vector<8x8xf32> to vector<1x8x8xf32>
    %232 = tpu.concatenate %224, %225, %226, %227, %228, %229, %230, %231 in 0 : vector<1x8x8xf32>, vector<1x8x8xf32>, vector<1x8x8xf32>, vector<1x8x8xf32>, vector<1x8x8xf32>, vector<1x8x8xf32>, vector<1x8x8xf32>, vector<1x8x8xf32> -> vector<8x8x8xf32>
    %233 = vector.extract_strided_slice %198 {offsets = [0, 0], sizes = [8, 8], strides = [1, 1]} : vector<8x32xf32> to vector<8x8xf32>
    %234 = vector.extract_strided_slice %198 {offsets = [0, 8], sizes = [8, 8], strides = [1, 1]} : vector<8x32xf32> to vector<8x8xf32>
    %235 = vector.extract_strided_slice %198 {offsets = [0, 16], sizes = [8, 8], strides = [1, 1]} : vector<8x32xf32> to vector<8x8xf32>
    %236 = vector.extract_strided_slice %198 {offsets = [0, 24], sizes = [8, 8], strides = [1, 1]} : vector<8x32xf32> to vector<8x8xf32>
    %237 = vector.shape_cast %233 : vector<8x8xf32> to vector<1x8x8xf32>
    %238 = vector.shape_cast %234 : vector<8x8xf32> to vector<1x8x8xf32>
    %239 = vector.shape_cast %235 : vector<8x8xf32> to vector<1x8x8xf32>
    %240 = vector.shape_cast %236 : vector<8x8xf32> to vector<1x8x8xf32>
    %241 = tpu.concatenate %237, %238, %239, %240 in 0 : vector<1x8x8xf32>, vector<1x8x8xf32>, vector<1x8x8xf32>, vector<1x8x8xf32> -> vector<4x8x8xf32>
    %242 = arith.truncf %215 : vector<8x8x8xf32> to vector<8x8x8xbf16>
    %243 = arith.truncf %232 : vector<8x8x8xf32> to vector<8x8x8xbf16>
    %cst_74 = arith.constant dense<0.000000e+00> : vector<8x8x8xf32>
    %244 = tpu.matmul %242, %243, %cst_74 {dimension_numbers = #tpu.dot_dimension_numbers<[2], [2], [1], [1], [0, 0, 0, 1, 1, 1], [0], [0]>} : vector<8x8x8xbf16>, vector<8x8x8xbf16>, vector<8x8x8xf32> -> vector<8x8x8xf32>
    %cst_75 = arith.constant 0.353553385 : f32
    %245 = vector.broadcast %cst_75 : f32 to vector<8x8x8xf32>
    %246 = arith.mulf %244, %245 : vector<8x8x8xf32>
    %cst_76 = arith.constant dense<0xFF800000> : vector<8x8xf32>
    %247 = vector.multi_reduction <maximumf>, %246, %cst_76 [2] : vector<8x8x8xf32> to vector<8x8xf32>
    %248 = vector.shape_cast %247 : vector<8x8xf32> to vector<8x8x1xf32>
    %249 = vector.broadcast %248 : vector<8x8x1xf32> to vector<8x8x8xf32>
    %250 = arith.subf %246, %249 : vector<8x8x8xf32>
    %251 = math.exp %250 : vector<8x8x8xf32>
    %cst_77 = arith.constant dense<0.000000e+00> : vector<8x8xf32>
    %252 = vector.multi_reduction <add>, %251, %cst_77 [2] : vector<8x8x8xf32> to vector<8x8xf32>
    %253 = vector.shape_cast %252 : vector<8x8xf32> to vector<8x8x1xf32>
    %254 = tpu.reciprocal %253 {approx = true} : vector<8x8x1xf32> -> vector<8x8x1xf32>
    %255 = vector.broadcast %254 : vector<8x8x1xf32> to vector<8x8x8xf32>
    %256 = arith.mulf %251, %255 : vector<8x8x8xf32>
    %257 = vector.extract_strided_slice %256 {offsets = [0, 0, 0], sizes = [4, 8, 8], strides = [1, 1, 1]} : vector<8x8x8xf32> to vector<4x8x8xf32>
    %258 = vector.extract_strided_slice %256 {offsets = [4, 0, 0], sizes = [4, 8, 8], strides = [1, 1, 1]} : vector<8x8x8xf32> to vector<4x8x8xf32>
    %259 = vector.broadcast %192 : vector<4x1x1xf32> to vector<4x8x8xf32>
    %260 = arith.mulf %259, %258 : vector<4x8x8xf32>
    %261 = arith.subf %257, %260 : vector<4x8x8xf32>
    %cst_78 = arith.constant dense<0xFF800000> : vector<4x8xf32>
    %262 = vector.multi_reduction <maximumf>, %261, %cst_78 [2] : vector<4x8x8xf32> to vector<4x8xf32>
    %263 = vector.shape_cast %262 : vector<4x8xf32> to vector<4x8x1xf32>
    %264 = vector.broadcast %263 : vector<4x8x1xf32> to vector<4x8x8xf32>
    %265 = arith.subf %261, %264 : vector<4x8x8xf32>
    %266 = math.exp %265 : vector<4x8x8xf32>
    %cst_79 = arith.constant dense<0.000000e+00> : vector<4x8xf32>
    %267 = vector.multi_reduction <add>, %266, %cst_79 [2] : vector<4x8x8xf32> to vector<4x8xf32>
    %268 = vector.shape_cast %267 : vector<4x8xf32> to vector<4x8x1xf32>
    %269 = tpu.reciprocal %268 {approx = true} : vector<4x8x1xf32> -> vector<4x8x1xf32>
    %270 = vector.broadcast %269 : vector<4x8x1xf32> to vector<4x8x8xf32>
    %271 = arith.mulf %266, %270 : vector<4x8x8xf32>
    %272 = arith.truncf %271 : vector<4x8x8xf32> to vector<4x8x8xbf16>
    %273 = arith.truncf %241 : vector<4x8x8xf32> to vector<4x8x8xbf16>
    %cst_80 = arith.constant dense<0.000000e+00> : vector<4x8x8xf32>
    %274 = tpu.matmul %272, %273, %cst_80 {dimension_numbers = #tpu.dot_dimension_numbers<[2], [1], [1], [2], [0, 0, 0, 1, 1, 2], [0], [0]>} : vector<4x8x8xbf16>, vector<4x8x8xbf16>, vector<4x8x8xf32> -> vector<4x8x8xf32>
    %275 = vector.extract_strided_slice %274 {offsets = [0, 0, 0], sizes = [1, 8, 8], strides = [1, 1, 1]} : vector<4x8x8xf32> to vector<1x8x8xf32>
    %276 = vector.shape_cast %275 : vector<1x8x8xf32> to vector<8x8xf32>
    %277 = vector.extract_strided_slice %274 {offsets = [1, 0, 0], sizes = [1, 8, 8], strides = [1, 1, 1]} : vector<4x8x8xf32> to vector<1x8x8xf32>
    %278 = vector.shape_cast %277 : vector<1x8x8xf32> to vector<8x8xf32>
    %279 = vector.extract_strided_slice %274 {offsets = [2, 0, 0], sizes = [1, 8, 8], strides = [1, 1, 1]} : vector<4x8x8xf32> to vector<1x8x8xf32>
    %280 = vector.shape_cast %279 : vector<1x8x8xf32> to vector<8x8xf32>
    %281 = vector.extract_strided_slice %274 {offsets = [3, 0, 0], sizes = [1, 8, 8], strides = [1, 1, 1]} : vector<4x8x8xf32> to vector<1x8x8xf32>
    %282 = vector.shape_cast %281 : vector<1x8x8xf32> to vector<8x8xf32>
    %283 = tpu.concatenate %276, %278, %280, %282 in 1 : vector<8x8xf32>, vector<8x8xf32>, vector<8x8xf32>, vector<8x8xf32> -> vector<8x32xf32>
    %284 = arith.mulf %283, %283 : vector<8x32xf32>
    %cst_81 = arith.constant dense<0.000000e+00> : vector<8xf32>
    %285 = vector.multi_reduction <add>, %284, %cst_81 [1] : vector<8x32xf32> to vector<8xf32>
    %286 = vector.shape_cast %285 : vector<8xf32> to vector<8x1xf32>
    %cst_82 = arith.constant 3.200000e+01 : f32
    %287 = vector.broadcast %cst_82 : f32 to vector<8x1xf32>
    %288 = arith.divf %286, %287 : vector<8x1xf32>
    %cst_83 = arith.constant 9.99999997E-7 : f32
    %289 = vector.broadcast %cst_83 : f32 to vector<8x1xf32>
    %290 = arith.addf %288, %289 : vector<8x1xf32>
    %291 = math.rsqrt %290 : vector<8x1xf32>
    %292 = vector.broadcast %291 : vector<8x1xf32> to vector<8x32xf32>
    %293 = arith.mulf %283, %292 : vector<8x32xf32>
    %294 = vector.broadcast %191 : vector<1x32xf32> to vector<8x32xf32>
    %295 = arith.mulf %293, %294 : vector<8x32xf32>
    %296 = arith.truncf %295 : vector<8x32xf32> to vector<8x32xbf16>
    %cst_84 = arith.constant dense<0.000000e+00> : vector<8x32xf32>
    %297 = tpu.matmul %296, %190, %cst_84 {dimension_numbers = #tpu.dot_dimension_numbers<[1], [0], [0], [1], [0, 0, 1, 1], [], []>} : vector<8x32xbf16>, vector<32x32xbf16>, vector<8x32xf32> -> vector<8x32xf32>
    %298 = arith.addf %173, %297 : vector<8x32xf32>
    %c0_85 = arith.constant 0 : index
    %c0_86 = arith.constant 0 : index
    %299 = vector.load %arg6[%c0_85, %c0_86] : memref<1x32xf32, #tpu.memory_space<vmem>>, vector<1x32xf32>
    %300 = arith.mulf %298, %298 : vector<8x32xf32>
    %cst_87 = arith.constant dense<0.000000e+00> : vector<8xf32>
    %301 = vector.multi_reduction <add>, %300, %cst_87 [1] : vector<8x32xf32> to vector<8xf32>
    %302 = vector.shape_cast %301 : vector<8xf32> to vector<8x1xf32>
    %cst_88 = arith.constant 3.200000e+01 : f32
    %303 = vector.broadcast %cst_88 : f32 to vector<8x1xf32>
    %304 = arith.divf %302, %303 : vector<8x1xf32>
    %cst_89 = arith.constant 9.99999997E-7 : f32
    %305 = vector.broadcast %cst_89 : f32 to vector<8x1xf32>
    %306 = arith.addf %304, %305 : vector<8x1xf32>
    %307 = math.rsqrt %306 : vector<8x1xf32>
    %308 = vector.broadcast %307 : vector<8x1xf32> to vector<8x32xf32>
    %309 = arith.mulf %298, %308 : vector<8x32xf32>
    %310 = vector.broadcast %299 : vector<1x32xf32> to vector<8x32xf32>
    %311 = arith.mulf %309, %310 : vector<8x32xf32>
    %c0_90 = arith.constant 0 : index
    %c0_91 = arith.constant 0 : index
    %312 = vector.load %arg20[%c0_90, %c0_91] : memref<32x64xbf16, #tpu.memory_space<vmem>>, vector<32x64xbf16>
    %313 = arith.truncf %311 : vector<8x32xf32> to vector<8x32xbf16>
    %cst_92 = arith.constant dense<0.000000e+00> : vector<8x64xf32>
    %314 = tpu.matmul %313, %312, %cst_92 {dimension_numbers = #tpu.dot_dimension_numbers<[1], [0], [0], [1], [0, 0, 1, 1], [], []>} : vector<8x32xbf16>, vector<32x64xbf16>, vector<8x64xf32> -> vector<8x64xf32>
    %c0_93 = arith.constant 0 : index
    %c0_94 = arith.constant 0 : index
    %315 = vector.load %arg21[%c0_93, %c0_94] : memref<1x64xf32, #tpu.memory_space<vmem>>, vector<1x64xf32>
    %316 = vector.broadcast %315 : vector<1x64xf32> to vector<8x64xf32>
    %317 = arith.addf %314, %316 : vector<8x64xf32>
    %c0_95 = arith.constant 0 : index
    %c0_96 = arith.constant 0 : index
    %318 = vector.load %arg22[%c0_95, %c0_96] : memref<64x340xbf16, #tpu.memory_space<vmem>>, vector<64x340xbf16>
    %319 = arith.truncf %317 : vector<8x64xf32> to vector<8x64xbf16>
    %cst_97 = arith.constant dense<0.000000e+00> : vector<8x340xf32>
    %320 = tpu.matmul %319, %318, %cst_97 {dimension_numbers = #tpu.dot_dimension_numbers<[1], [0], [0], [1], [0, 0, 1, 1], [], []>} : vector<8x64xbf16>, vector<64x340xbf16>, vector<8x340xf32> -> vector<8x340xf32>
    %321 = vector.extract_strided_slice %320 {offsets = [0, 0], sizes = [8, 170], strides = [1, 1]} : vector<8x340xf32> to vector<8x170xf32>
    %cst_98 = arith.constant 0.000000e+00 : f32
    %322 = vector.broadcast %cst_98 : f32 to vector<8x170xf32>
    %323 = arith.subf %322, %321 : vector<8x170xf32>
    %324 = math.exp %323 : vector<8x170xf32>
    %cst_99 = arith.constant 1.000000e+00 : f32
    %325 = vector.broadcast %cst_99 : f32 to vector<8x170xf32>
    %326 = arith.addf %325, %324 : vector<8x170xf32>
    %327 = tpu.reciprocal %326 {approx = true} : vector<8x170xf32> -> vector<8x170xf32>
    %328 = arith.mulf %321, %327 : vector<8x170xf32>
    %329 = vector.extract_strided_slice %320 {offsets = [0, 170], sizes = [8, 170], strides = [1, 1]} : vector<8x340xf32> to vector<8x170xf32>
    %330 = arith.mulf %328, %329 : vector<8x170xf32>
    %c0_100 = arith.constant 0 : index
    %c0_101 = arith.constant 0 : index
    %331 = vector.load %arg23[%c0_100, %c0_101] : memref<170x64xbf16, #tpu.memory_space<vmem>>, vector<170x64xbf16>
    %332 = arith.truncf %330 : vector<8x170xf32> to vector<8x170xbf16>
    %cst_102 = arith.constant dense<0.000000e+00> : vector<8x64xf32>
    %333 = tpu.matmul %332, %331, %cst_102 {dimension_numbers = #tpu.dot_dimension_numbers<[1], [0], [0], [1], [0, 0, 1, 1], [], []>} : vector<8x170xbf16>, vector<170x64xbf16>, vector<8x64xf32> -> vector<8x64xf32>
    %c0_103 = arith.constant 0 : index
    %c0_104 = arith.constant 0 : index
    %334 = vector.load %arg24[%c0_103, %c0_104] : memref<64x32xbf16, #tpu.memory_space<vmem>>, vector<64x32xbf16>
    %335 = arith.truncf %333 : vector<8x64xf32> to vector<8x64xbf16>
    %cst_105 = arith.constant dense<0.000000e+00> : vector<8x32xf32>
    %336 = tpu.matmul %335, %334, %cst_105 {dimension_numbers = #tpu.dot_dimension_numbers<[1], [0], [0], [1], [0, 0, 1, 1], [], []>} : vector<8x64xbf16>, vector<64x32xbf16>, vector<8x32xf32> -> vector<8x32xf32>
    %c0_106 = arith.constant 0 : index
    %c0_107 = arith.constant 0 : index
    %337 = vector.load %arg25[%c0_106, %c0_107] : memref<1x32xf32, #tpu.memory_space<vmem>>, vector<1x32xf32>
    %338 = vector.broadcast %337 : vector<1x32xf32> to vector<8x32xf32>
    %339 = arith.addf %336, %338 : vector<8x32xf32>
    %340 = arith.addf %298, %339 : vector<8x32xf32>
    %c0_108 = arith.constant 0 : index
    %c0_109 = arith.constant 0 : index
    %c0_110 = arith.constant 0 : index
    %341 = vector.load %arg26[%c0_108, %c0_109, %c0_110] : memref<1x8x32xf32, #tpu.memory_space<vmem>>, vector<1x8x32xf32>
    %342 = vector.shape_cast %341 : vector<1x8x32xf32> to vector<8x32xf32>
    %343 = vector.shape_cast %340 : vector<8x32xf32> to vector<1x8x32xf32>
    tpu.vector_store %arg26[%c0_108, %c0_109, %c0_110], %343 {strides = array<i32>} : memref<1x8x32xf32, #tpu.memory_space<vmem>>, vector<1x8x32xf32>,
    return
  }
  func.func @transform_0(%arg0: i32, %arg1: i32) -> (i32, i32, i32) {
    %c0_i32 = arith.constant 0 : i32
    %c0_i32_0 = arith.constant 0 : i32
    %c0_i32_1 = arith.constant 0 : i32
    return %arg0, %c0_i32, %c0_i32_0 : i32, i32, i32
  }
  func.func @transform_1(%arg0: i32, %arg1: i32) -> (i32, i32, i32) {
    %c0_i32 = arith.constant 0 : i32
    %c0_i32_0 = arith.constant 0 : i32
    %c0_i32_1 = arith.constant 0 : i32
    return %arg0, %c0_i32, %c0_i32_0 : i32, i32, i32
  }
  func.func @transform_2(%arg0: i32, %arg1: i32) -> (i32, i32) {
    %c0_i32 = arith.constant 0 : i32
    %c0_i32_0 = arith.constant 0 : i32
    %c0_i32_1 = arith.constant 0 : i32
    return %c0_i32, %c0_i32_0 : i32, i32
  }
  func.func @transform_3(%arg0: i32, %arg1: i32) -> (i32, i32) {
    %c0_i32 = arith.constant 0 : i32
    %c0_i32_0 = arith.constant 0 : i32
    %c0_i32_1 = arith.constant 0 : i32
    return %c0_i32, %c0_i32_0 : i32, i32
  }
  func.func @transform_4(%arg0: i32, %arg1: i32) -> (i32, i32) {
    %c0_i32 = arith.constant 0 : i32
    %c0_i32_0 = arith.constant 0 : i32
    %c0_i32_1 = arith.constant 0 : i32
    return %c0_i32, %c0_i32_0 : i32, i32
  }
  func.func @transform_5(%arg0: i32, %arg1: i32) -> (i32, i32) {
    %c0_i32 = arith.constant 0 : i32
    %c0_i32_0 = arith.constant 0 : i32
    %c0_i32_1 = arith.constant 0 : i32
    return %c0_i32, %c0_i32_0 : i32, i32
  }
  func.func @transform_6(%arg0: i32, %arg1: i32) -> (i32, i32) {
    %c0_i32 = arith.constant 0 : i32
    %c0_i32_0 = arith.constant 0 : i32
    %c0_i32_1 = arith.constant 0 : i32
    return %c0_i32, %c0_i32_0 : i32, i32
  }
  func.func @transform_7(%arg0: i32, %arg1: i32) -> (i32, i32) {
    %c0_i32 = arith.constant 0 : i32
    %c0_i32_0 = arith.constant 0 : i32
    %c0_i32_1 = arith.constant 0 : i32
    return %c0_i32, %c0_i32_0 : i32, i32
  }
  func.func @transform_8(%arg0: i32, %arg1: i32) -> (i32, i32) {
    %c0_i32 = arith.constant 0 : i32
    %c0_i32_0 = arith.constant 0 : i32
    %c0_i32_1 = arith.constant 0 : i32
    return %c0_i32, %c0_i32_0 : i32, i32
  }
  func.func @transform_9(%arg0: i32, %arg1: i32) -> (i32, i32) {
    %c0_i32 = arith.constant 0 : i32
    %c0_i32_0 = arith.constant 0 : i32
    %c0_i32_1 = arith.constant 0 : i32
    return %c0_i32, %c0_i32_0 : i32, i32
  }
  func.func @transform_10(%arg0: i32, %arg1: i32) -> (i32, i32) {
    %c0_i32 = arith.constant 0 : i32
    %c0_i32_0 = arith.constant 0 : i32
    %c0_i32_1 = arith.constant 0 : i32
    return %c0_i32, %c0_i32_0 : i32, i32
  }
  func.func @transform_11(%arg0: i32, %arg1: i32) -> (i32, i32, i32) {
    %c0_i32 = arith.constant 0 : i32
    %c0_i32_0 = arith.constant 0 : i32
    %c0_i32_1 = arith.constant 0 : i32
    %c0_i32_2 = arith.constant 0 : i32
    return %c0_i32, %c0_i32_0, %c0_i32_1 : i32, i32, i32
  }
  func.func @transform_12(%arg0: i32, %arg1: i32) -> (i32, i32) {
    %c0_i32 = arith.constant 0 : i32
    %c0_i32_0 = arith.constant 0 : i32
    %c0_i32_1 = arith.constant 0 : i32
    return %c0_i32, %c0_i32_0 : i32, i32
  }
  func.func @transform_13(%arg0: i32, %arg1: i32) -> (i32, i32) {
    %c0_i32 = arith.constant 0 : i32
    %c0_i32_0 = arith.constant 0 : i32
    %c0_i32_1 = arith.constant 0 : i32
    return %c0_i32, %c0_i32_0 : i32, i32
  }
  func.func @transform_14(%arg0: i32, %arg1: i32) -> (i32, i32) {
    %c0_i32 = arith.constant 0 : i32
    %c0_i32_0 = arith.constant 0 : i32
    %c0_i32_1 = arith.constant 0 : i32
    return %c0_i32, %c0_i32_0 : i32, i32
  }
  func.func @transform_15(%arg0: i32, %arg1: i32) -> (i32, i32) {
    %c0_i32 = arith.constant 0 : i32
    %c0_i32_0 = arith.constant 0 : i32
    %c0_i32_1 = arith.constant 0 : i32
    return %c0_i32, %c0_i32_0 : i32, i32
  }
  func.func @transform_16(%arg0: i32, %arg1: i32) -> (i32, i32) {
    %c0_i32 = arith.constant 0 : i32
    %c0_i32_0 = arith.constant 0 : i32
    %c0_i32_1 = arith.constant 0 : i32
    return %c0_i32, %c0_i32_0 : i32, i32
  }
  func.func @transform_17(%arg0: i32, %arg1: i32) -> (i32, i32, i32) {
    %c0_i32 = arith.constant 0 : i32
    %c0_i32_0 = arith.constant 0 : i32
    %c0_i32_1 = arith.constant 0 : i32
    %c0_i32_2 = arith.constant 0 : i32
    return %c0_i32, %c0_i32_0, %c0_i32_1 : i32, i32, i32
  }
  func.func @transform_18(%arg0: i32, %arg1: i32) -> (i32, i32) {
    %c0_i32 = arith.constant 0 : i32
    %c0_i32_0 = arith.constant 0 : i32
    %c0_i32_1 = arith.constant 0 : i32
    return %c0_i32, %c0_i32_0 : i32, i32
  }
  func.func @transform_19(%arg0: i32, %arg1: i32) -> (i32, i32) {
    %c0_i32 = arith.constant 0 : i32
    %c0_i32_0 = arith.constant 0 : i32
    %c0_i32_1 = arith.constant 0 : i32
    return %c0_i32, %c0_i32_0 : i32, i32
  }
  func.func @transform_20(%arg0: i32, %arg1: i32) -> (i32, i32) {
    %c0_i32 = arith.constant 0 : i32
    %c0_i32_0 = arith.constant 0 : i32
    %c0_i32_1 = arith.constant 0 : i32
    return %c0_i32, %c0_i32_0 : i32, i32
  }
  func.func @transform_21(%arg0: i32, %arg1: i32) -> (i32, i32) {
    %c0_i32 = arith.constant 0 : i32
    %c0_i32_0 = arith.constant 0 : i32
    %c0_i32_1 = arith.constant 0 : i32
    return %c0_i32, %c0_i32_0 : i32, i32
  }
  func.func @transform_22(%arg0: i32, %arg1: i32) -> (i32, i32) {
    %c0_i32 = arith.constant 0 : i32
    %c0_i32_0 = arith.constant 0 : i32
    %c0_i32_1 = arith.constant 0 : i32
    return %c0_i32, %c0_i32_0 : i32, i32
  }
  func.func @transform_23(%arg0: i32, %arg1: i32) -> (i32, i32) {
    %c0_i32 = arith.constant 0 : i32
    %c0_i32_0 = arith.constant 0 : i32
    %c0_i32_1 = arith.constant 0 : i32
    return %c0_i32, %c0_i32_0 : i32, i32
  }
  func.func @transform_24(%arg0: i32, %arg1: i32) -> (i32, i32, i32) {
    %c0_i32 = arith.constant 0 : i32
    %c0_i32_0 = arith.constant 0 : i32
    return %arg0, %arg1, %c0_i32 : i32, i32, i32
  }
}

</mosaic_0001>

<llo_original>
// kernel: decoder_forward.3
$region0: #{decoder_forward.3}
  #allocation0 [shape = 'u32[]', space=smem, size = 0x4, offset = 0x4, fixed_abs, tag = 'smem constant byte address 0x4 - core index']
  #allocation1 [shape = 'u32[144,128]{1,0:T(1,128)}', space=vmem, size = 0x12000, scoped, tag = 'internal scratch']
  %s0 = inlined_call_operand.vmem [shape: f32[2,8,32], index: 0, kind: input, shape index: {}]
  %s1 = inlined_call_operand.vmem [shape: f32[2,8,32], index: 1, kind: input, shape index: {}]
  %s2 = inlined_call_operand.vmem [shape: f32[1,32], index: 2, kind: input, shape index: {}]
  %s3 = inlined_call_operand.vmem [shape: f32[1,32], index: 3, kind: input, shape index: {}]
  %s4 = inlined_call_operand.vmem [shape: f32[1,32], index: 4, kind: input, shape index: {}]
  %s5 = inlined_call_operand.vmem [shape: f32[1,32], index: 5, kind: input, shape index: {}]
  %s6 = inlined_call_operand.vmem [shape: bf16[32,64], index: 6, kind: input, shape index: {}]
  %s7 = inlined_call_operand.vmem [shape: bf16[32,64], index: 7, kind: input, shape index: {}]
  %s8 = inlined_call_operand.vmem [shape: bf16[32,32], index: 8, kind: input, shape index: {}]
  %s9 = inlined_call_operand.vmem [shape: bf16[32,32], index: 9, kind: input, shape index: {}]
  %s10 = inlined_call_operand.vmem [shape: f32[1,32], index: 10, kind: input, shape index: {}]
  %s11 = inlined_call_operand.vmem [shape: f32[4,1,1], index: 11, kind: input, shape index: {}]
  %s12 = inlined_call_operand.vmem [shape: bf16[32,64], index: 12, kind: input, shape index: {}]
  %s13 = inlined_call_operand.vmem [shape: bf16[32,64], index: 13, kind: input, shape index: {}]
  %s14 = inlined_call_operand.vmem [shape: bf16[32,32], index: 14, kind: input, shape index: {}]
  %s15 = inlined_call_operand.vmem [shape: bf16[32,32], index: 15, kind: input, shape index: {}]
  %s16 = inlined_call_operand.vmem [shape: f32[1,32], index: 16, kind: input, shape index: {}]
  %s17 = inlined_call_operand.vmem [shape: f32[4,1,1], index: 17, kind: input, shape index: {}]
  %s18 = inlined_call_operand.vmem [shape: bf16[32,64], index: 18, kind: input, shape index: {}]
  %s19 = inlined_call_operand.vmem [shape: f32[1,64], index: 19, kind: input, shape index: {}]
  %s20 = inlined_call_operand.vmem [shape: bf16[64,340], index: 20, kind: input, shape index: {}]
  %s21 = inlined_call_operand.vmem [shape: bf16[170,64], index: 21, kind: input, shape index: {}]
  %s22 = inlined_call_operand.vmem [shape: bf16[64,32], index: 22, kind: input, shape index: {}]
  %s23 = inlined_call_operand.vmem [shape: f32[1,32], index: 23, kind: input, shape index: {}]
  %s24 = inlined_call_operand.hbm [shape: f32[2,8,32], index: 24, kind: output, shape index: {}]
  %s25 = sld [smem:[#allocation0]]
  $region129: #{decoder_forward.3} parent=0
    _
  %s27 = ssub.s32 1, %s25
  %s28 = scalar_select 0, %s27, %s25
  $region1: #{decoder_forward.3} parent=0
    #allocation2 [shape = 'u8[8192]{0}', space=vmem, size = 0x2000, scoped, tag = 'output window, operand 0']
    #allocation3 [shape = 's32[2]{0}', space=sflag, size = 0x8, scoped, tag = 'scoped memory for decoder_forward.3']
    %29 = vsyncpa [#allocation3], 0
    %s30 = scalar_lea.sflag [#allocation3], 1
    %31 = vsyncpa %s30, 0
    loop: start=0, step=1, limit=4
    $region2: #{decoder_forward.3} parent=1 // loop_pre_header
      _
    $region3: #{decoder_forward.3} parent=1 // loop_header
      %s33 = sphi 0, %s37
      %p34 = scmp.ge.s32.totalorder %s33, 4
      %s40 = sphi 0, %s52
      %s41 = sphi 0, %s48
      %s42 = sphi 0, %s40
      %s43 = sphi 0, %s41
      %s44 = sphi 0, %s42
      %s45 = sphi 0, %s43
      %s55 = sphi 0, %s57
      %s58 = sphi 0, %s55
      %s59 = sphi 0, %s58
      %s75 = sphi 0, %s59
      %s81 = sphi 0, %s83
      %s84 = sphi 0, %s81
      %s85 = sphi 0, %s84
      %s101 = sphi 0, %s85
      %s105 = sphi 0, %s105
      %s107 = sphi 0, %s105
      %s108 = sphi 0, %s107
      %s122 = sphi 0, %s108
      %s126 = sphi 0, %s126
      %s128 = sphi 0, %s126
      %s129 = sphi 0, %s128
      %s143 = sphi 0, %s129
      %s147 = sphi 0, %s147
      %s149 = sphi 0, %s147
      %s150 = sphi 0, %s149
      %s164 = sphi 0, %s150
      %s168 = sphi 0, %s168
      %s170 = sphi 0, %s168
      %s171 = sphi 0, %s170
      %s185 = sphi 0, %s171
      %s189 = sphi 0, %s189
      %s191 = sphi 0, %s189
      %s192 = sphi 0, %s191
      %s206 = sphi 0, %s192
      %s210 = sphi 0, %s210
      %s212 = sphi 0, %s210
      %s213 = sphi 0, %s212
      %s227 = sphi 0, %s213
      %s231 = sphi 0, %s231
      %s233 = sphi 0, %s231
      %s234 = sphi 0, %s233
      %s248 = sphi 0, %s234
      %s252 = sphi 0, %s252
      %s254 = sphi 0, %s252
      %s255 = sphi 0, %s254
      %s269 = sphi 0, %s255
      %s273 = sphi 0, %s273
      %s275 = sphi 0, %s273
      %s276 = sphi 0, %s275
      %s290 = sphi 0, %s276
      %s294 = sphi 0, %s294
      %s296 = sphi 0, %s294
      %s297 = sphi 0, %s296
      %s311 = sphi 0, %s297
      %s315 = sphi 0, %s315
      %s317 = sphi 0, %s315
      %s318 = sphi 0, %s317
      %s332 = sphi 0, %s318
      %s336 = sphi 0, %s336
      %s338 = sphi 0, %s336
      %s339 = sphi 0, %s338
      %s353 = sphi 0, %s339
      %s357 = sphi 0, %s357
      %s359 = sphi 0, %s357
      %s360 = sphi 0, %s359
      %s374 = sphi 0, %s360
      %s378 = sphi 0, %s378
      %s380 = sphi 0, %s378
      %s381 = sphi 0, %s380
      %s395 = sphi 0, %s381
      %s399 = sphi 0, %s399
      %s401 = sphi 0, %s399
      %s402 = sphi 0, %s401
      %s416 = sphi 0, %s402
      %s420 = sphi 0, %s420
      %s422 = sphi 0, %s420
      %s423 = sphi 0, %s422
      %s437 = sphi 0, %s423
      %s441 = sphi 0, %s441
      %s443 = sphi 0, %s441
      %s444 = sphi 0, %s443
      %s458 = sphi 0, %s444
      %s462 = sphi 0, %s462
      %s464 = sphi 0, %s462
      %s465 = sphi 0, %s464
      %s479 = sphi 0, %s465
      %s483 = sphi 0, %s483
      %s485 = sphi 0, %s483
      %s486 = sphi 0, %s485
      %s500 = sphi 0, %s486
      %s504 = sphi 0, %s504
      %s506 = sphi 0, %s504
      %s507 = sphi 0, %s506
      %s521 = sphi 0, %s507
      %s525 = sphi 0, %s525
      %s527 = sphi 0, %s525
      %s528 = sphi 0, %s527
      %s542 = sphi 0, %s528
      %s546 = sphi 0, %s546
      %s548 = sphi 0, %s546
      %s549 = sphi 0, %s548
      %s563 = sphi 0, %s549
      %s571 = sphi 0, %s573
      %s574 = sphi 0, %s571
      %s575 = sphi 0, %s574
      %s591 = sphi 0, %s575
    $region4: #{decoder_forward.3} parent=1 // loop_header_branch
      %36 = sbr.rel (%p34) target = $region8
    $region5: #{decoder_forward.3} parent=1 // loop_body
      %s38 = ssub.s32 %s33, 1
      %s39 = ssub.s32 %s33, 2
      %s46 = sadd.s32 1, %s41
      %p47 = scmp.ge.s32.totalorder %s46, 1
      %s48 = scalar_select %p47, 0, %s46
      %s49 = sadd.s32 1, %s40
      %s50 = scalar_select %p47, %s49, %s40
      %p51 = scmp.ge.s32.totalorder %s50, 2
      %s52 = scalar_select %p51, 0, %s50
      %s53 = ssub.s32 %s40, %s52
      %p54 = scmp.eq.s32.totalorder %s53, 0
      %s56 = sadd.s32 %s55, 1
      %s57 = scalar_select %p54, %s55, %s56
      %p60 = pneg %p54
      %p61 = scmp.eq.s32.totalorder %s33, 1
      %p62 = por %p60, %p61
      %p63 = scmp.ne.s32.totalorder %s55, %s58
      %p64 = scmp.eq.s32.totalorder %s33, 0
      %p65 = por %p63, %p64
      %p66 = scmp.ne.s32.totalorder %s55, %s58
      %p67 = scmp.eq.s32.totalorder %s38, 1
      %p68 = por %p66, %p67
      %p69 = scmp.ne.s32.totalorder %s58, %s59
      %p70 = scmp.eq.s32.totalorder %s38, 0
      %p71 = por %p69, %p70
      %p72 = scmp.ne.s32.totalorder %s58, %s59
      %p73 = scmp.eq.s32.totalorder %s39, 1
      %p74 = por %p72, %p73
      %p76 = scmp.ne.s32.totalorder %s59, %s75
      %p77 = scmp.eq.s32.totalorder %s39, 0
      %p78 = por %p76, %p77
      %s79 = ssub.s32 %s40, %s52
      %p80 = scmp.eq.s32.totalorder %s79, 0
      %s82 = sadd.s32 %s81, 1
      %s83 = scalar_select %p80, %s81, %s82
      %p86 = pneg %p80
      %p87 = scmp.eq.s32.totalorder %s33, 1
      %p88 = por %p86, %p87
      %p89 = scmp.ne.s32.totalorder %s81, %s84
      %p90 = scmp.eq.s32.totalorder %s33, 0
      %p91 = por %p89, %p90
      %p92 = scmp.ne.s32.totalorder %s81, %s84
      %p93 = scmp.eq.s32.totalorder %s38, 1
      %p94 = por %p92, %p93
      %p95 = scmp.ne.s32.totalorder %s84, %s85
      %p96 = scmp.eq.s32.totalorder %s38, 0
      %p97 = por %p95, %p96
      %p98 = scmp.ne.s32.totalorder %s84, %s85
      %p99 = scmp.eq.s32.totalorder %s39, 1
      %p100 = por %p98, %p99
      %p102 = scmp.ne.s32.totalorder %s85, %s101
      %p103 = scmp.eq.s32.totalorder %s39, 0
      %p104 = por %p102, %p103
      %s106 = sadd.s32 %s105, 1
      %p109 = scmp.eq.s32.totalorder %s33, 1
      %p110 = scmp.ne.s32.totalorder %s105, %s107
      %p111 = scmp.eq.s32.totalorder %s33, 0
      %p112 = por %p110, %p111
      %p113 = scmp.ne.s32.totalorder %s105, %s107
      %p114 = scmp.eq.s32.totalorder %s38, 1
      %p115 = por %p113, %p114
      %p116 = scmp.ne.s32.totalorder %s107, %s108
      %p117 = scmp.eq.s32.totalorder %s38, 0
      %p118 = por %p116, %p117
      %p119 = scmp.ne.s32.totalorder %s107, %s108
      %p120 = scmp.eq.s32.totalorder %s39, 1
      %p121 = por %p119, %p120
      %p123 = scmp.ne.s32.totalorder %s108, %s122
      %p124 = scmp.eq.s32.totalorder %s39, 0
      %p125 = por %p123, %p124
      %s127 = sadd.s32 %s126, 1
      %p130 = scmp.eq.s32.totalorder %s33, 1
      %p131 = scmp.ne.s32.totalorder %s126, %s128
      %p132 = scmp.eq.s32.totalorder %s33, 0
      %p133 = por %p131, %p132
      %p134 = scmp.ne.s32.totalorder %s126, %s128
      %p135 = scmp.eq.s32.totalorder %s38, 1
      %p136 = por %p134, %p135
      %p137 = scmp.ne.s32.totalorder %s128, %s129
      %p138 = scmp.eq.s32.totalorder %s38, 0
      %p139 = por %p137, %p138
      %p140 = scmp.ne.s32.totalorder %s128, %s129
      %p141 = scmp.eq.s32.totalorder %s39, 1
      %p142 = por %p140, %p141
      %p144 = scmp.ne.s32.totalorder %s129, %s143
      %p145 = scmp.eq.s32.totalorder %s39, 0
      %p146 = por %p144, %p145
      %s148 = sadd.s32 %s147, 1
      %p151 = scmp.eq.s32.totalorder %s33, 1
      %p152 = scmp.ne.s32.totalorder %s147, %s149
      %p153 = scmp.eq.s32.totalorder %s33, 0
      %p154 = por %p152, %p153
      %p155 = scmp.ne.s32.totalorder %s147, %s149
      %p156 = scmp.eq.s32.totalorder %s38, 1
      %p157 = por %p155, %p156
      %p158 = scmp.ne.s32.totalorder %s149, %s150
      %p159 = scmp.eq.s32.totalorder %s38, 0
      %p160 = por %p158, %p159
      %p161 = scmp.ne.s32.totalorder %s149, %s150
      %p162 = scmp.eq.s32.totalorder %s39, 1
      %p163 = por %p161, %p162
      %p165 = scmp.ne.s32.totalorder %s150, %s164
      %p166 = scmp.eq.s32.totalorder %s39, 0
      %p167 = por %p165, %p166
      %s169 = sadd.s32 %s168, 1
      %p172 = scmp.eq.s32.totalorder %s33, 1
      %p173 = scmp.ne.s32.totalorder %s168, %s170
      %p174 = scmp.eq.s32.totalorder %s33, 0
      %p175 = por %p173, %p174
      %p176 = scmp.ne.s32.totalorder %s168, %s170
      %p177 = scmp.eq.s32.totalorder %s38, 1
      %p178 = por %p176, %p177
      %p179 = scmp.ne.s32.totalorder %s170, %s171
      %p180 = scmp.eq.s32.totalorder %s38, 0
      %p181 = por %p179, %p180
      %p182 = scmp.ne.s32.totalorder %s170, %s171
      %p183 = scmp.eq.s32.totalorder %s39, 1
      %p184 = por %p182, %p183
      %p186 = scmp.ne.s32.totalorder %s171, %s185
      %p187 = scmp.eq.s32.totalorder %s39, 0
      %p188 = por %p186, %p187
      %s190 = sadd.s32 %s189, 1
      %p193 = scmp.eq.s32.totalorder %s33, 1
      %p194 = scmp.ne.s32.totalorder %s189, %s191
      %p195 = scmp.eq.s32.totalorder %s33, 0
      %p196 = por %p194, %p195
      %p197 = scmp.ne.s32.totalorder %s189, %s191
      %p198 = scmp.eq.s32.totalorder %s38, 1
      %p199 = por %p197, %p198
      %p200 = scmp.ne.s32.totalorder %s191, %s192
      %p201 = scmp.eq.s32.totalorder %s38, 0
      %p202 = por %p200, %p201
      %p203 = scmp.ne.s32.totalorder %s191, %s192
      %p204 = scmp.eq.s32.totalorder %s39, 1
      %p205 = por %p203, %p204
      %p207 = scmp.ne.s32.totalorder %s192, %s206
      %p208 = scmp.eq.s32.totalorder %s39, 0
      %p209 = por %p207, %p208
      %s211 = sadd.s32 %s210, 1
      %p214 = scmp.eq.s32.totalorder %s33, 1
      %p215 = scmp.ne.s32.totalorder %s210, %s212
      %p216 = scmp.eq.s32.totalorder %s33, 0
      %p217 = por %p215, %p216
      %p218 = scmp.ne.s32.totalorder %s210, %s212
      %p219 = scmp.eq.s32.totalorder %s38, 1
      %p220 = por %p218, %p219
      %p221 = scmp.ne.s32.totalorder %s212, %s213
      %p222 = scmp.eq.s32.totalorder %s38, 0
      %p223 = por %p221, %p222
      %p224 = scmp.ne.s32.totalorder %s212, %s213
      %p225 = scmp.eq.s32.totalorder %s39, 1
      %p226 = por %p224, %p225
      %p228 = scmp.ne.s32.totalorder %s213, %s227
      %p229 = scmp.eq.s32.totalorder %s39, 0
      %p230 = por %p228, %p229
      %s232 = sadd.s32 %s231, 1
      %p235 = scmp.eq.s32.totalorder %s33, 1
      %p236 = scmp.ne.s32.totalorder %s231, %s233
      %p237 = scmp.eq.s32.totalorder %s33, 0
      %p238 = por %p236, %p237
      %p239 = scmp.ne.s32.totalorder %s231, %s233
      %p240 = scmp.eq.s32.totalorder %s38, 1
      %p241 = por %p239, %p240
      %p242 = scmp.ne.s32.totalorder %s233, %s234
      %p243 = scmp.eq.s32.totalorder %s38, 0
      %p244 = por %p242, %p243
      %p245 = scmp.ne.s32.totalorder %s233, %s234
      %p246 = scmp.eq.s32.totalorder %s39, 1
      %p247 = por %p245, %p246
      %p249 = scmp.ne.s32.totalorder %s234, %s248
      %p250 = scmp.eq.s32.totalorder %s39, 0
      %p251 = por %p249, %p250
      %s253 = sadd.s32 %s252, 1
      %p256 = scmp.eq.s32.totalorder %s33, 1
      %p257 = scmp.ne.s32.totalorder %s252, %s254
      %p258 = scmp.eq.s32.totalorder %s33, 0
      %p259 = por %p257, %p258
      %p260 = scmp.ne.s32.totalorder %s252, %s254
      %p261 = scmp.eq.s32.totalorder %s38, 1
      %p262 = por %p260, %p261
      %p263 = scmp.ne.s32.totalorder %s254, %s255
      %p264 = scmp.eq.s32.totalorder %s38, 0
      %p265 = por %p263, %p264
      %p266 = scmp.ne.s32.totalorder %s254, %s255
      %p267 = scmp.eq.s32.totalorder %s39, 1
      %p268 = por %p266, %p267
      %p270 = scmp.ne.s32.totalorder %s255, %s269
      %p271 = scmp.eq.s32.totalorder %s39, 0
      %p272 = por %p270, %p271
      %s274 = sadd.s32 %s273, 1
      %p277 = scmp.eq.s32.totalorder %s33, 1
      %p278 = scmp.ne.s32.totalorder %s273, %s275
      %p279 = scmp.eq.s32.totalorder %s33, 0
      %p280 = por %p278, %p279
      %p281 = scmp.ne.s32.totalorder %s273, %s275
      %p282 = scmp.eq.s32.totalorder %s38, 1
      %p283 = por %p281, %p282
      %p284 = scmp.ne.s32.totalorder %s275, %s276
      %p285 = scmp.eq.s32.totalorder %s38, 0
      %p286 = por %p284, %p285
      %p287 = scmp.ne.s32.totalorder %s275, %s276
      %p288 = scmp.eq.s32.totalorder %s39, 1
      %p289 = por %p287, %p288
      %p291 = scmp.ne.s32.totalorder %s276, %s290
      %p292 = scmp.eq.s32.totalorder %s39, 0
      %p293 = por %p291, %p292
      %s295 = sadd.s32 %s294, 1
      %p298 = scmp.eq.s32.totalorder %s33, 1
      %p299 = scmp.ne.s32.totalorder %s294, %s296
      %p300 = scmp.eq.s32.totalorder %s33, 0
      %p301 = por %p299, %p300
      %p302 = scmp.ne.s32.totalorder %s294, %s296
      %p303 = scmp.eq.s32.totalorder %s38, 1
      %p304 = por %p302, %p303
      %p305 = scmp.ne.s32.totalorder %s296, %s297
      %p306 = scmp.eq.s32.totalorder %s38, 0
      %p307 = por %p305, %p306
      %p308 = scmp.ne.s32.totalorder %s296, %s297
      %p309 = scmp.eq.s32.totalorder %s39, 1
      %p310 = por %p308, %p309
      %p312 = scmp.ne.s32.totalorder %s297, %s311
      %p313 = scmp.eq.s32.totalorder %s39, 0
      %p314 = por %p312, %p313
      %s316 = sadd.s32 %s315, 1
      %p319 = scmp.eq.s32.totalorder %s33, 1
      %p320 = scmp.ne.s32.totalorder %s315, %s317
      %p321 = scmp.eq.s32.totalorder %s33, 0
      %p322 = por %p320, %p321
      %p323 = scmp.ne.s32.totalorder %s315, %s317
      %p324 = scmp.eq.s32.totalorder %s38, 1
      %p325 = por %p323, %p324
      %p326 = scmp.ne.s32.totalorder %s317, %s318
      %p327 = scmp.eq.s32.totalorder %s38, 0
      %p328 = por %p326, %p327
      %p329 = scmp.ne.s32.totalorder %s317, %s318
      %p330 = scmp.eq.s32.totalorder %s39, 1
      %p331 = por %p329, %p330
      %p333 = scmp.ne.s32.totalorder %s318, %s332
      %p334 = scmp.eq.s32.totalorder %s39, 0
      %p335 = por %p333, %p334
      %s337 = sadd.s32 %s336, 1
      %p340 = scmp.eq.s32.totalorder %s33, 1
      %p341 = scmp.ne.s32.totalorder %s336, %s338
      %p342 = scmp.eq.s32.totalorder %s33, 0
      %p343 = por %p341, %p342
      %p344 = scmp.ne.s32.totalorder %s336, %s338
      %p345 = scmp.eq.s32.totalorder %s38, 1
      %p346 = por %p344, %p345
      %p347 = scmp.ne.s32.totalorder %s338, %s339
      %p348 = scmp.eq.s32.totalorder %s38, 0
      %p349 = por %p347, %p348
      %p350 = scmp.ne.s32.totalorder %s338, %s339
      %p351 = scmp.eq.s32.totalorder %s39, 1
      %p352 = por %p350, %p351
      %p354 = scmp.ne.s32.totalorder %s339, %s353
      %p355 = scmp.eq.s32.totalorder %s39, 0
      %p356 = por %p354, %p355
      %s358 = sadd.s32 %s357, 1
      %p361 = scmp.eq.s32.totalorder %s33, 1
      %p362 = scmp.ne.s32.totalorder %s357, %s359
      %p363 = scmp.eq.s32.totalorder %s33, 0
      %p364 = por %p362, %p363
      %p365 = scmp.ne.s32.totalorder %s357, %s359
      %p366 = scmp.eq.s32.totalorder %s38, 1
      %p367 = por %p365, %p366
      %p368 = scmp.ne.s32.totalorder %s359, %s360
      %p369 = scmp.eq.s32.totalorder %s38, 0
      %p370 = por %p368, %p369
      %p371 = scmp.ne.s32.totalorder %s359, %s360
      %p372 = scmp.eq.s32.totalorder %s39, 1
      %p373 = por %p371, %p372
      %p375 = scmp.ne.s32.totalorder %s360, %s374
      %p376 = scmp.eq.s32.totalorder %s39, 0
      %p377 = por %p375, %p376
      %s379 = sadd.s32 %s378, 1
      %p382 = scmp.eq.s32.totalorder %s33, 1
      %p383 = scmp.ne.s32.totalorder %s378, %s380
      %p384 = scmp.eq.s32.totalorder %s33, 0
      %p385 = por %p383, %p384
      %p386 = scmp.ne.s32.totalorder %s378, %s380
      %p387 = scmp.eq.s32.totalorder %s38, 1
      %p388 = por %p386, %p387
      %p389 = scmp.ne.s32.totalorder %s380, %s381
      %p390 = scmp.eq.s32.totalorder %s38, 0
      %p391 = por %p389, %p390
      %p392 = scmp.ne.s32.totalorder %s380, %s381
      %p393 = scmp.eq.s32.totalorder %s39, 1
      %p394 = por %p392, %p393
      %p396 = scmp.ne.s32.totalorder %s381, %s395
      %p397 = scmp.eq.s32.totalorder %s39, 0
      %p398 = por %p396, %p397
      %s400 = sadd.s32 %s399, 1
      %p403 = scmp.eq.s32.totalorder %s33, 1
      %p404 = scmp.ne.s32.totalorder %s399, %s401
      %p405 = scmp.eq.s32.totalorder %s33, 0
      %p406 = por %p404, %p405
      %p407 = scmp.ne.s32.totalorder %s399, %s401
      %p408 = scmp.eq.s32.totalorder %s38, 1
      %p409 = por %p407, %p408
      %p410 = scmp.ne.s32.totalorder %s401, %s402
      %p411 = scmp.eq.s32.totalorder %s38, 0
      %p412 = por %p410, %p411
      %p413 = scmp.ne.s32.totalorder %s401, %s402
      %p414 = scmp.eq.s32.totalorder %s39, 1
      %p415 = por %p413, %p414
      %p417 = scmp.ne.s32.totalorder %s402, %s416
      %p418 = scmp.eq.s32.totalorder %s39, 0
      %p419 = por %p417, %p418
      %s421 = sadd.s32 %s420, 1
      %p424 = scmp.eq.s32.totalorder %s33, 1
      %p425 = scmp.ne.s32.totalorder %s420, %s422
      %p426 = scmp.eq.s32.totalorder %s33, 0
      %p427 = por %p425, %p426
      %p428 = scmp.ne.s32.totalorder %s420, %s422
      %p429 = scmp.eq.s32.totalorder %s38, 1
      %p430 = por %p428, %p429
      %p431 = scmp.ne.s32.totalorder %s422, %s423
      %p432 = scmp.eq.s32.totalorder %s38, 0
      %p433 = por %p431, %p432
      %p434 = scmp.ne.s32.totalorder %s422, %s423
      %p435 = scmp.eq.s32.totalorder %s39, 1
      %p436 = por %p434, %p435
      %p438 = scmp.ne.s32.totalorder %s423, %s437
      %p439 = scmp.eq.s32.totalorder %s39, 0
      %p440 = por %p438, %p439
      %s442 = sadd.s32 %s441, 1
      %p445 = scmp.eq.s32.totalorder %s33, 1
      %p446 = scmp.ne.s32.totalorder %s441, %s443
      %p447 = scmp.eq.s32.totalorder %s33, 0
      %p448 = por %p446, %p447
      %p449 = scmp.ne.s32.totalorder %s441, %s443
      %p450 = scmp.eq.s32.totalorder %s38, 1
      %p451 = por %p449, %p450
      %p452 = scmp.ne.s32.totalorder %s443, %s444
      %p453 = scmp.eq.s32.totalorder %s38, 0
      %p454 = por %p452, %p453
      %p455 = scmp.ne.s32.totalorder %s443, %s444
      %p456 = scmp.eq.s32.totalorder %s39, 1
      %p457 = por %p455, %p456
      %p459 = scmp.ne.s32.totalorder %s444, %s458
      %p460 = scmp.eq.s32.totalorder %s39, 0
      %p461 = por %p459, %p460
      %s463 = sadd.s32 %s462, 1
      %p466 = scmp.eq.s32.totalorder %s33, 1
      %p467 = scmp.ne.s32.totalorder %s462, %s464
      %p468 = scmp.eq.s32.totalorder %s33, 0
      %p469 = por %p467, %p468
      %p470 = scmp.ne.s32.totalorder %s462, %s464
      %p471 = scmp.eq.s32.totalorder %s38, 1
      %p472 = por %p470, %p471
      %p473 = scmp.ne.s32.totalorder %s464, %s465
      %p474 = scmp.eq.s32.totalorder %s38, 0
      %p475 = por %p473, %p474
      %p476 = scmp.ne.s32.totalorder %s464, %s465
      %p477 = scmp.eq.s32.totalorder %s39, 1
      %p478 = por %p476, %p477
      %p480 = scmp.ne.s32.totalorder %s465, %s479
      %p481 = scmp.eq.s32.totalorder %s39, 0
      %p482 = por %p480, %p481
      %s484 = sadd.s32 %s483, 1
      %p487 = scmp.eq.s32.totalorder %s33, 1
      %p488 = scmp.ne.s32.totalorder %s483, %s485
      %p489 = scmp.eq.s32.totalorder %s33, 0
      %p490 = por %p488, %p489
      %p491 = scmp.ne.s32.totalorder %s483, %s485
      %p492 = scmp.eq.s32.totalorder %s38, 1
      %p493 = por %p491, %p492
      %p494 = scmp.ne.s32.totalorder %s485, %s486
      %p495 = scmp.eq.s32.totalorder %s38, 0
      %p496 = por %p494, %p495
      %p497 = scmp.ne.s32.totalorder %s485, %s486
      %p498 = scmp.eq.s32.totalorder %s39, 1
      %p499 = por %p497, %p498
      %p501 = scmp.ne.s32.totalorder %s486, %s500
      %p502 = scmp.eq.s32.totalorder %s39, 0
      %p503 = por %p501, %p502
      %s505 = sadd.s32 %s504, 1
      %p508 = scmp.eq.s32.totalorder %s33, 1
      %p509 = scmp.ne.s32.totalorder %s504, %s506
      %p510 = scmp.eq.s32.totalorder %s33, 0
      %p511 = por %p509, %p510
      %p512 = scmp.ne.s32.totalorder %s504, %s506
      %p513 = scmp.eq.s32.totalorder %s38, 1
      %p514 = por %p512, %p513
      %p515 = scmp.ne.s32.totalorder %s506, %s507
      %p516 = scmp.eq.s32.totalorder %s38, 0
      %p517 = por %p515, %p516
      %p518 = scmp.ne.s32.totalorder %s506, %s507
      %p519 = scmp.eq.s32.totalorder %s39, 1
      %p520 = por %p518, %p519
      %p522 = scmp.ne.s32.totalorder %s507, %s521
      %p523 = scmp.eq.s32.totalorder %s39, 0
      %p524 = por %p522, %p523
      %s526 = sadd.s32 %s525, 1
      %p529 = scmp.eq.s32.totalorder %s33, 1
      %p530 = scmp.ne.s32.totalorder %s525, %s527
      %p531 = scmp.eq.s32.totalorder %s33, 0
      %p532 = por %p530, %p531
      %p533 = scmp.ne.s32.totalorder %s525, %s527
      %p534 = scmp.eq.s32.totalorder %s38, 1
      %p535 = por %p533, %p534
      %p536 = scmp.ne.s32.totalorder %s527, %s528
      %p537 = scmp.eq.s32.totalorder %s38, 0
      %p538 = por %p536, %p537
      %p539 = scmp.ne.s32.totalorder %s527, %s528
      %p540 = scmp.eq.s32.totalorder %s39, 1
      %p541 = por %p539, %p540
      %p543 = scmp.ne.s32.totalorder %s528, %s542
      %p544 = scmp.eq.s32.totalorder %s39, 0
      %p545 = por %p543, %p544
      %s547 = sadd.s32 %s546, 1
      %p550 = scmp.eq.s32.totalorder %s33, 1
      %p551 = scmp.ne.s32.totalorder %s546, %s548
      %p552 = scmp.eq.s32.totalorder %s33, 0
      %p553 = por %p551, %p552
      %p554 = scmp.ne.s32.totalorder %s546, %s548
      %p555 = scmp.eq.s32.totalorder %s38, 1
      %p556 = por %p554, %p555
      %p557 = scmp.ne.s32.totalorder %s548, %s549
      %p558 = scmp.eq.s32.totalorder %s38, 0
      %p559 = por %p557, %p558
      %p560 = scmp.ne.s32.totalorder %s548, %s549
      %p561 = scmp.eq.s32.totalorder %s39, 1
      %p562 = por %p560, %p561
      %p564 = scmp.ne.s32.totalorder %s549, %s563
      %p565 = scmp.eq.s32.totalorder %s39, 0
      %p566 = por %p564, %p565
      %s567 = ssub.s32 %s40, %s52
      %s568 = ssub.s32 %s41, %s48
      %s569 = sor.u32 %s567, %s568
      %p570 = scmp.eq.s32.totalorder %s569, 0
      %s572 = sadd.s32 %s571, 1
      %s573 = scalar_select %p570, %s571, %s572
      %p576 = pneg %p570
      %p577 = scmp.eq.s32.totalorder %s33, 1
      %p578 = por %p576, %p577
      %p579 = scmp.ne.s32.totalorder %s571, %s574
      %p580 = scmp.eq.s32.totalorder %s33, 0
      %p581 = por %p579, %p580
      %p582 = scmp.ne.s32.totalorder %s571, %s574
      %p583 = scmp.eq.s32.totalorder %s38, 1
      %p584 = por %p582, %p583
      %p585 = scmp.ne.s32.totalorder %s574, %s575
      %p586 = scmp.eq.s32.totalorder %s38, 0
      %p587 = por %p585, %p586
      %p588 = scmp.ne.s32.totalorder %s574, %s575
      %p589 = scmp.eq.s32.totalorder %s39, 1
      %p590 = por %p588, %p589
      %p592 = scmp.ne.s32.totalorder %s575, %s591
      %p593 = scmp.eq.s32.totalorder %s39, 0
      %p594 = por %p592, %p593
      %p595 = scmp.le.s32.totalorder 1, %s33
      %p596 = scmp.lt.s32.totalorder %s33, 3
      %p597 = pnand %p595, %p596
      %p598 = pneg %p597
      // Predicated region
      $region9: #{decoder_forward.3} parent=5 // pred_check
        _
      $region10: #{decoder_forward.3} parent=5 // pred_check_branch
        %600 = sbr.rel (%p597) target = $region12
      $region11: #{decoder_forward.3} parent=5 // pred_region
        %s601 = ssub.s32 %s33, 1
        // Predicated region
        $region13: #{decoder_forward.3} parent=11 // pred_check
          %p602 = pneg %p118
        $region14: #{decoder_forward.3} parent=11 // pred_check_branch
          %604 = sbr.rel (%p602) target = $region16
        $region15: #{decoder_forward.3} parent=11 // pred_region
          _
        $region16: #{decoder_forward.3} parent=11 // pred_fallthru
          _
        // Predicated region
        $region17: #{decoder_forward.3} parent=11 // pred_check
          %p605 = pneg %p139
        $region18: #{decoder_forward.3} parent=11 // pred_check_branch
          %607 = sbr.rel (%p605) target = $region20
        $region19: #{decoder_forward.3} parent=11 // pred_region
          _
        $region20: #{decoder_forward.3} parent=11 // pred_fallthru
          _
        // Predicated region
        $region21: #{decoder_forward.3} parent=11 // pred_check
          %p608 = pneg %p160
        $region22: #{decoder_forward.3} parent=11 // pred_check_branch
          %610 = sbr.rel (%p608) target = $region24
        $region23: #{decoder_forward.3} parent=11 // pred_region
          _
        $region24: #{decoder_forward.3} parent=11 // pred_fallthru
          _
        // Predicated region
        $region25: #{decoder_forward.3} parent=11 // pred_check
          %p611 = pneg %p181
        $region26: #{decoder_forward.3} parent=11 // pred_check_branch
          %613 = sbr.rel (%p611) target = $region28
        $region27: #{decoder_forward.3} parent=11 // pred_region
          _
        $region28: #{decoder_forward.3} parent=11 // pred_fallthru
          _
        // Predicated region
        $region29: #{decoder_forward.3} parent=11 // pred_check
          %p614 = pneg %p202
        $region30: #{decoder_forward.3} parent=11 // pred_check_branch
          %616 = sbr.rel (%p614) target = $region32
        $region31: #{decoder_forward.3} parent=11 // pred_region
          _
        $region32: #{decoder_forward.3} parent=11 // pred_fallthru
          _
        // Predicated region
        $region33: #{decoder_forward.3} parent=11 // pred_check
          %p617 = pneg %p223
        $region34: #{decoder_forward.3} parent=11 // pred_check_branch
          %619 = sbr.rel (%p617) target = $region36
        $region35: #{decoder_forward.3} parent=11 // pred_region
          _
        $region36: #{decoder_forward.3} parent=11 // pred_fallthru
          _
        // Predicated region
        $region37: #{decoder_forward.3} parent=11 // pred_check
          %p620 = pneg %p244
        $region38: #{decoder_forward.3} parent=11 // pred_check_branch
          %622 = sbr.rel (%p620) target = $region40
        $region39: #{decoder_forward.3} parent=11 // pred_region
          _
        $region40: #{decoder_forward.3} parent=11 // pred_fallthru
          _
        // Predicated region
        $region41: #{decoder_forward.3} parent=11 // pred_check
          %p623 = pneg %p265
        $region42: #{decoder_forward.3} parent=11 // pred_check_branch
          %625 = sbr.rel (%p623) target = $region44
        $region43: #{decoder_forward.3} parent=11 // pred_region
          _
        $region44: #{decoder_forward.3} parent=11 // pred_fallthru
          _
        // Predicated region
        $region45: #{decoder_forward.3} parent=11 // pred_check
          %p626 = pneg %p286
        $region46: #{decoder_forward.3} parent=11 // pred_check_branch
          %628 = sbr.rel (%p626) target = $region48
        $region47: #{decoder_forward.3} parent=11 // pred_region
          _
        $region48: #{decoder_forward.3} parent=11 // pred_fallthru
          _
        // Predicated region
        $region49: #{decoder_forward.3} parent=11 // pred_check
          %p629 = pneg %p307
        $region50: #{decoder_forward.3} parent=11 // pred_check_branch
          %631 = sbr.rel (%p629) target = $region52
        $region51: #{decoder_forward.3} parent=11 // pred_region
          _
        $region52: #{decoder_forward.3} parent=11 // pred_fallthru
          _
        // Predicated region
        $region53: #{decoder_forward.3} parent=11 // pred_check
          %p632 = pneg %p328
        $region54: #{decoder_forward.3} parent=11 // pred_check_branch
          %634 = sbr.rel (%p632) target = $region56
        $region55: #{decoder_forward.3} parent=11 // pred_region
          _
        $region56: #{decoder_forward.3} parent=11 // pred_fallthru
          _
        // Predicated region
        $region57: #{decoder_forward.3} parent=11 // pred_check
          %p635 = pneg %p349
        $region58: #{decoder_forward.3} parent=11 // pred_check_branch
          %637 = sbr.rel (%p635) target = $region60
        $region59: #{decoder_forward.3} parent=11 // pred_region
          _
        $region60: #{decoder_forward.3} parent=11 // pred_fallthru
          _
        // Predicated region
        $region61: #{decoder_forward.3} parent=11 // pred_check
          %p638 = pneg %p370
        $region62: #{decoder_forward.3} parent=11 // pred_check_branch
          %640 = sbr.rel (%p638) target = $region64
        $region63: #{decoder_forward.3} parent=11 // pred_region
          _
        $region64: #{decoder_forward.3} parent=11 // pred_fallthru
          _
        // Predicated region
        $region65: #{decoder_forward.3} parent=11 // pred_check
          %p641 = pneg %p391
        $region66: #{decoder_forward.3} parent=11 // pred_check_branch
          %643 = sbr.rel (%p641) target = $region68
        $region67: #{decoder_forward.3} parent=11 // pred_region
          _
        $region68: #{decoder_forward.3} parent=11 // pred_fallthru
          _
        // Predicated region
        $region69: #{decoder_forward.3} parent=11 // pred_check
          %p644 = pneg %p412
        $region70: #{decoder_forward.3} parent=11 // pred_check_branch
          %646 = sbr.rel (%p644) target = $region72
        $region71: #{decoder_forward.3} parent=11 // pred_region
          _
        $region72: #{decoder_forward.3} parent=11 // pred_fallthru
          _
        // Predicated region
        $region73: #{decoder_forward.3} parent=11 // pred_check
          %p647 = pneg %p433
        $region74: #{decoder_forward.3} parent=11 // pred_check_branch
          %649 = sbr.rel (%p647) target = $region76
        $region75: #{decoder_forward.3} parent=11 // pred_region
          _
        $region76: #{decoder_forward.3} parent=11 // pred_fallthru
          _
        // Predicated region
        $region77: #{decoder_forward.3} parent=11 // pred_check
          %p650 = pneg %p454
        $region78: #{decoder_forward.3} parent=11 // pred_check_branch
          %652 = sbr.rel (%p650) target = $region80
        $region79: #{decoder_forward.3} parent=11 // pred_region
          _
        $region80: #{decoder_forward.3} parent=11 // pred_fallthru
          _
        // Predicated region
        $region81: #{decoder_forward.3} parent=11 // pred_check
          %p653 = pneg %p475
        $region82: #{decoder_forward.3} parent=11 // pred_check_branch
          %655 = sbr.rel (%p653) target = $region84
        $region83: #{decoder_forward.3} parent=11 // pred_region
          _
        $region84: #{decoder_forward.3} parent=11 // pred_fallthru
          _
        // Predicated region
        $region85: #{decoder_forward.3} parent=11 // pred_check
          %p656 = pneg %p496
        $region86: #{decoder_forward.3} parent=11 // pred_check_branch
          %658 = sbr.rel (%p656) target = $region88
        $region87: #{decoder_forward.3} parent=11 // pred_region
          _
        $region88: #{decoder_forward.3} parent=11 // pred_fallthru
          _
        // Predicated region
        $region89: #{decoder_forward.3} parent=11 // pred_check
          %p659 = pneg %p517
        $region90: #{decoder_forward.3} parent=11 // pred_check_branch
          %661 = sbr.rel (%p659) target = $region92
        $region91: #{decoder_forward.3} parent=11 // pred_region
          _
        $region92: #{decoder_forward.3} parent=11 // pred_fallthru
          _
        // Predicated region
        $region93: #{decoder_forward.3} parent=11 // pred_check
          %p662 = pneg %p538
        $region94: #{decoder_forward.3} parent=11 // pred_check_branch
          %664 = sbr.rel (%p662) target = $region96
        $region95: #{decoder_forward.3} parent=11 // pred_region
          _
        $region96: #{decoder_forward.3} parent=11 // pred_fallthru
          _
        // Predicated region
        $region97: #{decoder_forward.3} parent=11 // pred_check
          %p665 = pneg %p559
        $region98: #{decoder_forward.3} parent=11 // pred_check_branch
          %667 = sbr.rel (%p665) target = $region100
        $region99: #{decoder_forward.3} parent=11 // pred_region
          _
        $region100: #{decoder_forward.3} parent=11 // pred_fallthru
          _
      $region12: #{decoder_forward.3} parent=5 // pred_fallthru
        _
      %p668 = scmp.lt.s32.totalorder %s33, 2
      // Predicated region
      $region101: #{decoder_forward.3} parent=5 // pred_check
        %p669 = pneg %p668
      $region102: #{decoder_forward.3} parent=5 // pred_check_branch
        %671 = sbr.rel (%p669) target = $region104
      $region103: #{decoder_forward.3} parent=5 // pred_region
        // Predicated region
        $region105: #{decoder_forward.3} parent=103 // pred_check
          %p672 = pneg %p65
        $region106: #{decoder_forward.3} parent=103 // pred_check_branch
          %674 = sbr.rel (%p672) target = $region108
        $region107: #{decoder_forward.3} parent=103 // pred_region
          %p675 = scmp.lt.s32.totalorder %s40, 1
          %s676 = scalar_select %p675, %s40, 1
          %s677 = smul.addr %s676, 8
          %s678 = scalar_lea.vmem %s0, %s677
        $region108: #{decoder_forward.3} parent=103 // pred_fallthru
          _
        // Predicated region
        $region109: #{decoder_forward.3} parent=103 // pred_check
          %p679 = pneg %p91
        $region110: #{decoder_forward.3} parent=103 // pred_check_branch
          %681 = sbr.rel (%p679) target = $region112
        $region111: #{decoder_forward.3} parent=103 // pred_region
          %p682 = scmp.lt.s32.totalorder %s40, 1
          %s683 = scalar_select %p682, %s40, 1
          %s684 = smul.addr %s683, 8
          %s685 = scalar_lea.vmem %s1, %s684
        $region112: #{decoder_forward.3} parent=103 // pred_fallthru
          _
      $region104: #{decoder_forward.3} parent=5 // pred_fallthru
        _
      %p686 = scmp.le.s32.totalorder 1, %s33
      %p687 = scmp.lt.s32.totalorder %s33, 3
      %p688 = pnand %p686, %p687
      %p689 = pneg %p688
      // Predicated region
      $region113: #{decoder_forward.3} parent=5 // pred_check
        _
      $region114: #{decoder_forward.3} parent=5 // pred_check_branch
        %691 = sbr.rel (%p688) target = $region116
      $region115: #{decoder_forward.3} parent=5 // pred_region
        %s692 = ssub.s32 %s33, 1
        %p693 = scmp.lt.s32.totalorder %s42, 1
        %s694 = scalar_select %p693, %s42, 1
        %s695 = smul.addr %s694, 8
        %s696 = scalar_lea.vmem %s0, %s695
        %p697 = pneg %p71
        %p698 = pneg %p68
        %p699 = scmp.lt.s32.totalorder %s42, 1
        %s700 = scalar_select %p699, %s42, 1
        %s701 = smul.addr %s700, 8
        %s702 = scalar_lea.vmem %s1, %s701
        %p703 = pneg %p97
        %p704 = pneg %p94
        %p705 = pneg %p118
        %p706 = pneg %p115
        %p707 = pneg %p139
        %p708 = pneg %p136
        %p709 = pneg %p160
        %p710 = pneg %p157
        %p711 = pneg %p181
        %p712 = pneg %p178
        %p713 = pneg %p202
        %p714 = pneg %p199
        %p715 = pneg %p223
        %p716 = pneg %p220
        %p717 = pneg %p244
        %p718 = pneg %p241
        %p719 = pneg %p265
        %p720 = pneg %p262
        %p721 = pneg %p286
        %p722 = pneg %p283
        %p723 = pneg %p307
        %p724 = pneg %p304
        %p725 = pneg %p328
        %p726 = pneg %p325
        %p727 = pneg %p349
        %p728 = pneg %p346
        %p729 = pneg %p370
        %p730 = pneg %p367
        %p731 = pneg %p391
        %p732 = pneg %p388
        %p733 = pneg %p412
        %p734 = pneg %p409
        %p735 = pneg %p433
        %p736 = pneg %p430
        %p737 = pneg %p454
        %p738 = pneg %p451
        %p739 = pneg %p475
        %p740 = pneg %p472
        %p741 = pneg %p496
        %p742 = pneg %p493
        %p743 = pneg %p517
        %p744 = pneg %p514
        %p745 = pneg %p538
        %p746 = pneg %p535
        %p747 = pneg %p559
        %p748 = pneg %p556
        %p749 = pneg %p587
        %p750 = pneg %p584
        %s751 = sand.u32 %s574, 1
        %s752 = scalar_lea.sflag [#allocation3], %s751
        %s753 = sand.u32 %s574, 1
        %s754 = smul.addr %s753, 8
        %s755 = scalar_lea.vmem [#allocation2], %s754
        %p756 = scmp.lt.s32.totalorder %s42, 1
        %s757 = scalar_select %p756, %s42, 1
        %s758 = smul.addr %s757, 8
        %s759 = scalar_lea.vmem %s0, %s758
        %p760 = scmp.lt.s32.totalorder %s42, 1
        %s761 = scalar_select %p760, %s42, 1
        %s762 = smul.addr %s761, 8
        %s763 = scalar_lea.vmem %s1, %s762
        %s765 = smul.u32 %s43, 8
        %v766 = vld [vmem:[%s759] sm:$0xff]
        %s767 = scalar_lea.vmem %s759, %s765
        %v768 = vld [vmem:[%s767] sm:$0xff]
        %v769 = vld [vmem:[%s763] sm:$0xff]
        %v770 = vld [vmem:[%s2] sm:$0x1]
        %v771 = vmul.f32 %v768, %v768
        %vm772 = vcmask 261120
        %v773 = vsel %vm772, %v771, 0.0
        %774 = vadd.xlane.f32.xlu0 %v773
        %v775 = vpop.xlane.xlu0 %774
        %v776 = vrcp.pop 32.0
        %v777 = vmul.f32 %v775, %v776
        %v778 = vadd.f32 %v777, 1e-06
        %v779 = vrsqrt.pop %v778
        %v780 = vmul.f32 %v768, %v779
        %v782 = vlaneseq
        %v783 = vshrl.u32 %v782, 7
        %v784 = vsub.s32 0, %v783
        %v785 = vrot.slane %v770, %v784
        %v787 = vmul.f32 %v780, %v785
        %v788 = vld [vmem:[%s5] sm:$0x1]
        %v789 = vmul.f32 %v787, %v787
        %v790 = vsel %vm772, %v789, 0.0
        %791 = vadd.xlane.f32.xlu0 %v790
        %v792 = vpop.xlane.xlu0 %791
        %v793 = vmul.f32 %v792, %v776
        %v794 = vadd.f32 %v793, 1e-06
        %v795 = vrsqrt.pop %v794
        %v796 = vmul.f32 %v787, %v795
        %v798 = vlaneseq
        %v799 = vshrl.u32 %v798, 7
        %v800 = vsub.s32 0, %v799
        %v801 = vrot.slane %v788, %v800
        %v803 = vmul.f32 %v796, %v801
        %v804 = vmul.f32 %v766, %v766
        %v805 = vsel %vm772, %v804, 0.0
        %806 = vadd.xlane.f32.xlu0 %v805
        %v807 = vpop.xlane.xlu0 %806
        %v808 = vmul.f32 %v807, %v776
        %v809 = vadd.f32 %v808, 1e-06
        %v810 = vrsqrt.pop %v809
        %v811 = vmul.f32 %v766, %v810
        %v812 = vmul.f32 %v811, %v785
        %v813 = vmul.f32 %v812, %v812
        %v814 = vsel %vm772, %v813, 0.0
        %815 = vadd.xlane.f32.xlu0 %v814
        %v816 = vpop.xlane.xlu0 %815
        %v817 = vmul.f32 %v816, %v776
        %v818 = vadd.f32 %v817, 1e-06
        %v819 = vrsqrt.pop %v818
        %v820 = vmul.f32 %v812, %v819
        %v821 = vmul.f32 %v820, %v801
        %v822 = vld [vmem:[%s6] sm:$0xf]
        %v823 = vld [vmem:[%s6 + $0x4] sm:$0xf]
        %v824 = vld [vmem:[%s6 + $0x8] sm:$0xf]
        %v825 = vld [vmem:[%s6 + $0xc] sm:$0xf]
        %v826 = vld [vmem:[%s7] sm:$0xf]
        %v827 = vld [vmem:[%s7 + $0x4] sm:$0xf]
        %v828 = vld [vmem:[%s7 + $0x8] sm:$0xf]
        %v829 = vld [vmem:[%s7 + $0xc] sm:$0xf]
        %v830 = vld [vmem:[%s8] sm:$0xf]
        %v831 = vld [vmem:[%s8 + $0x4] sm:$0xf]
        %v832 = vld [vmem:[%s8 + $0x8] sm:$0xf]
        %v833 = vld [vmem:[%s8 + $0xc] sm:$0xf]
        %v834 = vld [vmem:[%s9] sm:$0xf]
        %v835 = vld [vmem:[%s9 + $0x4] sm:$0xf]
        %v836 = vld [vmem:[%s9 + $0x8] sm:$0xf]
        %v837 = vld [vmem:[%s9 + $0xc] sm:$0xf]
        %v838 = vld [vmem:[%s10] sm:$0x1]
        %v839 = vld [vmem:[%s11] sm:$0x1]
        %v840 = vld [vmem:[%s11 + $0x1] sm:$0x1]
        %v841 = vld [vmem:[%s11 + $0x2] sm:$0x1]
        %v842 = vld [vmem:[%s11 + $0x3] sm:$0x1]
        %v843 = vpack.c.bf16 %v803, %v803
        %v848 = vunpack.c.l.b16 %v822
        %v849 = vunpack.c.l.b16 %v823
        %v850 = vunpack.c.l.b16 %v824
        %v851 = vunpack.c.l.b16 %v825
        %v852 = vpack.c.b16 %v849, %v848
        %v853 = vpack.c.b16 %v851, %v850
        %v857 = vsel %vm772, %v843, 0
        %859 = vmatprep.subr.bf16.mxu0 0
        %860 = vmatpush1.bf16.msra.mxu0 %v852
        %861 = vmatprep.subr.bf16.mxu0 0
        %862 = vmatpush1.bf16.msra.mxu0 %v853
        %863 = vmatprep.subr.bf16.mxu0 0
        %864 = vmatpush1.bf16.msra.mxu0 0
        %865 = vmatprep.subr.bf16.mxu0 0
        %866 = vmatpush1.bf16.msra.mxu0 0
        %867 = vmatprep.subr.bf16.mxu0 0
        %868 = vmatpush1.bf16.msra.mxu0 0
        %869 = vmatprep.subr.bf16.mxu0 0
        %870 = vmatpush1.bf16.msra.mxu0 0
        %871 = vmatprep.subr.bf16.mxu0 0
        %872 = vmatpush1.bf16.msra.mxu0 0
        %873 = vmatprep.subr.bf16.mxu0 0
        %874 = vmatpush1.bf16.msra.mxu0 0
        %875 = vmatprep.subr.bf16.mxu0 0
        %876 = vmatpush1.bf16.msra.mxu0 0
        %877 = vmatprep.subr.bf16.mxu0 0
        %878 = vmatpush1.bf16.msra.mxu0 0
        %879 = vmatprep.subr.bf16.mxu0 0
        %880 = vmatpush1.bf16.msra.mxu0 0
        %881 = vmatprep.subr.bf16.mxu0 0
        %882 = vmatpush1.bf16.msra.mxu0 0
        %883 = vmatprep.subr.bf16.mxu0 0
        %884 = vmatpush1.bf16.msra.mxu0 0
        %885 = vmatprep.subr.bf16.mxu0 0
        %886 = vmatpush1.bf16.msra.mxu0 0
        %887 = vmatprep.subr.bf16.mxu0 0
        %888 = vmatpush1.bf16.msra.mxu0 0
        %889 = vmatprep.subr.bf16.mxu0 0
        %890 = vmatpush1.bf16.msra.mxu0 0
        %891 = vmatprep.mubr.bf16.mxu0 0
        %892 = vmatmul.mubr.bf16.gmra.mrb[0].mxu0 %v857
        %v893 = vpop.f32.mrb[0].mxu0
        %v894 = vadd.f32 0.0, %v893
        %v895 = vpop.f32.mrb[0].mxu0
        %v896 = vpop.f32.mrb[0].mxu0
        %v897 = vpop.f32.mrb[0].mxu0
        %898 = vdwg.mxu0
        %v899 = vpack.c.bf16 %v821, %v821
        %v904 = vunpack.c.l.b16 %v826
        %v905 = vunpack.c.l.b16 %v827
        %v906 = vunpack.c.l.b16 %v828
        %v907 = vunpack.c.l.b16 %v829
        %v908 = vpack.c.b16 %v905, %v904
        %v909 = vpack.c.b16 %v907, %v906
        %v913 = vsel %vm772, %v899, 0
        %915 = vmatprep.subr.bf16.mxu0 0
        %916 = vmatpush1.bf16.msra.mxu0 %v908
        %917 = vmatprep.subr.bf16.mxu0 0
        %918 = vmatpush1.bf16.msra.mxu0 %v909
        %919 = vmatprep.subr.bf16.mxu0 0
        %920 = vmatpush1.bf16.msra.mxu0 0
        %921 = vmatprep.subr.bf16.mxu0 0
        %922 = vmatpush1.bf16.msra.mxu0 0
        %923 = vmatprep.subr.bf16.mxu0 0
        %924 = vmatpush1.bf16.msra.mxu0 0
        %925 = vmatprep.subr.bf16.mxu0 0
        %926 = vmatpush1.bf16.msra.mxu0 0
        %927 = vmatprep.subr.bf16.mxu0 0
        %928 = vmatpush1.bf16.msra.mxu0 0
        %929 = vmatprep.subr.bf16.mxu0 0
        %930 = vmatpush1.bf16.msra.mxu0 0
        %931 = vmatprep.subr.bf16.mxu0 0
        %932 = vmatpush1.bf16.msra.mxu0 0
        %933 = vmatprep.subr.bf16.mxu0 0
        %934 = vmatpush1.bf16.msra.mxu0 0
        %935 = vmatprep.subr.bf16.mxu0 0
        %936 = vmatpush1.bf16.msra.mxu0 0
        %937 = vmatprep.subr.bf16.mxu0 0
        %938 = vmatpush1.bf16.msra.mxu0 0
        %939 = vmatprep.subr.bf16.mxu0 0
        %940 = vmatpush1.bf16.msra.mxu0 0
        %941 = vmatprep.subr.bf16.mxu0 0
        %942 = vmatpush1.bf16.msra.mxu0 0
        %943 = vmatprep.subr.bf16.mxu0 0
        %944 = vmatpush1.bf16.msra.mxu0 0
        %945 = vmatprep.subr.bf16.mxu0 0
        %946 = vmatpush1.bf16.msra.mxu0 0
        %947 = vmatprep.mubr.bf16.mxu0 0
        %948 = vmatmul.mubr.bf16.gmra.mrb[0].mxu0 %v913
        %v949 = vpop.f32.mrb[0].mxu0
        %v950 = vadd.f32 0.0, %v949
        %v951 = vpop.f32.mrb[0].mxu0
        %v952 = vpop.f32.mrb[0].mxu0
        %v953 = vpop.f32.mrb[0].mxu0
        %954 = vdwg.mxu0
        %v959 = vunpack.c.l.b16 %v830
        %v960 = vunpack.c.l.b16 %v831
        %v961 = vunpack.c.l.b16 %v832
        %v962 = vunpack.c.l.b16 %v833
        %v963 = vpack.c.b16 %v960, %v959
        %v964 = vpack.c.b16 %v962, %v961
        %967 = vmatprep.subr.bf16.mxu0 0
        %968 = vmatpush1.bf16.msra.mxu0 %v963
        %969 = vmatprep.subr.bf16.mxu0 0
        %970 = vmatpush1.bf16.msra.mxu0 %v964
        %971 = vmatprep.subr.bf16.mxu0 0
        %972 = vmatpush1.bf16.msra.mxu0 0
        %973 = vmatprep.subr.bf16.mxu0 0
        %974 = vmatpush1.bf16.msra.mxu0 0
        %975 = vmatprep.subr.bf16.mxu0 0
        %976 = vmatpush1.bf16.msra.mxu0 0
        %977 = vmatprep.subr.bf16.mxu0 0
        %978 = vmatpush1.bf16.msra.mxu0 0
        %979 = vmatprep.subr.bf16.mxu0 0
        %980 = vmatpush1.bf16.msra.mxu0 0
        %981 = vmatprep.subr.bf16.mxu0 0
        %982 = vmatpush1.bf16.msra.mxu0 0
        %983 = vmatprep.subr.bf16.mxu0 0
        %984 = vmatpush1.bf16.msra.mxu0 0
        %985 = vmatprep.subr.bf16.mxu0 0
        %986 = vmatpush1.bf16.msra.mxu0 0
        %987 = vmatprep.subr.bf16.mxu0 0
        %988 = vmatpush1.bf16.msra.mxu0 0
        %989 = vmatprep.subr.bf16.mxu0 0
        %990 = vmatpush1.bf16.msra.mxu0 0
        %991 = vmatprep.subr.bf16.mxu0 0
        %992 = vmatpush1.bf16.msra.mxu0 0
        %993 = vmatprep.subr.bf16.mxu0 0
        %994 = vmatpush1.bf16.msra.mxu0 0
        %995 = vmatprep.subr.bf16.mxu0 0
        %996 = vmatpush1.bf16.msra.mxu0 0
        %997 = vmatprep.subr.bf16.mxu0 0
        %998 = vmatpush1.bf16.msra.mxu0 0
        %999 = vmatprep.mubr.bf16.mxu0 0
        %1000 = vmatmul.mubr.bf16.gmra.mrb[0].mxu0 %v913
        %v1001 = vpop.f32.mrb[0].mxu0
        %v1002 = vadd.f32 0.0, %v1001
        %v1003 = vpop.f32.mrb[0].mxu0
        %v1004 = vpop.f32.mrb[0].mxu0
        %v1005 = vpop.f32.mrb[0].mxu0
        %1006 = vdwg.mxu0
        %1008 = vrot.lane.b32.xlu0 %v894, 120
        %v1009 = vpop.permute.xlu0 %1008
        %1011 = vrot.lane.b32.xlu0 %v894, 112
        %v1012 = vpop.permute.xlu0 %1011
        %1014 = vrot.lane.b32.xlu0 %v894, 104
        %v1015 = vpop.permute.xlu0 %1014
        %1017 = vrot.lane.b32.xlu0 %v894, 96
        %v1018 = vpop.permute.xlu0 %1017
        %1020 = vrot.lane.b32.xlu0 %v894, 88
        %v1021 = vpop.permute.xlu0 %1020
        %1023 = vrot.lane.b32.xlu0 %v894, 80
        %v1024 = vpop.permute.xlu0 %1023
        %1026 = vrot.lane.b32.xlu0 %v894, 72
        %v1027 = vpop.permute.xlu0 %1026
        %1030 = vrot.lane.b32.xlu0 %v950, 120
        %v1031 = vpop.permute.xlu0 %1030
        %1033 = vrot.lane.b32.xlu0 %v950, 112
        %v1034 = vpop.permute.xlu0 %1033
        %1036 = vrot.lane.b32.xlu0 %v950, 104
        %v1037 = vpop.permute.xlu0 %1036
        %1039 = vrot.lane.b32.xlu0 %v950, 96
        %v1040 = vpop.permute.xlu0 %1039
        %1042 = vrot.lane.b32.xlu0 %v950, 88
        %v1043 = vpop.permute.xlu0 %1042
        %1045 = vrot.lane.b32.xlu0 %v950, 80
        %v1046 = vpop.permute.xlu0 %1045
        %1048 = vrot.lane.b32.xlu0 %v950, 72
        %v1049 = vpop.permute.xlu0 %1048
        %1052 = vrot.lane.b32.xlu0 %v1002, 120
        %v1053 = vpop.permute.xlu0 %1052
        %1055 = vrot.lane.b32.xlu0 %v1002, 112
        %v1056 = vpop.permute.xlu0 %1055
        %1058 = vrot.lane.b32.xlu0 %v1002, 104
        %v1059 = vpop.permute.xlu0 %1058
        %v1061 = vpack.c.bf16 %v894, %v894
        %v1062 = vpack.c.bf16 %v1009, %v1009
        %v1063 = vpack.c.bf16 %v1012, %v1012
        %v1064 = vpack.c.bf16 %v1015, %v1015
        %v1065 = vpack.c.bf16 %v1018, %v1018
        %v1066 = vpack.c.bf16 %v1021, %v1021
        %v1067 = vpack.c.bf16 %v1024, %v1024
        %v1068 = vpack.c.bf16 %v1027, %v1027
        %v1069 = vpack.c.bf16 %v950, %v950
        %v1070 = vpack.c.bf16 %v1031, %v1031
        %v1071 = vpack.c.bf16 %v1034, %v1034
        %v1072 = vpack.c.bf16 %v1037, %v1037
        %v1073 = vpack.c.bf16 %v1040, %v1040
        %v1074 = vpack.c.bf16 %v1043, %v1043
        %v1075 = vpack.c.bf16 %v1046, %v1046
        %v1076 = vpack.c.bf16 %v1049, %v1049
        %vm1077 = vcmask 64512
        %v1079 = vsel %vm1077, %v1061, 0
        %v1082 = vsel %vm1077, %v1069, 0
        %1084 = vmatprep.subr.bf16.mxu0 0
        %1085 = vmatpush1.bf16.xpose.msra.mxu0 %v1082
        %1086 = vmatprep.subr.bf16.mxu0 0
        %1087 = vmatpush1.bf16.xpose.msra.mxu0 0
        %1088 = vmatprep.subr.bf16.mxu0 0
        %1089 = vmatpush1.bf16.xpose.msra.mxu0 0
        %1090 = vmatprep.subr.bf16.mxu0 0
        %1091 = vmatpush1.bf16.xpose.msra.mxu0 0
        %1092 = vmatprep.subr.bf16.mxu0 0
        %1093 = vmatpush1.bf16.xpose.msra.mxu0 0
        %1094 = vmatprep.subr.bf16.mxu0 0
        %1095 = vmatpush1.bf16.xpose.msra.mxu0 0
        %1096 = vmatprep.subr.bf16.mxu0 0
        %1097 = vmatpush1.bf16.xpose.msra.mxu0 0
        %1098 = vmatprep.subr.bf16.mxu0 0
        %1099 = vmatpush1.bf16.xpose.msra.mxu0 0
        %1100 = vmatprep.subr.bf16.mxu0 0
        %1101 = vmatpush1.bf16.xpose.msra.mxu0 0
        %1102 = vmatprep.subr.bf16.mxu0 0
        %1103 = vmatpush1.bf16.xpose.msra.mxu0 0
        %1104 = vmatprep.subr.bf16.mxu0 0
        %1105 = vmatpush1.bf16.xpose.msra.mxu0 0
        %1106 = vmatprep.subr.bf16.mxu0 0
        %1107 = vmatpush1.bf16.xpose.msra.mxu0 0
        %1108 = vmatprep.subr.bf16.mxu0 0
        %1109 = vmatpush1.bf16.xpose.msra.mxu0 0
        %1110 = vmatprep.subr.bf16.mxu0 0
        %1111 = vmatpush1.bf16.xpose.msra.mxu0 0
        %1112 = vmatprep.subr.bf16.mxu0 0
        %1113 = vmatpush1.bf16.xpose.msra.mxu0 0
        %1114 = vmatprep.subr.bf16.mxu0 0
        %1115 = vmatpush1.bf16.xpose.msra.mxu0 0
        %1116 = vmatprep.mubr.bf16.mxu0 0
        %1117 = vmatmul.mubr.bf16.gmra.mrb[0].mxu0 %v1079
        %v1118 = vpop.f32.mrb[0].mxu0
        %v1119 = vadd.f32 0.0, %v1118
        %v1120 = vpop.f32.mrb[0].mxu0
        %v1121 = vpop.f32.mrb[0].mxu0
        %v1122 = vpop.f32.mrb[0].mxu0
        %1123 = vdwg.mxu0
        %v1125 = vsel %vm1077, %v1062, 0
        %v1128 = vsel %vm1077, %v1070, 0
        %1130 = vmatprep.subr.bf16.mxu0 0
        %1131 = vmatpush1.bf16.xpose.msra.mxu0 %v1128
        %1132 = vmatprep.subr.bf16.mxu0 0
        %1133 = vmatpush1.bf16.xpose.msra.mxu0 0
        %1134 = vmatprep.subr.bf16.mxu0 0
        %1135 = vmatpush1.bf16.xpose.msra.mxu0 0
        %1136 = vmatprep.subr.bf16.mxu0 0
        %1137 = vmatpush1.bf16.xpose.msra.mxu0 0
        %1138 = vmatprep.subr.bf16.mxu0 0
        %1139 = vmatpush1.bf16.xpose.msra.mxu0 0
        %1140 = vmatprep.subr.bf16.mxu0 0
        %1141 = vmatpush1.bf16.xpose.msra.mxu0 0
        %1142 = vmatprep.subr.bf16.mxu0 0
        %1143 = vmatpush1.bf16.xpose.msra.mxu0 0
        %1144 = vmatprep.subr.bf16.mxu0 0
        %1145 = vmatpush1.bf16.xpose.msra.mxu0 0
        %1146 = vmatprep.subr.bf16.mxu0 0
        %1147 = vmatpush1.bf16.xpose.msra.mxu0 0
        %1148 = vmatprep.subr.bf16.mxu0 0
        %1149 = vmatpush1.bf16.xpose.msra.mxu0 0
        %1150 = vmatprep.subr.bf16.mxu0 0
        %1151 = vmatpush1.bf16.xpose.msra.mxu0 0
        %1152 = vmatprep.subr.bf16.mxu0 0
        %1153 = vmatpush1.bf16.xpose.msra.mxu0 0
        %1154 = vmatprep.subr.bf16.mxu0 0
        %1155 = vmatpush1.bf16.xpose.msra.mxu0 0
        %1156 = vmatprep.subr.bf16.mxu0 0
        %1157 = vmatpush1.bf16.xpose.msra.mxu0 0
        %1158 = vmatprep.subr.bf16.mxu0 0
        %1159 = vmatpush1.bf16.xpose.msra.mxu0 0
        %1160 = vmatprep.subr.bf16.mxu0 0
        %1161 = vmatpush1.bf16.xpose.msra.mxu0 0
        %1162 = vmatprep.mubr.bf16.mxu0 0
        %1163 = vmatmul.mubr.bf16.gmra.mrb[0].mxu0 %v1125
        %v1164 = vpop.f32.mrb[0].mxu0
        %v1165 = vadd.f32 0.0, %v1164
        %v1166 = vpop.f32.mrb[0].mxu0
        %v1167 = vpop.f32.mrb[0].mxu0
        %v1168 = vpop.f32.mrb[0].mxu0
        %1169 = vdwg.mxu0
        %v1171 = vsel %vm1077, %v1063, 0
        %v1174 = vsel %vm1077, %v1071, 0
        %1176 = vmatprep.subr.bf16.mxu0 0
        %1177 = vmatpush1.bf16.xpose.msra.mxu0 %v1174
        %1178 = vmatprep.subr.bf16.mxu0 0
        %1179 = vmatpush1.bf16.xpose.msra.mxu0 0
        %1180 = vmatprep.subr.bf16.mxu0 0
        %1181 = vmatpush1.bf16.xpose.msra.mxu0 0
        %1182 = vmatprep.subr.bf16.mxu0 0
        %1183 = vmatpush1.bf16.xpose.msra.mxu0 0
        %1184 = vmatprep.subr.bf16.mxu0 0
        %1185 = vmatpush1.bf16.xpose.msra.mxu0 0
        %1186 = vmatprep.subr.bf16.mxu0 0
        %1187 = vmatpush1.bf16.xpose.msra.mxu0 0
        %1188 = vmatprep.subr.bf16.mxu0 0
        %1189 = vmatpush1.bf16.xpose.msra.mxu0 0
        %1190 = vmatprep.subr.bf16.mxu0 0
        %1191 = vmatpush1.bf16.xpose.msra.mxu0 0
        %1192 = vmatprep.subr.bf16.mxu0 0
        %1193 = vmatpush1.bf16.xpose.msra.mxu0 0
        %1194 = vmatprep.subr.bf16.mxu0 0
        %1195 = vmatpush1.bf16.xpose.msra.mxu0 0
        %1196 = vmatprep.subr.bf16.mxu0 0
        %1197 = vmatpush1.bf16.xpose.msra.mxu0 0
        %1198 = vmatprep.subr.bf16.mxu0 0
        %1199 = vmatpush1.bf16.xpose.msra.mxu0 0
        %1200 = vmatprep.subr.bf16.mxu0 0
        %1201 = vmatpush1.bf16.xpose.msra.mxu0 0
        %1202 = vmatprep.subr.bf16.mxu0 0
        %1203 = vmatpush1.bf16.xpose.msra.mxu0 0
        %1204 = vmatprep.subr.bf16.mxu0 0
        %1205 = vmatpush1.bf16.xpose.msra.mxu0 0
        %1206 = vmatprep.subr.bf16.mxu0 0
        %1207 = vmatpush1.bf16.xpose.msra.mxu0 0
        %1208 = vmatprep.mubr.bf16.mxu0 0
        %1209 = vmatmul.mubr.bf16.gmra.mrb[0].mxu0 %v1171
        %v1210 = vpop.f32.mrb[0].mxu0
        %v1211 = vadd.f32 0.0, %v1210
        %v1212 = vpop.f32.mrb[0].mxu0
        %v1213 = vpop.f32.mrb[0].mxu0
        %v1214 = vpop.f32.mrb[0].mxu0
        %1215 = vdwg.mxu0
        %v1217 = vsel %vm1077, %v1064, 0
        %v1220 = vsel %vm1077, %v1072, 0
        %1222 = vmatprep.subr.bf16.mxu0 0
        %1223 = vmatpush1.bf16.xpose.msra.mxu0 %v1220
        %1224 = vmatprep.subr.bf16.mxu0 0
        %1225 = vmatpush1.bf16.xpose.msra.mxu0 0
        %1226 = vmatprep.subr.bf16.mxu0 0
        %1227 = vmatpush1.bf16.xpose.msra.mxu0 0
        %1228 = vmatprep.subr.bf16.mxu0 0
        %1229 = vmatpush1.bf16.xpose.msra.mxu0 0
        %1230 = vmatprep.subr.bf16.mxu0 0
        %1231 = vmatpush1.bf16.xpose.msra.mxu0 0
        %1232 = vmatprep.subr.bf16.mxu0 0
        %1233 = vmatpush1.bf16.xpose.msra.mxu0 0
        %1234 = vmatprep.subr.bf16.mxu0 0
        %1235 = vmatpush1.bf16.xpose.msra.mxu0 0
        %1236 = vmatprep.subr.bf16.mxu0 0
        %1237 = vmatpush1.bf16.xpose.msra.mxu0 0
        %1238 = vmatprep.subr.bf16.mxu0 0
        %1239 = vmatpush1.bf16.xpose.msra.mxu0 0
        %1240 = vmatprep.subr.bf16.mxu0 0
        %1241 = vmatpush1.bf16.xpose.msra.mxu0 0
        %1242 = vmatprep.subr.bf16.mxu0 0
        %1243 = vmatpush1.bf16.xpose.msra.mxu0 0
        %1244 = vmatprep.subr.bf16.mxu0 0
        %1245 = vmatpush1.bf16.xpose.msra.mxu0 0
        %1246 = vmatprep.subr.bf16.mxu0 0
        %1247 = vmatpush1.bf16.xpose.msra.mxu0 0
        %1248 = vmatprep.subr.bf16.mxu0 0
        %1249 = vmatpush1.bf16.xpose.msra.mxu0 0
        %1250 = vmatprep.subr.bf16.mxu0 0
        %1251 = vmatpush1.bf16.xpose.msra.mxu0 0
        %1252 = vmatprep.subr.bf16.mxu0 0
        %1253 = vmatpush1.bf16.xpose.msra.mxu0 0
        %1254 = vmatprep.mubr.bf16.mxu0 0
        %1255 = vmatmul.mubr.bf16.gmra.mrb[0].mxu0 %v1217
        %v1256 = vpop.f32.mrb[0].mxu0
        %v1257 = vadd.f32 0.0, %v1256
        %v1258 = vpop.f32.mrb[0].mxu0
        %v1259 = vpop.f32.mrb[0].mxu0
        %v1260 = vpop.f32.mrb[0].mxu0
        %1261 = vdwg.mxu0
        %v1263 = vsel %vm1077, %v1065, 0
        %v1266 = vsel %vm1077, %v1073, 0
        %1268 = vmatprep.subr.bf16.mxu0 0
        %1269 = vmatpush1.bf16.xpose.msra.mxu0 %v1266
        %1270 = vmatprep.subr.bf16.mxu0 0
        %1271 = vmatpush1.bf16.xpose.msra.mxu0 0
        %1272 = vmatprep.subr.bf16.mxu0 0
        %1273 = vmatpush1.bf16.xpose.msra.mxu0 0
        %1274 = vmatprep.subr.bf16.mxu0 0
        %1275 = vmatpush1.bf16.xpose.msra.mxu0 0
        %1276 = vmatprep.subr.bf16.mxu0 0
        %1277 = vmatpush1.bf16.xpose.msra.mxu0 0
        %1278 = vmatprep.subr.bf16.mxu0 0
        %1279 = vmatpush1.bf16.xpose.msra.mxu0 0
        %1280 = vmatprep.subr.bf16.mxu0 0
        %1281 = vmatpush1.bf16.xpose.msra.mxu0 0
        %1282 = vmatprep.subr.bf16.mxu0 0
        %1283 = vmatpush1.bf16.xpose.msra.mxu0 0
        %1284 = vmatprep.subr.bf16.mxu0 0
        %1285 = vmatpush1.bf16.xpose.msra.mxu0 0
        %1286 = vmatprep.subr.bf16.mxu0 0
        %1287 = vmatpush1.bf16.xpose.msra.mxu0 0
        %1288 = vmatprep.subr.bf16.mxu0 0
        %1289 = vmatpush1.bf16.xpose.msra.mxu0 0
        %1290 = vmatprep.subr.bf16.mxu0 0
        %1291 = vmatpush1.bf16.xpose.msra.mxu0 0
        %1292 = vmatprep.subr.bf16.mxu0 0
        %1293 = vmatpush1.bf16.xpose.msra.mxu0 0
        %1294 = vmatprep.subr.bf16.mxu0 0
        %1295 = vmatpush1.bf16.xpose.msra.mxu0 0
        %1296 = vmatprep.subr.bf16.mxu0 0
        %1297 = vmatpush1.bf16.xpose.msra.mxu0 0
        %1298 = vmatprep.subr.bf16.mxu0 0
        %1299 = vmatpush1.bf16.xpose.msra.mxu0 0
        %1300 = vmatprep.mubr.bf16.mxu0 0
        %1301 = vmatmul.mubr.bf16.gmra.mrb[0].mxu0 %v1263
        %v1302 = vpop.f32.mrb[0].mxu0
        %v1303 = vadd.f32 0.0, %v1302
        %v1304 = vpop.f32.mrb[0].mxu0
        %v1305 = vpop.f32.mrb[0].mxu0
        %v1306 = vpop.f32.mrb[0].mxu0
        %1307 = vdwg.mxu0
        %v1309 = vsel %vm1077, %v1066, 0
        %v1312 = vsel %vm1077, %v1074, 0
        %1314 = vmatprep.subr.bf16.mxu0 0
        %1315 = vmatpush1.bf16.xpose.msra.mxu0 %v1312
        %1316 = vmatprep.subr.bf16.mxu0 0
        %1317 = vmatpush1.bf16.xpose.msra.mxu0 0
        %1318 = vmatprep.subr.bf16.mxu0 0
        %1319 = vmatpush1.bf16.xpose.msra.mxu0 0
        %1320 = vmatprep.subr.bf16.mxu0 0
        %1321 = vmatpush1.bf16.xpose.msra.mxu0 0
        %1322 = vmatprep.subr.bf16.mxu0 0
        %1323 = vmatpush1.bf16.xpose.msra.mxu0 0
        %1324 = vmatprep.subr.bf16.mxu0 0
        %1325 = vmatpush1.bf16.xpose.msra.mxu0 0
        %1326 = vmatprep.subr.bf16.mxu0 0
        %1327 = vmatpush1.bf16.xpose.msra.mxu0 0
        %1328 = vmatprep.subr.bf16.mxu0 0
        %1329 = vmatpush1.bf16.xpose.msra.mxu0 0
        %1330 = vmatprep.subr.bf16.mxu0 0
        %1331 = vmatpush1.bf16.xpose.msra.mxu0 0
        %1332 = vmatprep.subr.bf16.mxu0 0
        %1333 = vmatpush1.bf16.xpose.msra.mxu0 0
        %1334 = vmatprep.subr.bf16.mxu0 0
        %1335 = vmatpush1.bf16.xpose.msra.mxu0 0
        %1336 = vmatprep.subr.bf16.mxu0 0
        %1337 = vmatpush1.bf16.xpose.msra.mxu0 0
        %1338 = vmatprep.subr.bf16.mxu0 0
        %1339 = vmatpush1.bf16.xpose.msra.mxu0 0
        %1340 = vmatprep.subr.bf16.mxu0 0
        %1341 = vmatpush1.bf16.xpose.msra.mxu0 0
        %1342 = vmatprep.subr.bf16.mxu0 0
        %1343 = vmatpush1.bf16.xpose.msra.mxu0 0
        %1344 = vmatprep.subr.bf16.mxu0 0
        %1345 = vmatpush1.bf16.xpose.msra.mxu0 0
        %1346 = vmatprep.mubr.bf16.mxu0 0
        %1347 = vmatmul.mubr.bf16.gmra.mrb[0].mxu0 %v1309
        %v1348 = vpop.f32.mrb[0].mxu0
        %v1349 = vadd.f32 0.0, %v1348
        %v1350 = vpop.f32.mrb[0].mxu0
        %v1351 = vpop.f32.mrb[0].mxu0
        %v1352 = vpop.f32.mrb[0].mxu0
        %1353 = vdwg.mxu0
        %v1355 = vsel %vm1077, %v1067, 0
        %v1358 = vsel %vm1077, %v1075, 0
        %1360 = vmatprep.subr.bf16.mxu0 0
        %1361 = vmatpush1.bf16.xpose.msra.mxu0 %v1358
        %1362 = vmatprep.subr.bf16.mxu0 0
        %1363 = vmatpush1.bf16.xpose.msra.mxu0 0
        %1364 = vmatprep.subr.bf16.mxu0 0
        %1365 = vmatpush1.bf16.xpose.msra.mxu0 0
        %1366 = vmatprep.subr.bf16.mxu0 0
        %1367 = vmatpush1.bf16.xpose.msra.mxu0 0
        %1368 = vmatprep.subr.bf16.mxu0 0
        %1369 = vmatpush1.bf16.xpose.msra.mxu0 0
        %1370 = vmatprep.subr.bf16.mxu0 0
        %1371 = vmatpush1.bf16.xpose.msra.mxu0 0
        %1372 = vmatprep.subr.bf16.mxu0 0
        %1373 = vmatpush1.bf16.xpose.msra.mxu0 0
        %1374 = vmatprep.subr.bf16.mxu0 0
        %1375 = vmatpush1.bf16.xpose.msra.mxu0 0
        %1376 = vmatprep.subr.bf16.mxu0 0
        %1377 = vmatpush1.bf16.xpose.msra.mxu0 0
        %1378 = vmatprep.subr.bf16.mxu0 0
        %1379 = vmatpush1.bf16.xpose.msra.mxu0 0
        %1380 = vmatprep.subr.bf16.mxu0 0
        %1381 = vmatpush1.bf16.xpose.msra.mxu0 0
        %1382 = vmatprep.subr.bf16.mxu0 0
        %1383 = vmatpush1.bf16.xpose.msra.mxu0 0
        %1384 = vmatprep.subr.bf16.mxu0 0
        %1385 = vmatpush1.bf16.xpose.msra.mxu0 0
        %1386 = vmatprep.subr.bf16.mxu0 0
        %1387 = vmatpush1.bf16.xpose.msra.mxu0 0
        %1388 = vmatprep.subr.bf16.mxu0 0
        %1389 = vmatpush1.bf16.xpose.msra.mxu0 0
        %1390 = vmatprep.subr.bf16.mxu0 0
        %1391 = vmatpush1.bf16.xpose.msra.mxu0 0
        %1392 = vmatprep.mubr.bf16.mxu0 0
        %1393 = vmatmul.mubr.bf16.gmra.mrb[0].mxu0 %v1355
        %v1394 = vpop.f32.mrb[0].mxu0
        %v1395 = vadd.f32 0.0, %v1394
        %v1396 = vpop.f32.mrb[0].mxu0
        %v1397 = vpop.f32.mrb[0].mxu0
        %v1398 = vpop.f32.mrb[0].mxu0
        %1399 = vdwg.mxu0
        %v1401 = vsel %vm1077, %v1068, 0
        %v1404 = vsel %vm1077, %v1076, 0
        %1406 = vmatprep.subr.bf16.mxu0 0
        %1407 = vmatpush1.bf16.xpose.msra.mxu0 %v1404
        %1408 = vmatprep.subr.bf16.mxu0 0
        %1409 = vmatpush1.bf16.xpose.msra.mxu0 0
        %1410 = vmatprep.subr.bf16.mxu0 0
        %1411 = vmatpush1.bf16.xpose.msra.mxu0 0
        %1412 = vmatprep.subr.bf16.mxu0 0
        %1413 = vmatpush1.bf16.xpose.msra.mxu0 0
        %1414 = vmatprep.subr.bf16.mxu0 0
        %1415 = vmatpush1.bf16.xpose.msra.mxu0 0
        %1416 = vmatprep.subr.bf16.mxu0 0
        %1417 = vmatpush1.bf16.xpose.msra.mxu0 0
        %1418 = vmatprep.subr.bf16.mxu0 0
        %1419 = vmatpush1.bf16.xpose.msra.mxu0 0
        %1420 = vmatprep.subr.bf16.mxu0 0
        %1421 = vmatpush1.bf16.xpose.msra.mxu0 0
        %1422 = vmatprep.subr.bf16.mxu0 0
        %1423 = vmatpush1.bf16.xpose.msra.mxu0 0
        %1424 = vmatprep.subr.bf16.mxu0 0
        %1425 = vmatpush1.bf16.xpose.msra.mxu0 0
        %1426 = vmatprep.subr.bf16.mxu0 0
        %1427 = vmatpush1.bf16.xpose.msra.mxu0 0
        %1428 = vmatprep.subr.bf16.mxu0 0
        %1429 = vmatpush1.bf16.xpose.msra.mxu0 0
        %1430 = vmatprep.subr.bf16.mxu0 0
        %1431 = vmatpush1.bf16.xpose.msra.mxu0 0
        %1432 = vmatprep.subr.bf16.mxu0 0
        %1433 = vmatpush1.bf16.xpose.msra.mxu0 0
        %1434 = vmatprep.subr.bf16.mxu0 0
        %1435 = vmatpush1.bf16.xpose.msra.mxu0 0
        %1436 = vmatprep.subr.bf16.mxu0 0
        %1437 = vmatpush1.bf16.xpose.msra.mxu0 0
        %1438 = vmatprep.mubr.bf16.mxu0 0
        %1439 = vmatmul.mubr.bf16.gmra.mrb[0].mxu0 %v1401
        %v1440 = vpop.f32.mrb[0].mxu0
        %v1441 = vadd.f32 0.0, %v1440
        %v1442 = vpop.f32.mrb[0].mxu0
        %v1443 = vpop.f32.mrb[0].mxu0
        %v1444 = vpop.f32.mrb[0].mxu0
        %1445 = vdwg.mxu0
        %v1446 = vmul.f32 %v1119, 0.35355338
        %v1447 = vmul.f32 %v1165, 0.35355338
        %v1448 = vmul.f32 %v1211, 0.35355338
        %v1449 = vmul.f32 %v1257, 0.35355338
        %v1450 = vmul.f32 %v1303, 0.35355338
        %v1451 = vmul.f32 %v1349, 0.35355338
        %v1452 = vmul.f32 %v1395, 0.35355338
        %v1453 = vmul.f32 %v1441, 0.35355338
        %v1454 = vsel %vm1077, %v1446, -inf
        %1455 = vmax.xlane.f32.xlu0 %v1454
        %v1456 = vpop.xlane.xlu0 %1455
        %v1457 = vsel %vm1077, %v1447, -inf
        %1458 = vmax.xlane.f32.xlu0 %v1457
        %v1459 = vpop.xlane.xlu0 %1458
        %v1460 = vsel %vm1077, %v1448, -inf
        %1461 = vmax.xlane.f32.xlu0 %v1460
        %v1462 = vpop.xlane.xlu0 %1461
        %v1463 = vsel %vm1077, %v1449, -inf
        %1464 = vmax.xlane.f32.xlu0 %v1463
        %v1465 = vpop.xlane.xlu0 %1464
        %v1466 = vsel %vm1077, %v1450, -inf
        %1467 = vmax.xlane.f32.xlu0 %v1466
        %v1468 = vpop.xlane.xlu0 %1467
        %v1469 = vsel %vm1077, %v1451, -inf
        %1470 = vmax.xlane.f32.xlu0 %v1469
        %v1471 = vpop.xlane.xlu0 %1470
        %v1472 = vsel %vm1077, %v1452, -inf
        %1473 = vmax.xlane.f32.xlu0 %v1472
        %v1474 = vpop.xlane.xlu0 %1473
        %v1475 = vsel %vm1077, %v1453, -inf
        %1476 = vmax.xlane.f32.xlu0 %v1475
        %v1477 = vpop.xlane.xlu0 %1476
        %v1478 = vsub.f32 %v1446, %v1456
        %v1479 = vsub.f32 %v1447, %v1459
        %v1480 = vsub.f32 %v1448, %v1462
        %v1481 = vsub.f32 %v1449, %v1465
        %v1482 = vsub.f32 %v1450, %v1468
        %v1483 = vsub.f32 %v1451, %v1471
        %v1484 = vsub.f32 %v1452, %v1474
        %v1485 = vsub.f32 %v1453, %v1477
        %v1486 = vmul.f32 %v1478, 1.442695
        %v1487 = vpow.pop %v1486
        %v1488 = vmul.f32 %v1479, 1.442695
        %v1489 = vpow.pop %v1488
        %v1490 = vmul.f32 %v1480, 1.442695
        %v1491 = vpow.pop %v1490
        %v1492 = vmul.f32 %v1481, 1.442695
        %v1493 = vpow.pop %v1492
        %v1494 = vmul.f32 %v1482, 1.442695
        %v1495 = vpow.pop %v1494
        %v1496 = vmul.f32 %v1483, 1.442695
        %v1497 = vpow.pop %v1496
        %v1498 = vmul.f32 %v1484, 1.442695
        %v1499 = vpow.pop %v1498
        %v1500 = vmul.f32 %v1485, 1.442695
        %v1501 = vpow.pop %v1500
        %v1502 = vsel %vm1077, %v1487, 0.0
        %1503 = vadd.xlane.f32.xlu0 %v1502
        %v1504 = vpop.xlane.xlu0 %1503
        %v1505 = vsel %vm1077, %v1489, 0.0
        %1506 = vadd.xlane.f32.xlu0 %v1505
        %v1507 = vpop.xlane.xlu0 %1506
        %v1508 = vsel %vm1077, %v1491, 0.0
        %1509 = vadd.xlane.f32.xlu0 %v1508
        %v1510 = vpop.xlane.xlu0 %1509
        %v1511 = vsel %vm1077, %v1493, 0.0
        %1512 = vadd.xlane.f32.xlu0 %v1511
        %v1513 = vpop.xlane.xlu0 %1512
        %v1514 = vsel %vm1077, %v1495, 0.0
        %1515 = vadd.xlane.f32.xlu0 %v1514
        %v1516 = vpop.xlane.xlu0 %1515
        %v1517 = vsel %vm1077, %v1497, 0.0
        %1518 = vadd.xlane.f32.xlu0 %v1517
        %v1519 = vpop.xlane.xlu0 %1518
        %v1520 = vsel %vm1077, %v1499, 0.0
        %1521 = vadd.xlane.f32.xlu0 %v1520
        %v1522 = vpop.xlane.xlu0 %1521
        %v1523 = vsel %vm1077, %v1501, 0.0
        %1524 = vadd.xlane.f32.xlu0 %v1523
        %v1525 = vpop.xlane.xlu0 %1524
        %v1526 = vrcp.pop %v1504
        %v1527 = vrcp.pop %v1507
        %v1528 = vrcp.pop %v1510
        %v1529 = vrcp.pop %v1513
        %v1530 = vrcp.pop %v1516
        %v1531 = vrcp.pop %v1519
        %v1532 = vrcp.pop %v1522
        %v1533 = vrcp.pop %v1525
        %v1534 = vmul.f32 %v1487, %v1526
        %v1535 = vmul.f32 %v1489, %v1527
        %v1536 = vmul.f32 %v1491, %v1528
        %v1537 = vmul.f32 %v1493, %v1529
        %v1538 = vmul.f32 %v1495, %v1530
        %v1539 = vmul.f32 %v1497, %v1531
        %v1540 = vmul.f32 %v1499, %v1532
        %v1541 = vmul.f32 %v1501, %v1533
        %v1546 = vlaneseq
        %v1547 = vshrl.u32 %v1546, 7
        %v1548 = vsub.s32 0, %v1547
        %v1549 = vrot.slane %v839, %v1548
        %v1550 = vlaneseq
        %v1551 = vshrl.u32 %v1550, 7
        %v1552 = vsub.s32 0, %v1551
        %v1553 = vrot.slane %v840, %v1552
        %v1554 = vlaneseq
        %v1555 = vshrl.u32 %v1554, 7
        %v1556 = vsub.s32 0, %v1555
        %v1557 = vrot.slane %v841, %v1556
        %v1558 = vlaneseq
        %v1559 = vshrl.u32 %v1558, 7
        %v1560 = vsub.s32 0, %v1559
        %v1561 = vrot.slane %v842, %v1560
        %1562 = vset.pattern.permute.xlu0 0
        %1563 = vperm.xlu0 %1562, %v1549
        %v1564 = vpop.permute.xlu0 %1563
        %1566 = vset.pattern.permute.xlu0 0
        %1567 = vperm.xlu0 %1566, %v1553
        %v1568 = vpop.permute.xlu0 %1567
        %1570 = vset.pattern.permute.xlu0 0
        %1571 = vperm.xlu0 %1570, %v1557
        %v1572 = vpop.permute.xlu0 %1571
        %1574 = vset.pattern.permute.xlu0 0
        %1575 = vperm.xlu0 %1574, %v1561
        %v1576 = vpop.permute.xlu0 %1575
        %v1578 = vmul.f32 %v1564, %v1538
        %v1579 = vmul.f32 %v1568, %v1539
        %v1580 = vmul.f32 %v1572, %v1540
        %v1581 = vmul.f32 %v1576, %v1541
        %v1582 = vsub.f32 %v1534, %v1578
        %v1583 = vsub.f32 %v1535, %v1579
        %v1584 = vsub.f32 %v1536, %v1580
        %v1585 = vsub.f32 %v1537, %v1581
        %v1586 = vsel %vm1077, %v1582, -inf
        %1587 = vmax.xlane.f32.xlu0 %v1586
        %v1588 = vpop.xlane.xlu0 %1587
        %v1589 = vsel %vm1077, %v1583, -inf
        %1590 = vmax.xlane.f32.xlu0 %v1589
        %v1591 = vpop.xlane.xlu0 %1590
        %v1592 = vsel %vm1077, %v1584, -inf
        %1593 = vmax.xlane.f32.xlu0 %v1592
        %v1594 = vpop.xlane.xlu0 %1593
        %v1595 = vsel %vm1077, %v1585, -inf
        %1596 = vmax.xlane.f32.xlu0 %v1595
        %v1597 = vpop.xlane.xlu0 %1596
        %v1598 = vsub.f32 %v1582, %v1588
        %v1599 = vsub.f32 %v1583, %v1591
        %v1600 = vsub.f32 %v1584, %v1594
        %v1601 = vsub.f32 %v1585, %v1597
        %v1602 = vmul.f32 %v1598, 1.442695
        %v1603 = vpow.pop %v1602
        %v1604 = vmul.f32 %v1599, 1.442695
        %v1605 = vpow.pop %v1604
        %v1606 = vmul.f32 %v1600, 1.442695
        %v1607 = vpow.pop %v1606
        %v1608 = vmul.f32 %v1601, 1.442695
        %v1609 = vpow.pop %v1608
        %v1610 = vsel %vm1077, %v1603, 0.0
        %1611 = vadd.xlane.f32.xlu0 %v1610
        %v1612 = vpop.xlane.xlu0 %1611
        %v1613 = vsel %vm1077, %v1605, 0.0
        %1614 = vadd.xlane.f32.xlu0 %v1613
        %v1615 = vpop.xlane.xlu0 %1614
        %v1616 = vsel %vm1077, %v1607, 0.0
        %1617 = vadd.xlane.f32.xlu0 %v1616
        %v1618 = vpop.xlane.xlu0 %1617
        %v1619 = vsel %vm1077, %v1609, 0.0
        %1620 = vadd.xlane.f32.xlu0 %v1619
        %v1621 = vpop.xlane.xlu0 %1620
        %v1622 = vrcp.pop %v1612
        %v1623 = vrcp.pop %v1615
        %v1624 = vrcp.pop %v1618
        %v1625 = vrcp.pop %v1621
        %v1626 = vmul.f32 %v1603, %v1622
        %v1627 = vmul.f32 %v1605, %v1623
        %v1628 = vmul.f32 %v1607, %v1624
        %v1629 = vmul.f32 %v1609, %v1625
        %v1630 = vpack.c.bf16 %v1626, %v1626
        %v1631 = vpack.c.bf16 %v1627, %v1627
        %v1632 = vpack.c.bf16 %v1628, %v1628
        %v1633 = vpack.c.bf16 %v1629, %v1629
        %v1634 = vpack.c.bf16 %v1002, %v1002
        %v1635 = vpack.c.bf16 %v1053, %v1053
        %v1636 = vpack.c.bf16 %v1056, %v1056
        %v1637 = vpack.c.bf16 %v1059, %v1059
        %v1639 = vsel %vm1077, %v1630, 0
        %vm1641 = vcmask 1043456
        %v1643 = vsel %vm1641, %v1634, 0
        %1645 = vmatprep.subr.bf16.mxu0 0
        %1646 = vmatpush1.bf16.msra.mxu0 %v1643
        %1647 = vmatprep.subr.bf16.mxu0 0
        %1648 = vmatpush1.bf16.msra.mxu0 0
        %1649 = vmatprep.subr.bf16.mxu0 0
        %1650 = vmatpush1.bf16.msra.mxu0 0
        %1651 = vmatprep.subr.bf16.mxu0 0
        %1652 = vmatpush1.bf16.msra.mxu0 0
        %1653 = vmatprep.subr.bf16.mxu0 0
        %1654 = vmatpush1.bf16.msra.mxu0 0
        %1655 = vmatprep.subr.bf16.mxu0 0
        %1656 = vmatpush1.bf16.msra.mxu0 0
        %1657 = vmatprep.subr.bf16.mxu0 0
        %1658 = vmatpush1.bf16.msra.mxu0 0
        %1659 = vmatprep.subr.bf16.mxu0 0
        %1660 = vmatpush1.bf16.msra.mxu0 0
        %1661 = vmatprep.subr.bf16.mxu0 0
        %1662 = vmatpush1.bf16.msra.mxu0 0
        %1663 = vmatprep.subr.bf16.mxu0 0
        %1664 = vmatpush1.bf16.msra.mxu0 0
        %1665 = vmatprep.subr.bf16.mxu0 0
        %1666 = vmatpush1.bf16.msra.mxu0 0
        %1667 = vmatprep.subr.bf16.mxu0 0
        %1668 = vmatpush1.bf16.msra.mxu0 0
        %1669 = vmatprep.subr.bf16.mxu0 0
        %1670 = vmatpush1.bf16.msra.mxu0 0
        %1671 = vmatprep.subr.bf16.mxu0 0
        %1672 = vmatpush1.bf16.msra.mxu0 0
        %1673 = vmatprep.subr.bf16.mxu0 0
        %1674 = vmatpush1.bf16.msra.mxu0 0
        %1675 = vmatprep.subr.bf16.mxu0 0
        %1676 = vmatpush1.bf16.msra.mxu0 0
        %1677 = vmatprep.mubr.bf16.mxu0 0
        %1678 = vmatmul.mubr.bf16.gmra.mrb[0].mxu0 %v1639
        %v1679 = vpop.f32.mrb[0].mxu0
        %v1680 = vadd.f32 0.0, %v1679
        %v1681 = vpop.f32.mrb[0].mxu0
        %v1682 = vpop.f32.mrb[0].mxu0
        %v1683 = vpop.f32.mrb[0].mxu0
        %1684 = vdwg.mxu0
        %v1686 = vsel %vm1077, %v1631, 0
        %v1689 = vsel %vm1641, %v1635, 0
        %1691 = vmatprep.subr.bf16.mxu0 0
        %1692 = vmatpush1.bf16.msra.mxu0 %v1689
        %1693 = vmatprep.subr.bf16.mxu0 0
        %1694 = vmatpush1.bf16.msra.mxu0 0
        %1695 = vmatprep.subr.bf16.mxu0 0
        %1696 = vmatpush1.bf16.msra.mxu0 0
        %1697 = vmatprep.subr.bf16.mxu0 0
        %1698 = vmatpush1.bf16.msra.mxu0 0
        %1699 = vmatprep.subr.bf16.mxu0 0
        %1700 = vmatpush1.bf16.msra.mxu0 0
        %1701 = vmatprep.subr.bf16.mxu0 0
        %1702 = vmatpush1.bf16.msra.mxu0 0
        %1703 = vmatprep.subr.bf16.mxu0 0
        %1704 = vmatpush1.bf16.msra.mxu0 0
        %1705 = vmatprep.subr.bf16.mxu0 0
        %1706 = vmatpush1.bf16.msra.mxu0 0
        %1707 = vmatprep.subr.bf16.mxu0 0
        %1708 = vmatpush1.bf16.msra.mxu0 0
        %1709 = vmatprep.subr.bf16.mxu0 0
        %1710 = vmatpush1.bf16.msra.mxu0 0
        %1711 = vmatprep.subr.bf16.mxu0 0
        %1712 = vmatpush1.bf16.msra.mxu0 0
        %1713 = vmatprep.subr.bf16.mxu0 0
        %1714 = vmatpush1.bf16.msra.mxu0 0
        %1715 = vmatprep.subr.bf16.mxu0 0
        %1716 = vmatpush1.bf16.msra.mxu0 0
        %1717 = vmatprep.subr.bf16.mxu0 0
        %1718 = vmatpush1.bf16.msra.mxu0 0
        %1719 = vmatprep.subr.bf16.mxu0 0
        %1720 = vmatpush1.bf16.msra.mxu0 0
        %1721 = vmatprep.subr.bf16.mxu0 0
        %1722 = vmatpush1.bf16.msra.mxu0 0
        %1723 = vmatprep.mubr.bf16.mxu0 0
        %1724 = vmatmul.mubr.bf16.gmra.mrb[0].mxu0 %v1686
        %v1725 = vpop.f32.mrb[0].mxu0
        %v1726 = vadd.f32 0.0, %v1725
        %v1727 = vpop.f32.mrb[0].mxu0
        %v1728 = vpop.f32.mrb[0].mxu0
        %v1729 = vpop.f32.mrb[0].mxu0
        %1730 = vdwg.mxu0
        %v1732 = vsel %vm1077, %v1632, 0
        %v1735 = vsel %vm1641, %v1636, 0
        %1737 = vmatprep.subr.bf16.mxu0 0
        %1738 = vmatpush1.bf16.msra.mxu0 %v1735
        %1739 = vmatprep.subr.bf16.mxu0 0
        %1740 = vmatpush1.bf16.msra.mxu0 0
        %1741 = vmatprep.subr.bf16.mxu0 0
        %1742 = vmatpush1.bf16.msra.mxu0 0
        %1743 = vmatprep.subr.bf16.mxu0 0
        %1744 = vmatpush1.bf16.msra.mxu0 0
        %1745 = vmatprep.subr.bf16.mxu0 0
        %1746 = vmatpush1.bf16.msra.mxu0 0
        %1747 = vmatprep.subr.bf16.mxu0 0
        %1748 = vmatpush1.bf16.msra.mxu0 0
        %1749 = vmatprep.subr.bf16.mxu0 0
        %1750 = vmatpush1.bf16.msra.mxu0 0
        %1751 = vmatprep.subr.bf16.mxu0 0
        %1752 = vmatpush1.bf16.msra.mxu0 0
        %1753 = vmatprep.subr.bf16.mxu0 0
        %1754 = vmatpush1.bf16.msra.mxu0 0
        %1755 = vmatprep.subr.bf16.mxu0 0
        %1756 = vmatpush1.bf16.msra.mxu0 0
        %1757 = vmatprep.subr.bf16.mxu0 0
        %1758 = vmatpush1.bf16.msra.mxu0 0
        %1759 = vmatprep.subr.bf16.mxu0 0
        %1760 = vmatpush1.bf16.msra.mxu0 0
        %1761 = vmatprep.subr.bf16.mxu0 0
        %1762 = vmatpush1.bf16.msra.mxu0 0
        %1763 = vmatprep.subr.bf16.mxu0 0
        %1764 = vmatpush1.bf16.msra.mxu0 0
        %1765 = vmatprep.subr.bf16.mxu0 0
        %1766 = vmatpush1.bf16.msra.mxu0 0
        %1767 = vmatprep.subr.bf16.mxu0 0
        %1768 = vmatpush1.bf16.msra.mxu0 0
        %1769 = vmatprep.mubr.bf16.mxu0 0
        %1770 = vmatmul.mubr.bf16.gmra.mrb[0].mxu0 %v1732
        %v1771 = vpop.f32.mrb[0].mxu0
        %v1772 = vadd.f32 0.0, %v1771
        %v1773 = vpop.f32.mrb[0].mxu0
        %v1774 = vpop.f32.mrb[0].mxu0
        %v1775 = vpop.f32.mrb[0].mxu0
        %1776 = vdwg.mxu0
        %v1778 = vsel %vm1077, %v1633, 0
        %v1781 = vsel %vm1641, %v1637, 0
        %1783 = vmatprep.subr.bf16.mxu0 0
        %1784 = vmatpush1.bf16.msra.mxu0 %v1781
        %1785 = vmatprep.subr.bf16.mxu0 0
        %1786 = vmatpush1.bf16.msra.mxu0 0
        %1787 = vmatprep.subr.bf16.mxu0 0
        %1788 = vmatpush1.bf16.msra.mxu0 0
        %1789 = vmatprep.subr.bf16.mxu0 0
        %1790 = vmatpush1.bf16.msra.mxu0 0
        %1791 = vmatprep.subr.bf16.mxu0 0
        %1792 = vmatpush1.bf16.msra.mxu0 0
        %1793 = vmatprep.subr.bf16.mxu0 0
        %1794 = vmatpush1.bf16.msra.mxu0 0
        %1795 = vmatprep.subr.bf16.mxu0 0
        %1796 = vmatpush1.bf16.msra.mxu0 0
        %1797 = vmatprep.subr.bf16.mxu0 0
        %1798 = vmatpush1.bf16.msra.mxu0 0
        %1799 = vmatprep.subr.bf16.mxu0 0
        %1800 = vmatpush1.bf16.msra.mxu0 0
        %1801 = vmatprep.subr.bf16.mxu0 0
        %1802 = vmatpush1.bf16.msra.mxu0 0
        %1803 = vmatprep.subr.bf16.mxu0 0
        %1804 = vmatpush1.bf16.msra.mxu0 0
        %1805 = vmatprep.subr.bf16.mxu0 0
        %1806 = vmatpush1.bf16.msra.mxu0 0
        %1807 = vmatprep.subr.bf16.mxu0 0
        %1808 = vmatpush1.bf16.msra.mxu0 0
        %1809 = vmatprep.subr.bf16.mxu0 0
        %1810 = vmatpush1.bf16.msra.mxu0 0
        %1811 = vmatprep.subr.bf16.mxu0 0
        %1812 = vmatpush1.bf16.msra.mxu0 0
        %1813 = vmatprep.subr.bf16.mxu0 0
        %1814 = vmatpush1.bf16.msra.mxu0 0
        %1815 = vmatprep.mubr.bf16.mxu0 0
        %1816 = vmatmul.mubr.bf16.gmra.mrb[0].mxu0 %v1778
        %v1817 = vpop.f32.mrb[0].mxu0
        %v1818 = vadd.f32 0.0, %v1817
        %v1819 = vpop.f32.mrb[0].mxu0
        %v1820 = vpop.f32.mrb[0].mxu0
        %v1821 = vpop.f32.mrb[0].mxu0
        %1822 = vdwg.mxu0
        %1824 = vrot.lane.b32.xlu0 %v1726, 8
        %v1825 = vpop.permute.xlu0 %1824
        %1828 = vrot.lane.b32.xlu0 %v1772, 16
        %v1829 = vpop.permute.xlu0 %1828
        %1832 = vrot.lane.b32.xlu0 %v1818, 24
        %v1833 = vpop.permute.xlu0 %1832
        %v1835 = vsel %vm1077, %v1680, %v1825
        %vm1836 = vcmask 130048
        %v1837 = vsel %vm1836, %v1835, %v1829
        %vm1838 = vcmask 195584
        %v1839 = vsel %vm1838, %v1837, %v1833
        %v1840 = vmul.f32 %v1839, %v1839
        %v1841 = vsel %vm772, %v1840, 0.0
        %1842 = vadd.xlane.f32.xlu0 %v1841
        %v1843 = vpop.xlane.xlu0 %1842
        %v1844 = vmul.f32 %v1843, %v776
        %v1845 = vadd.f32 %v1844, 1e-06
        %v1846 = vrsqrt.pop %v1845
        %v1847 = vmul.f32 %v1839, %v1846
        %v1849 = vlaneseq
        %v1850 = vshrl.u32 %v1849, 7
        %v1851 = vsub.s32 0, %v1850
        %v1852 = vrot.slane %v838, %v1851
        %v1854 = vmul.f32 %v1847, %v1852
        %v1855 = vpack.c.bf16 %v1854, %v1854
        %v1860 = vunpack.c.l.b16 %v834
        %v1861 = vunpack.c.l.b16 %v835
        %v1862 = vunpack.c.l.b16 %v836
        %v1863 = vunpack.c.l.b16 %v837
        %v1864 = vpack.c.b16 %v1861, %v1860
        %v1865 = vpack.c.b16 %v1863, %v1862
        %v1869 = vsel %vm772, %v1855, 0
        %1871 = vmatprep.subr.bf16.mxu0 0
        %1872 = vmatpush1.bf16.msra.mxu0 %v1864
        %1873 = vmatprep.subr.bf16.mxu0 0
        %1874 = vmatpush1.bf16.msra.mxu0 %v1865
        %1875 = vmatprep.subr.bf16.mxu0 0
        %1876 = vmatpush1.bf16.msra.mxu0 0
        %1877 = vmatprep.subr.bf16.mxu0 0
        %1878 = vmatpush1.bf16.msra.mxu0 0
        %1879 = vmatprep.subr.bf16.mxu0 0
        %1880 = vmatpush1.bf16.msra.mxu0 0
        %1881 = vmatprep.subr.bf16.mxu0 0
        %1882 = vmatpush1.bf16.msra.mxu0 0
        %1883 = vmatprep.subr.bf16.mxu0 0
        %1884 = vmatpush1.bf16.msra.mxu0 0
        %1885 = vmatprep.subr.bf16.mxu0 0
        %1886 = vmatpush1.bf16.msra.mxu0 0
        %1887 = vmatprep.subr.bf16.mxu0 0
        %1888 = vmatpush1.bf16.msra.mxu0 0
        %1889 = vmatprep.subr.bf16.mxu0 0
        %1890 = vmatpush1.bf16.msra.mxu0 0
        %1891 = vmatprep.subr.bf16.mxu0 0
        %1892 = vmatpush1.bf16.msra.mxu0 0
        %1893 = vmatprep.subr.bf16.mxu0 0
        %1894 = vmatpush1.bf16.msra.mxu0 0
        %1895 = vmatprep.subr.bf16.mxu0 0
        %1896 = vmatpush1.bf16.msra.mxu0 0
        %1897 = vmatprep.subr.bf16.mxu0 0
        %1898 = vmatpush1.bf16.msra.mxu0 0
        %1899 = vmatprep.subr.bf16.mxu0 0
        %1900 = vmatpush1.bf16.msra.mxu0 0
        %1901 = vmatprep.subr.bf16.mxu0 0
        %1902 = vmatpush1.bf16.msra.mxu0 0
        %1903 = vmatprep.mubr.bf16.mxu0 0
        %1904 = vmatmul.mubr.bf16.gmra.mrb[0].mxu0 %v1869
        %v1905 = vpop.f32.mrb[0].mxu0
        %v1906 = vadd.f32 0.0, %v1905
        %v1907 = vpop.f32.mrb[0].mxu0
        %v1908 = vpop.f32.mrb[0].mxu0
        %v1909 = vpop.f32.mrb[0].mxu0
        %1910 = vdwg.mxu0
        %v1911 = vadd.f32 %v768, %v787
        %v1912 = vadd.f32 %v1911, %v1906
        %v1913 = vld [vmem:[%s3] sm:$0x1]
        %v1914 = vmul.f32 %v1912, %v1912
        %v1915 = vsel %vm772, %v1914, 0.0
        %1916 = vadd.xlane.f32.xlu0 %v1915
        %v1917 = vpop.xlane.xlu0 %1916
        %v1918 = vmul.f32 %v1917, %v776
        %v1919 = vadd.f32 %v1918, 1e-06
        %v1920 = vrsqrt.pop %v1919
        %v1921 = vmul.f32 %v1912, %v1920
        %v1923 = vlaneseq
        %v1924 = vshrl.u32 %v1923, 7
        %v1925 = vsub.s32 0, %v1924
        %v1926 = vrot.slane %v1913, %v1925
        %v1928 = vmul.f32 %v1921, %v1926
        %v1929 = vld [vmem:[%s12] sm:$0xf]
        %v1930 = vld [vmem:[%s12 + $0x4] sm:$0xf]
        %v1931 = vld [vmem:[%s12 + $0x8] sm:$0xf]
        %v1932 = vld [vmem:[%s12 + $0xc] sm:$0xf]
        %v1933 = vld [vmem:[%s13] sm:$0xf]
        %v1934 = vld [vmem:[%s13 + $0x4] sm:$0xf]
        %v1935 = vld [vmem:[%s13 + $0x8] sm:$0xf]
        %v1936 = vld [vmem:[%s13 + $0xc] sm:$0xf]
        %v1937 = vld [vmem:[%s14] sm:$0xf]
        %v1938 = vld [vmem:[%s14 + $0x4] sm:$0xf]
        %v1939 = vld [vmem:[%s14 + $0x8] sm:$0xf]
        %v1940 = vld [vmem:[%s14 + $0xc] sm:$0xf]
        %v1941 = vld [vmem:[%s15] sm:$0xf]
        %v1942 = vld [vmem:[%s15 + $0x4] sm:$0xf]
        %v1943 = vld [vmem:[%s15 + $0x8] sm:$0xf]
        %v1944 = vld [vmem:[%s15 + $0xc] sm:$0xf]
        %v1945 = vld [vmem:[%s16] sm:$0x1]
        %v1946 = vld [vmem:[%s17] sm:$0x1]
        %v1947 = vld [vmem:[%s17 + $0x1] sm:$0x1]
        %v1948 = vld [vmem:[%s17 + $0x2] sm:$0x1]
        %v1949 = vld [vmem:[%s17 + $0x3] sm:$0x1]
        %v1950 = vpack.c.bf16 %v1928, %v1928
        %v1955 = vunpack.c.l.b16 %v1929
        %v1956 = vunpack.c.l.b16 %v1930
        %v1957 = vunpack.c.l.b16 %v1931
        %v1958 = vunpack.c.l.b16 %v1932
        %v1959 = vpack.c.b16 %v1956, %v1955
        %v1960 = vpack.c.b16 %v1958, %v1957
        %v1964 = vsel %vm772, %v1950, 0
        %1966 = vmatprep.subr.bf16.mxu0 0
        %1967 = vmatpush1.bf16.msra.mxu0 %v1959
        %1968 = vmatprep.subr.bf16.mxu0 0
        %1969 = vmatpush1.bf16.msra.mxu0 %v1960
        %1970 = vmatprep.subr.bf16.mxu0 0
        %1971 = vmatpush1.bf16.msra.mxu0 0
        %1972 = vmatprep.subr.bf16.mxu0 0
        %1973 = vmatpush1.bf16.msra.mxu0 0
        %1974 = vmatprep.subr.bf16.mxu0 0
        %1975 = vmatpush1.bf16.msra.mxu0 0
        %1976 = vmatprep.subr.bf16.mxu0 0
        %1977 = vmatpush1.bf16.msra.mxu0 0
        %1978 = vmatprep.subr.bf16.mxu0 0
        %1979 = vmatpush1.bf16.msra.mxu0 0
        %1980 = vmatprep.subr.bf16.mxu0 0
        %1981 = vmatpush1.bf16.msra.mxu0 0
        %1982 = vmatprep.subr.bf16.mxu0 0
        %1983 = vmatpush1.bf16.msra.mxu0 0
        %1984 = vmatprep.subr.bf16.mxu0 0
        %1985 = vmatpush1.bf16.msra.mxu0 0
        %1986 = vmatprep.subr.bf16.mxu0 0
        %1987 = vmatpush1.bf16.msra.mxu0 0
        %1988 = vmatprep.subr.bf16.mxu0 0
        %1989 = vmatpush1.bf16.msra.mxu0 0
        %1990 = vmatprep.subr.bf16.mxu0 0
        %1991 = vmatpush1.bf16.msra.mxu0 0
        %1992 = vmatprep.subr.bf16.mxu0 0
        %1993 = vmatpush1.bf16.msra.mxu0 0
        %1994 = vmatprep.subr.bf16.mxu0 0
        %1995 = vmatpush1.bf16.msra.mxu0 0
        %1996 = vmatprep.subr.bf16.mxu0 0
        %1997 = vmatpush1.bf16.msra.mxu0 0
        %1998 = vmatprep.mubr.bf16.mxu0 0
        %1999 = vmatmul.mubr.bf16.gmra.mrb[0].mxu0 %v1964
        %v2000 = vpop.f32.mrb[0].mxu0
        %v2001 = vadd.f32 0.0, %v2000
        %v2002 = vpop.f32.mrb[0].mxu0
        %v2003 = vpop.f32.mrb[0].mxu0
        %v2004 = vpop.f32.mrb[0].mxu0
        %2005 = vdwg.mxu0
        %v2006 = vpack.c.bf16 %v769, %v769
        %v2011 = vunpack.c.l.b16 %v1933
        %v2012 = vunpack.c.l.b16 %v1934
        %v2013 = vunpack.c.l.b16 %v1935
        %v2014 = vunpack.c.l.b16 %v1936
        %v2015 = vpack.c.b16 %v2012, %v2011
        %v2016 = vpack.c.b16 %v2014, %v2013
        %v2020 = vsel %vm772, %v2006, 0
        %2022 = vmatprep.subr.bf16.mxu0 0
        %2023 = vmatpush1.bf16.msra.mxu0 %v2015
        %2024 = vmatprep.subr.bf16.mxu0 0
        %2025 = vmatpush1.bf16.msra.mxu0 %v2016
        %2026 = vmatprep.subr.bf16.mxu0 0
        %2027 = vmatpush1.bf16.msra.mxu0 0
        %2028 = vmatprep.subr.bf16.mxu0 0
        %2029 = vmatpush1.bf16.msra.mxu0 0
        %2030 = vmatprep.subr.bf16.mxu0 0
        %2031 = vmatpush1.bf16.msra.mxu0 0
        %2032 = vmatprep.subr.bf16.mxu0 0
        %2033 = vmatpush1.bf16.msra.mxu0 0
        %2034 = vmatprep.subr.bf16.mxu0 0
        %2035 = vmatpush1.bf16.msra.mxu0 0
        %2036 = vmatprep.subr.bf16.mxu0 0
        %2037 = vmatpush1.bf16.msra.mxu0 0
        %2038 = vmatprep.subr.bf16.mxu0 0
        %2039 = vmatpush1.bf16.msra.mxu0 0
        %2040 = vmatprep.subr.bf16.mxu0 0
        %2041 = vmatpush1.bf16.msra.mxu0 0
        %2042 = vmatprep.subr.bf16.mxu0 0
        %2043 = vmatpush1.bf16.msra.mxu0 0
        %2044 = vmatprep.subr.bf16.mxu0 0
        %2045 = vmatpush1.bf16.msra.mxu0 0
        %2046 = vmatprep.subr.bf16.mxu0 0
        %2047 = vmatpush1.bf16.msra.mxu0 0
        %2048 = vmatprep.subr.bf16.mxu0 0
        %2049 = vmatpush1.bf16.msra.mxu0 0
        %2050 = vmatprep.subr.bf16.mxu0 0
        %2051 = vmatpush1.bf16.msra.mxu0 0
        %2052 = vmatprep.subr.bf16.mxu0 0
        %2053 = vmatpush1.bf16.msra.mxu0 0
        %2054 = vmatprep.mubr.bf16.mxu0 0
        %2055 = vmatmul.mubr.bf16.gmra.mrb[0].mxu0 %v2020
        %v2056 = vpop.f32.mrb[0].mxu0
        %v2057 = vadd.f32 0.0, %v2056
        %v2058 = vpop.f32.mrb[0].mxu0
        %v2059 = vpop.f32.mrb[0].mxu0
        %v2060 = vpop.f32.mrb[0].mxu0
        %2061 = vdwg.mxu0
        %v2066 = vunpack.c.l.b16 %v1937
        %v2067 = vunpack.c.l.b16 %v1938
        %v2068 = vunpack.c.l.b16 %v1939
        %v2069 = vunpack.c.l.b16 %v1940
        %v2070 = vpack.c.b16 %v2067, %v2066
        %v2071 = vpack.c.b16 %v2069, %v2068
        %2074 = vmatprep.subr.bf16.mxu0 0
        %2075 = vmatpush1.bf16.msra.mxu0 %v2070
        %2076 = vmatprep.subr.bf16.mxu0 0
        %2077 = vmatpush1.bf16.msra.mxu0 %v2071
        %2078 = vmatprep.subr.bf16.mxu0 0
        %2079 = vmatpush1.bf16.msra.mxu0 0
        %2080 = vmatprep.subr.bf16.mxu0 0
        %2081 = vmatpush1.bf16.msra.mxu0 0
        %2082 = vmatprep.subr.bf16.mxu0 0
        %2083 = vmatpush1.bf16.msra.mxu0 0
        %2084 = vmatprep.subr.bf16.mxu0 0
        %2085 = vmatpush1.bf16.msra.mxu0 0
        %2086 = vmatprep.subr.bf16.mxu0 0
        %2087 = vmatpush1.bf16.msra.mxu0 0
        %2088 = vmatprep.subr.bf16.mxu0 0
        %2089 = vmatpush1.bf16.msra.mxu0 0
        %2090 = vmatprep.subr.bf16.mxu0 0
        %2091 = vmatpush1.bf16.msra.mxu0 0
        %2092 = vmatprep.subr.bf16.mxu0 0
        %2093 = vmatpush1.bf16.msra.mxu0 0
        %2094 = vmatprep.subr.bf16.mxu0 0
        %2095 = vmatpush1.bf16.msra.mxu0 0
        %2096 = vmatprep.subr.bf16.mxu0 0
        %2097 = vmatpush1.bf16.msra.mxu0 0
        %2098 = vmatprep.subr.bf16.mxu0 0
        %2099 = vmatpush1.bf16.msra.mxu0 0
        %2100 = vmatprep.subr.bf16.mxu0 0
        %2101 = vmatpush1.bf16.msra.mxu0 0
        %2102 = vmatprep.subr.bf16.mxu0 0
        %2103 = vmatpush1.bf16.msra.mxu0 0
        %2104 = vmatprep.subr.bf16.mxu0 0
        %2105 = vmatpush1.bf16.msra.mxu0 0
        %2106 = vmatprep.mubr.bf16.mxu0 0
        %2107 = vmatmul.mubr.bf16.gmra.mrb[0].mxu0 %v2020
        %v2108 = vpop.f32.mrb[0].mxu0
        %v2109 = vadd.f32 0.0, %v2108
        %v2110 = vpop.f32.mrb[0].mxu0
        %v2111 = vpop.f32.mrb[0].mxu0
        %v2112 = vpop.f32.mrb[0].mxu0
        %2113 = vdwg.mxu0
        %2115 = vrot.lane.b32.xlu0 %v2001, 120
        %v2116 = vpop.permute.xlu0 %2115
        %2118 = vrot.lane.b32.xlu0 %v2001, 112
        %v2119 = vpop.permute.xlu0 %2118
        %2121 = vrot.lane.b32.xlu0 %v2001, 104
        %v2122 = vpop.permute.xlu0 %2121
        %2124 = vrot.lane.b32.xlu0 %v2001, 96
        %v2125 = vpop.permute.xlu0 %2124
        %2127 = vrot.lane.b32.xlu0 %v2001, 88
        %v2128 = vpop.permute.xlu0 %2127
        %2130 = vrot.lane.b32.xlu0 %v2001, 80
        %v2131 = vpop.permute.xlu0 %2130
        %2133 = vrot.lane.b32.xlu0 %v2001, 72
        %v2134 = vpop.permute.xlu0 %2133
        %2137 = vrot.lane.b32.xlu0 %v2057, 120
        %v2138 = vpop.permute.xlu0 %2137
        %2140 = vrot.lane.b32.xlu0 %v2057, 112
        %v2141 = vpop.permute.xlu0 %2140
        %2143 = vrot.lane.b32.xlu0 %v2057, 104
        %v2144 = vpop.permute.xlu0 %2143
        %2146 = vrot.lane.b32.xlu0 %v2057, 96
        %v2147 = vpop.permute.xlu0 %2146
        %2149 = vrot.lane.b32.xlu0 %v2057, 88
        %v2150 = vpop.permute.xlu0 %2149
        %2152 = vrot.lane.b32.xlu0 %v2057, 80
        %v2153 = vpop.permute.xlu0 %2152
        %2155 = vrot.lane.b32.xlu0 %v2057, 72
        %v2156 = vpop.permute.xlu0 %2155
        %2159 = vrot.lane.b32.xlu0 %v2109, 120
        %v2160 = vpop.permute.xlu0 %2159
        %2162 = vrot.lane.b32.xlu0 %v2109, 112
        %v2163 = vpop.permute.xlu0 %2162
        %2165 = vrot.lane.b32.xlu0 %v2109, 104
        %v2166 = vpop.permute.xlu0 %2165
        %v2168 = vpack.c.bf16 %v2001, %v2001
        %v2169 = vpack.c.bf16 %v2116, %v2116
        %v2170 = vpack.c.bf16 %v2119, %v2119
        %v2171 = vpack.c.bf16 %v2122, %v2122
        %v2172 = vpack.c.bf16 %v2125, %v2125
        %v2173 = vpack.c.bf16 %v2128, %v2128
        %v2174 = vpack.c.bf16 %v2131, %v2131
        %v2175 = vpack.c.bf16 %v2134, %v2134
        %v2176 = vpack.c.bf16 %v2057, %v2057
        %v2177 = vpack.c.bf16 %v2138, %v2138
        %v2178 = vpack.c.bf16 %v2141, %v2141
        %v2179 = vpack.c.bf16 %v2144, %v2144
        %v2180 = vpack.c.bf16 %v2147, %v2147
        %v2181 = vpack.c.bf16 %v2150, %v2150
        %v2182 = vpack.c.bf16 %v2153, %v2153
        %v2183 = vpack.c.bf16 %v2156, %v2156
        %v2185 = vsel %vm1077, %v2168, 0
        %v2188 = vsel %vm1077, %v2176, 0
        %2190 = vmatprep.subr.bf16.mxu0 0
        %2191 = vmatpush1.bf16.xpose.msra.mxu0 %v2188
        %2192 = vmatprep.subr.bf16.mxu0 0
        %2193 = vmatpush1.bf16.xpose.msra.mxu0 0
        %2194 = vmatprep.subr.bf16.mxu0 0
        %2195 = vmatpush1.bf16.xpose.msra.mxu0 0
        %2196 = vmatprep.subr.bf16.mxu0 0
        %2197 = vmatpush1.bf16.xpose.msra.mxu0 0
        %2198 = vmatprep.subr.bf16.mxu0 0
        %2199 = vmatpush1.bf16.xpose.msra.mxu0 0
        %2200 = vmatprep.subr.bf16.mxu0 0
        %2201 = vmatpush1.bf16.xpose.msra.mxu0 0
        %2202 = vmatprep.subr.bf16.mxu0 0
        %2203 = vmatpush1.bf16.xpose.msra.mxu0 0
        %2204 = vmatprep.subr.bf16.mxu0 0
        %2205 = vmatpush1.bf16.xpose.msra.mxu0 0
        %2206 = vmatprep.subr.bf16.mxu0 0
        %2207 = vmatpush1.bf16.xpose.msra.mxu0 0
        %2208 = vmatprep.subr.bf16.mxu0 0
        %2209 = vmatpush1.bf16.xpose.msra.mxu0 0
        %2210 = vmatprep.subr.bf16.mxu0 0
        %2211 = vmatpush1.bf16.xpose.msra.mxu0 0
        %2212 = vmatprep.subr.bf16.mxu0 0
        %2213 = vmatpush1.bf16.xpose.msra.mxu0 0
        %2214 = vmatprep.subr.bf16.mxu0 0
        %2215 = vmatpush1.bf16.xpose.msra.mxu0 0
        %2216 = vmatprep.subr.bf16.mxu0 0
        %2217 = vmatpush1.bf16.xpose.msra.mxu0 0
        %2218 = vmatprep.subr.bf16.mxu0 0
        %2219 = vmatpush1.bf16.xpose.msra.mxu0 0
        %2220 = vmatprep.subr.bf16.mxu0 0
        %2221 = vmatpush1.bf16.xpose.msra.mxu0 0
        %2222 = vmatprep.mubr.bf16.mxu0 0
        %2223 = vmatmul.mubr.bf16.gmra.mrb[0].mxu0 %v2185
        %v2224 = vpop.f32.mrb[0].mxu0
        %v2225 = vadd.f32 0.0, %v2224
        %v2226 = vpop.f32.mrb[0].mxu0
        %v2227 = vpop.f32.mrb[0].mxu0
        %v2228 = vpop.f32.mrb[0].mxu0
        %2229 = vdwg.mxu0
        %v2231 = vsel %vm1077, %v2169, 0
        %v2234 = vsel %vm1077, %v2177, 0
        %2236 = vmatprep.subr.bf16.mxu0 0
        %2237 = vmatpush1.bf16.xpose.msra.mxu0 %v2234
        %2238 = vmatprep.subr.bf16.mxu0 0
        %2239 = vmatpush1.bf16.xpose.msra.mxu0 0
        %2240 = vmatprep.subr.bf16.mxu0 0
        %2241 = vmatpush1.bf16.xpose.msra.mxu0 0
        %2242 = vmatprep.subr.bf16.mxu0 0
        %2243 = vmatpush1.bf16.xpose.msra.mxu0 0
        %2244 = vmatprep.subr.bf16.mxu0 0
        %2245 = vmatpush1.bf16.xpose.msra.mxu0 0
        %2246 = vmatprep.subr.bf16.mxu0 0
        %2247 = vmatpush1.bf16.xpose.msra.mxu0 0
        %2248 = vmatprep.subr.bf16.mxu0 0
        %2249 = vmatpush1.bf16.xpose.msra.mxu0 0
        %2250 = vmatprep.subr.bf16.mxu0 0
        %2251 = vmatpush1.bf16.xpose.msra.mxu0 0
        %2252 = vmatprep.subr.bf16.mxu0 0
        %2253 = vmatpush1.bf16.xpose.msra.mxu0 0
        %2254 = vmatprep.subr.bf16.mxu0 0
        %2255 = vmatpush1.bf16.xpose.msra.mxu0 0
        %2256 = vmatprep.subr.bf16.mxu0 0
        %2257 = vmatpush1.bf16.xpose.msra.mxu0 0
        %2258 = vmatprep.subr.bf16.mxu0 0
        %2259 = vmatpush1.bf16.xpose.msra.mxu0 0
        %2260 = vmatprep.subr.bf16.mxu0 0
        %2261 = vmatpush1.bf16.xpose.msra.mxu0 0
        %2262 = vmatprep.subr.bf16.mxu0 0
        %2263 = vmatpush1.bf16.xpose.msra.mxu0 0
        %2264 = vmatprep.subr.bf16.mxu0 0
        %2265 = vmatpush1.bf16.xpose.msra.mxu0 0
        %2266 = vmatprep.subr.bf16.mxu0 0
        %2267 = vmatpush1.bf16.xpose.msra.mxu0 0
        %2268 = vmatprep.mubr.bf16.mxu0 0
        %2269 = vmatmul.mubr.bf16.gmra.mrb[0].mxu0 %v2231
        %v2270 = vpop.f32.mrb[0].mxu0
        %v2271 = vadd.f32 0.0, %v2270
        %v2272 = vpop.f32.mrb[0].mxu0
        %v2273 = vpop.f32.mrb[0].mxu0
        %v2274 = vpop.f32.mrb[0].mxu0
        %2275 = vdwg.mxu0
        %v2277 = vsel %vm1077, %v2170, 0
        %v2280 = vsel %vm1077, %v2178, 0
        %2282 = vmatprep.subr.bf16.mxu0 0
        %2283 = vmatpush1.bf16.xpose.msra.mxu0 %v2280
        %2284 = vmatprep.subr.bf16.mxu0 0
        %2285 = vmatpush1.bf16.xpose.msra.mxu0 0
        %2286 = vmatprep.subr.bf16.mxu0 0
        %2287 = vmatpush1.bf16.xpose.msra.mxu0 0
        %2288 = vmatprep.subr.bf16.mxu0 0
        %2289 = vmatpush1.bf16.xpose.msra.mxu0 0
        %2290 = vmatprep.subr.bf16.mxu0 0
        %2291 = vmatpush1.bf16.xpose.msra.mxu0 0
        %2292 = vmatprep.subr.bf16.mxu0 0
        %2293 = vmatpush1.bf16.xpose.msra.mxu0 0
        %2294 = vmatprep.subr.bf16.mxu0 0
        %2295 = vmatpush1.bf16.xpose.msra.mxu0 0
        %2296 = vmatprep.subr.bf16.mxu0 0
        %2297 = vmatpush1.bf16.xpose.msra.mxu0 0
        %2298 = vmatprep.subr.bf16.mxu0 0
        %2299 = vmatpush1.bf16.xpose.msra.mxu0 0
        %2300 = vmatprep.subr.bf16.mxu0 0
        %2301 = vmatpush1.bf16.xpose.msra.mxu0 0
        %2302 = vmatprep.subr.bf16.mxu0 0
        %2303 = vmatpush1.bf16.xpose.msra.mxu0 0
        %2304 = vmatprep.subr.bf16.mxu0 0
        %2305 = vmatpush1.bf16.xpose.msra.mxu0 0
        %2306 = vmatprep.subr.bf16.mxu0 0
        %2307 = vmatpush1.bf16.xpose.msra.mxu0 0
        %2308 = vmatprep.subr.bf16.mxu0 0
        %2309 = vmatpush1.bf16.xpose.msra.mxu0 0
        %2310 = vmatprep.subr.bf16.mxu0 0
        %2311 = vmatpush1.bf16.xpose.msra.mxu0 0
        %2312 = vmatprep.subr.bf16.mxu0 0
        %2313 = vmatpush1.bf16.xpose.msra.mxu0 0
        %2314 = vmatprep.mubr.bf16.mxu0 0
        %2315 = vmatmul.mubr.bf16.gmra.mrb[0].mxu0 %v2277
        %v2316 = vpop.f32.mrb[0].mxu0
        %v2317 = vadd.f32 0.0, %v2316
        %v2318 = vpop.f32.mrb[0].mxu0
        %v2319 = vpop.f32.mrb[0].mxu0
        %v2320 = vpop.f32.mrb[0].mxu0
        %2321 = vdwg.mxu0
        %v2323 = vsel %vm1077, %v2171, 0
        %v2326 = vsel %vm1077, %v2179, 0
        %2328 = vmatprep.subr.bf16.mxu0 0
        %2329 = vmatpush1.bf16.xpose.msra.mxu0 %v2326
        %2330 = vmatprep.subr.bf16.mxu0 0
        %2331 = vmatpush1.bf16.xpose.msra.mxu0 0
        %2332 = vmatprep.subr.bf16.mxu0 0
        %2333 = vmatpush1.bf16.xpose.msra.mxu0 0
        %2334 = vmatprep.subr.bf16.mxu0 0
        %2335 = vmatpush1.bf16.xpose.msra.mxu0 0
        %2336 = vmatprep.subr.bf16.mxu0 0
        %2337 = vmatpush1.bf16.xpose.msra.mxu0 0
        %2338 = vmatprep.subr.bf16.mxu0 0
        %2339 = vmatpush1.bf16.xpose.msra.mxu0 0
        %2340 = vmatprep.subr.bf16.mxu0 0
        %2341 = vmatpush1.bf16.xpose.msra.mxu0 0
        %2342 = vmatprep.subr.bf16.mxu0 0
        %2343 = vmatpush1.bf16.xpose.msra.mxu0 0
        %2344 = vmatprep.subr.bf16.mxu0 0
        %2345 = vmatpush1.bf16.xpose.msra.mxu0 0
        %2346 = vmatprep.subr.bf16.mxu0 0
        %2347 = vmatpush1.bf16.xpose.msra.mxu0 0
        %2348 = vmatprep.subr.bf16.mxu0 0
        %2349 = vmatpush1.bf16.xpose.msra.mxu0 0
        %2350 = vmatprep.subr.bf16.mxu0 0
        %2351 = vmatpush1.bf16.xpose.msra.mxu0 0
        %2352 = vmatprep.subr.bf16.mxu0 0
        %2353 = vmatpush1.bf16.xpose.msra.mxu0 0
        %2354 = vmatprep.subr.bf16.mxu0 0
        %2355 = vmatpush1.bf16.xpose.msra.mxu0 0
        %2356 = vmatprep.subr.bf16.mxu0 0
        %2357 = vmatpush1.bf16.xpose.msra.mxu0 0
        %2358 = vmatprep.subr.bf16.mxu0 0
        %2359 = vmatpush1.bf16.xpose.msra.mxu0 0
        %2360 = vmatprep.mubr.bf16.mxu0 0
        %2361 = vmatmul.mubr.bf16.gmra.mrb[0].mxu0 %v2323
        %v2362 = vpop.f32.mrb[0].mxu0
        %v2363 = vadd.f32 0.0, %v2362
        %v2364 = vpop.f32.mrb[0].mxu0
        %v2365 = vpop.f32.mrb[0].mxu0
        %v2366 = vpop.f32.mrb[0].mxu0
        %2367 = vdwg.mxu0
        %v2369 = vsel %vm1077, %v2172, 0
        %v2372 = vsel %vm1077, %v2180, 0
        %2374 = vmatprep.subr.bf16.mxu0 0
        %2375 = vmatpush1.bf16.xpose.msra.mxu0 %v2372
        %2376 = vmatprep.subr.bf16.mxu0 0
        %2377 = vmatpush1.bf16.xpose.msra.mxu0 0
        %2378 = vmatprep.subr.bf16.mxu0 0
        %2379 = vmatpush1.bf16.xpose.msra.mxu0 0
        %2380 = vmatprep.subr.bf16.mxu0 0
        %2381 = vmatpush1.bf16.xpose.msra.mxu0 0
        %2382 = vmatprep.subr.bf16.mxu0 0
        %2383 = vmatpush1.bf16.xpose.msra.mxu0 0
        %2384 = vmatprep.subr.bf16.mxu0 0
        %2385 = vmatpush1.bf16.xpose.msra.mxu0 0
        %2386 = vmatprep.subr.bf16.mxu0 0
        %2387 = vmatpush1.bf16.xpose.msra.mxu0 0
        %2388 = vmatprep.subr.bf16.mxu0 0
        %2389 = vmatpush1.bf16.xpose.msra.mxu0 0
        %2390 = vmatprep.subr.bf16.mxu0 0
        %2391 = vmatpush1.bf16.xpose.msra.mxu0 0
        %2392 = vmatprep.subr.bf16.mxu0 0
        %2393 = vmatpush1.bf16.xpose.msra.mxu0 0
        %2394 = vmatprep.subr.bf16.mxu0 0
        %2395 = vmatpush1.bf16.xpose.msra.mxu0 0
        %2396 = vmatprep.subr.bf16.mxu0 0
        %2397 = vmatpush1.bf16.xpose.msra.mxu0 0
        %2398 = vmatprep.subr.bf16.mxu0 0
        %2399 = vmatpush1.bf16.xpose.msra.mxu0 0
        %2400 = vmatprep.subr.bf16.mxu0 0
        %2401 = vmatpush1.bf16.xpose.msra.mxu0 0
        %2402 = vmatprep.subr.bf16.mxu0 0
        %2403 = vmatpush1.bf16.xpose.msra.mxu0 0
        %2404 = vmatprep.subr.bf16.mxu0 0
        %2405 = vmatpush1.bf16.xpose.msra.mxu0 0
        %2406 = vmatprep.mubr.bf16.mxu0 0
        %2407 = vmatmul.mubr.bf16.gmra.mrb[0].mxu0 %v2369
        %v2408 = vpop.f32.mrb[0].mxu0
        %v2409 = vadd.f32 0.0, %v2408
        %v2410 = vpop.f32.mrb[0].mxu0
        %v2411 = vpop.f32.mrb[0].mxu0
        %v2412 = vpop.f32.mrb[0].mxu0
        %2413 = vdwg.mxu0
        %v2415 = vsel %vm1077, %v2173, 0
        %v2418 = vsel %vm1077, %v2181, 0
        %2420 = vmatprep.subr.bf16.mxu0 0
        %2421 = vmatpush1.bf16.xpose.msra.mxu0 %v2418
        %2422 = vmatprep.subr.bf16.mxu0 0
        %2423 = vmatpush1.bf16.xpose.msra.mxu0 0
        %2424 = vmatprep.subr.bf16.mxu0 0
        %2425 = vmatpush1.bf16.xpose.msra.mxu0 0
        %2426 = vmatprep.subr.bf16.mxu0 0
        %2427 = vmatpush1.bf16.xpose.msra.mxu0 0
        %2428 = vmatprep.subr.bf16.mxu0 0
        %2429 = vmatpush1.bf16.xpose.msra.mxu0 0
        %2430 = vmatprep.subr.bf16.mxu0 0
        %2431 = vmatpush1.bf16.xpose.msra.mxu0 0
        %2432 = vmatprep.subr.bf16.mxu0 0
        %2433 = vmatpush1.bf16.xpose.msra.mxu0 0
        %2434 = vmatprep.subr.bf16.mxu0 0
        %2435 = vmatpush1.bf16.xpose.msra.mxu0 0
        %2436 = vmatprep.subr.bf16.mxu0 0
        %2437 = vmatpush1.bf16.xpose.msra.mxu0 0
        %2438 = vmatprep.subr.bf16.mxu0 0
        %2439 = vmatpush1.bf16.xpose.msra.mxu0 0
        %2440 = vmatprep.subr.bf16.mxu0 0
        %2441 = vmatpush1.bf16.xpose.msra.mxu0 0
        %2442 = vmatprep.subr.bf16.mxu0 0
        %2443 = vmatpush1.bf16.xpose.msra.mxu0 0
        %2444 = vmatprep.subr.bf16.mxu0 0
        %2445 = vmatpush1.bf16.xpose.msra.mxu0 0
        %2446 = vmatprep.subr.bf16.mxu0 0
        %2447 = vmatpush1.bf16.xpose.msra.mxu0 0
        %2448 = vmatprep.subr.bf16.mxu0 0
        %2449 = vmatpush1.bf16.xpose.msra.mxu0 0
        %2450 = vmatprep.subr.bf16.mxu0 0
        %2451 = vmatpush1.bf16.xpose.msra.mxu0 0
        %2452 = vmatprep.mubr.bf16.mxu0 0
        %2453 = vmatmul.mubr.bf16.gmra.mrb[0].mxu0 %v2415
        %v2454 = vpop.f32.mrb[0].mxu0
        %v2455 = vadd.f32 0.0, %v2454
        %v2456 = vpop.f32.mrb[0].mxu0
        %v2457 = vpop.f32.mrb[0].mxu0
        %v2458 = vpop.f32.mrb[0].mxu0
        %2459 = vdwg.mxu0
        %v2461 = vsel %vm1077, %v2174, 0
        %v2464 = vsel %vm1077, %v2182, 0
        %2466 = vmatprep.subr.bf16.mxu0 0
        %2467 = vmatpush1.bf16.xpose.msra.mxu0 %v2464
        %2468 = vmatprep.subr.bf16.mxu0 0
        %2469 = vmatpush1.bf16.xpose.msra.mxu0 0
        %2470 = vmatprep.subr.bf16.mxu0 0
        %2471 = vmatpush1.bf16.xpose.msra.mxu0 0
        %2472 = vmatprep.subr.bf16.mxu0 0
        %2473 = vmatpush1.bf16.xpose.msra.mxu0 0
        %2474 = vmatprep.subr.bf16.mxu0 0
        %2475 = vmatpush1.bf16.xpose.msra.mxu0 0
        %2476 = vmatprep.subr.bf16.mxu0 0
        %2477 = vmatpush1.bf16.xpose.msra.mxu0 0
        %2478 = vmatprep.subr.bf16.mxu0 0
        %2479 = vmatpush1.bf16.xpose.msra.mxu0 0
        %2480 = vmatprep.subr.bf16.mxu0 0
        %2481 = vmatpush1.bf16.xpose.msra.mxu0 0
        %2482 = vmatprep.subr.bf16.mxu0 0
        %2483 = vmatpush1.bf16.xpose.msra.mxu0 0
        %2484 = vmatprep.subr.bf16.mxu0 0
        %2485 = vmatpush1.bf16.xpose.msra.mxu0 0
        %2486 = vmatprep.subr.bf16.mxu0 0
        %2487 = vmatpush1.bf16.xpose.msra.mxu0 0
        %2488 = vmatprep.subr.bf16.mxu0 0
        %2489 = vmatpush1.bf16.xpose.msra.mxu0 0
        %2490 = vmatprep.subr.bf16.mxu0 0
        %2491 = vmatpush1.bf16.xpose.msra.mxu0 0
        %2492 = vmatprep.subr.bf16.mxu0 0
        %2493 = vmatpush1.bf16.xpose.msra.mxu0 0
        %2494 = vmatprep.subr.bf16.mxu0 0
        %2495 = vmatpush1.bf16.xpose.msra.mxu0 0
        %2496 = vmatprep.subr.bf16.mxu0 0
        %2497 = vmatpush1.bf16.xpose.msra.mxu0 0
        %2498 = vmatprep.mubr.bf16.mxu0 0
        %2499 = vmatmul.mubr.bf16.gmra.mrb[0].mxu0 %v2461
        %v2500 = vpop.f32.mrb[0].mxu0
        %v2501 = vadd.f32 0.0, %v2500
        %v2502 = vpop.f32.mrb[0].mxu0
        %v2503 = vpop.f32.mrb[0].mxu0
        %v2504 = vpop.f32.mrb[0].mxu0
        %2505 = vdwg.mxu0
        %v2507 = vsel %vm1077, %v2175, 0
        %v2510 = vsel %vm1077, %v2183, 0
        %2512 = vmatprep.subr.bf16.mxu0 0
        %2513 = vmatpush1.bf16.xpose.msra.mxu0 %v2510
        %2514 = vmatprep.subr.bf16.mxu0 0
        %2515 = vmatpush1.bf16.xpose.msra.mxu0 0
        %2516 = vmatprep.subr.bf16.mxu0 0
        %2517 = vmatpush1.bf16.xpose.msra.mxu0 0
        %2518 = vmatprep.subr.bf16.mxu0 0
        %2519 = vmatpush1.bf16.xpose.msra.mxu0 0
        %2520 = vmatprep.subr.bf16.mxu0 0
        %2521 = vmatpush1.bf16.xpose.msra.mxu0 0
        %2522 = vmatprep.subr.bf16.mxu0 0
        %2523 = vmatpush1.bf16.xpose.msra.mxu0 0
        %2524 = vmatprep.subr.bf16.mxu0 0
        %2525 = vmatpush1.bf16.xpose.msra.mxu0 0
        %2526 = vmatprep.subr.bf16.mxu0 0
        %2527 = vmatpush1.bf16.xpose.msra.mxu0 0
        %2528 = vmatprep.subr.bf16.mxu0 0
        %2529 = vmatpush1.bf16.xpose.msra.mxu0 0
        %2530 = vmatprep.subr.bf16.mxu0 0
        %2531 = vmatpush1.bf16.xpose.msra.mxu0 0
        %2532 = vmatprep.subr.bf16.mxu0 0
        %2533 = vmatpush1.bf16.xpose.msra.mxu0 0
        %2534 = vmatprep.subr.bf16.mxu0 0
        %2535 = vmatpush1.bf16.xpose.msra.mxu0 0
        %2536 = vmatprep.subr.bf16.mxu0 0
        %2537 = vmatpush1.bf16.xpose.msra.mxu0 0
        %2538 = vmatprep.subr.bf16.mxu0 0
        %2539 = vmatpush1.bf16.xpose.msra.mxu0 0
        %2540 = vmatprep.subr.bf16.mxu0 0
        %2541 = vmatpush1.bf16.xpose.msra.mxu0 0
        %2542 = vmatprep.subr.bf16.mxu0 0
        %2543 = vmatpush1.bf16.xpose.msra.mxu0 0
        %2544 = vmatprep.mubr.bf16.mxu0 0
        %2545 = vmatmul.mubr.bf16.gmra.mrb[0].mxu0 %v2507
        %v2546 = vpop.f32.mrb[0].mxu0
        %v2547 = vadd.f32 0.0, %v2546
        %v2548 = vpop.f32.mrb[0].mxu0
        %v2549 = vpop.f32.mrb[0].mxu0
        %v2550 = vpop.f32.mrb[0].mxu0
        %2551 = vdwg.mxu0
        %v2552 = vmul.f32 %v2225, 0.35355338
        %v2553 = vmul.f32 %v2271, 0.35355338
        %v2554 = vmul.f32 %v2317, 0.35355338
        %v2555 = vmul.f32 %v2363, 0.35355338
        %v2556 = vmul.f32 %v2409, 0.35355338
        %v2557 = vmul.f32 %v2455, 0.35355338
        %v2558 = vmul.f32 %v2501, 0.35355338
        %v2559 = vmul.f32 %v2547, 0.35355338
        %v2560 = vsel %vm1077, %v2552, -inf
        %2561 = vmax.xlane.f32.xlu0 %v2560
        %v2562 = vpop.xlane.xlu0 %2561
        %v2563 = vsel %vm1077, %v2553, -inf
        %2564 = vmax.xlane.f32.xlu0 %v2563
        %v2565 = vpop.xlane.xlu0 %2564
        %v2566 = vsel %vm1077, %v2554, -inf
        %2567 = vmax.xlane.f32.xlu0 %v2566
        %v2568 = vpop.xlane.xlu0 %2567
        %v2569 = vsel %vm1077, %v2555, -inf
        %2570 = vmax.xlane.f32.xlu0 %v2569
        %v2571 = vpop.xlane.xlu0 %2570
        %v2572 = vsel %vm1077, %v2556, -inf
        %2573 = vmax.xlane.f32.xlu0 %v2572
        %v2574 = vpop.xlane.xlu0 %2573
        %v2575 = vsel %vm1077, %v2557, -inf
        %2576 = vmax.xlane.f32.xlu0 %v2575
        %v2577 = vpop.xlane.xlu0 %2576
        %v2578 = vsel %vm1077, %v2558, -inf
        %2579 = vmax.xlane.f32.xlu0 %v2578
        %v2580 = vpop.xlane.xlu0 %2579
        %v2581 = vsel %vm1077, %v2559, -inf
        %2582 = vmax.xlane.f32.xlu0 %v2581
        %v2583 = vpop.xlane.xlu0 %2582
        %v2584 = vsub.f32 %v2552, %v2562
        %v2585 = vsub.f32 %v2553, %v2565
        %v2586 = vsub.f32 %v2554, %v2568
        %v2587 = vsub.f32 %v2555, %v2571
        %v2588 = vsub.f32 %v2556, %v2574
        %v2589 = vsub.f32 %v2557, %v2577
        %v2590 = vsub.f32 %v2558, %v2580
        %v2591 = vsub.f32 %v2559, %v2583
        %v2592 = vmul.f32 %v2584, 1.442695
        %v2593 = vpow.pop %v2592
        %v2594 = vmul.f32 %v2585, 1.442695
        %v2595 = vpow.pop %v2594
        %v2596 = vmul.f32 %v2586, 1.442695
        %v2597 = vpow.pop %v2596
        %v2598 = vmul.f32 %v2587, 1.442695
        %v2599 = vpow.pop %v2598
        %v2600 = vmul.f32 %v2588, 1.442695
        %v2601 = vpow.pop %v2600
        %v2602 = vmul.f32 %v2589, 1.442695
        %v2603 = vpow.pop %v2602
        %v2604 = vmul.f32 %v2590, 1.442695
        %v2605 = vpow.pop %v2604
        %v2606 = vmul.f32 %v2591, 1.442695
        %v2607 = vpow.pop %v2606
        %v2608 = vsel %vm1077, %v2593, 0.0
        %2609 = vadd.xlane.f32.xlu0 %v2608
        %v2610 = vpop.xlane.xlu0 %2609
        %v2611 = vsel %vm1077, %v2595, 0.0
        %2612 = vadd.xlane.f32.xlu0 %v2611
        %v2613 = vpop.xlane.xlu0 %2612
        %v2614 = vsel %vm1077, %v2597, 0.0
        %2615 = vadd.xlane.f32.xlu0 %v2614
        %v2616 = vpop.xlane.xlu0 %2615
        %v2617 = vsel %vm1077, %v2599, 0.0
        %2618 = vadd.xlane.f32.xlu0 %v2617
        %v2619 = vpop.xlane.xlu0 %2618
        %v2620 = vsel %vm1077, %v2601, 0.0
        %2621 = vadd.xlane.f32.xlu0 %v2620
        %v2622 = vpop.xlane.xlu0 %2621
        %v2623 = vsel %vm1077, %v2603, 0.0
        %2624 = vadd.xlane.f32.xlu0 %v2623
        %v2625 = vpop.xlane.xlu0 %2624
        %v2626 = vsel %vm1077, %v2605, 0.0
        %2627 = vadd.xlane.f32.xlu0 %v2626
        %v2628 = vpop.xlane.xlu0 %2627
        %v2629 = vsel %vm1077, %v2607, 0.0
        %2630 = vadd.xlane.f32.xlu0 %v2629
        %v2631 = vpop.xlane.xlu0 %2630
        %v2632 = vrcp.pop %v2610
        %v2633 = vrcp.pop %v2613
        %v2634 = vrcp.pop %v2616
        %v2635 = vrcp.pop %v2619
        %v2636 = vrcp.pop %v2622
        %v2637 = vrcp.pop %v2625
        %v2638 = vrcp.pop %v2628
        %v2639 = vrcp.pop %v2631
        %v2640 = vmul.f32 %v2593, %v2632
        %v2641 = vmul.f32 %v2595, %v2633
        %v2642 = vmul.f32 %v2597, %v2634
        %v2643 = vmul.f32 %v2599, %v2635
        %v2644 = vmul.f32 %v2601, %v2636
        %v2645 = vmul.f32 %v2603, %v2637
        %v2646 = vmul.f32 %v2605, %v2638
        %v2647 = vmul.f32 %v2607, %v2639
        %v2652 = vlaneseq
        %v2653 = vshrl.u32 %v2652, 7
        %v2654 = vsub.s32 0, %v2653
        %v2655 = vrot.slane %v1946, %v2654
        %v2656 = vlaneseq
        %v2657 = vshrl.u32 %v2656, 7
        %v2658 = vsub.s32 0, %v2657
        %v2659 = vrot.slane %v1947, %v2658
        %v2660 = vlaneseq
        %v2661 = vshrl.u32 %v2660, 7
        %v2662 = vsub.s32 0, %v2661
        %v2663 = vrot.slane %v1948, %v2662
        %v2664 = vlaneseq
        %v2665 = vshrl.u32 %v2664, 7
        %v2666 = vsub.s32 0, %v2665
        %v2667 = vrot.slane %v1949, %v2666
        %2668 = vset.pattern.permute.xlu0 0
        %2669 = vperm.xlu0 %2668, %v2655
        %v2670 = vpop.permute.xlu0 %2669
        %2672 = vset.pattern.permute.xlu0 0
        %2673 = vperm.xlu0 %2672, %v2659
        %v2674 = vpop.permute.xlu0 %2673
        %2676 = vset.pattern.permute.xlu0 0
        %2677 = vperm.xlu0 %2676, %v2663
        %v2678 = vpop.permute.xlu0 %2677
        %2680 = vset.pattern.permute.xlu0 0
        %2681 = vperm.xlu0 %2680, %v2667
        %v2682 = vpop.permute.xlu0 %2681
        %v2684 = vmul.f32 %v2670, %v2644
        %v2685 = vmul.f32 %v2674, %v2645
        %v2686 = vmul.f32 %v2678, %v2646
        %v2687 = vmul.f32 %v2682, %v2647
        %v2688 = vsub.f32 %v2640, %v2684
        %v2689 = vsub.f32 %v2641, %v2685
        %v2690 = vsub.f32 %v2642, %v2686
        %v2691 = vsub.f32 %v2643, %v2687
        %v2692 = vsel %vm1077, %v2688, -inf
        %2693 = vmax.xlane.f32.xlu0 %v2692
        %v2694 = vpop.xlane.xlu0 %2693
        %v2695 = vsel %vm1077, %v2689, -inf
        %2696 = vmax.xlane.f32.xlu0 %v2695
        %v2697 = vpop.xlane.xlu0 %2696
        %v2698 = vsel %vm1077, %v2690, -inf
        %2699 = vmax.xlane.f32.xlu0 %v2698
        %v2700 = vpop.xlane.xlu0 %2699
        %v2701 = vsel %vm1077, %v2691, -inf
        %2702 = vmax.xlane.f32.xlu0 %v2701
        %v2703 = vpop.xlane.xlu0 %2702
        %v2704 = vsub.f32 %v2688, %v2694
        %v2705 = vsub.f32 %v2689, %v2697
        %v2706 = vsub.f32 %v2690, %v2700
        %v2707 = vsub.f32 %v2691, %v2703
        %v2708 = vmul.f32 %v2704, 1.442695
        %v2709 = vpow.pop %v2708
        %v2710 = vmul.f32 %v2705, 1.442695
        %v2711 = vpow.pop %v2710
        %v2712 = vmul.f32 %v2706, 1.442695
        %v2713 = vpow.pop %v2712
        %v2714 = vmul.f32 %v2707, 1.442695
        %v2715 = vpow.pop %v2714
        %v2716 = vsel %vm1077, %v2709, 0.0
        %2717 = vadd.xlane.f32.xlu0 %v2716
        %v2718 = vpop.xlane.xlu0 %2717
        %v2719 = vsel %vm1077, %v2711, 0.0
        %2720 = vadd.xlane.f32.xlu0 %v2719
        %v2721 = vpop.xlane.xlu0 %2720
        %v2722 = vsel %vm1077, %v2713, 0.0
        %2723 = vadd.xlane.f32.xlu0 %v2722
        %v2724 = vpop.xlane.xlu0 %2723
        %v2725 = vsel %vm1077, %v2715, 0.0
        %2726 = vadd.xlane.f32.xlu0 %v2725
        %v2727 = vpop.xlane.xlu0 %2726
        %v2728 = vrcp.pop %v2718
        %v2729 = vrcp.pop %v2721
        %v2730 = vrcp.pop %v2724
        %v2731 = vrcp.pop %v2727
        %v2732 = vmul.f32 %v2709, %v2728
        %v2733 = vmul.f32 %v2711, %v2729
        %v2734 = vmul.f32 %v2713, %v2730
        %v2735 = vmul.f32 %v2715, %v2731
        %v2736 = vpack.c.bf16 %v2732, %v2732
        %v2737 = vpack.c.bf16 %v2733, %v2733
        %v2738 = vpack.c.bf16 %v2734, %v2734
        %v2739 = vpack.c.bf16 %v2735, %v2735
        %v2740 = vpack.c.bf16 %v2109, %v2109
        %v2741 = vpack.c.bf16 %v2160, %v2160
        %v2742 = vpack.c.bf16 %v2163, %v2163
        %v2743 = vpack.c.bf16 %v2166, %v2166
        %v2745 = vsel %vm1077, %v2736, 0
        %v2748 = vsel %vm1641, %v2740, 0
        %2750 = vmatprep.subr.bf16.mxu0 0
        %2751 = vmatpush1.bf16.msra.mxu0 %v2748
        %2752 = vmatprep.subr.bf16.mxu0 0
        %2753 = vmatpush1.bf16.msra.mxu0 0
        %2754 = vmatprep.subr.bf16.mxu0 0
        %2755 = vmatpush1.bf16.msra.mxu0 0
        %2756 = vmatprep.subr.bf16.mxu0 0
        %2757 = vmatpush1.bf16.msra.mxu0 0
        %2758 = vmatprep.subr.bf16.mxu0 0
        %2759 = vmatpush1.bf16.msra.mxu0 0
        %2760 = vmatprep.subr.bf16.mxu0 0
        %2761 = vmatpush1.bf16.msra.mxu0 0
        %2762 = vmatprep.subr.bf16.mxu0 0
        %2763 = vmatpush1.bf16.msra.mxu0 0
        %2764 = vmatprep.subr.bf16.mxu0 0
        %2765 = vmatpush1.bf16.msra.mxu0 0
        %2766 = vmatprep.subr.bf16.mxu0 0
        %2767 = vmatpush1.bf16.msra.mxu0 0
        %2768 = vmatprep.subr.bf16.mxu0 0
        %2769 = vmatpush1.bf16.msra.mxu0 0
        %2770 = vmatprep.subr.bf16.mxu0 0
        %2771 = vmatpush1.bf16.msra.mxu0 0
        %2772 = vmatprep.subr.bf16.mxu0 0
        %2773 = vmatpush1.bf16.msra.mxu0 0
        %2774 = vmatprep.subr.bf16.mxu0 0
        %2775 = vmatpush1.bf16.msra.mxu0 0
        %2776 = vmatprep.subr.bf16.mxu0 0
        %2777 = vmatpush1.bf16.msra.mxu0 0
        %2778 = vmatprep.subr.bf16.mxu0 0
        %2779 = vmatpush1.bf16.msra.mxu0 0
        %2780 = vmatprep.subr.bf16.mxu0 0
        %2781 = vmatpush1.bf16.msra.mxu0 0
        %2782 = vmatprep.mubr.bf16.mxu0 0
        %2783 = vmatmul.mubr.bf16.gmra.mrb[0].mxu0 %v2745
        %v2784 = vpop.f32.mrb[0].mxu0
        %v2785 = vadd.f32 0.0, %v2784
        %v2786 = vpop.f32.mrb[0].mxu0
        %v2787 = vpop.f32.mrb[0].mxu0
        %v2788 = vpop.f32.mrb[0].mxu0
        %2789 = vdwg.mxu0
        %v2791 = vsel %vm1077, %v2737, 0
        %v2794 = vsel %vm1641, %v2741, 0
        %2796 = vmatprep.subr.bf16.mxu0 0
        %2797 = vmatpush1.bf16.msra.mxu0 %v2794
        %2798 = vmatprep.subr.bf16.mxu0 0
        %2799 = vmatpush1.bf16.msra.mxu0 0
        %2800 = vmatprep.subr.bf16.mxu0 0
        %2801 = vmatpush1.bf16.msra.mxu0 0
        %2802 = vmatprep.subr.bf16.mxu0 0
        %2803 = vmatpush1.bf16.msra.mxu0 0
        %2804 = vmatprep.subr.bf16.mxu0 0
        %2805 = vmatpush1.bf16.msra.mxu0 0
        %2806 = vmatprep.subr.bf16.mxu0 0
        %2807 = vmatpush1.bf16.msra.mxu0 0
        %2808 = vmatprep.subr.bf16.mxu0 0
        %2809 = vmatpush1.bf16.msra.mxu0 0
        %2810 = vmatprep.subr.bf16.mxu0 0
        %2811 = vmatpush1.bf16.msra.mxu0 0
        %2812 = vmatprep.subr.bf16.mxu0 0
        %2813 = vmatpush1.bf16.msra.mxu0 0
        %2814 = vmatprep.subr.bf16.mxu0 0
        %2815 = vmatpush1.bf16.msra.mxu0 0
        %2816 = vmatprep.subr.bf16.mxu0 0
        %2817 = vmatpush1.bf16.msra.mxu0 0
        %2818 = vmatprep.subr.bf16.mxu0 0
        %2819 = vmatpush1.bf16.msra.mxu0 0
        %2820 = vmatprep.subr.bf16.mxu0 0
        %2821 = vmatpush1.bf16.msra.mxu0 0
        %2822 = vmatprep.subr.bf16.mxu0 0
        %2823 = vmatpush1.bf16.msra.mxu0 0
        %2824 = vmatprep.subr.bf16.mxu0 0
        %2825 = vmatpush1.bf16.msra.mxu0 0
        %2826 = vmatprep.subr.bf16.mxu0 0
        %2827 = vmatpush1.bf16.msra.mxu0 0
        %2828 = vmatprep.mubr.bf16.mxu0 0
        %2829 = vmatmul.mubr.bf16.gmra.mrb[0].mxu0 %v2791
        %v2830 = vpop.f32.mrb[0].mxu0
        %v2831 = vadd.f32 0.0, %v2830
        %v2832 = vpop.f32.mrb[0].mxu0
        %v2833 = vpop.f32.mrb[0].mxu0
        %v2834 = vpop.f32.mrb[0].mxu0
        %2835 = vdwg.mxu0
        %v2837 = vsel %vm1077, %v2738, 0
        %v2840 = vsel %vm1641, %v2742, 0
        %2842 = vmatprep.subr.bf16.mxu0 0
        %2843 = vmatpush1.bf16.msra.mxu0 %v2840
        %2844 = vmatprep.subr.bf16.mxu0 0
        %2845 = vmatpush1.bf16.msra.mxu0 0
        %2846 = vmatprep.subr.bf16.mxu0 0
        %2847 = vmatpush1.bf16.msra.mxu0 0
        %2848 = vmatprep.subr.bf16.mxu0 0
        %2849 = vmatpush1.bf16.msra.mxu0 0
        %2850 = vmatprep.subr.bf16.mxu0 0
        %2851 = vmatpush1.bf16.msra.mxu0 0
        %2852 = vmatprep.subr.bf16.mxu0 0
        %2853 = vmatpush1.bf16.msra.mxu0 0
        %2854 = vmatprep.subr.bf16.mxu0 0
        %2855 = vmatpush1.bf16.msra.mxu0 0
        %2856 = vmatprep.subr.bf16.mxu0 0
        %2857 = vmatpush1.bf16.msra.mxu0 0
        %2858 = vmatprep.subr.bf16.mxu0 0
        %2859 = vmatpush1.bf16.msra.mxu0 0
        %2860 = vmatprep.subr.bf16.mxu0 0
        %2861 = vmatpush1.bf16.msra.mxu0 0
        %2862 = vmatprep.subr.bf16.mxu0 0
        %2863 = vmatpush1.bf16.msra.mxu0 0
        %2864 = vmatprep.subr.bf16.mxu0 0
        %2865 = vmatpush1.bf16.msra.mxu0 0
        %2866 = vmatprep.subr.bf16.mxu0 0
        %2867 = vmatpush1.bf16.msra.mxu0 0
        %2868 = vmatprep.subr.bf16.mxu0 0
        %2869 = vmatpush1.bf16.msra.mxu0 0
        %2870 = vmatprep.subr.bf16.mxu0 0
        %2871 = vmatpush1.bf16.msra.mxu0 0
        %2872 = vmatprep.subr.bf16.mxu0 0
        %2873 = vmatpush1.bf16.msra.mxu0 0
        %2874 = vmatprep.mubr.bf16.mxu0 0
        %2875 = vmatmul.mubr.bf16.gmra.mrb[0].mxu0 %v2837
        %v2876 = vpop.f32.mrb[0].mxu0
        %v2877 = vadd.f32 0.0, %v2876
        %v2878 = vpop.f32.mrb[0].mxu0
        %v2879 = vpop.f32.mrb[0].mxu0
        %v2880 = vpop.f32.mrb[0].mxu0
        %2881 = vdwg.mxu0
        %v2883 = vsel %vm1077, %v2739, 0
        %v2886 = vsel %vm1641, %v2743, 0
        %2888 = vmatprep.subr.bf16.mxu0 0
        %2889 = vmatpush1.bf16.msra.mxu0 %v2886
        %2890 = vmatprep.subr.bf16.mxu0 0
        %2891 = vmatpush1.bf16.msra.mxu0 0
        %2892 = vmatprep.subr.bf16.mxu0 0
        %2893 = vmatpush1.bf16.msra.mxu0 0
        %2894 = vmatprep.subr.bf16.mxu0 0
        %2895 = vmatpush1.bf16.msra.mxu0 0
        %2896 = vmatprep.subr.bf16.mxu0 0
        %2897 = vmatpush1.bf16.msra.mxu0 0
        %2898 = vmatprep.subr.bf16.mxu0 0
        %2899 = vmatpush1.bf16.msra.mxu0 0
        %2900 = vmatprep.subr.bf16.mxu0 0
        %2901 = vmatpush1.bf16.msra.mxu0 0
        %2902 = vmatprep.subr.bf16.mxu0 0
        %2903 = vmatpush1.bf16.msra.mxu0 0
        %2904 = vmatprep.subr.bf16.mxu0 0
        %2905 = vmatpush1.bf16.msra.mxu0 0
        %2906 = vmatprep.subr.bf16.mxu0 0
        %2907 = vmatpush1.bf16.msra.mxu0 0
        %2908 = vmatprep.subr.bf16.mxu0 0
        %2909 = vmatpush1.bf16.msra.mxu0 0
        %2910 = vmatprep.subr.bf16.mxu0 0
        %2911 = vmatpush1.bf16.msra.mxu0 0
        %2912 = vmatprep.subr.bf16.mxu0 0
        %2913 = vmatpush1.bf16.msra.mxu0 0
        %2914 = vmatprep.subr.bf16.mxu0 0
        %2915 = vmatpush1.bf16.msra.mxu0 0
        %2916 = vmatprep.subr.bf16.mxu0 0
        %2917 = vmatpush1.bf16.msra.mxu0 0
        %2918 = vmatprep.subr.bf16.mxu0 0
        %2919 = vmatpush1.bf16.msra.mxu0 0
        %2920 = vmatprep.mubr.bf16.mxu0 0
        %2921 = vmatmul.mubr.bf16.gmra.mrb[0].mxu0 %v2883
        %v2922 = vpop.f32.mrb[0].mxu0
        %v2923 = vadd.f32 0.0, %v2922
        %v2924 = vpop.f32.mrb[0].mxu0
        %v2925 = vpop.f32.mrb[0].mxu0
        %v2926 = vpop.f32.mrb[0].mxu0
        %2927 = vdwg.mxu0
        %2929 = vrot.lane.b32.xlu0 %v2831, 8
        %v2930 = vpop.permute.xlu0 %2929
        %2933 = vrot.lane.b32.xlu0 %v2877, 16
        %v2934 = vpop.permute.xlu0 %2933
        %2937 = vrot.lane.b32.xlu0 %v2923, 24
        %v2938 = vpop.permute.xlu0 %2937
        %v2940 = vsel %vm1077, %v2785, %v2930
        %v2941 = vsel %vm1836, %v2940, %v2934
        %v2942 = vsel %vm1838, %v2941, %v2938
        %v2943 = vmul.f32 %v2942, %v2942
        %v2944 = vsel %vm772, %v2943, 0.0
        %2945 = vadd.xlane.f32.xlu0 %v2944
        %v2946 = vpop.xlane.xlu0 %2945
        %v2947 = vmul.f32 %v2946, %v776
        %v2948 = vadd.f32 %v2947, 1e-06
        %v2949 = vrsqrt.pop %v2948
        %v2950 = vmul.f32 %v2942, %v2949
        %v2952 = vlaneseq
        %v2953 = vshrl.u32 %v2952, 7
        %v2954 = vsub.s32 0, %v2953
        %v2955 = vrot.slane %v1945, %v2954
        %v2957 = vmul.f32 %v2950, %v2955
        %v2958 = vpack.c.bf16 %v2957, %v2957
        %v2963 = vunpack.c.l.b16 %v1941
        %v2964 = vunpack.c.l.b16 %v1942
        %v2965 = vunpack.c.l.b16 %v1943
        %v2966 = vunpack.c.l.b16 %v1944
        %v2967 = vpack.c.b16 %v2964, %v2963
        %v2968 = vpack.c.b16 %v2966, %v2965
        %v2972 = vsel %vm772, %v2958, 0
        %2974 = vmatprep.subr.bf16.mxu0 0
        %2975 = vmatpush1.bf16.msra.mxu0 %v2967
        %2976 = vmatprep.subr.bf16.mxu0 0
        %2977 = vmatpush1.bf16.msra.mxu0 %v2968
        %2978 = vmatprep.subr.bf16.mxu0 0
        %2979 = vmatpush1.bf16.msra.mxu0 0
        %2980 = vmatprep.subr.bf16.mxu0 0
        %2981 = vmatpush1.bf16.msra.mxu0 0
        %2982 = vmatprep.subr.bf16.mxu0 0
        %2983 = vmatpush1.bf16.msra.mxu0 0
        %2984 = vmatprep.subr.bf16.mxu0 0
        %2985 = vmatpush1.bf16.msra.mxu0 0
        %2986 = vmatprep.subr.bf16.mxu0 0
        %2987 = vmatpush1.bf16.msra.mxu0 0
        %2988 = vmatprep.subr.bf16.mxu0 0
        %2989 = vmatpush1.bf16.msra.mxu0 0
        %2990 = vmatprep.subr.bf16.mxu0 0
        %2991 = vmatpush1.bf16.msra.mxu0 0
        %2992 = vmatprep.subr.bf16.mxu0 0
        %2993 = vmatpush1.bf16.msra.mxu0 0
        %2994 = vmatprep.subr.bf16.mxu0 0
        %2995 = vmatpush1.bf16.msra.mxu0 0
        %2996 = vmatprep.subr.bf16.mxu0 0
        %2997 = vmatpush1.bf16.msra.mxu0 0
        %2998 = vmatprep.subr.bf16.mxu0 0
        %2999 = vmatpush1.bf16.msra.mxu0 0
        %3000 = vmatprep.subr.bf16.mxu0 0
        %3001 = vmatpush1.bf16.msra.mxu0 0
        %3002 = vmatprep.subr.bf16.mxu0 0
        %3003 = vmatpush1.bf16.msra.mxu0 0
        %3004 = vmatprep.subr.bf16.mxu0 0
        %3005 = vmatpush1.bf16.msra.mxu0 0
        %3006 = vmatprep.mubr.bf16.mxu0 0
        %3007 = vmatmul.mubr.bf16.gmra.mrb[0].mxu0 %v2972
        %v3008 = vpop.f32.mrb[0].mxu0
        %v3009 = vadd.f32 0.0, %v3008
        %v3010 = vpop.f32.mrb[0].mxu0
        %v3011 = vpop.f32.mrb[0].mxu0
        %v3012 = vpop.f32.mrb[0].mxu0
        %3013 = vdwg.mxu0
        %v3014 = vadd.f32 %v1912, %v3009
        %v3015 = vld [vmem:[%s4] sm:$0x1]
        %v3016 = vmul.f32 %v3014, %v3014
        %v3017 = vsel %vm772, %v3016, 0.0
        %3018 = vadd.xlane.f32.xlu0 %v3017
        %v3019 = vpop.xlane.xlu0 %3018
        %v3020 = vmul.f32 %v3019, %v776
        %v3021 = vadd.f32 %v3020, 1e-06
        %v3022 = vrsqrt.pop %v3021
        %v3023 = vmul.f32 %v3014, %v3022
        %v3025 = vlaneseq
        %v3026 = vshrl.u32 %v3025, 7
        %v3027 = vsub.s32 0, %v3026
        %v3028 = vrot.slane %v3015, %v3027
        %v3030 = vmul.f32 %v3023, %v3028
        %v3031 = vld [vmem:[%s18] sm:$0xf]
        %v3032 = vld [vmem:[%s18 + $0x4] sm:$0xf]
        %v3033 = vld [vmem:[%s18 + $0x8] sm:$0xf]
        %v3034 = vld [vmem:[%s18 + $0xc] sm:$0xf]
        %v3035 = vpack.c.bf16 %v3030, %v3030
        %v3036 = vld [vmem:[%s19] sm:$0x1]
        %v3038 = vlaneseq
        %v3039 = vshrl.u32 %v3038, 7
        %v3040 = vsub.s32 0, %v3039
        %v3041 = vrot.slane %v3036, %v3040
        %v3047 = vunpack.c.l.b16 %v3031
        %v3048 = vunpack.c.l.b16 %v3032
        %v3049 = vunpack.c.l.b16 %v3033
        %v3050 = vunpack.c.l.b16 %v3034
        %v3051 = vpack.c.b16 %v3048, %v3047
        %v3052 = vpack.c.b16 %v3050, %v3049
        %v3056 = vsel %vm772, %v3035, 0
        %3058 = vmatprep.subr.bf16.mxu0 0
        %3059 = vmatpush1.bf16.msra.mxu0 %v3051
        %3060 = vmatprep.subr.bf16.mxu0 0
        %3061 = vmatpush1.bf16.msra.mxu0 %v3052
        %3062 = vmatprep.subr.bf16.mxu0 0
        %3063 = vmatpush1.bf16.msra.mxu0 0
        %3064 = vmatprep.subr.bf16.mxu0 0
        %3065 = vmatpush1.bf16.msra.mxu0 0
        %3066 = vmatprep.subr.bf16.mxu0 0
        %3067 = vmatpush1.bf16.msra.mxu0 0
        %3068 = vmatprep.subr.bf16.mxu0 0
        %3069 = vmatpush1.bf16.msra.mxu0 0
        %3070 = vmatprep.subr.bf16.mxu0 0
        %3071 = vmatpush1.bf16.msra.mxu0 0
        %3072 = vmatprep.subr.bf16.mxu0 0
        %3073 = vmatpush1.bf16.msra.mxu0 0
        %3074 = vmatprep.subr.bf16.mxu0 0
        %3075 = vmatpush1.bf16.msra.mxu0 0
        %3076 = vmatprep.subr.bf16.mxu0 0
        %3077 = vmatpush1.bf16.msra.mxu0 0
        %3078 = vmatprep.subr.bf16.mxu0 0
        %3079 = vmatpush1.bf16.msra.mxu0 0
        %3080 = vmatprep.subr.bf16.mxu0 0
        %3081 = vmatpush1.bf16.msra.mxu0 0
        %3082 = vmatprep.subr.bf16.mxu0 0
        %3083 = vmatpush1.bf16.msra.mxu0 0
        %3084 = vmatprep.subr.bf16.mxu0 0
        %3085 = vmatpush1.bf16.msra.mxu0 0
        %3086 = vmatprep.subr.bf16.mxu0 0
        %3087 = vmatpush1.bf16.msra.mxu0 0
        %3088 = vmatprep.subr.bf16.mxu0 0
        %3089 = vmatpush1.bf16.msra.mxu0 0
        %3090 = vmatprep.mubr.bf16.mxu0 0
        %3091 = vmatmul.mubr.bf16.gmra.mrb[0].mxu0 %v3056
        %v3092 = vpop.f32.mrb[0].mxu0
        %v3093 = vadd.f32 %v3041, %v3092
        %v3094 = vpop.f32.mrb[0].mxu0
        %v3095 = vpop.f32.mrb[0].mxu0
        %v3096 = vpop.f32.mrb[0].mxu0
        %3097 = vdwg.mxu0
        %v3098 = vld [vmem:[%s20] sm:$0xff]
        %v3099 = vld [vmem:[%s20 + $0x8] sm:$0xf]
        %v3100 = vld [vmem:[%s20 + $0xc] sm:$0xff]
        %v3101 = vld [vmem:[%s20 + $0x14] sm:$0xf]
        %v3102 = vld [vmem:[%s20 + $0x18] sm:$0xff]
        %v3103 = vld [vmem:[%s20 + $0x20] sm:$0xf]
        %v3104 = vld [vmem:[%s20 + $0x24] sm:$0xff]
        %v3105 = vld [vmem:[%s20 + $0x2c] sm:$0xf]
        %v3106 = vld [vmem:[%s20 + $0x30] sm:$0xff]
        %v3107 = vld [vmem:[%s20 + $0x38] sm:$0xf]
        %v3108 = vld [vmem:[%s20 + $0x3c] sm:$0xff]
        %v3109 = vld [vmem:[%s20 + $0x44] sm:$0xf]
        %v3110 = vld [vmem:[%s20 + $0x48] sm:$0xff]
        %v3111 = vld [vmem:[%s20 + $0x50] sm:$0xf]
        %v3112 = vld [vmem:[%s20 + $0x54] sm:$0xff]
        %v3113 = vld [vmem:[%s20 + $0x5c] sm:$0xf]
        %v3114 = vpack.c.bf16 %v3093, %v3093
        %v3131 = vunpack.c.l.b16 %v3098
        %v3132 = vunpack.c.h.b16 %v3098
        %v3133 = vunpack.c.l.b16 %v3099
        %v3134 = vunpack.c.l.b16 %v3100
        %v3135 = vunpack.c.h.b16 %v3100
        %v3136 = vunpack.c.l.b16 %v3101
        %v3137 = vunpack.c.l.b16 %v3102
        %v3138 = vunpack.c.h.b16 %v3102
        %v3139 = vunpack.c.l.b16 %v3103
        %v3140 = vunpack.c.l.b16 %v3104
        %v3141 = vunpack.c.h.b16 %v3104
        %v3142 = vunpack.c.l.b16 %v3105
        %v3143 = vunpack.c.l.b16 %v3106
        %v3144 = vunpack.c.h.b16 %v3106
        %v3145 = vunpack.c.l.b16 %v3107
        %v3146 = vunpack.c.l.b16 %v3108
        %v3147 = vunpack.c.h.b16 %v3108
        %v3148 = vunpack.c.l.b16 %v3109
        %v3149 = vunpack.c.l.b16 %v3110
        %v3150 = vunpack.c.h.b16 %v3110
        %v3151 = vunpack.c.l.b16 %v3111
        %v3152 = vunpack.c.l.b16 %v3112
        %v3153 = vunpack.c.h.b16 %v3112
        %v3154 = vunpack.c.l.b16 %v3113
        %v3155 = vpack.c.b16 %v3134, %v3131
        %v3156 = vpack.c.b16 %v3135, %v3132
        %v3157 = vpack.c.b16 %v3136, %v3133
        %v3158 = vpack.c.b16 %v3140, %v3137
        %v3159 = vpack.c.b16 %v3141, %v3138
        %v3160 = vpack.c.b16 %v3142, %v3139
        %v3161 = vpack.c.b16 %v3146, %v3143
        %v3162 = vpack.c.b16 %v3147, %v3144
        %v3163 = vpack.c.b16 %v3148, %v3145
        %v3164 = vpack.c.b16 %v3152, %v3149
        %v3165 = vpack.c.b16 %v3153, %v3150
        %v3166 = vpack.c.b16 %v3154, %v3151
        %vm3179 = vcmask 523264
        %v3181 = vsel %vm3179, %v3114, 0
        %3183 = vmatprep.subr.bf16.mxu0 %v3156
        %3184 = vmatpush1.bf16.msra.mxu0 %v3155
        %3185 = vmatprep.subr.bf16.mxu0 %v3159
        %3186 = vmatpush1.bf16.msra.mxu0 %v3158
        %3187 = vmatprep.subr.bf16.mxu0 %v3162
        %3188 = vmatpush1.bf16.msra.mxu0 %v3161
        %3189 = vmatprep.subr.bf16.mxu0 %v3165
        %3190 = vmatpush1.bf16.msra.mxu0 %v3164
        %3191 = vmatprep.subr.bf16.mxu0 0
        %3192 = vmatpush1.bf16.msra.mxu0 0
        %3193 = vmatprep.subr.bf16.mxu0 0
        %3194 = vmatpush1.bf16.msra.mxu0 0
        %3195 = vmatprep.subr.bf16.mxu0 0
        %3196 = vmatpush1.bf16.msra.mxu0 0
        %3197 = vmatprep.subr.bf16.mxu0 0
        %3198 = vmatpush1.bf16.msra.mxu0 0
        %3199 = vmatprep.subr.bf16.mxu0 0
        %3200 = vmatpush1.bf16.msra.mxu0 0
        %3201 = vmatprep.subr.bf16.mxu0 0
        %3202 = vmatpush1.bf16.msra.mxu0 0
        %3203 = vmatprep.subr.bf16.mxu0 0
        %3204 = vmatpush1.bf16.msra.mxu0 0
        %3205 = vmatprep.subr.bf16.mxu0 0
        %3206 = vmatpush1.bf16.msra.mxu0 0
        %3207 = vmatprep.subr.bf16.mxu0 0
        %3208 = vmatpush1.bf16.msra.mxu0 0
        %3209 = vmatprep.subr.bf16.mxu0 0
        %3210 = vmatpush1.bf16.msra.mxu0 0
        %3211 = vmatprep.subr.bf16.mxu0 0
        %3212 = vmatpush1.bf16.msra.mxu0 0
        %3213 = vmatprep.subr.bf16.mxu0 0
        %3214 = vmatpush1.bf16.msra.mxu0 0
        %3215 = vmatprep.mubr.bf16.mxu0 0
        %3216 = vmatmul.mubr.bf16.gmra.mrb[0].mxu0 %v3181
        %v3217 = vpop.f32.mrb[0].mxu0
        %v3218 = vadd.f32 0.0, %v3217
        %v3219 = vpop.f32.mrb[0].mxu0
        %v3220 = vadd.f32 0.0, %v3219
        %v3221 = vpop.f32.mrb[0].mxu0
        %v3222 = vpop.f32.mrb[0].mxu0
        %3223 = vdwg.mxu0
        %3224 = vmatprep.subr.bf16.mxu0 0
        %3225 = vmatpush1.bf16.msra.mxu0 %v3157
        %3226 = vmatprep.subr.bf16.mxu0 0
        %3227 = vmatpush1.bf16.msra.mxu0 %v3160
        %3228 = vmatprep.subr.bf16.mxu0 0
        %3229 = vmatpush1.bf16.msra.mxu0 %v3163
        %3230 = vmatprep.subr.bf16.mxu0 0
        %3231 = vmatpush1.bf16.msra.mxu0 %v3166
        %3232 = vmatprep.subr.bf16.mxu0 0
        %3233 = vmatpush1.bf16.msra.mxu0 0
        %3234 = vmatprep.subr.bf16.mxu0 0
        %3235 = vmatpush1.bf16.msra.mxu0 0
        %3236 = vmatprep.subr.bf16.mxu0 0
        %3237 = vmatpush1.bf16.msra.mxu0 0
        %3238 = vmatprep.subr.bf16.mxu0 0
        %3239 = vmatpush1.bf16.msra.mxu0 0
        %3240 = vmatprep.subr.bf16.mxu0 0
        %3241 = vmatpush1.bf16.msra.mxu0 0
        %3242 = vmatprep.subr.bf16.mxu0 0
        %3243 = vmatpush1.bf16.msra.mxu0 0
        %3244 = vmatprep.subr.bf16.mxu0 0
        %3245 = vmatpush1.bf16.msra.mxu0 0
        %3246 = vmatprep.subr.bf16.mxu0 0
        %3247 = vmatpush1.bf16.msra.mxu0 0
        %3248 = vmatprep.subr.bf16.mxu0 0
        %3249 = vmatpush1.bf16.msra.mxu0 0
        %3250 = vmatprep.subr.bf16.mxu0 0
        %3251 = vmatpush1.bf16.msra.mxu0 0
        %3252 = vmatprep.subr.bf16.mxu0 0
        %3253 = vmatpush1.bf16.msra.mxu0 0
        %3254 = vmatprep.subr.bf16.mxu0 0
        %3255 = vmatpush1.bf16.msra.mxu0 0
        %3256 = vmatprep.mubr.bf16.mxu0 0
        %3257 = vmatmul.mubr.bf16.gmra.mrb[0].mxu0 %v3181
        %v3258 = vpop.f32.mrb[0].mxu0
        %v3259 = vadd.f32 0.0, %v3258
        %v3260 = vpop.f32.mrb[0].mxu0
        %v3261 = vpop.f32.mrb[0].mxu0
        %v3262 = vpop.f32.mrb[0].mxu0
        %3263 = vdwg.mxu0
        %v3264 = vsub.f32 0.0, %v3218
        %v3265 = vsub.f32 0.0, %v3220
        %v3266 = vmul.f32 %v3264, 1.442695
        %v3267 = vpow.pop %v3266
        %v3268 = vmul.f32 %v3265, 1.442695
        %v3269 = vpow.pop %v3268
        %v3270 = vadd.f32 %v3267, 1.0
        %v3271 = vadd.f32 %v3269, 1.0
        %v3272 = vrcp.pop %v3270
        %v3273 = vrcp.pop %v3271
        %v3274 = vmul.f32 %v3218, %v3272
        %v3275 = vmul.f32 %v3220, %v3273
        %3278 = vrot.lane.b32.xlu0 %v3220, 86
        %v3279 = vpop.permute.xlu0 %3278
        %3280 = vrot.lane.b32.xlu0 %v3259, 86
        %v3281 = vpop.permute.xlu0 %3280
        %vm3282 = vcmask 703488
        %v3283 = vsel %vm3282, %v3279, %v3281
        %v3286 = vmul.f32 %v3274, %v3283
        %v3287 = vmul.f32 %v3275, %v3281
        %v3288 = vld [vmem:[%s21] sm:$0xf]
        %v3289 = vld [vmem:[%s21 + $0x4] sm:$0xf]
        %v3290 = vld [vmem:[%s21 + $0x8] sm:$0xf]
        %v3291 = vld [vmem:[%s21 + $0xc] sm:$0xf]
        %v3292 = vld [vmem:[%s21 + $0x10] sm:$0xf]
        %v3293 = vld [vmem:[%s21 + $0x14] sm:$0xf]
        %v3294 = vld [vmem:[%s21 + $0x18] sm:$0xf]
        %v3295 = vld [vmem:[%s21 + $0x1c] sm:$0xf]
        %v3296 = vld [vmem:[%s21 + $0x20] sm:$0xf]
        %v3297 = vld [vmem:[%s21 + $0x24] sm:$0xf]
        %v3298 = vld [vmem:[%s21 + $0x28] sm:$0xf]
        %v3299 = vld [vmem:[%s21 + $0x2c] sm:$0xf]
        %v3300 = vld [vmem:[%s21 + $0x30] sm:$0xf]
        %v3301 = vld [vmem:[%s21 + $0x34] sm:$0xf]
        %v3302 = vld [vmem:[%s21 + $0x38] sm:$0xf]
        %v3303 = vld [vmem:[%s21 + $0x3c] sm:$0xf]
        %v3304 = vld [vmem:[%s21 + $0x40] sm:$0xf]
        %v3305 = vld [vmem:[%s21 + $0x44] sm:$0xf]
        %v3306 = vld [vmem:[%s21 + $0x48] sm:$0xf]
        %v3307 = vld [vmem:[%s21 + $0x4c] sm:$0xf]
        %v3308 = vld [vmem:[%s21 + $0x50] sm:$0xf]
        %v3309 = vld [vmem:[%s21 + $0x54] sm:$0x1]
        %v3310 = vpack.c.bf16 %v3286, %v3286
        %v3311 = vpack.c.bf16 %v3287, %v3287
        %v3334 = vunpack.c.l.b16 %v3288
        %v3335 = vunpack.c.l.b16 %v3289
        %v3336 = vunpack.c.l.b16 %v3290
        %v3337 = vunpack.c.l.b16 %v3291
        %v3338 = vunpack.c.l.b16 %v3292
        %v3339 = vunpack.c.l.b16 %v3293
        %v3340 = vunpack.c.l.b16 %v3294
        %v3341 = vunpack.c.l.b16 %v3295
        %v3342 = vunpack.c.l.b16 %v3296
        %v3343 = vunpack.c.l.b16 %v3297
        %v3344 = vunpack.c.l.b16 %v3298
        %v3345 = vunpack.c.l.b16 %v3299
        %v3346 = vunpack.c.l.b16 %v3300
        %v3347 = vunpack.c.l.b16 %v3301
        %v3348 = vunpack.c.l.b16 %v3302
        %v3349 = vunpack.c.l.b16 %v3303
        %v3350 = vunpack.c.l.b16 %v3304
        %v3351 = vunpack.c.l.b16 %v3305
        %v3352 = vunpack.c.l.b16 %v3306
        %v3353 = vunpack.c.l.b16 %v3307
        %v3354 = vunpack.c.l.b16 %v3308
        %v3355 = vunpack.c.l.b16 %v3309
        %v3356 = vpack.c.b16 %v3335, %v3334
        %v3357 = vpack.c.b16 %v3337, %v3336
        %v3358 = vpack.c.b16 %v3339, %v3338
        %v3359 = vpack.c.b16 %v3341, %v3340
        %v3360 = vpack.c.b16 %v3343, %v3342
        %v3361 = vpack.c.b16 %v3345, %v3344
        %v3362 = vpack.c.b16 %v3347, %v3346
        %v3363 = vpack.c.b16 %v3349, %v3348
        %v3364 = vpack.c.b16 %v3351, %v3350
        %v3365 = vpack.c.b16 %v3353, %v3352
        %v3366 = vpack.c.b16 %v3355, %v3354
        %vm3377 = vcmask 343040
        %v3379 = vsel %vm3377, %v3311, 0
        %vm3381 = vcmask 1044480
        %v3383 = vsel %vm3381, %v3366, 0
        %3385 = vmatprep.subr.bf16.mxu0 0
        %3386 = vmatpush1.bf16.msra.mxu0 %v3356
        %3387 = vmatprep.subr.bf16.mxu0 0
        %3388 = vmatpush1.bf16.msra.mxu0 %v3357
        %3389 = vmatprep.subr.bf16.mxu0 0
        %3390 = vmatpush1.bf16.msra.mxu0 %v3358
        %3391 = vmatprep.subr.bf16.mxu0 0
        %3392 = vmatpush1.bf16.msra.mxu0 %v3359
        %3393 = vmatprep.subr.bf16.mxu0 0
        %3394 = vmatpush1.bf16.msra.mxu0 %v3360
        %3395 = vmatprep.subr.bf16.mxu0 0
        %3396 = vmatpush1.bf16.msra.mxu0 %v3361
        %3397 = vmatprep.subr.bf16.mxu0 0
        %3398 = vmatpush1.bf16.msra.mxu0 %v3362
        %3399 = vmatprep.subr.bf16.mxu0 0
        %3400 = vmatpush1.bf16.msra.mxu0 %v3363
        %3401 = vmatprep.subr.bf16.mxu0 0
        %3402 = vmatpush1.bf16.msra.mxu0 %v3364
        %3403 = vmatprep.subr.bf16.mxu0 0
        %3404 = vmatpush1.bf16.msra.mxu0 %v3365
        %3405 = vmatprep.subr.bf16.mxu0 0
        %3406 = vmatpush1.bf16.msra.mxu0 %v3383
        %3407 = vmatprep.subr.bf16.mxu0 0
        %3408 = vmatpush1.bf16.msra.mxu0 0
        %3409 = vmatprep.subr.bf16.mxu0 0
        %3410 = vmatpush1.bf16.msra.mxu0 0
        %3411 = vmatprep.subr.bf16.mxu0 0
        %3412 = vmatpush1.bf16.msra.mxu0 0
        %3413 = vmatprep.subr.bf16.mxu0 0
        %3414 = vmatpush1.bf16.msra.mxu0 0
        %3415 = vmatprep.subr.bf16.mxu0 0
        %3416 = vmatpush1.bf16.msra.mxu0 0
        %3417 = vmatprep.mubr.bf16.mxu0 %v3379
        %3418 = vmatmul.mubr.bf16.gmra.mrb[0].mxu0 %v3310
        %v3419 = vpop.f32.mrb[0].mxu0
        %v3420 = vadd.f32 0.0, %v3419
        %v3421 = vpop.f32.mrb[0].mxu0
        %v3422 = vpop.f32.mrb[0].mxu0
        %v3423 = vpop.f32.mrb[0].mxu0
        %3424 = vdwg.mxu0
        %v3425 = vld [vmem:[%s22] sm:$0xf]
        %v3426 = vld [vmem:[%s22 + $0x4] sm:$0xf]
        %v3427 = vld [vmem:[%s22 + $0x8] sm:$0xf]
        %v3428 = vld [vmem:[%s22 + $0xc] sm:$0xf]
        %v3429 = vld [vmem:[%s22 + $0x10] sm:$0xf]
        %v3430 = vld [vmem:[%s22 + $0x14] sm:$0xf]
        %v3431 = vld [vmem:[%s22 + $0x18] sm:$0xf]
        %v3432 = vld [vmem:[%s22 + $0x1c] sm:$0xf]
        %v3433 = vpack.c.bf16 %v3420, %v3420
        %v3434 = vld [vmem:[%s23] sm:$0x1]
        %v3436 = vlaneseq
        %v3437 = vshrl.u32 %v3436, 7
        %v3438 = vsub.s32 0, %v3437
        %v3439 = vrot.slane %v3434, %v3438
        %v3449 = vunpack.c.l.b16 %v3425
        %v3450 = vunpack.c.l.b16 %v3426
        %v3451 = vunpack.c.l.b16 %v3427
        %v3452 = vunpack.c.l.b16 %v3428
        %v3453 = vunpack.c.l.b16 %v3429
        %v3454 = vunpack.c.l.b16 %v3430
        %v3455 = vunpack.c.l.b16 %v3431
        %v3456 = vunpack.c.l.b16 %v3432
        %v3457 = vpack.c.b16 %v3450, %v3449
        %v3458 = vpack.c.b16 %v3452, %v3451
        %v3459 = vpack.c.b16 %v3454, %v3453
        %v3460 = vpack.c.b16 %v3456, %v3455
        %v3466 = vsel %vm3179, %v3433, 0
        %3468 = vmatprep.subr.bf16.mxu0 0
        %3469 = vmatpush1.bf16.msra.mxu0 %v3457
        %3470 = vmatprep.subr.bf16.mxu0 0
        %3471 = vmatpush1.bf16.msra.mxu0 %v3458
        %3472 = vmatprep.subr.bf16.mxu0 0
        %3473 = vmatpush1.bf16.msra.mxu0 %v3459
        %3474 = vmatprep.subr.bf16.mxu0 0
        %3475 = vmatpush1.bf16.msra.mxu0 %v3460
        %3476 = vmatprep.subr.bf16.mxu0 0
        %3477 = vmatpush1.bf16.msra.mxu0 0
        %3478 = vmatprep.subr.bf16.mxu0 0
        %3479 = vmatpush1.bf16.msra.mxu0 0
        %3480 = vmatprep.subr.bf16.mxu0 0
        %3481 = vmatpush1.bf16.msra.mxu0 0
        %3482 = vmatprep.subr.bf16.mxu0 0
        %3483 = vmatpush1.bf16.msra.mxu0 0
        %3484 = vmatprep.subr.bf16.mxu0 0
        %3485 = vmatpush1.bf16.msra.mxu0 0
        %3486 = vmatprep.subr.bf16.mxu0 0
        %3487 = vmatpush1.bf16.msra.mxu0 0
        %3488 = vmatprep.subr.bf16.mxu0 0
        %3489 = vmatpush1.bf16.msra.mxu0 0
        %3490 = vmatprep.subr.bf16.mxu0 0
        %3491 = vmatpush1.bf16.msra.mxu0 0
        %3492 = vmatprep.subr.bf16.mxu0 0
        %3493 = vmatpush1.bf16.msra.mxu0 0
        %3494 = vmatprep.subr.bf16.mxu0 0
        %3495 = vmatpush1.bf16.msra.mxu0 0
        %3496 = vmatprep.subr.bf16.mxu0 0
        %3497 = vmatpush1.bf16.msra.mxu0 0
        %3498 = vmatprep.subr.bf16.mxu0 0
        %3499 = vmatpush1.bf16.msra.mxu0 0
        %3500 = vmatprep.mubr.bf16.mxu0 0
        %3501 = vmatmul.mubr.bf16.gmra.mrb[0].mxu0 %v3466
        %v3502 = vpop.f32.mrb[0].mxu0
        %v3503 = vadd.f32 %v3439, %v3502
        %v3504 = vpop.f32.mrb[0].mxu0
        %v3505 = vpop.f32.mrb[0].mxu0
        %v3506 = vpop.f32.mrb[0].mxu0
        %3507 = vdwg.mxu0
        %v3508 = vadd.f32 %v3014, %v3503
        %3509 = vst.msk [vmem:[%s755] sm:$0xff] %vm772, %v3508
        %s3510 = sand.u32 %s574, 1
        %s3511 = scalar_lea.sflag [#allocation3], %s3510
        %s3512 = sand.u32 %s574, 1
        %s3513 = smul.addr %s3512, 8
        %s3514 = scalar_lea.vmem [#allocation2], %s3513
        // Predicated region
        $region117: #{decoder_forward.3} parent=115 // pred_check
          %p3515 = pneg %p584
        $region118: #{decoder_forward.3} parent=115 // pred_check_branch
          %3517 = sbr.rel (%p3515) target = $region120
        $region119: #{decoder_forward.3} parent=115 // pred_region
          %s3519 = ssub.s32 128, 128
          %3520 = vsyncadd %s3511, %s3519
          %s3521 = sadd.s32 %s43, %s42
          %s3522 = smul.addr %s3521, 128
          %s3523 = scalar_lea.hbm %s24, %s3522
          %s3525 = sshll.u32 %s3514, 4
          %s3526 = int_to_ptr.vmem [resolvable:$true] %s3525
          %3528 = dma.vmem_to_hbm [thread:$0]  %s3526, 128, %s3523, %s3511
        $region120: #{decoder_forward.3} parent=115 // pred_fallthru
          _
      $region116: #{decoder_forward.3} parent=5 // pred_fallthru
        _
      %p3529 = scmp.le.s32.totalorder 2, %s33
      // Predicated region
      $region121: #{decoder_forward.3} parent=5 // pred_check
        %p3530 = pneg %p3529
      $region122: #{decoder_forward.3} parent=5 // pred_check_branch
        %3532 = sbr.rel (%p3530) target = $region124
      $region123: #{decoder_forward.3} parent=5 // pred_region
        %s3533 = ssub.s32 %s33, 2
        // Predicated region
        $region125: #{decoder_forward.3} parent=123 // pred_check
          %p3534 = pneg %p590
        $region126: #{decoder_forward.3} parent=123 // pred_check_branch
          %3536 = sbr.rel (%p3534) target = $region128
        $region127: #{decoder_forward.3} parent=123 // pred_region
          %s3537 = sand.u32 %s575, 1
          %s3538 = scalar_lea.sflag [#allocation3], %s3537
          %s3539 = sand.u32 %s575, 1
          %s3540 = smul.addr %s3539, 8
          %s3541 = scalar_lea.vmem [#allocation2], %s3540
          %3542 = dma.done %s3538, 128
        $region128: #{decoder_forward.3} parent=123 // pred_fallthru
          _
      $region124: #{decoder_forward.3} parent=5 // pred_fallthru
        _
    $region6: #{decoder_forward.3} parent=1 // loop_footer
      %s37 = sadd.s32 1, %s33
    $region7: #{decoder_forward.3} parent=1 // loop_footer_branch
      %32 = sbr.rel target = $region3
    $region8: #{decoder_forward.3} parent=1 // loop_exit
      _
    %3543 = vsyncpa [#allocation3], 1
    %s3544 = scalar_lea.sflag [#allocation3], 1
    %3545 = vsyncpa %s3544, 1

// kernel: decoder_forward.2
$region0: #{decoder_forward.2}
  #allocation0 [shape = 'u32[]', space=smem, size = 0x4, offset = 0x4, fixed_abs, tag = 'smem constant byte address 0x4 - core index']
  #allocation1 [shape = 'u32[144,128]{1,0:T(1,128)}', space=vmem, size = 0x12000, scoped, tag = 'internal scratch']
  %s0 = inlined_call_operand.vmem [shape: f32[2,8,32], index: 0, kind: input, shape index: {}]
  %s1 = inlined_call_operand.vmem [shape: f32[2,8,32], index: 1, kind: input, shape index: {}]
  %s2 = inlined_call_operand.vmem [shape: f32[1,32], index: 2, kind: input, shape index: {}]
  %s3 = inlined_call_operand.vmem [shape: f32[1,32], index: 3, kind: input, shape index: {}]
  %s4 = inlined_call_operand.hbm [shape: f32[1,32], index: 4, kind: input, shape index: {}]
  %s5 = inlined_call_operand.hbm [shape: f32[1,32], index: 5, kind: input, shape index: {}]
  %s6 = inlined_call_operand.vmem [shape: bf16[32,64], index: 6, kind: input, shape index: {}]
  %s7 = inlined_call_operand.vmem [shape: bf16[32,64], index: 7, kind: input, shape index: {}]
  %s8 = inlined_call_operand.vmem [shape: bf16[32,32], index: 8, kind: input, shape index: {}]
  %s9 = inlined_call_operand.vmem [shape: bf16[32,32], index: 9, kind: input, shape index: {}]
  %s10 = inlined_call_operand.hbm [shape: f32[1,32], index: 10, kind: input, shape index: {}]
  %s11 = inlined_call_operand.vmem [shape: f32[4,1,1], index: 11, kind: input, shape index: {}]
  %s12 = inlined_call_operand.vmem [shape: bf16[32,64], index: 12, kind: input, shape index: {}]
  %s13 = inlined_call_operand.vmem [shape: bf16[32,64], index: 13, kind: input, shape index: {}]
  %s14 = inlined_call_operand.vmem [shape: bf16[32,32], index: 14, kind: input, shape index: {}]
  %s15 = inlined_call_operand.vmem [shape: bf16[32,32], index: 15, kind: input, shape index: {}]
  %s16 = inlined_call_operand.vmem [shape: f32[1,32], index: 16, kind: input, shape index: {}]
  %s17 = inlined_call_operand.vmem [shape: f32[4,1,1], index: 17, kind: input, shape index: {}]
  %s18 = inlined_call_operand.hbm [shape: bf16[32,64], index: 18, kind: input, shape index: {}]
  %s19 = inlined_call_operand.vmem [shape: f32[1,64], index: 19, kind: input, shape index: {}]
  %s20 = inlined_call_operand.vmem [shape: bf16[64,340], index: 20, kind: input, shape index: {}]
  %s21 = inlined_call_operand.vmem [shape: bf16[170,64], index: 21, kind: input, shape index: {}]
  %s22 = inlined_call_operand.vmem [shape: bf16[64,32], index: 22, kind: input, shape index: {}]
  %s23 = inlined_call_operand.vmem [shape: f32[1,32], index: 23, kind: input, shape index: {}]
  %s24 = inlined_call_operand.vmem [shape: f32[2,8,32], index: 24, kind: output, shape index: {}]
  %s25 = sld [smem:[#allocation0]]
  $region145: #{decoder_forward.2} parent=0
    _
  %s27 = ssub.s32 1, %s25
  %s28 = scalar_select 0, %s27, %s25
  $region1: #{decoder_forward.2} parent=0
    #allocation2 [shape = 'u8[512]{0}', space=vmem, size = 0x400, scoped, tag = 'input window, operand 4, single buffered']
    #allocation3 [shape = 's32[2]{0}', space=sflag, size = 0x8, scoped, tag = 'scoped memory for decoder_forward.2']
    #allocation4 [shape = 'u8[512]{0}', space=vmem, size = 0x400, scoped, tag = 'input window, operand 5, single buffered']
    #allocation5 [shape = 's32[1]{0}', space=sflag, size = 0x4, scoped, tag = 'scoped memory for decoder_forward.2']
    #allocation6 [shape = 'u8[512]{0}', space=vmem, size = 0x400, scoped, tag = 'input window, operand 10, single buffered']
    #allocation7 [shape = 'u8[8192]{0}', space=vmem, size = 0x2000, scoped, tag = 'input window, operand 18, single buffered']
    #allocation8 [shape = 's32[1]{0}', space=sflag, size = 0x4, scoped, tag = 'scoped memory for decoder_forward.2']
    %29 = vsyncpa [#allocation3], 0
    %30 = vsyncpa [#allocation5], 0
    %31 = vsyncpa [#allocation8], 0
    loop: start=0, step=1, limit=4
    $region2: #{decoder_forward.2} parent=1 // loop_pre_header
      _
    $region3: #{decoder_forward.2} parent=1 // loop_header
      %s33 = sphi 0, %s37
      %p34 = scmp.ge.s32.totalorder %s33, 4
      %s40 = sphi 0, %s52
      %s41 = sphi 0, %s48
      %s42 = sphi 0, %s40
      %s43 = sphi 0, %s41
      %s44 = sphi 0, %s42
      %s45 = sphi 0, %s43
      %s55 = sphi 0, %s57
      %s58 = sphi 0, %s55
      %s59 = sphi 0, %s58
      %s75 = sphi 0, %s59
      %s81 = sphi 0, %s83
      %s84 = sphi 0, %s81
      %s85 = sphi 0, %s84
      %s101 = sphi 0, %s85
      %s105 = sphi 0, %s105
      %s107 = sphi 0, %s105
      %s108 = sphi 0, %s107
      %s122 = sphi 0, %s108
      %s126 = sphi 0, %s126
      %s128 = sphi 0, %s126
      %s129 = sphi 0, %s128
      %s143 = sphi 0, %s129
      %s147 = sphi 0, %s147
      %s149 = sphi 0, %s147
      %s150 = sphi 0, %s149
      %s164 = sphi 0, %s150
      %s168 = sphi 0, %s168
      %s170 = sphi 0, %s168
      %s171 = sphi 0, %s170
      %s185 = sphi 0, %s171
      %s189 = sphi 0, %s189
      %s191 = sphi 0, %s189
      %s192 = sphi 0, %s191
      %s206 = sphi 0, %s192
      %s210 = sphi 0, %s210
      %s212 = sphi 0, %s210
      %s213 = sphi 0, %s212
      %s227 = sphi 0, %s213
      %s231 = sphi 0, %s231
      %s233 = sphi 0, %s231
      %s234 = sphi 0, %s233
      %s248 = sphi 0, %s234
      %s252 = sphi 0, %s252
      %s254 = sphi 0, %s252
      %s255 = sphi 0, %s254
      %s269 = sphi 0, %s255
      %s273 = sphi 0, %s273
      %s275 = sphi 0, %s273
      %s276 = sphi 0, %s275
      %s290 = sphi 0, %s276
      %s294 = sphi 0, %s294
      %s296 = sphi 0, %s294
      %s297 = sphi 0, %s296
      %s311 = sphi 0, %s297
      %s315 = sphi 0, %s315
      %s317 = sphi 0, %s315
      %s318 = sphi 0, %s317
      %s332 = sphi 0, %s318
      %s336 = sphi 0, %s336
      %s338 = sphi 0, %s336
      %s339 = sphi 0, %s338
      %s353 = sphi 0, %s339
      %s357 = sphi 0, %s357
      %s359 = sphi 0, %s357
      %s360 = sphi 0, %s359
      %s374 = sphi 0, %s360
      %s378 = sphi 0, %s378
      %s380 = sphi 0, %s378
      %s381 = sphi 0, %s380
      %s395 = sphi 0, %s381
      %s399 = sphi 0, %s399
      %s401 = sphi 0, %s399
      %s402 = sphi 0, %s401
      %s416 = sphi 0, %s402
      %s420 = sphi 0, %s420
      %s422 = sphi 0, %s420
      %s423 = sphi 0, %s422
      %s437 = sphi 0, %s423
      %s441 = sphi 0, %s441
      %s443 = sphi 0, %s441
      %s444 = sphi 0, %s443
      %s458 = sphi 0, %s444
      %s462 = sphi 0, %s462
      %s464 = sphi 0, %s462
      %s465 = sphi 0, %s464
      %s479 = sphi 0, %s465
      %s483 = sphi 0, %s483
      %s485 = sphi 0, %s483
      %s486 = sphi 0, %s485
      %s500 = sphi 0, %s486
      %s504 = sphi 0, %s504
      %s506 = sphi 0, %s504
      %s507 = sphi 0, %s506
      %s521 = sphi 0, %s507
      %s525 = sphi 0, %s525
      %s527 = sphi 0, %s525
      %s528 = sphi 0, %s527
      %s542 = sphi 0, %s528
      %s546 = sphi 0, %s546
      %s548 = sphi 0, %s546
      %s549 = sphi 0, %s548
      %s563 = sphi 0, %s549
      %s571 = sphi 0, %s573
      %s574 = sphi 0, %s571
      %s575 = sphi 0, %s574
      %s591 = sphi 0, %s575
    $region4: #{decoder_forward.2} parent=1 // loop_header_branch
      %36 = sbr.rel (%p34) target = $region8
    $region5: #{decoder_forward.2} parent=1 // loop_body
      %s38 = ssub.s32 %s33, 1
      %s39 = ssub.s32 %s33, 2
      %s46 = sadd.s32 1, %s41
      %p47 = scmp.ge.s32.totalorder %s46, 1
      %s48 = scalar_select %p47, 0, %s46
      %s49 = sadd.s32 1, %s40
      %s50 = scalar_select %p47, %s49, %s40
      %p51 = scmp.ge.s32.totalorder %s50, 2
      %s52 = scalar_select %p51, 0, %s50
      %s53 = ssub.s32 %s40, %s52
      %p54 = scmp.eq.s32.totalorder %s53, 0
      %s56 = sadd.s32 %s55, 1
      %s57 = scalar_select %p54, %s55, %s56
      %p60 = pneg %p54
      %p61 = scmp.eq.s32.totalorder %s33, 1
      %p62 = por %p60, %p61
      %p63 = scmp.ne.s32.totalorder %s55, %s58
      %p64 = scmp.eq.s32.totalorder %s33, 0
      %p65 = por %p63, %p64
      %p66 = scmp.ne.s32.totalorder %s55, %s58
      %p67 = scmp.eq.s32.totalorder %s38, 1
      %p68 = por %p66, %p67
      %p69 = scmp.ne.s32.totalorder %s58, %s59
      %p70 = scmp.eq.s32.totalorder %s38, 0
      %p71 = por %p69, %p70
      %p72 = scmp.ne.s32.totalorder %s58, %s59
      %p73 = scmp.eq.s32.totalorder %s39, 1
      %p74 = por %p72, %p73
      %p76 = scmp.ne.s32.totalorder %s59, %s75
      %p77 = scmp.eq.s32.totalorder %s39, 0
      %p78 = por %p76, %p77
      %s79 = ssub.s32 %s40, %s52
      %p80 = scmp.eq.s32.totalorder %s79, 0
      %s82 = sadd.s32 %s81, 1
      %s83 = scalar_select %p80, %s81, %s82
      %p86 = pneg %p80
      %p87 = scmp.eq.s32.totalorder %s33, 1
      %p88 = por %p86, %p87
      %p89 = scmp.ne.s32.totalorder %s81, %s84
      %p90 = scmp.eq.s32.totalorder %s33, 0
      %p91 = por %p89, %p90
      %p92 = scmp.ne.s32.totalorder %s81, %s84
      %p93 = scmp.eq.s32.totalorder %s38, 1
      %p94 = por %p92, %p93
      %p95 = scmp.ne.s32.totalorder %s84, %s85
      %p96 = scmp.eq.s32.totalorder %s38, 0
      %p97 = por %p95, %p96
      %p98 = scmp.ne.s32.totalorder %s84, %s85
      %p99 = scmp.eq.s32.totalorder %s39, 1
      %p100 = por %p98, %p99
      %p102 = scmp.ne.s32.totalorder %s85, %s101
      %p103 = scmp.eq.s32.totalorder %s39, 0
      %p104 = por %p102, %p103
      %s106 = sadd.s32 %s105, 1
      %p109 = scmp.eq.s32.totalorder %s33, 1
      %p110 = scmp.ne.s32.totalorder %s105, %s107
      %p111 = scmp.eq.s32.totalorder %s33, 0
      %p112 = por %p110, %p111
      %p113 = scmp.ne.s32.totalorder %s105, %s107
      %p114 = scmp.eq.s32.totalorder %s38, 1
      %p115 = por %p113, %p114
      %p116 = scmp.ne.s32.totalorder %s107, %s108
      %p117 = scmp.eq.s32.totalorder %s38, 0
      %p118 = por %p116, %p117
      %p119 = scmp.ne.s32.totalorder %s107, %s108
      %p120 = scmp.eq.s32.totalorder %s39, 1
      %p121 = por %p119, %p120
      %p123 = scmp.ne.s32.totalorder %s108, %s122
      %p124 = scmp.eq.s32.totalorder %s39, 0
      %p125 = por %p123, %p124
      %s127 = sadd.s32 %s126, 1
      %p130 = scmp.eq.s32.totalorder %s33, 1
      %p131 = scmp.ne.s32.totalorder %s126, %s128
      %p132 = scmp.eq.s32.totalorder %s33, 0
      %p133 = por %p131, %p132
      %p134 = scmp.ne.s32.totalorder %s126, %s128
      %p135 = scmp.eq.s32.totalorder %s38, 1
      %p136 = por %p134, %p135
      %p137 = scmp.ne.s32.totalorder %s128, %s129
      %p138 = scmp.eq.s32.totalorder %s38, 0
      %p139 = por %p137, %p138
      %p140 = scmp.ne.s32.totalorder %s128, %s129
      %p141 = scmp.eq.s32.totalorder %s39, 1
      %p142 = por %p140, %p141
      %p144 = scmp.ne.s32.totalorder %s129, %s143
      %p145 = scmp.eq.s32.totalorder %s39, 0
      %p146 = por %p144, %p145
      %s148 = sadd.s32 %s147, 1
      %p151 = scmp.eq.s32.totalorder %s33, 1
      %p152 = scmp.ne.s32.totalorder %s147, %s149
      %p153 = scmp.eq.s32.totalorder %s33, 0
      %p154 = por %p152, %p153
      %p155 = scmp.ne.s32.totalorder %s147, %s149
      %p156 = scmp.eq.s32.totalorder %s38, 1
      %p157 = por %p155, %p156
      %p158 = scmp.ne.s32.totalorder %s149, %s150
      %p159 = scmp.eq.s32.totalorder %s38, 0
      %p160 = por %p158, %p159
      %p161 = scmp.ne.s32.totalorder %s149, %s150
      %p162 = scmp.eq.s32.totalorder %s39, 1
      %p163 = por %p161, %p162
      %p165 = scmp.ne.s32.totalorder %s150, %s164
      %p166 = scmp.eq.s32.totalorder %s39, 0
      %p167 = por %p165, %p166
      %s169 = sadd.s32 %s168, 1
      %p172 = scmp.eq.s32.totalorder %s33, 1
      %p173 = scmp.ne.s32.totalorder %s168, %s170
      %p174 = scmp.eq.s32.totalorder %s33, 0
      %p175 = por %p173, %p174
      %p176 = scmp.ne.s32.totalorder %s168, %s170
      %p177 = scmp.eq.s32.totalorder %s38, 1
      %p178 = por %p176, %p177
      %p179 = scmp.ne.s32.totalorder %s170, %s171
      %p180 = scmp.eq.s32.totalorder %s38, 0
      %p181 = por %p179, %p180
      %p182 = scmp.ne.s32.totalorder %s170, %s171
      %p183 = scmp.eq.s32.totalorder %s39, 1
      %p184 = por %p182, %p183
      %p186 = scmp.ne.s32.totalorder %s171, %s185
      %p187 = scmp.eq.s32.totalorder %s39, 0
      %p188 = por %p186, %p187
      %s190 = sadd.s32 %s189, 1
      %p193 = scmp.eq.s32.totalorder %s33, 1
      %p194 = scmp.ne.s32.totalorder %s189, %s191
      %p195 = scmp.eq.s32.totalorder %s33, 0
      %p196 = por %p194, %p195
      %p197 = scmp.ne.s32.totalorder %s189, %s191
      %p198 = scmp.eq.s32.totalorder %s38, 1
      %p199 = por %p197, %p198
      %p200 = scmp.ne.s32.totalorder %s191, %s192
      %p201 = scmp.eq.s32.totalorder %s38, 0
      %p202 = por %p200, %p201
      %p203 = scmp.ne.s32.totalorder %s191, %s192
      %p204 = scmp.eq.s32.totalorder %s39, 1
      %p205 = por %p203, %p204
      %p207 = scmp.ne.s32.totalorder %s192, %s206
      %p208 = scmp.eq.s32.totalorder %s39, 0
      %p209 = por %p207, %p208
      %s211 = sadd.s32 %s210, 1
      %p214 = scmp.eq.s32.totalorder %s33, 1
      %p215 = scmp.ne.s32.totalorder %s210, %s212
      %p216 = scmp.eq.s32.totalorder %s33, 0
      %p217 = por %p215, %p216
      %p218 = scmp.ne.s32.totalorder %s210, %s212
      %p219 = scmp.eq.s32.totalorder %s38, 1
      %p220 = por %p218, %p219
      %p221 = scmp.ne.s32.totalorder %s212, %s213
      %p222 = scmp.eq.s32.totalorder %s38, 0
      %p223 = por %p221, %p222
      %p224 = scmp.ne.s32.totalorder %s212, %s213
      %p225 = scmp.eq.s32.totalorder %s39, 1
      %p226 = por %p224, %p225
      %p228 = scmp.ne.s32.totalorder %s213, %s227
      %p229 = scmp.eq.s32.totalorder %s39, 0
      %p230 = por %p228, %p229
      %s232 = sadd.s32 %s231, 1
      %p235 = scmp.eq.s32.totalorder %s33, 1
      %p236 = scmp.ne.s32.totalorder %s231, %s233
      %p237 = scmp.eq.s32.totalorder %s33, 0
      %p238 = por %p236, %p237
      %p239 = scmp.ne.s32.totalorder %s231, %s233
      %p240 = scmp.eq.s32.totalorder %s38, 1
      %p241 = por %p239, %p240
      %p242 = scmp.ne.s32.totalorder %s233, %s234
      %p243 = scmp.eq.s32.totalorder %s38, 0
      %p244 = por %p242, %p243
      %p245 = scmp.ne.s32.totalorder %s233, %s234
      %p246 = scmp.eq.s32.totalorder %s39, 1
      %p247 = por %p245, %p246
      %p249 = scmp.ne.s32.totalorder %s234, %s248
      %p250 = scmp.eq.s32.totalorder %s39, 0
      %p251 = por %p249, %p250
      %s253 = sadd.s32 %s252, 1
      %p256 = scmp.eq.s32.totalorder %s33, 1
      %p257 = scmp.ne.s32.totalorder %s252, %s254
      %p258 = scmp.eq.s32.totalorder %s33, 0
      %p259 = por %p257, %p258
      %p260 = scmp.ne.s32.totalorder %s252, %s254
      %p261 = scmp.eq.s32.totalorder %s38, 1
      %p262 = por %p260, %p261
      %p263 = scmp.ne.s32.totalorder %s254, %s255
      %p264 = scmp.eq.s32.totalorder %s38, 0
      %p265 = por %p263, %p264
      %p266 = scmp.ne.s32.totalorder %s254, %s255
      %p267 = scmp.eq.s32.totalorder %s39, 1
      %p268 = por %p266, %p267
      %p270 = scmp.ne.s32.totalorder %s255, %s269
      %p271 = scmp.eq.s32.totalorder %s39, 0
      %p272 = por %p270, %p271
      %s274 = sadd.s32 %s273, 1
      %p277 = scmp.eq.s32.totalorder %s33, 1
      %p278 = scmp.ne.s32.totalorder %s273, %s275
      %p279 = scmp.eq.s32.totalorder %s33, 0
      %p280 = por %p278, %p279
      %p281 = scmp.ne.s32.totalorder %s273, %s275
      %p282 = scmp.eq.s32.totalorder %s38, 1
      %p283 = por %p281, %p282
      %p284 = scmp.ne.s32.totalorder %s275, %s276
      %p285 = scmp.eq.s32.totalorder %s38, 0
      %p286 = por %p284, %p285
      %p287 = scmp.ne.s32.totalorder %s275, %s276
      %p288 = scmp.eq.s32.totalorder %s39, 1
      %p289 = por %p287, %p288
      %p291 = scmp.ne.s32.totalorder %s276, %s290
      %p292 = scmp.eq.s32.totalorder %s39, 0
      %p293 = por %p291, %p292
      %s295 = sadd.s32 %s294, 1
      %p298 = scmp.eq.s32.totalorder %s33, 1
      %p299 = scmp.ne.s32.totalorder %s294, %s296
      %p300 = scmp.eq.s32.totalorder %s33, 0
      %p301 = por %p299, %p300
      %p302 = scmp.ne.s32.totalorder %s294, %s296
      %p303 = scmp.eq.s32.totalorder %s38, 1
      %p304 = por %p302, %p303
      %p305 = scmp.ne.s32.totalorder %s296, %s297
      %p306 = scmp.eq.s32.totalorder %s38, 0
      %p307 = por %p305, %p306
      %p308 = scmp.ne.s32.totalorder %s296, %s297
      %p309 = scmp.eq.s32.totalorder %s39, 1
      %p310 = por %p308, %p309
      %p312 = scmp.ne.s32.totalorder %s297, %s311
      %p313 = scmp.eq.s32.totalorder %s39, 0
      %p314 = por %p312, %p313
      %s316 = sadd.s32 %s315, 1
      %p319 = scmp.eq.s32.totalorder %s33, 1
      %p320 = scmp.ne.s32.totalorder %s315, %s317
      %p321 = scmp.eq.s32.totalorder %s33, 0
      %p322 = por %p320, %p321
      %p323 = scmp.ne.s32.totalorder %s315, %s317
      %p324 = scmp.eq.s32.totalorder %s38, 1
      %p325 = por %p323, %p324
      %p326 = scmp.ne.s32.totalorder %s317, %s318
      %p327 = scmp.eq.s32.totalorder %s38, 0
      %p328 = por %p326, %p327
      %p329 = scmp.ne.s32.totalorder %s317, %s318
      %p330 = scmp.eq.s32.totalorder %s39, 1
      %p331 = por %p329, %p330
      %p333 = scmp.ne.s32.totalorder %s318, %s332
      %p334 = scmp.eq.s32.totalorder %s39, 0
      %p335 = por %p333, %p334
      %s337 = sadd.s32 %s336, 1
      %p340 = scmp.eq.s32.totalorder %s33, 1
      %p341 = scmp.ne.s32.totalorder %s336, %s338
      %p342 = scmp.eq.s32.totalorder %s33, 0
      %p343 = por %p341, %p342
      %p344 = scmp.ne.s32.totalorder %s336, %s338
      %p345 = scmp.eq.s32.totalorder %s38, 1
      %p346 = por %p344, %p345
      %p347 = scmp.ne.s32.totalorder %s338, %s339
      %p348 = scmp.eq.s32.totalorder %s38, 0
      %p349 = por %p347, %p348
      %p350 = scmp.ne.s32.totalorder %s338, %s339
      %p351 = scmp.eq.s32.totalorder %s39, 1
      %p352 = por %p350, %p351
      %p354 = scmp.ne.s32.totalorder %s339, %s353
      %p355 = scmp.eq.s32.totalorder %s39, 0
      %p356 = por %p354, %p355
      %s358 = sadd.s32 %s357, 1
      %p361 = scmp.eq.s32.totalorder %s33, 1
      %p362 = scmp.ne.s32.totalorder %s357, %s359
      %p363 = scmp.eq.s32.totalorder %s33, 0
      %p364 = por %p362, %p363
      %p365 = scmp.ne.s32.totalorder %s357, %s359
      %p366 = scmp.eq.s32.totalorder %s38, 1
      %p367 = por %p365, %p366
      %p368 = scmp.ne.s32.totalorder %s359, %s360
      %p369 = scmp.eq.s32.totalorder %s38, 0
      %p370 = por %p368, %p369
      %p371 = scmp.ne.s32.totalorder %s359, %s360
      %p372 = scmp.eq.s32.totalorder %s39, 1
      %p373 = por %p371, %p372
      %p375 = scmp.ne.s32.totalorder %s360, %s374
      %p376 = scmp.eq.s32.totalorder %s39, 0
      %p377 = por %p375, %p376
      %s379 = sadd.s32 %s378, 1
      %p382 = scmp.eq.s32.totalorder %s33, 1
      %p383 = scmp.ne.s32.totalorder %s378, %s380
      %p384 = scmp.eq.s32.totalorder %s33, 0
      %p385 = por %p383, %p384
      %p386 = scmp.ne.s32.totalorder %s378, %s380
      %p387 = scmp.eq.s32.totalorder %s38, 1
      %p388 = por %p386, %p387
      %p389 = scmp.ne.s32.totalorder %s380, %s381
      %p390 = scmp.eq.s32.totalorder %s38, 0
      %p391 = por %p389, %p390
      %p392 = scmp.ne.s32.totalorder %s380, %s381
      %p393 = scmp.eq.s32.totalorder %s39, 1
      %p394 = por %p392, %p393
      %p396 = scmp.ne.s32.totalorder %s381, %s395
      %p397 = scmp.eq.s32.totalorder %s39, 0
      %p398 = por %p396, %p397
      %s400 = sadd.s32 %s399, 1
      %p403 = scmp.eq.s32.totalorder %s33, 1
      %p404 = scmp.ne.s32.totalorder %s399, %s401
      %p405 = scmp.eq.s32.totalorder %s33, 0
      %p406 = por %p404, %p405
      %p407 = scmp.ne.s32.totalorder %s399, %s401
      %p408 = scmp.eq.s32.totalorder %s38, 1
      %p409 = por %p407, %p408
      %p410 = scmp.ne.s32.totalorder %s401, %s402
      %p411 = scmp.eq.s32.totalorder %s38, 0
      %p412 = por %p410, %p411
      %p413 = scmp.ne.s32.totalorder %s401, %s402
      %p414 = scmp.eq.s32.totalorder %s39, 1
      %p415 = por %p413, %p414
      %p417 = scmp.ne.s32.totalorder %s402, %s416
      %p418 = scmp.eq.s32.totalorder %s39, 0
      %p419 = por %p417, %p418
      %s421 = sadd.s32 %s420, 1
      %p424 = scmp.eq.s32.totalorder %s33, 1
      %p425 = scmp.ne.s32.totalorder %s420, %s422
      %p426 = scmp.eq.s32.totalorder %s33, 0
      %p427 = por %p425, %p426
      %p428 = scmp.ne.s32.totalorder %s420, %s422
      %p429 = scmp.eq.s32.totalorder %s38, 1
      %p430 = por %p428, %p429
      %p431 = scmp.ne.s32.totalorder %s422, %s423
      %p432 = scmp.eq.s32.totalorder %s38, 0
      %p433 = por %p431, %p432
      %p434 = scmp.ne.s32.totalorder %s422, %s423
      %p435 = scmp.eq.s32.totalorder %s39, 1
      %p436 = por %p434, %p435
      %p438 = scmp.ne.s32.totalorder %s423, %s437
      %p439 = scmp.eq.s32.totalorder %s39, 0
      %p440 = por %p438, %p439
      %s442 = sadd.s32 %s441, 1
      %p445 = scmp.eq.s32.totalorder %s33, 1
      %p446 = scmp.ne.s32.totalorder %s441, %s443
      %p447 = scmp.eq.s32.totalorder %s33, 0
      %p448 = por %p446, %p447
      %p449 = scmp.ne.s32.totalorder %s441, %s443
      %p450 = scmp.eq.s32.totalorder %s38, 1
      %p451 = por %p449, %p450
      %p452 = scmp.ne.s32.totalorder %s443, %s444
      %p453 = scmp.eq.s32.totalorder %s38, 0
      %p454 = por %p452, %p453
      %p455 = scmp.ne.s32.totalorder %s443, %s444
      %p456 = scmp.eq.s32.totalorder %s39, 1
      %p457 = por %p455, %p456
      %p459 = scmp.ne.s32.totalorder %s444, %s458
      %p460 = scmp.eq.s32.totalorder %s39, 0
      %p461 = por %p459, %p460
      %s463 = sadd.s32 %s462, 1
      %p466 = scmp.eq.s32.totalorder %s33, 1
      %p467 = scmp.ne.s32.totalorder %s462, %s464
      %p468 = scmp.eq.s32.totalorder %s33, 0
      %p469 = por %p467, %p468
      %p470 = scmp.ne.s32.totalorder %s462, %s464
      %p471 = scmp.eq.s32.totalorder %s38, 1
      %p472 = por %p470, %p471
      %p473 = scmp.ne.s32.totalorder %s464, %s465
      %p474 = scmp.eq.s32.totalorder %s38, 0
      %p475 = por %p473, %p474
      %p476 = scmp.ne.s32.totalorder %s464, %s465
      %p477 = scmp.eq.s32.totalorder %s39, 1
      %p478 = por %p476, %p477
      %p480 = scmp.ne.s32.totalorder %s465, %s479
      %p481 = scmp.eq.s32.totalorder %s39, 0
      %p482 = por %p480, %p481
      %s484 = sadd.s32 %s483, 1
      %p487 = scmp.eq.s32.totalorder %s33, 1
      %p488 = scmp.ne.s32.totalorder %s483, %s485
      %p489 = scmp.eq.s32.totalorder %s33, 0
      %p490 = por %p488, %p489
      %p491 = scmp.ne.s32.totalorder %s483, %s485
      %p492 = scmp.eq.s32.totalorder %s38, 1
      %p493 = por %p491, %p492
      %p494 = scmp.ne.s32.totalorder %s485, %s486
      %p495 = scmp.eq.s32.totalorder %s38, 0
      %p496 = por %p494, %p495
      %p497 = scmp.ne.s32.totalorder %s485, %s486
      %p498 = scmp.eq.s32.totalorder %s39, 1
      %p499 = por %p497, %p498
      %p501 = scmp.ne.s32.totalorder %s486, %s500
      %p502 = scmp.eq.s32.totalorder %s39, 0
      %p503 = por %p501, %p502
      %s505 = sadd.s32 %s504, 1
      %p508 = scmp.eq.s32.totalorder %s33, 1
      %p509 = scmp.ne.s32.totalorder %s504, %s506
      %p510 = scmp.eq.s32.totalorder %s33, 0
      %p511 = por %p509, %p510
      %p512 = scmp.ne.s32.totalorder %s504, %s506
      %p513 = scmp.eq.s32.totalorder %s38, 1
      %p514 = por %p512, %p513
      %p515 = scmp.ne.s32.totalorder %s506, %s507
      %p516 = scmp.eq.s32.totalorder %s38, 0
      %p517 = por %p515, %p516
      %p518 = scmp.ne.s32.totalorder %s506, %s507
      %p519 = scmp.eq.s32.totalorder %s39, 1
      %p520 = por %p518, %p519
      %p522 = scmp.ne.s32.totalorder %s507, %s521
      %p523 = scmp.eq.s32.totalorder %s39, 0
      %p524 = por %p522, %p523
      %s526 = sadd.s32 %s525, 1
      %p529 = scmp.eq.s32.totalorder %s33, 1
      %p530 = scmp.ne.s32.totalorder %s525, %s527
      %p531 = scmp.eq.s32.totalorder %s33, 0
      %p532 = por %p530, %p531
      %p533 = scmp.ne.s32.totalorder %s525, %s527
      %p534 = scmp.eq.s32.totalorder %s38, 1
      %p535 = por %p533, %p534
      %p536 = scmp.ne.s32.totalorder %s527, %s528
      %p537 = scmp.eq.s32.totalorder %s38, 0
      %p538 = por %p536, %p537
      %p539 = scmp.ne.s32.totalorder %s527, %s528
      %p540 = scmp.eq.s32.totalorder %s39, 1
      %p541 = por %p539, %p540
      %p543 = scmp.ne.s32.totalorder %s528, %s542
      %p544 = scmp.eq.s32.totalorder %s39, 0
      %p545 = por %p543, %p544
      %s547 = sadd.s32 %s546, 1
      %p550 = scmp.eq.s32.totalorder %s33, 1
      %p551 = scmp.ne.s32.totalorder %s546, %s548
      %p552 = scmp.eq.s32.totalorder %s33, 0
      %p553 = por %p551, %p552
      %p554 = scmp.ne.s32.totalorder %s546, %s548
      %p555 = scmp.eq.s32.totalorder %s38, 1
      %p556 = por %p554, %p555
      %p557 = scmp.ne.s32.totalorder %s548, %s549
      %p558 = scmp.eq.s32.totalorder %s38, 0
      %p559 = por %p557, %p558
      %p560 = scmp.ne.s32.totalorder %s548, %s549
      %p561 = scmp.eq.s32.totalorder %s39, 1
      %p562 = por %p560, %p561
      %p564 = scmp.ne.s32.totalorder %s549, %s563
      %p565 = scmp.eq.s32.totalorder %s39, 0
      %p566 = por %p564, %p565
      %s567 = ssub.s32 %s40, %s52
      %s568 = ssub.s32 %s41, %s48
      %s569 = sor.u32 %s567, %s568
      %p570 = scmp.eq.s32.totalorder %s569, 0
      %s572 = sadd.s32 %s571, 1
      %s573 = scalar_select %p570, %s571, %s572
      %p576 = pneg %p570
      %p577 = scmp.eq.s32.totalorder %s33, 1
      %p578 = por %p576, %p577
      %p579 = scmp.ne.s32.totalorder %s571, %s574
      %p580 = scmp.eq.s32.totalorder %s33, 0
      %p581 = por %p579, %p580
      %p582 = scmp.ne.s32.totalorder %s571, %s574
      %p583 = scmp.eq.s32.totalorder %s38, 1
      %p584 = por %p582, %p583
      %p585 = scmp.ne.s32.totalorder %s574, %s575
      %p586 = scmp.eq.s32.totalorder %s38, 0
      %p587 = por %p585, %p586
      %p588 = scmp.ne.s32.totalorder %s574, %s575
      %p589 = scmp.eq.s32.totalorder %s39, 1
      %p590 = por %p588, %p589
      %p592 = scmp.ne.s32.totalorder %s575, %s591
      %p593 = scmp.eq.s32.totalorder %s39, 0
      %p594 = por %p592, %p593
      %p595 = scmp.le.s32.totalorder 1, %s33
      %p596 = scmp.lt.s32.totalorder %s33, 3
      %p597 = pnand %p595, %p596
      %p598 = pneg %p597
      // Predicated region
      $region9: #{decoder_forward.2} parent=5 // pred_check
        _
      $region10: #{decoder_forward.2} parent=5 // pred_check_branch
        %600 = sbr.rel (%p597) target = $region12
      $region11: #{decoder_forward.2} parent=5 // pred_region
        %s601 = ssub.s32 %s33, 1
        // Predicated region
        $region13: #{decoder_forward.2} parent=11 // pred_check
          %p602 = pneg %p118
        $region14: #{decoder_forward.2} parent=11 // pred_check_branch
          %604 = sbr.rel (%p602) target = $region16
        $region15: #{decoder_forward.2} parent=11 // pred_region
          _
        $region16: #{decoder_forward.2} parent=11 // pred_fallthru
          _
        // Predicated region
        $region17: #{decoder_forward.2} parent=11 // pred_check
          %p605 = pneg %p139
        $region18: #{decoder_forward.2} parent=11 // pred_check_branch
          %607 = sbr.rel (%p605) target = $region20
        $region19: #{decoder_forward.2} parent=11 // pred_region
          _
        $region20: #{decoder_forward.2} parent=11 // pred_fallthru
          _
        // Predicated region
        $region21: #{decoder_forward.2} parent=11 // pred_check
          %p608 = pneg %p160
        $region22: #{decoder_forward.2} parent=11 // pred_check_branch
          %610 = sbr.rel (%p608) target = $region24
        $region23: #{decoder_forward.2} parent=11 // pred_region
          %s612 = ssub.s32 16, 16
          %613 = vsyncadd [#allocation3], %s612
          %s615 = sshll.u32 [#allocation2], 4
          %s616 = int_to_ptr.vmem [resolvable:$true] %s615
          %618 = dma.hbm_to_vmem [thread:$0]  %s4, 16, %s616, [#allocation3]
        $region24: #{decoder_forward.2} parent=11 // pred_fallthru
          _
        // Predicated region
        $region25: #{decoder_forward.2} parent=11 // pred_check
          %p619 = pneg %p181
        $region26: #{decoder_forward.2} parent=11 // pred_check_branch
          %621 = sbr.rel (%p619) target = $region28
        $region27: #{decoder_forward.2} parent=11 // pred_region
          %s623 = ssub.s32 16, 16
          %624 = vsyncadd [#allocation5], %s623
          %s626 = sshll.u32 [#allocation4], 4
          %s627 = int_to_ptr.vmem [resolvable:$true] %s626
          %629 = dma.hbm_to_vmem [thread:$0]  %s5, 16, %s627, [#allocation5]
        $region28: #{decoder_forward.2} parent=11 // pred_fallthru
          _
        // Predicated region
        $region29: #{decoder_forward.2} parent=11 // pred_check
          %p630 = pneg %p202
        $region30: #{decoder_forward.2} parent=11 // pred_check_branch
          %632 = sbr.rel (%p630) target = $region32
        $region31: #{decoder_forward.2} parent=11 // pred_region
          _
        $region32: #{decoder_forward.2} parent=11 // pred_fallthru
          _
        // Predicated region
        $region33: #{decoder_forward.2} parent=11 // pred_check
          %p633 = pneg %p223
        $region34: #{decoder_forward.2} parent=11 // pred_check_branch
          %635 = sbr.rel (%p633) target = $region36
        $region35: #{decoder_forward.2} parent=11 // pred_region
          _
        $region36: #{decoder_forward.2} parent=11 // pred_fallthru
          _
        // Predicated region
        $region37: #{decoder_forward.2} parent=11 // pred_check
          %p636 = pneg %p244
        $region38: #{decoder_forward.2} parent=11 // pred_check_branch
          %638 = sbr.rel (%p636) target = $region40
        $region39: #{decoder_forward.2} parent=11 // pred_region
          _
        $region40: #{decoder_forward.2} parent=11 // pred_fallthru
          _
        // Predicated region
        $region41: #{decoder_forward.2} parent=11 // pred_check
          %p639 = pneg %p265
        $region42: #{decoder_forward.2} parent=11 // pred_check_branch
          %641 = sbr.rel (%p639) target = $region44
        $region43: #{decoder_forward.2} parent=11 // pred_region
          _
        $region44: #{decoder_forward.2} parent=11 // pred_fallthru
          _
        // Predicated region
        $region45: #{decoder_forward.2} parent=11 // pred_check
          %p642 = pneg %p286
        $region46: #{decoder_forward.2} parent=11 // pred_check_branch
          %644 = sbr.rel (%p642) target = $region48
        $region47: #{decoder_forward.2} parent=11 // pred_region
          %s646 = ssub.s32 16, 16
          %647 = vsyncadd [#allocation5], %s646
          %s649 = sshll.u32 [#allocation6], 4
          %s650 = int_to_ptr.vmem [resolvable:$true] %s649
          %652 = dma.hbm_to_vmem [thread:$0]  %s10, 16, %s650, [#allocation5]
        $region48: #{decoder_forward.2} parent=11 // pred_fallthru
          _
        // Predicated region
        $region49: #{decoder_forward.2} parent=11 // pred_check
          %p653 = pneg %p307
        $region50: #{decoder_forward.2} parent=11 // pred_check_branch
          %655 = sbr.rel (%p653) target = $region52
        $region51: #{decoder_forward.2} parent=11 // pred_region
          _
        $region52: #{decoder_forward.2} parent=11 // pred_fallthru
          _
        // Predicated region
        $region53: #{decoder_forward.2} parent=11 // pred_check
          %p656 = pneg %p328
        $region54: #{decoder_forward.2} parent=11 // pred_check_branch
          %658 = sbr.rel (%p656) target = $region56
        $region55: #{decoder_forward.2} parent=11 // pred_region
          _
        $region56: #{decoder_forward.2} parent=11 // pred_fallthru
          _
        // Predicated region
        $region57: #{decoder_forward.2} parent=11 // pred_check
          %p659 = pneg %p349
        $region58: #{decoder_forward.2} parent=11 // pred_check_branch
          %661 = sbr.rel (%p659) target = $region60
        $region59: #{decoder_forward.2} parent=11 // pred_region
          _
        $region60: #{decoder_forward.2} parent=11 // pred_fallthru
          _
        // Predicated region
        $region61: #{decoder_forward.2} parent=11 // pred_check
          %p662 = pneg %p370
        $region62: #{decoder_forward.2} parent=11 // pred_check_branch
          %664 = sbr.rel (%p662) target = $region64
        $region63: #{decoder_forward.2} parent=11 // pred_region
          _
        $region64: #{decoder_forward.2} parent=11 // pred_fallthru
          _
        // Predicated region
        $region65: #{decoder_forward.2} parent=11 // pred_check
          %p665 = pneg %p391
        $region66: #{decoder_forward.2} parent=11 // pred_check_branch
          %667 = sbr.rel (%p665) target = $region68
        $region67: #{decoder_forward.2} parent=11 // pred_region
          _
        $region68: #{decoder_forward.2} parent=11 // pred_fallthru
          _
        // Predicated region
        $region69: #{decoder_forward.2} parent=11 // pred_check
          %p668 = pneg %p412
        $region70: #{decoder_forward.2} parent=11 // pred_check_branch
          %670 = sbr.rel (%p668) target = $region72
        $region71: #{decoder_forward.2} parent=11 // pred_region
          _
        $region72: #{decoder_forward.2} parent=11 // pred_fallthru
          _
        // Predicated region
        $region73: #{decoder_forward.2} parent=11 // pred_check
          %p671 = pneg %p433
        $region74: #{decoder_forward.2} parent=11 // pred_check_branch
          %673 = sbr.rel (%p671) target = $region76
        $region75: #{decoder_forward.2} parent=11 // pred_region
          _
        $region76: #{decoder_forward.2} parent=11 // pred_fallthru
          _
        // Predicated region
        $region77: #{decoder_forward.2} parent=11 // pred_check
          %p674 = pneg %p454
        $region78: #{decoder_forward.2} parent=11 // pred_check_branch
          %676 = sbr.rel (%p674) target = $region80
        $region79: #{decoder_forward.2} parent=11 // pred_region
          %s678 = ssub.s32 256, 256
          %679 = vsyncadd [#allocation8], %s678
          %s680 = sshll.u32 [#allocation7], 4
          %s681 = int_to_ptr.vmem [resolvable:$true] %s680
          %686 = dma.hbm_to_vmem [thread:$0]  %s18, 256, %s681, [#allocation8], 64, 64, 4
        $region80: #{decoder_forward.2} parent=11 // pred_fallthru
          _
        // Predicated region
        $region81: #{decoder_forward.2} parent=11 // pred_check
          %p687 = pneg %p475
        $region82: #{decoder_forward.2} parent=11 // pred_check_branch
          %689 = sbr.rel (%p687) target = $region84
        $region83: #{decoder_forward.2} parent=11 // pred_region
          _
        $region84: #{decoder_forward.2} parent=11 // pred_fallthru
          _
        // Predicated region
        $region85: #{decoder_forward.2} parent=11 // pred_check
          %p690 = pneg %p496
        $region86: #{decoder_forward.2} parent=11 // pred_check_branch
          %692 = sbr.rel (%p690) target = $region88
        $region87: #{decoder_forward.2} parent=11 // pred_region
          _
        $region88: #{decoder_forward.2} parent=11 // pred_fallthru
          _
        // Predicated region
        $region89: #{decoder_forward.2} parent=11 // pred_check
          %p693 = pneg %p517
        $region90: #{decoder_forward.2} parent=11 // pred_check_branch
          %695 = sbr.rel (%p693) target = $region92
        $region91: #{decoder_forward.2} parent=11 // pred_region
          _
        $region92: #{decoder_forward.2} parent=11 // pred_fallthru
          _
        // Predicated region
        $region93: #{decoder_forward.2} parent=11 // pred_check
          %p696 = pneg %p538
        $region94: #{decoder_forward.2} parent=11 // pred_check_branch
          %698 = sbr.rel (%p696) target = $region96
        $region95: #{decoder_forward.2} parent=11 // pred_region
          _
        $region96: #{decoder_forward.2} parent=11 // pred_fallthru
          _
        // Predicated region
        $region97: #{decoder_forward.2} parent=11 // pred_check
          %p699 = pneg %p559
        $region98: #{decoder_forward.2} parent=11 // pred_check_branch
          %701 = sbr.rel (%p699) target = $region100
        $region99: #{decoder_forward.2} parent=11 // pred_region
          _
        $region100: #{decoder_forward.2} parent=11 // pred_fallthru
          _
      $region12: #{decoder_forward.2} parent=5 // pred_fallthru
        _
      %p702 = scmp.lt.s32.totalorder %s33, 2
      // Predicated region
      $region101: #{decoder_forward.2} parent=5 // pred_check
        %p703 = pneg %p702
      $region102: #{decoder_forward.2} parent=5 // pred_check_branch
        %705 = sbr.rel (%p703) target = $region104
      $region103: #{decoder_forward.2} parent=5 // pred_region
        // Predicated region
        $region105: #{decoder_forward.2} parent=103 // pred_check
          %p706 = pneg %p65
        $region106: #{decoder_forward.2} parent=103 // pred_check_branch
          %708 = sbr.rel (%p706) target = $region108
        $region107: #{decoder_forward.2} parent=103 // pred_region
          %p709 = scmp.lt.s32.totalorder %s40, 1
          %s710 = scalar_select %p709, %s40, 1
          %s711 = smul.addr %s710, 8
          %s712 = scalar_lea.vmem %s0, %s711
        $region108: #{decoder_forward.2} parent=103 // pred_fallthru
          _
        // Predicated region
        $region109: #{decoder_forward.2} parent=103 // pred_check
          %p713 = pneg %p91
        $region110: #{decoder_forward.2} parent=103 // pred_check_branch
          %715 = sbr.rel (%p713) target = $region112
        $region111: #{decoder_forward.2} parent=103 // pred_region
          %p716 = scmp.lt.s32.totalorder %s40, 1
          %s717 = scalar_select %p716, %s40, 1
          %s718 = smul.addr %s717, 8
          %s719 = scalar_lea.vmem %s1, %s718
        $region112: #{decoder_forward.2} parent=103 // pred_fallthru
          _
      $region104: #{decoder_forward.2} parent=5 // pred_fallthru
        _
      %p720 = scmp.le.s32.totalorder 1, %s33
      %p721 = scmp.lt.s32.totalorder %s33, 3
      %p722 = pnand %p720, %p721
      %p723 = pneg %p722
      // Predicated region
      $region113: #{decoder_forward.2} parent=5 // pred_check
        _
      $region114: #{decoder_forward.2} parent=5 // pred_check_branch
        %725 = sbr.rel (%p722) target = $region116
      $region115: #{decoder_forward.2} parent=5 // pred_region
        %s726 = ssub.s32 %s33, 1
        // Predicated region
        $region117: #{decoder_forward.2} parent=115 // pred_check
          %p727 = pneg %p160
        $region118: #{decoder_forward.2} parent=115 // pred_check_branch
          %729 = sbr.rel (%p727) target = $region120
        $region119: #{decoder_forward.2} parent=115 // pred_region
          %730 = dma.done [#allocation3], 16
        $region120: #{decoder_forward.2} parent=115 // pred_fallthru
          _
        // Predicated region
        $region121: #{decoder_forward.2} parent=115 // pred_check
          %p731 = pneg %p181
        $region122: #{decoder_forward.2} parent=115 // pred_check_branch
          %733 = sbr.rel (%p731) target = $region124
        $region123: #{decoder_forward.2} parent=115 // pred_region
          %734 = dma.done [#allocation5], 16
        $region124: #{decoder_forward.2} parent=115 // pred_fallthru
          _
        // Predicated region
        $region125: #{decoder_forward.2} parent=115 // pred_check
          %p735 = pneg %p286
        $region126: #{decoder_forward.2} parent=115 // pred_check_branch
          %737 = sbr.rel (%p735) target = $region128
        $region127: #{decoder_forward.2} parent=115 // pred_region
          %738 = dma.done [#allocation5], 16
        $region128: #{decoder_forward.2} parent=115 // pred_fallthru
          _
        // Predicated region
        $region129: #{decoder_forward.2} parent=115 // pred_check
          %p739 = pneg %p454
        $region130: #{decoder_forward.2} parent=115 // pred_check_branch
          %741 = sbr.rel (%p739) target = $region132
        $region131: #{decoder_forward.2} parent=115 // pred_region
          %742 = dma.done [#allocation8], 256
        $region132: #{decoder_forward.2} parent=115 // pred_fallthru
          _
        %p743 = scmp.lt.s32.totalorder %s42, 1
        %s744 = scalar_select %p743, %s42, 1
        %s745 = smul.addr %s744, 8
        %s746 = scalar_lea.vmem %s0, %s745
        %p747 = pneg %p71
        %p748 = pneg %p68
        %p749 = scmp.lt.s32.totalorder %s42, 1
        %s750 = scalar_select %p749, %s42, 1
        %s751 = smul.addr %s750, 8
        %s752 = scalar_lea.vmem %s1, %s751
        %p753 = pneg %p97
        %p754 = pneg %p94
        %p755 = pneg %p118
        %p756 = pneg %p115
        %p757 = pneg %p139
        %p758 = pneg %p136
        %p759 = pneg %p160
        %p760 = pneg %p157
        %p761 = pneg %p181
        %p762 = pneg %p178
        %p763 = pneg %p202
        %p764 = pneg %p199
        %p765 = pneg %p223
        %p766 = pneg %p220
        %p767 = pneg %p244
        %p768 = pneg %p241
        %p769 = pneg %p265
        %p770 = pneg %p262
        %p771 = pneg %p286
        %p772 = pneg %p283
        %p773 = pneg %p307
        %p774 = pneg %p304
        %p775 = pneg %p328
        %p776 = pneg %p325
        %p777 = pneg %p349
        %p778 = pneg %p346
        %p779 = pneg %p370
        %p780 = pneg %p367
        %p781 = pneg %p391
        %p782 = pneg %p388
        %p783 = pneg %p412
        %p784 = pneg %p409
        %p785 = pneg %p433
        %p786 = pneg %p430
        %p787 = pneg %p454
        %p788 = pneg %p451
        %p789 = pneg %p475
        %p790 = pneg %p472
        %p791 = pneg %p496
        %p792 = pneg %p493
        %p793 = pneg %p517
        %p794 = pneg %p514
        %p795 = pneg %p538
        %p796 = pneg %p535
        %p797 = pneg %p559
        %p798 = pneg %p556
        %p799 = pneg %p587
        %p800 = pneg %p584
        %p801 = scmp.lt.s32.totalorder %s42, 1
        %s802 = scalar_select %p801, %s42, 1
        %p803 = scmp.lt.s32.totalorder %s43, 0
        %s804 = scalar_select %p803, %s43, 0
        %s805 = sadd.s32 %s804, %s802
        %s806 = smul.addr %s805, 8
        %s807 = scalar_lea.vmem %s24, %s806
        %p808 = scmp.lt.s32.totalorder %s42, 1
        %s809 = scalar_select %p808, %s42, 1
        %s810 = smul.addr %s809, 8
        %s811 = scalar_lea.vmem %s0, %s810
        %p812 = scmp.lt.s32.totalorder %s42, 1
        %s813 = scalar_select %p812, %s42, 1
        %s814 = smul.addr %s813, 8
        %s815 = scalar_lea.vmem %s1, %s814
        %p816 = scmp.lt.s32.totalorder %s42, 1
        %s817 = scalar_select %p816, %s42, 1
        %p818 = scmp.lt.s32.totalorder %s43, 0
        %s819 = scalar_select %p818, %s43, 0
        %s820 = sadd.s32 %s819, %s817
        %s821 = smul.addr %s820, 8
        %s822 = scalar_lea.vmem %s24, %s821
        %s824 = smul.u32 %s43, 8
        %v825 = vld [vmem:[%s811] sm:$0xff]
        %s826 = scalar_lea.vmem %s811, %s824
        %v827 = vld [vmem:[%s826] sm:$0xff]
        %v828 = vld [vmem:[%s815] sm:$0xff]
        %v829 = vld [vmem:[%s2] sm:$0x1]
        %v830 = vmul.f32 %v827, %v827
        %vm831 = vcmask 261120
        %v832 = vsel %vm831, %v830, 0.0
        %833 = vadd.xlane.f32.xlu0 %v832
        %v834 = vpop.xlane.xlu0 %833
        %v835 = vrcp.pop 32.0
        %v836 = vmul.f32 %v834, %v835
        %v837 = vadd.f32 %v836, 1e-06
        %v838 = vrsqrt.pop %v837
        %v839 = vmul.f32 %v827, %v838
        %v841 = vlaneseq
        %v842 = vshrl.u32 %v841, 7
        %v843 = vsub.s32 0, %v842
        %v844 = vrot.slane %v829, %v843
        %v846 = vmul.f32 %v839, %v844
        %v847 = vld [vmem:[#allocation4] sm:$0x1]
        %v848 = vmul.f32 %v846, %v846
        %v849 = vsel %vm831, %v848, 0.0
        %850 = vadd.xlane.f32.xlu0 %v849
        %v851 = vpop.xlane.xlu0 %850
        %v852 = vmul.f32 %v851, %v835
        %v853 = vadd.f32 %v852, 1e-06
        %v854 = vrsqrt.pop %v853
        %v855 = vmul.f32 %v846, %v854
        %v857 = vlaneseq
        %v858 = vshrl.u32 %v857, 7
        %v859 = vsub.s32 0, %v858
        %v860 = vrot.slane %v847, %v859
        %v862 = vmul.f32 %v855, %v860
        %v863 = vmul.f32 %v825, %v825
        %v864 = vsel %vm831, %v863, 0.0
        %865 = vadd.xlane.f32.xlu0 %v864
        %v866 = vpop.xlane.xlu0 %865
        %v867 = vmul.f32 %v866, %v835
        %v868 = vadd.f32 %v867, 1e-06
        %v869 = vrsqrt.pop %v868
        %v870 = vmul.f32 %v825, %v869
        %v871 = vmul.f32 %v870, %v844
        %v872 = vmul.f32 %v871, %v871
        %v873 = vsel %vm831, %v872, 0.0
        %874 = vadd.xlane.f32.xlu0 %v873
        %v875 = vpop.xlane.xlu0 %874
        %v876 = vmul.f32 %v875, %v835
        %v877 = vadd.f32 %v876, 1e-06
        %v878 = vrsqrt.pop %v877
        %v879 = vmul.f32 %v871, %v878
        %v880 = vmul.f32 %v879, %v860
        %v881 = vld [vmem:[%s6] sm:$0xf]
        %v882 = vld [vmem:[%s6 + $0x4] sm:$0xf]
        %v883 = vld [vmem:[%s6 + $0x8] sm:$0xf]
        %v884 = vld [vmem:[%s6 + $0xc] sm:$0xf]
        %v885 = vld [vmem:[%s7] sm:$0xf]
        %v886 = vld [vmem:[%s7 + $0x4] sm:$0xf]
        %v887 = vld [vmem:[%s7 + $0x8] sm:$0xf]
        %v888 = vld [vmem:[%s7 + $0xc] sm:$0xf]
        %v889 = vld [vmem:[%s8] sm:$0xf]
        %v890 = vld [vmem:[%s8 + $0x4] sm:$0xf]
        %v891 = vld [vmem:[%s8 + $0x8] sm:$0xf]
        %v892 = vld [vmem:[%s8 + $0xc] sm:$0xf]
        %v893 = vld [vmem:[%s9] sm:$0xf]
        %v894 = vld [vmem:[%s9 + $0x4] sm:$0xf]
        %v895 = vld [vmem:[%s9 + $0x8] sm:$0xf]
        %v896 = vld [vmem:[%s9 + $0xc] sm:$0xf]
        %v897 = vld [vmem:[#allocation6] sm:$0x1]
        %v898 = vld [vmem:[%s11] sm:$0x1]
        %v899 = vld [vmem:[%s11 + $0x1] sm:$0x1]
        %v900 = vld [vmem:[%s11 + $0x2] sm:$0x1]
        %v901 = vld [vmem:[%s11 + $0x3] sm:$0x1]
        %v902 = vpack.c.bf16 %v862, %v862
        %v907 = vunpack.c.l.b16 %v881
        %v908 = vunpack.c.l.b16 %v882
        %v909 = vunpack.c.l.b16 %v883
        %v910 = vunpack.c.l.b16 %v884
        %v911 = vpack.c.b16 %v908, %v907
        %v912 = vpack.c.b16 %v910, %v909
        %v916 = vsel %vm831, %v902, 0
        %918 = vmatprep.subr.bf16.mxu0 0
        %919 = vmatpush1.bf16.msra.mxu0 %v911
        %920 = vmatprep.subr.bf16.mxu0 0
        %921 = vmatpush1.bf16.msra.mxu0 %v912
        %922 = vmatprep.subr.bf16.mxu0 0
        %923 = vmatpush1.bf16.msra.mxu0 0
        %924 = vmatprep.subr.bf16.mxu0 0
        %925 = vmatpush1.bf16.msra.mxu0 0
        %926 = vmatprep.subr.bf16.mxu0 0
        %927 = vmatpush1.bf16.msra.mxu0 0
        %928 = vmatprep.subr.bf16.mxu0 0
        %929 = vmatpush1.bf16.msra.mxu0 0
        %930 = vmatprep.subr.bf16.mxu0 0
        %931 = vmatpush1.bf16.msra.mxu0 0
        %932 = vmatprep.subr.bf16.mxu0 0
        %933 = vmatpush1.bf16.msra.mxu0 0
        %934 = vmatprep.subr.bf16.mxu0 0
        %935 = vmatpush1.bf16.msra.mxu0 0
        %936 = vmatprep.subr.bf16.mxu0 0
        %937 = vmatpush1.bf16.msra.mxu0 0
        %938 = vmatprep.subr.bf16.mxu0 0
        %939 = vmatpush1.bf16.msra.mxu0 0
        %940 = vmatprep.subr.bf16.mxu0 0
        %941 = vmatpush1.bf16.msra.mxu0 0
        %942 = vmatprep.subr.bf16.mxu0 0
        %943 = vmatpush1.bf16.msra.mxu0 0
        %944 = vmatprep.subr.bf16.mxu0 0
        %945 = vmatpush1.bf16.msra.mxu0 0
        %946 = vmatprep.subr.bf16.mxu0 0
        %947 = vmatpush1.bf16.msra.mxu0 0
        %948 = vmatprep.subr.bf16.mxu0 0
        %949 = vmatpush1.bf16.msra.mxu0 0
        %950 = vmatprep.mubr.bf16.mxu0 0
        %951 = vmatmul.mubr.bf16.gmra.mrb[0].mxu0 %v916
        %v952 = vpop.f32.mrb[0].mxu0
        %v953 = vadd.f32 0.0, %v952
        %v954 = vpop.f32.mrb[0].mxu0
        %v955 = vpop.f32.mrb[0].mxu0
        %v956 = vpop.f32.mrb[0].mxu0
        %957 = vdwg.mxu0
        %v958 = vpack.c.bf16 %v880, %v880
        %v963 = vunpack.c.l.b16 %v885
        %v964 = vunpack.c.l.b16 %v886
        %v965 = vunpack.c.l.b16 %v887
        %v966 = vunpack.c.l.b16 %v888
        %v967 = vpack.c.b16 %v964, %v963
        %v968 = vpack.c.b16 %v966, %v965
        %v972 = vsel %vm831, %v958, 0
        %974 = vmatprep.subr.bf16.mxu0 0
        %975 = vmatpush1.bf16.msra.mxu0 %v967
        %976 = vmatprep.subr.bf16.mxu0 0
        %977 = vmatpush1.bf16.msra.mxu0 %v968
        %978 = vmatprep.subr.bf16.mxu0 0
        %979 = vmatpush1.bf16.msra.mxu0 0
        %980 = vmatprep.subr.bf16.mxu0 0
        %981 = vmatpush1.bf16.msra.mxu0 0
        %982 = vmatprep.subr.bf16.mxu0 0
        %983 = vmatpush1.bf16.msra.mxu0 0
        %984 = vmatprep.subr.bf16.mxu0 0
        %985 = vmatpush1.bf16.msra.mxu0 0
        %986 = vmatprep.subr.bf16.mxu0 0
        %987 = vmatpush1.bf16.msra.mxu0 0
        %988 = vmatprep.subr.bf16.mxu0 0
        %989 = vmatpush1.bf16.msra.mxu0 0
        %990 = vmatprep.subr.bf16.mxu0 0
        %991 = vmatpush1.bf16.msra.mxu0 0
        %992 = vmatprep.subr.bf16.mxu0 0
        %993 = vmatpush1.bf16.msra.mxu0 0
        %994 = vmatprep.subr.bf16.mxu0 0
        %995 = vmatpush1.bf16.msra.mxu0 0
        %996 = vmatprep.subr.bf16.mxu0 0
        %997 = vmatpush1.bf16.msra.mxu0 0
        %998 = vmatprep.subr.bf16.mxu0 0
        %999 = vmatpush1.bf16.msra.mxu0 0
        %1000 = vmatprep.subr.bf16.mxu0 0
        %1001 = vmatpush1.bf16.msra.mxu0 0
        %1002 = vmatprep.subr.bf16.mxu0 0
        %1003 = vmatpush1.bf16.msra.mxu0 0
        %1004 = vmatprep.subr.bf16.mxu0 0
        %1005 = vmatpush1.bf16.msra.mxu0 0
        %1006 = vmatprep.mubr.bf16.mxu0 0
        %1007 = vmatmul.mubr.bf16.gmra.mrb[0].mxu0 %v972
        %v1008 = vpop.f32.mrb[0].mxu0
        %v1009 = vadd.f32 0.0, %v1008
        %v1010 = vpop.f32.mrb[0].mxu0
        %v1011 = vpop.f32.mrb[0].mxu0
        %v1012 = vpop.f32.mrb[0].mxu0
        %1013 = vdwg.mxu0
        %v1018 = vunpack.c.l.b16 %v889
        %v1019 = vunpack.c.l.b16 %v890
        %v1020 = vunpack.c.l.b16 %v891
        %v1021 = vunpack.c.l.b16 %v892
        %v1022 = vpack.c.b16 %v1019, %v1018
        %v1023 = vpack.c.b16 %v1021, %v1020
        %1026 = vmatprep.subr.bf16.mxu0 0
        %1027 = vmatpush1.bf16.msra.mxu0 %v1022
        %1028 = vmatprep.subr.bf16.mxu0 0
        %1029 = vmatpush1.bf16.msra.mxu0 %v1023
        %1030 = vmatprep.subr.bf16.mxu0 0
        %1031 = vmatpush1.bf16.msra.mxu0 0
        %1032 = vmatprep.subr.bf16.mxu0 0
        %1033 = vmatpush1.bf16.msra.mxu0 0
        %1034 = vmatprep.subr.bf16.mxu0 0
        %1035 = vmatpush1.bf16.msra.mxu0 0
        %1036 = vmatprep.subr.bf16.mxu0 0
        %1037 = vmatpush1.bf16.msra.mxu0 0
        %1038 = vmatprep.subr.bf16.mxu0 0
        %1039 = vmatpush1.bf16.msra.mxu0 0
        %1040 = vmatprep.subr.bf16.mxu0 0
        %1041 = vmatpush1.bf16.msra.mxu0 0
        %1042 = vmatprep.subr.bf16.mxu0 0
        %1043 = vmatpush1.bf16.msra.mxu0 0
        %1044 = vmatprep.subr.bf16.mxu0 0
        %1045 = vmatpush1.bf16.msra.mxu0 0
        %1046 = vmatprep.subr.bf16.mxu0 0
        %1047 = vmatpush1.bf16.msra.mxu0 0
        %1048 = vmatprep.subr.bf16.mxu0 0
        %1049 = vmatpush1.bf16.msra.mxu0 0
        %1050 = vmatprep.subr.bf16.mxu0 0
        %1051 = vmatpush1.bf16.msra.mxu0 0
        %1052 = vmatprep.subr.bf16.mxu0 0
        %1053 = vmatpush1.bf16.msra.mxu0 0
        %1054 = vmatprep.subr.bf16.mxu0 0
        %1055 = vmatpush1.bf16.msra.mxu0 0
        %1056 = vmatprep.subr.bf16.mxu0 0
        %1057 = vmatpush1.bf16.msra.mxu0 0
        %1058 = vmatprep.mubr.bf16.mxu0 0
        %1059 = vmatmul.mubr.bf16.gmra.mrb[0].mxu0 %v972
        %v1060 = vpop.f32.mrb[0].mxu0
        %v1061 = vadd.f32 0.0, %v1060
        %v1062 = vpop.f32.mrb[0].mxu0
        %v1063 = vpop.f32.mrb[0].mxu0
        %v1064 = vpop.f32.mrb[0].mxu0
        %1065 = vdwg.mxu0
        %1067 = vrot.lane.b32.xlu0 %v953, 120
        %v1068 = vpop.permute.xlu0 %1067
        %1070 = vrot.lane.b32.xlu0 %v953, 112
        %v1071 = vpop.permute.xlu0 %1070
        %1073 = vrot.lane.b32.xlu0 %v953, 104
        %v1074 = vpop.permute.xlu0 %1073
        %1076 = vrot.lane.b32.xlu0 %v953, 96
        %v1077 = vpop.permute.xlu0 %1076
        %1079 = vrot.lane.b32.xlu0 %v953, 88
        %v1080 = vpop.permute.xlu0 %1079
        %1082 = vrot.lane.b32.xlu0 %v953, 80
        %v1083 = vpop.permute.xlu0 %1082
        %1085 = vrot.lane.b32.xlu0 %v953, 72
        %v1086 = vpop.permute.xlu0 %1085
        %1089 = vrot.lane.b32.xlu0 %v1009, 120
        %v1090 = vpop.permute.xlu0 %1089
        %1092 = vrot.lane.b32.xlu0 %v1009, 112
        %v1093 = vpop.permute.xlu0 %1092
        %1095 = vrot.lane.b32.xlu0 %v1009, 104
        %v1096 = vpop.permute.xlu0 %1095
        %1098 = vrot.lane.b32.xlu0 %v1009, 96
        %v1099 = vpop.permute.xlu0 %1098
        %1101 = vrot.lane.b32.xlu0 %v1009, 88
        %v1102 = vpop.permute.xlu0 %1101
        %1104 = vrot.lane.b32.xlu0 %v1009, 80
        %v1105 = vpop.permute.xlu0 %1104
        %1107 = vrot.lane.b32.xlu0 %v1009, 72
        %v1108 = vpop.permute.xlu0 %1107
        %1111 = vrot.lane.b32.xlu0 %v1061, 120
        %v1112 = vpop.permute.xlu0 %1111
        %1114 = vrot.lane.b32.xlu0 %v1061, 112
        %v1115 = vpop.permute.xlu0 %1114
        %1117 = vrot.lane.b32.xlu0 %v1061, 104
        %v1118 = vpop.permute.xlu0 %1117
        %v1120 = vpack.c.bf16 %v953, %v953
        %v1121 = vpack.c.bf16 %v1068, %v1068
        %v1122 = vpack.c.bf16 %v1071, %v1071
        %v1123 = vpack.c.bf16 %v1074, %v1074
        %v1124 = vpack.c.bf16 %v1077, %v1077
        %v1125 = vpack.c.bf16 %v1080, %v1080
        %v1126 = vpack.c.bf16 %v1083, %v1083
        %v1127 = vpack.c.bf16 %v1086, %v1086
        %v1128 = vpack.c.bf16 %v1009, %v1009
        %v1129 = vpack.c.bf16 %v1090, %v1090
        %v1130 = vpack.c.bf16 %v1093, %v1093
        %v1131 = vpack.c.bf16 %v1096, %v1096
        %v1132 = vpack.c.bf16 %v1099, %v1099
        %v1133 = vpack.c.bf16 %v1102, %v1102
        %v1134 = vpack.c.bf16 %v1105, %v1105
        %v1135 = vpack.c.bf16 %v1108, %v1108
        %vm1136 = vcmask 64512
        %v1138 = vsel %vm1136, %v1120, 0
        %v1141 = vsel %vm1136, %v1128, 0
        %1143 = vmatprep.subr.bf16.mxu0 0
        %1144 = vmatpush1.bf16.xpose.msra.mxu0 %v1141
        %1145 = vmatprep.subr.bf16.mxu0 0
        %1146 = vmatpush1.bf16.xpose.msra.mxu0 0
        %1147 = vmatprep.subr.bf16.mxu0 0
        %1148 = vmatpush1.bf16.xpose.msra.mxu0 0
        %1149 = vmatprep.subr.bf16.mxu0 0
        %1150 = vmatpush1.bf16.xpose.msra.mxu0 0
        %1151 = vmatprep.subr.bf16.mxu0 0
        %1152 = vmatpush1.bf16.xpose.msra.mxu0 0
        %1153 = vmatprep.subr.bf16.mxu0 0
        %1154 = vmatpush1.bf16.xpose.msra.mxu0 0
        %1155 = vmatprep.subr.bf16.mxu0 0
        %1156 = vmatpush1.bf16.xpose.msra.mxu0 0
        %1157 = vmatprep.subr.bf16.mxu0 0
        %1158 = vmatpush1.bf16.xpose.msra.mxu0 0
        %1159 = vmatprep.subr.bf16.mxu0 0
        %1160 = vmatpush1.bf16.xpose.msra.mxu0 0
        %1161 = vmatprep.subr.bf16.mxu0 0
        %1162 = vmatpush1.bf16.xpose.msra.mxu0 0
        %1163 = vmatprep.subr.bf16.mxu0 0
        %1164 = vmatpush1.bf16.xpose.msra.mxu0 0
        %1165 = vmatprep.subr.bf16.mxu0 0
        %1166 = vmatpush1.bf16.xpose.msra.mxu0 0
        %1167 = vmatprep.subr.bf16.mxu0 0
        %1168 = vmatpush1.bf16.xpose.msra.mxu0 0
        %1169 = vmatprep.subr.bf16.mxu0 0
        %1170 = vmatpush1.bf16.xpose.msra.mxu0 0
        %1171 = vmatprep.subr.bf16.mxu0 0
        %1172 = vmatpush1.bf16.xpose.msra.mxu0 0
        %1173 = vmatprep.subr.bf16.mxu0 0
        %1174 = vmatpush1.bf16.xpose.msra.mxu0 0
        %1175 = vmatprep.mubr.bf16.mxu0 0
        %1176 = vmatmul.mubr.bf16.gmra.mrb[0].mxu0 %v1138
        %v1177 = vpop.f32.mrb[0].mxu0
        %v1178 = vadd.f32 0.0, %v1177
        %v1179 = vpop.f32.mrb[0].mxu0
        %v1180 = vpop.f32.mrb[0].mxu0
        %v1181 = vpop.f32.mrb[0].mxu0
        %1182 = vdwg.mxu0
        %v1184 = vsel %vm1136, %v1121, 0
        %v1187 = vsel %vm1136, %v1129, 0
        %1189 = vmatprep.subr.bf16.mxu0 0
        %1190 = vmatpush1.bf16.xpose.msra.mxu0 %v1187
        %1191 = vmatprep.subr.bf16.mxu0 0
        %1192 = vmatpush1.bf16.xpose.msra.mxu0 0
        %1193 = vmatprep.subr.bf16.mxu0 0
        %1194 = vmatpush1.bf16.xpose.msra.mxu0 0
        %1195 = vmatprep.subr.bf16.mxu0 0
        %1196 = vmatpush1.bf16.xpose.msra.mxu0 0
        %1197 = vmatprep.subr.bf16.mxu0 0
        %1198 = vmatpush1.bf16.xpose.msra.mxu0 0
        %1199 = vmatprep.subr.bf16.mxu0 0
        %1200 = vmatpush1.bf16.xpose.msra.mxu0 0
        %1201 = vmatprep.subr.bf16.mxu0 0
        %1202 = vmatpush1.bf16.xpose.msra.mxu0 0
        %1203 = vmatprep.subr.bf16.mxu0 0
        %1204 = vmatpush1.bf16.xpose.msra.mxu0 0
        %1205 = vmatprep.subr.bf16.mxu0 0
        %1206 = vmatpush1.bf16.xpose.msra.mxu0 0
        %1207 = vmatprep.subr.bf16.mxu0 0
        %1208 = vmatpush1.bf16.xpose.msra.mxu0 0
        %1209 = vmatprep.subr.bf16.mxu0 0
        %1210 = vmatpush1.bf16.xpose.msra.mxu0 0
        %1211 = vmatprep.subr.bf16.mxu0 0
        %1212 = vmatpush1.bf16.xpose.msra.mxu0 0
        %1213 = vmatprep.subr.bf16.mxu0 0
        %1214 = vmatpush1.bf16.xpose.msra.mxu0 0
        %1215 = vmatprep.subr.bf16.mxu0 0
        %1216 = vmatpush1.bf16.xpose.msra.mxu0 0
        %1217 = vmatprep.subr.bf16.mxu0 0
        %1218 = vmatpush1.bf16.xpose.msra.mxu0 0
        %1219 = vmatprep.subr.bf16.mxu0 0
        %1220 = vmatpush1.bf16.xpose.msra.mxu0 0
        %1221 = vmatprep.mubr.bf16.mxu0 0
        %1222 = vmatmul.mubr.bf16.gmra.mrb[0].mxu0 %v1184
        %v1223 = vpop.f32.mrb[0].mxu0
        %v1224 = vadd.f32 0.0, %v1223
        %v1225 = vpop.f32.mrb[0].mxu0
        %v1226 = vpop.f32.mrb[0].mxu0
        %v1227 = vpop.f32.mrb[0].mxu0
        %1228 = vdwg.mxu0
        %v1230 = vsel %vm1136, %v1122, 0
        %v1233 = vsel %vm1136, %v1130, 0
        %1235 = vmatprep.subr.bf16.mxu0 0
        %1236 = vmatpush1.bf16.xpose.msra.mxu0 %v1233
        %1237 = vmatprep.subr.bf16.mxu0 0
        %1238 = vmatpush1.bf16.xpose.msra.mxu0 0
        %1239 = vmatprep.subr.bf16.mxu0 0
        %1240 = vmatpush1.bf16.xpose.msra.mxu0 0
        %1241 = vmatprep.subr.bf16.mxu0 0
        %1242 = vmatpush1.bf16.xpose.msra.mxu0 0
        %1243 = vmatprep.subr.bf16.mxu0 0
        %1244 = vmatpush1.bf16.xpose.msra.mxu0 0
        %1245 = vmatprep.subr.bf16.mxu0 0
        %1246 = vmatpush1.bf16.xpose.msra.mxu0 0
        %1247 = vmatprep.subr.bf16.mxu0 0
        %1248 = vmatpush1.bf16.xpose.msra.mxu0 0
        %1249 = vmatprep.subr.bf16.mxu0 0
        %1250 = vmatpush1.bf16.xpose.msra.mxu0 0
        %1251 = vmatprep.subr.bf16.mxu0 0
        %1252 = vmatpush1.bf16.xpose.msra.mxu0 0
        %1253 = vmatprep.subr.bf16.mxu0 0
        %1254 = vmatpush1.bf16.xpose.msra.mxu0 0
        %1255 = vmatprep.subr.bf16.mxu0 0
        %1256 = vmatpush1.bf16.xpose.msra.mxu0 0
        %1257 = vmatprep.subr.bf16.mxu0 0
        %1258 = vmatpush1.bf16.xpose.msra.mxu0 0
        %1259 = vmatprep.subr.bf16.mxu0 0
        %1260 = vmatpush1.bf16.xpose.msra.mxu0 0
        %1261 = vmatprep.subr.bf16.mxu0 0
        %1262 = vmatpush1.bf16.xpose.msra.mxu0 0
        %1263 = vmatprep.subr.bf16.mxu0 0
        %1264 = vmatpush1.bf16.xpose.msra.mxu0 0
        %1265 = vmatprep.subr.bf16.mxu0 0
        %1266 = vmatpush1.bf16.xpose.msra.mxu0 0
        %1267 = vmatprep.mubr.bf16.mxu0 0
        %1268 = vmatmul.mubr.bf16.gmra.mrb[0].mxu0 %v1230
        %v1269 = vpop.f32.mrb[0].mxu0
        %v1270 = vadd.f32 0.0, %v1269
        %v1271 = vpop.f32.mrb[0].mxu0
        %v1272 = vpop.f32.mrb[0].mxu0
        %v1273 = vpop.f32.mrb[0].mxu0
        %1274 = vdwg.mxu0
        %v1276 = vsel %vm1136, %v1123, 0
        %v1279 = vsel %vm1136, %v1131, 0
        %1281 = vmatprep.subr.bf16.mxu0 0
        %1282 = vmatpush1.bf16.xpose.msra.mxu0 %v1279
        %1283 = vmatprep.subr.bf16.mxu0 0
        %1284 = vmatpush1.bf16.xpose.msra.mxu0 0
        %1285 = vmatprep.subr.bf16.mxu0 0
        %1286 = vmatpush1.bf16.xpose.msra.mxu0 0
        %1287 = vmatprep.subr.bf16.mxu0 0
        %1288 = vmatpush1.bf16.xpose.msra.mxu0 0
        %1289 = vmatprep.subr.bf16.mxu0 0
        %1290 = vmatpush1.bf16.xpose.msra.mxu0 0
        %1291 = vmatprep.subr.bf16.mxu0 0
        %1292 = vmatpush1.bf16.xpose.msra.mxu0 0
        %1293 = vmatprep.subr.bf16.mxu0 0
        %1294 = vmatpush1.bf16.xpose.msra.mxu0 0
        %1295 = vmatprep.subr.bf16.mxu0 0
        %1296 = vmatpush1.bf16.xpose.msra.mxu0 0
        %1297 = vmatprep.subr.bf16.mxu0 0
        %1298 = vmatpush1.bf16.xpose.msra.mxu0 0
        %1299 = vmatprep.subr.bf16.mxu0 0
        %1300 = vmatpush1.bf16.xpose.msra.mxu0 0
        %1301 = vmatprep.subr.bf16.mxu0 0
        %1302 = vmatpush1.bf16.xpose.msra.mxu0 0
        %1303 = vmatprep.subr.bf16.mxu0 0
        %1304 = vmatpush1.bf16.xpose.msra.mxu0 0
        %1305 = vmatprep.subr.bf16.mxu0 0
        %1306 = vmatpush1.bf16.xpose.msra.mxu0 0
        %1307 = vmatprep.subr.bf16.mxu0 0
        %1308 = vmatpush1.bf16.xpose.msra.mxu0 0
        %1309 = vmatprep.subr.bf16.mxu0 0
        %1310 = vmatpush1.bf16.xpose.msra.mxu0 0
        %1311 = vmatprep.subr.bf16.mxu0 0
        %1312 = vmatpush1.bf16.xpose.msra.mxu0 0
        %1313 = vmatprep.mubr.bf16.mxu0 0
        %1314 = vmatmul.mubr.bf16.gmra.mrb[0].mxu0 %v1276
        %v1315 = vpop.f32.mrb[0].mxu0
        %v1316 = vadd.f32 0.0, %v1315
        %v1317 = vpop.f32.mrb[0].mxu0
        %v1318 = vpop.f32.mrb[0].mxu0
        %v1319 = vpop.f32.mrb[0].mxu0
        %1320 = vdwg.mxu0
        %v1322 = vsel %vm1136, %v1124, 0
        %v1325 = vsel %vm1136, %v1132, 0
        %1327 = vmatprep.subr.bf16.mxu0 0
        %1328 = vmatpush1.bf16.xpose.msra.mxu0 %v1325
        %1329 = vmatprep.subr.bf16.mxu0 0
        %1330 = vmatpush1.bf16.xpose.msra.mxu0 0
        %1331 = vmatprep.subr.bf16.mxu0 0
        %1332 = vmatpush1.bf16.xpose.msra.mxu0 0
        %1333 = vmatprep.subr.bf16.mxu0 0
        %1334 = vmatpush1.bf16.xpose.msra.mxu0 0
        %1335 = vmatprep.subr.bf16.mxu0 0
        %1336 = vmatpush1.bf16.xpose.msra.mxu0 0
        %1337 = vmatprep.subr.bf16.mxu0 0
        %1338 = vmatpush1.bf16.xpose.msra.mxu0 0
        %1339 = vmatprep.subr.bf16.mxu0 0
        %1340 = vmatpush1.bf16.xpose.msra.mxu0 0
        %1341 = vmatprep.subr.bf16.mxu0 0
        %1342 = vmatpush1.bf16.xpose.msra.mxu0 0
        %1343 = vmatprep.subr.bf16.mxu0 0
        %1344 = vmatpush1.bf16.xpose.msra.mxu0 0
        %1345 = vmatprep.subr.bf16.mxu0 0
        %1346 = vmatpush1.bf16.xpose.msra.mxu0 0
        %1347 = vmatprep.subr.bf16.mxu0 0
        %1348 = vmatpush1.bf16.xpose.msra.mxu0 0
        %1349 = vmatprep.subr.bf16.mxu0 0
        %1350 = vmatpush1.bf16.xpose.msra.mxu0 0
        %1351 = vmatprep.subr.bf16.mxu0 0
        %1352 = vmatpush1.bf16.xpose.msra.mxu0 0
        %1353 = vmatprep.subr.bf16.mxu0 0
        %1354 = vmatpush1.bf16.xpose.msra.mxu0 0
        %1355 = vmatprep.subr.bf16.mxu0 0
        %1356 = vmatpush1.bf16.xpose.msra.mxu0 0
        %1357 = vmatprep.subr.bf16.mxu0 0
        %1358 = vmatpush1.bf16.xpose.msra.mxu0 0
        %1359 = vmatprep.mubr.bf16.mxu0 0
        %1360 = vmatmul.mubr.bf16.gmra.mrb[0].mxu0 %v1322
        %v1361 = vpop.f32.mrb[0].mxu0
        %v1362 = vadd.f32 0.0, %v1361
        %v1363 = vpop.f32.mrb[0].mxu0
        %v1364 = vpop.f32.mrb[0].mxu0
        %v1365 = vpop.f32.mrb[0].mxu0
        %1366 = vdwg.mxu0
        %v1368 = vsel %vm1136, %v1125, 0
        %v1371 = vsel %vm1136, %v1133, 0
        %1373 = vmatprep.subr.bf16.mxu0 0
        %1374 = vmatpush1.bf16.xpose.msra.mxu0 %v1371
        %1375 = vmatprep.subr.bf16.mxu0 0
        %1376 = vmatpush1.bf16.xpose.msra.mxu0 0
        %1377 = vmatprep.subr.bf16.mxu0 0
        %1378 = vmatpush1.bf16.xpose.msra.mxu0 0
        %1379 = vmatprep.subr.bf16.mxu0 0
        %1380 = vmatpush1.bf16.xpose.msra.mxu0 0
        %1381 = vmatprep.subr.bf16.mxu0 0
        %1382 = vmatpush1.bf16.xpose.msra.mxu0 0
        %1383 = vmatprep.subr.bf16.mxu0 0
        %1384 = vmatpush1.bf16.xpose.msra.mxu0 0
        %1385 = vmatprep.subr.bf16.mxu0 0
        %1386 = vmatpush1.bf16.xpose.msra.mxu0 0
        %1387 = vmatprep.subr.bf16.mxu0 0
        %1388 = vmatpush1.bf16.xpose.msra.mxu0 0
        %1389 = vmatprep.subr.bf16.mxu0 0
        %1390 = vmatpush1.bf16.xpose.msra.mxu0 0
        %1391 = vmatprep.subr.bf16.mxu0 0
        %1392 = vmatpush1.bf16.xpose.msra.mxu0 0
        %1393 = vmatprep.subr.bf16.mxu0 0
        %1394 = vmatpush1.bf16.xpose.msra.mxu0 0
        %1395 = vmatprep.subr.bf16.mxu0 0
        %1396 = vmatpush1.bf16.xpose.msra.mxu0 0
        %1397 = vmatprep.subr.bf16.mxu0 0
        %1398 = vmatpush1.bf16.xpose.msra.mxu0 0
        %1399 = vmatprep.subr.bf16.mxu0 0
        %1400 = vmatpush1.bf16.xpose.msra.mxu0 0
        %1401 = vmatprep.subr.bf16.mxu0 0
        %1402 = vmatpush1.bf16.xpose.msra.mxu0 0
        %1403 = vmatprep.subr.bf16.mxu0 0
        %1404 = vmatpush1.bf16.xpose.msra.mxu0 0
        %1405 = vmatprep.mubr.bf16.mxu0 0
        %1406 = vmatmul.mubr.bf16.gmra.mrb[0].mxu0 %v1368
        %v1407 = vpop.f32.mrb[0].mxu0
        %v1408 = vadd.f32 0.0, %v1407
        %v1409 = vpop.f32.mrb[0].mxu0
        %v1410 = vpop.f32.mrb[0].mxu0
        %v1411 = vpop.f32.mrb[0].mxu0
        %1412 = vdwg.mxu0
        %v1414 = vsel %vm1136, %v1126, 0
        %v1417 = vsel %vm1136, %v1134, 0
        %1419 = vmatprep.subr.bf16.mxu0 0
        %1420 = vmatpush1.bf16.xpose.msra.mxu0 %v1417
        %1421 = vmatprep.subr.bf16.mxu0 0
        %1422 = vmatpush1.bf16.xpose.msra.mxu0 0
        %1423 = vmatprep.subr.bf16.mxu0 0
        %1424 = vmatpush1.bf16.xpose.msra.mxu0 0
        %1425 = vmatprep.subr.bf16.mxu0 0
        %1426 = vmatpush1.bf16.xpose.msra.mxu0 0
        %1427 = vmatprep.subr.bf16.mxu0 0
        %1428 = vmatpush1.bf16.xpose.msra.mxu0 0
        %1429 = vmatprep.subr.bf16.mxu0 0
        %1430 = vmatpush1.bf16.xpose.msra.mxu0 0
        %1431 = vmatprep.subr.bf16.mxu0 0
        %1432 = vmatpush1.bf16.xpose.msra.mxu0 0
        %1433 = vmatprep.subr.bf16.mxu0 0
        %1434 = vmatpush1.bf16.xpose.msra.mxu0 0
        %1435 = vmatprep.subr.bf16.mxu0 0
        %1436 = vmatpush1.bf16.xpose.msra.mxu0 0
        %1437 = vmatprep.subr.bf16.mxu0 0
        %1438 = vmatpush1.bf16.xpose.msra.mxu0 0
        %1439 = vmatprep.subr.bf16.mxu0 0
        %1440 = vmatpush1.bf16.xpose.msra.mxu0 0
        %1441 = vmatprep.subr.bf16.mxu0 0
        %1442 = vmatpush1.bf16.xpose.msra.mxu0 0
        %1443 = vmatprep.subr.bf16.mxu0 0
        %1444 = vmatpush1.bf16.xpose.msra.mxu0 0
        %1445 = vmatprep.subr.bf16.mxu0 0
        %1446 = vmatpush1.bf16.xpose.msra.mxu0 0
        %1447 = vmatprep.subr.bf16.mxu0 0
        %1448 = vmatpush1.bf16.xpose.msra.mxu0 0
        %1449 = vmatprep.subr.bf16.mxu0 0
        %1450 = vmatpush1.bf16.xpose.msra.mxu0 0
        %1451 = vmatprep.mubr.bf16.mxu0 0
        %1452 = vmatmul.mubr.bf16.gmra.mrb[0].mxu0 %v1414
        %v1453 = vpop.f32.mrb[0].mxu0
        %v1454 = vadd.f32 0.0, %v1453
        %v1455 = vpop.f32.mrb[0].mxu0
        %v1456 = vpop.f32.mrb[0].mxu0
        %v1457 = vpop.f32.mrb[0].mxu0
        %1458 = vdwg.mxu0
        %v1460 = vsel %vm1136, %v1127, 0
        %v1463 = vsel %vm1136, %v1135, 0
        %1465 = vmatprep.subr.bf16.mxu0 0
        %1466 = vmatpush1.bf16.xpose.msra.mxu0 %v1463
        %1467 = vmatprep.subr.bf16.mxu0 0
        %1468 = vmatpush1.bf16.xpose.msra.mxu0 0
        %1469 = vmatprep.subr.bf16.mxu0 0
        %1470 = vmatpush1.bf16.xpose.msra.mxu0 0
        %1471 = vmatprep.subr.bf16.mxu0 0
        %1472 = vmatpush1.bf16.xpose.msra.mxu0 0
        %1473 = vmatprep.subr.bf16.mxu0 0
        %1474 = vmatpush1.bf16.xpose.msra.mxu0 0
        %1475 = vmatprep.subr.bf16.mxu0 0
        %1476 = vmatpush1.bf16.xpose.msra.mxu0 0
        %1477 = vmatprep.subr.bf16.mxu0 0
        %1478 = vmatpush1.bf16.xpose.msra.mxu0 0
        %1479 = vmatprep.subr.bf16.mxu0 0
        %1480 = vmatpush1.bf16.xpose.msra.mxu0 0
        %1481 = vmatprep.subr.bf16.mxu0 0
        %1482 = vmatpush1.bf16.xpose.msra.mxu0 0
        %1483 = vmatprep.subr.bf16.mxu0 0
        %1484 = vmatpush1.bf16.xpose.msra.mxu0 0
        %1485 = vmatprep.subr.bf16.mxu0 0
        %1486 = vmatpush1.bf16.xpose.msra.mxu0 0
        %1487 = vmatprep.subr.bf16.mxu0 0
        %1488 = vmatpush1.bf16.xpose.msra.mxu0 0
        %1489 = vmatprep.subr.bf16.mxu0 0
        %1490 = vmatpush1.bf16.xpose.msra.mxu0 0
        %1491 = vmatprep.subr.bf16.mxu0 0
        %1492 = vmatpush1.bf16.xpose.msra.mxu0 0
        %1493 = vmatprep.subr.bf16.mxu0 0
        %1494 = vmatpush1.bf16.xpose.msra.mxu0 0
        %1495 = vmatprep.subr.bf16.mxu0 0
        %1496 = vmatpush1.bf16.xpose.msra.mxu0 0
        %1497 = vmatprep.mubr.bf16.mxu0 0
        %1498 = vmatmul.mubr.bf16.gmra.mrb[0].mxu0 %v1460
        %v1499 = vpop.f32.mrb[0].mxu0
        %v1500 = vadd.f32 0.0, %v1499
        %v1501 = vpop.f32.mrb[0].mxu0
        %v1502 = vpop.f32.mrb[0].mxu0
        %v1503 = vpop.f32.mrb[0].mxu0
        %1504 = vdwg.mxu0
        %v1505 = vmul.f32 %v1178, 0.35355338
        %v1506 = vmul.f32 %v1224, 0.35355338
        %v1507 = vmul.f32 %v1270, 0.35355338
        %v1508 = vmul.f32 %v1316, 0.35355338
        %v1509 = vmul.f32 %v1362, 0.35355338
        %v1510 = vmul.f32 %v1408, 0.35355338
        %v1511 = vmul.f32 %v1454, 0.35355338
        %v1512 = vmul.f32 %v1500, 0.35355338
        %v1513 = vsel %vm1136, %v1505, -inf
        %1514 = vmax.xlane.f32.xlu0 %v1513
        %v1515 = vpop.xlane.xlu0 %1514
        %v1516 = vsel %vm1136, %v1506, -inf
        %1517 = vmax.xlane.f32.xlu0 %v1516
        %v1518 = vpop.xlane.xlu0 %1517
        %v1519 = vsel %vm1136, %v1507, -inf
        %1520 = vmax.xlane.f32.xlu0 %v1519
        %v1521 = vpop.xlane.xlu0 %1520
        %v1522 = vsel %vm1136, %v1508, -inf
        %1523 = vmax.xlane.f32.xlu0 %v1522
        %v1524 = vpop.xlane.xlu0 %1523
        %v1525 = vsel %vm1136, %v1509, -inf
        %1526 = vmax.xlane.f32.xlu0 %v1525
        %v1527 = vpop.xlane.xlu0 %1526
        %v1528 = vsel %vm1136, %v1510, -inf
        %1529 = vmax.xlane.f32.xlu0 %v1528
        %v1530 = vpop.xlane.xlu0 %1529
        %v1531 = vsel %vm1136, %v1511, -inf
        %1532 = vmax.xlane.f32.xlu0 %v1531
        %v1533 = vpop.xlane.xlu0 %1532
        %v1534 = vsel %vm1136, %v1512, -inf
        %1535 = vmax.xlane.f32.xlu0 %v1534
        %v1536 = vpop.xlane.xlu0 %1535
        %v1537 = vsub.f32 %v1505, %v1515
        %v1538 = vsub.f32 %v1506, %v1518
        %v1539 = vsub.f32 %v1507, %v1521
        %v1540 = vsub.f32 %v1508, %v1524
        %v1541 = vsub.f32 %v1509, %v1527
        %v1542 = vsub.f32 %v1510, %v1530
        %v1543 = vsub.f32 %v1511, %v1533
        %v1544 = vsub.f32 %v1512, %v1536
        %v1545 = vmul.f32 %v1537, 1.442695
        %v1546 = vpow.pop %v1545
        %v1547 = vmul.f32 %v1538, 1.442695
        %v1548 = vpow.pop %v1547
        %v1549 = vmul.f32 %v1539, 1.442695
        %v1550 = vpow.pop %v1549
        %v1551 = vmul.f32 %v1540, 1.442695
        %v1552 = vpow.pop %v1551
        %v1553 = vmul.f32 %v1541, 1.442695
        %v1554 = vpow.pop %v1553
        %v1555 = vmul.f32 %v1542, 1.442695
        %v1556 = vpow.pop %v1555
        %v1557 = vmul.f32 %v1543, 1.442695
        %v1558 = vpow.pop %v1557
        %v1559 = vmul.f32 %v1544, 1.442695
        %v1560 = vpow.pop %v1559
        %v1561 = vsel %vm1136, %v1546, 0.0
        %1562 = vadd.xlane.f32.xlu0 %v1561
        %v1563 = vpop.xlane.xlu0 %1562
        %v1564 = vsel %vm1136, %v1548, 0.0
        %1565 = vadd.xlane.f32.xlu0 %v1564
        %v1566 = vpop.xlane.xlu0 %1565
        %v1567 = vsel %vm1136, %v1550, 0.0
        %1568 = vadd.xlane.f32.xlu0 %v1567
        %v1569 = vpop.xlane.xlu0 %1568
        %v1570 = vsel %vm1136, %v1552, 0.0
        %1571 = vadd.xlane.f32.xlu0 %v1570
        %v1572 = vpop.xlane.xlu0 %1571
        %v1573 = vsel %vm1136, %v1554, 0.0
        %1574 = vadd.xlane.f32.xlu0 %v1573
        %v1575 = vpop.xlane.xlu0 %1574
        %v1576 = vsel %vm1136, %v1556, 0.0
        %1577 = vadd.xlane.f32.xlu0 %v1576
        %v1578 = vpop.xlane.xlu0 %1577
        %v1579 = vsel %vm1136, %v1558, 0.0
        %1580 = vadd.xlane.f32.xlu0 %v1579
        %v1581 = vpop.xlane.xlu0 %1580
        %v1582 = vsel %vm1136, %v1560, 0.0
        %1583 = vadd.xlane.f32.xlu0 %v1582
        %v1584 = vpop.xlane.xlu0 %1583
        %v1585 = vrcp.pop %v1563
        %v1586 = vrcp.pop %v1566
        %v1587 = vrcp.pop %v1569
        %v1588 = vrcp.pop %v1572
        %v1589 = vrcp.pop %v1575
        %v1590 = vrcp.pop %v1578
        %v1591 = vrcp.pop %v1581
        %v1592 = vrcp.pop %v1584
        %v1593 = vmul.f32 %v1546, %v1585
        %v1594 = vmul.f32 %v1548, %v1586
        %v1595 = vmul.f32 %v1550, %v1587
        %v1596 = vmul.f32 %v1552, %v1588
        %v1597 = vmul.f32 %v1554, %v1589
        %v1598 = vmul.f32 %v1556, %v1590
        %v1599 = vmul.f32 %v1558, %v1591
        %v1600 = vmul.f32 %v1560, %v1592
        %v1605 = vlaneseq
        %v1606 = vshrl.u32 %v1605, 7
        %v1607 = vsub.s32 0, %v1606
        %v1608 = vrot.slane %v898, %v1607
        %v1609 = vlaneseq
        %v1610 = vshrl.u32 %v1609, 7
        %v1611 = vsub.s32 0, %v1610
        %v1612 = vrot.slane %v899, %v1611
        %v1613 = vlaneseq
        %v1614 = vshrl.u32 %v1613, 7
        %v1615 = vsub.s32 0, %v1614
        %v1616 = vrot.slane %v900, %v1615
        %v1617 = vlaneseq
        %v1618 = vshrl.u32 %v1617, 7
        %v1619 = vsub.s32 0, %v1618
        %v1620 = vrot.slane %v901, %v1619
        %1621 = vset.pattern.permute.xlu0 0
        %1622 = vperm.xlu0 %1621, %v1608
        %v1623 = vpop.permute.xlu0 %1622
        %1625 = vset.pattern.permute.xlu0 0
        %1626 = vperm.xlu0 %1625, %v1612
        %v1627 = vpop.permute.xlu0 %1626
        %1629 = vset.pattern.permute.xlu0 0
        %1630 = vperm.xlu0 %1629, %v1616
        %v1631 = vpop.permute.xlu0 %1630
        %1633 = vset.pattern.permute.xlu0 0
        %1634 = vperm.xlu0 %1633, %v1620
        %v1635 = vpop.permute.xlu0 %1634
        %v1637 = vmul.f32 %v1623, %v1597
        %v1638 = vmul.f32 %v1627, %v1598
        %v1639 = vmul.f32 %v1631, %v1599
        %v1640 = vmul.f32 %v1635, %v1600
        %v1641 = vsub.f32 %v1593, %v1637
        %v1642 = vsub.f32 %v1594, %v1638
        %v1643 = vsub.f32 %v1595, %v1639
        %v1644 = vsub.f32 %v1596, %v1640
        %v1645 = vsel %vm1136, %v1641, -inf
        %1646 = vmax.xlane.f32.xlu0 %v1645
        %v1647 = vpop.xlane.xlu0 %1646
        %v1648 = vsel %vm1136, %v1642, -inf
        %1649 = vmax.xlane.f32.xlu0 %v1648
        %v1650 = vpop.xlane.xlu0 %1649
        %v1651 = vsel %vm1136, %v1643, -inf
        %1652 = vmax.xlane.f32.xlu0 %v1651
        %v1653 = vpop.xlane.xlu0 %1652
        %v1654 = vsel %vm1136, %v1644, -inf
        %1655 = vmax.xlane.f32.xlu0 %v1654
        %v1656 = vpop.xlane.xlu0 %1655
        %v1657 = vsub.f32 %v1641, %v1647
        %v1658 = vsub.f32 %v1642, %v1650
        %v1659 = vsub.f32 %v1643, %v1653
        %v1660 = vsub.f32 %v1644, %v1656
        %v1661 = vmul.f32 %v1657, 1.442695
        %v1662 = vpow.pop %v1661
        %v1663 = vmul.f32 %v1658, 1.442695
        %v1664 = vpow.pop %v1663
        %v1665 = vmul.f32 %v1659, 1.442695
        %v1666 = vpow.pop %v1665
        %v1667 = vmul.f32 %v1660, 1.442695
        %v1668 = vpow.pop %v1667
        %v1669 = vsel %vm1136, %v1662, 0.0
        %1670 = vadd.xlane.f32.xlu0 %v1669
        %v1671 = vpop.xlane.xlu0 %1670
        %v1672 = vsel %vm1136, %v1664, 0.0
        %1673 = vadd.xlane.f32.xlu0 %v1672
        %v1674 = vpop.xlane.xlu0 %1673
        %v1675 = vsel %vm1136, %v1666, 0.0
        %1676 = vadd.xlane.f32.xlu0 %v1675
        %v1677 = vpop.xlane.xlu0 %1676
        %v1678 = vsel %vm1136, %v1668, 0.0
        %1679 = vadd.xlane.f32.xlu0 %v1678
        %v1680 = vpop.xlane.xlu0 %1679
        %v1681 = vrcp.pop %v1671
        %v1682 = vrcp.pop %v1674
        %v1683 = vrcp.pop %v1677
        %v1684 = vrcp.pop %v1680
        %v1685 = vmul.f32 %v1662, %v1681
        %v1686 = vmul.f32 %v1664, %v1682
        %v1687 = vmul.f32 %v1666, %v1683
        %v1688 = vmul.f32 %v1668, %v1684
        %v1689 = vpack.c.bf16 %v1685, %v1685
        %v1690 = vpack.c.bf16 %v1686, %v1686
        %v1691 = vpack.c.bf16 %v1687, %v1687
        %v1692 = vpack.c.bf16 %v1688, %v1688
        %v1693 = vpack.c.bf16 %v1061, %v1061
        %v1694 = vpack.c.bf16 %v1112, %v1112
        %v1695 = vpack.c.bf16 %v1115, %v1115
        %v1696 = vpack.c.bf16 %v1118, %v1118
        %v1698 = vsel %vm1136, %v1689, 0
        %vm1700 = vcmask 1043456
        %v1702 = vsel %vm1700, %v1693, 0
        %1704 = vmatprep.subr.bf16.mxu0 0
        %1705 = vmatpush1.bf16.msra.mxu0 %v1702
        %1706 = vmatprep.subr.bf16.mxu0 0
        %1707 = vmatpush1.bf16.msra.mxu0 0
        %1708 = vmatprep.subr.bf16.mxu0 0
        %1709 = vmatpush1.bf16.msra.mxu0 0
        %1710 = vmatprep.subr.bf16.mxu0 0
        %1711 = vmatpush1.bf16.msra.mxu0 0
        %1712 = vmatprep.subr.bf16.mxu0 0
        %1713 = vmatpush1.bf16.msra.mxu0 0
        %1714 = vmatprep.subr.bf16.mxu0 0
        %1715 = vmatpush1.bf16.msra.mxu0 0
        %1716 = vmatprep.subr.bf16.mxu0 0
        %1717 = vmatpush1.bf16.msra.mxu0 0
        %1718 = vmatprep.subr.bf16.mxu0 0
        %1719 = vmatpush1.bf16.msra.mxu0 0
        %1720 = vmatprep.subr.bf16.mxu0 0
        %1721 = vmatpush1.bf16.msra.mxu0 0
        %1722 = vmatprep.subr.bf16.mxu0 0
        %1723 = vmatpush1.bf16.msra.mxu0 0
        %1724 = vmatprep.subr.bf16.mxu0 0
        %1725 = vmatpush1.bf16.msra.mxu0 0
        %1726 = vmatprep.subr.bf16.mxu0 0
        %1727 = vmatpush1.bf16.msra.mxu0 0
        %1728 = vmatprep.subr.bf16.mxu0 0
        %1729 = vmatpush1.bf16.msra.mxu0 0
        %1730 = vmatprep.subr.bf16.mxu0 0
        %1731 = vmatpush1.bf16.msra.mxu0 0
        %1732 = vmatprep.subr.bf16.mxu0 0
        %1733 = vmatpush1.bf16.msra.mxu0 0
        %1734 = vmatprep.subr.bf16.mxu0 0
        %1735 = vmatpush1.bf16.msra.mxu0 0
        %1736 = vmatprep.mubr.bf16.mxu0 0
        %1737 = vmatmul.mubr.bf16.gmra.mrb[0].mxu0 %v1698
        %v1738 = vpop.f32.mrb[0].mxu0
        %v1739 = vadd.f32 0.0, %v1738
        %v1740 = vpop.f32.mrb[0].mxu0
        %v1741 = vpop.f32.mrb[0].mxu0
        %v1742 = vpop.f32.mrb[0].mxu0
        %1743 = vdwg.mxu0
        %v1745 = vsel %vm1136, %v1690, 0
        %v1748 = vsel %vm1700, %v1694, 0
        %1750 = vmatprep.subr.bf16.mxu0 0
        %1751 = vmatpush1.bf16.msra.mxu0 %v1748
        %1752 = vmatprep.subr.bf16.mxu0 0
        %1753 = vmatpush1.bf16.msra.mxu0 0
        %1754 = vmatprep.subr.bf16.mxu0 0
        %1755 = vmatpush1.bf16.msra.mxu0 0
        %1756 = vmatprep.subr.bf16.mxu0 0
        %1757 = vmatpush1.bf16.msra.mxu0 0
        %1758 = vmatprep.subr.bf16.mxu0 0
        %1759 = vmatpush1.bf16.msra.mxu0 0
        %1760 = vmatprep.subr.bf16.mxu0 0
        %1761 = vmatpush1.bf16.msra.mxu0 0
        %1762 = vmatprep.subr.bf16.mxu0 0
        %1763 = vmatpush1.bf16.msra.mxu0 0
        %1764 = vmatprep.subr.bf16.mxu0 0
        %1765 = vmatpush1.bf16.msra.mxu0 0
        %1766 = vmatprep.subr.bf16.mxu0 0
        %1767 = vmatpush1.bf16.msra.mxu0 0
        %1768 = vmatprep.subr.bf16.mxu0 0
        %1769 = vmatpush1.bf16.msra.mxu0 0
        %1770 = vmatprep.subr.bf16.mxu0 0
        %1771 = vmatpush1.bf16.msra.mxu0 0
        %1772 = vmatprep.subr.bf16.mxu0 0
        %1773 = vmatpush1.bf16.msra.mxu0 0
        %1774 = vmatprep.subr.bf16.mxu0 0
        %1775 = vmatpush1.bf16.msra.mxu0 0
        %1776 = vmatprep.subr.bf16.mxu0 0
        %1777 = vmatpush1.bf16.msra.mxu0 0
        %1778 = vmatprep.subr.bf16.mxu0 0
        %1779 = vmatpush1.bf16.msra.mxu0 0
        %1780 = vmatprep.subr.bf16.mxu0 0
        %1781 = vmatpush1.bf16.msra.mxu0 0
        %1782 = vmatprep.mubr.bf16.mxu0 0
        %1783 = vmatmul.mubr.bf16.gmra.mrb[0].mxu0 %v1745
        %v1784 = vpop.f32.mrb[0].mxu0
        %v1785 = vadd.f32 0.0, %v1784
        %v1786 = vpop.f32.mrb[0].mxu0
        %v1787 = vpop.f32.mrb[0].mxu0
        %v1788 = vpop.f32.mrb[0].mxu0
        %1789 = vdwg.mxu0
        %v1791 = vsel %vm1136, %v1691, 0
        %v1794 = vsel %vm1700, %v1695, 0
        %1796 = vmatprep.subr.bf16.mxu0 0
        %1797 = vmatpush1.bf16.msra.mxu0 %v1794
        %1798 = vmatprep.subr.bf16.mxu0 0
        %1799 = vmatpush1.bf16.msra.mxu0 0
        %1800 = vmatprep.subr.bf16.mxu0 0
        %1801 = vmatpush1.bf16.msra.mxu0 0
        %1802 = vmatprep.subr.bf16.mxu0 0
        %1803 = vmatpush1.bf16.msra.mxu0 0
        %1804 = vmatprep.subr.bf16.mxu0 0
        %1805 = vmatpush1.bf16.msra.mxu0 0
        %1806 = vmatprep.subr.bf16.mxu0 0
        %1807 = vmatpush1.bf16.msra.mxu0 0
        %1808 = vmatprep.subr.bf16.mxu0 0
        %1809 = vmatpush1.bf16.msra.mxu0 0
        %1810 = vmatprep.subr.bf16.mxu0 0
        %1811 = vmatpush1.bf16.msra.mxu0 0
        %1812 = vmatprep.subr.bf16.mxu0 0
        %1813 = vmatpush1.bf16.msra.mxu0 0
        %1814 = vmatprep.subr.bf16.mxu0 0
        %1815 = vmatpush1.bf16.msra.mxu0 0
        %1816 = vmatprep.subr.bf16.mxu0 0
        %1817 = vmatpush1.bf16.msra.mxu0 0
        %1818 = vmatprep.subr.bf16.mxu0 0
        %1819 = vmatpush1.bf16.msra.mxu0 0
        %1820 = vmatprep.subr.bf16.mxu0 0
        %1821 = vmatpush1.bf16.msra.mxu0 0
        %1822 = vmatprep.subr.bf16.mxu0 0
        %1823 = vmatpush1.bf16.msra.mxu0 0
        %1824 = vmatprep.subr.bf16.mxu0 0
        %1825 = vmatpush1.bf16.msra.mxu0 0
        %1826 = vmatprep.subr.bf16.mxu0 0
        %1827 = vmatpush1.bf16.msra.mxu0 0
        %1828 = vmatprep.mubr.bf16.mxu0 0
        %1829 = vmatmul.mubr.bf16.gmra.mrb[0].mxu0 %v1791
        %v1830 = vpop.f32.mrb[0].mxu0
        %v1831 = vadd.f32 0.0, %v1830
        %v1832 = vpop.f32.mrb[0].mxu0
        %v1833 = vpop.f32.mrb[0].mxu0
        %v1834 = vpop.f32.mrb[0].mxu0
        %1835 = vdwg.mxu0
        %v1837 = vsel %vm1136, %v1692, 0
        %v1840 = vsel %vm1700, %v1696, 0
        %1842 = vmatprep.subr.bf16.mxu0 0
        %1843 = vmatpush1.bf16.msra.mxu0 %v1840
        %1844 = vmatprep.subr.bf16.mxu0 0
        %1845 = vmatpush1.bf16.msra.mxu0 0
        %1846 = vmatprep.subr.bf16.mxu0 0
        %1847 = vmatpush1.bf16.msra.mxu0 0
        %1848 = vmatprep.subr.bf16.mxu0 0
        %1849 = vmatpush1.bf16.msra.mxu0 0
        %1850 = vmatprep.subr.bf16.mxu0 0
        %1851 = vmatpush1.bf16.msra.mxu0 0
        %1852 = vmatprep.subr.bf16.mxu0 0
        %1853 = vmatpush1.bf16.msra.mxu0 0
        %1854 = vmatprep.subr.bf16.mxu0 0
        %1855 = vmatpush1.bf16.msra.mxu0 0
        %1856 = vmatprep.subr.bf16.mxu0 0
        %1857 = vmatpush1.bf16.msra.mxu0 0
        %1858 = vmatprep.subr.bf16.mxu0 0
        %1859 = vmatpush1.bf16.msra.mxu0 0
        %1860 = vmatprep.subr.bf16.mxu0 0
        %1861 = vmatpush1.bf16.msra.mxu0 0
        %1862 = vmatprep.subr.bf16.mxu0 0
        %1863 = vmatpush1.bf16.msra.mxu0 0
        %1864 = vmatprep.subr.bf16.mxu0 0
        %1865 = vmatpush1.bf16.msra.mxu0 0
        %1866 = vmatprep.subr.bf16.mxu0 0
        %1867 = vmatpush1.bf16.msra.mxu0 0
        %1868 = vmatprep.subr.bf16.mxu0 0
        %1869 = vmatpush1.bf16.msra.mxu0 0
        %1870 = vmatprep.subr.bf16.mxu0 0
        %1871 = vmatpush1.bf16.msra.mxu0 0
        %1872 = vmatprep.subr.bf16.mxu0 0
        %1873 = vmatpush1.bf16.msra.mxu0 0
        %1874 = vmatprep.mubr.bf16.mxu0 0
        %1875 = vmatmul.mubr.bf16.gmra.mrb[0].mxu0 %v1837
        %v1876 = vpop.f32.mrb[0].mxu0
        %v1877 = vadd.f32 0.0, %v1876
        %v1878 = vpop.f32.mrb[0].mxu0
        %v1879 = vpop.f32.mrb[0].mxu0
        %v1880 = vpop.f32.mrb[0].mxu0
        %1881 = vdwg.mxu0
        %1883 = vrot.lane.b32.xlu0 %v1785, 8
        %v1884 = vpop.permute.xlu0 %1883
        %1887 = vrot.lane.b32.xlu0 %v1831, 16
        %v1888 = vpop.permute.xlu0 %1887
        %1891 = vrot.lane.b32.xlu0 %v1877, 24
        %v1892 = vpop.permute.xlu0 %1891
        %v1894 = vsel %vm1136, %v1739, %v1884
        %vm1895 = vcmask 130048
        %v1896 = vsel %vm1895, %v1894, %v1888
        %vm1897 = vcmask 195584
        %v1898 = vsel %vm1897, %v1896, %v1892
        %v1899 = vmul.f32 %v1898, %v1898
        %v1900 = vsel %vm831, %v1899, 0.0
        %1901 = vadd.xlane.f32.xlu0 %v1900
        %v1902 = vpop.xlane.xlu0 %1901
        %v1903 = vmul.f32 %v1902, %v835
        %v1904 = vadd.f32 %v1903, 1e-06
        %v1905 = vrsqrt.pop %v1904
        %v1906 = vmul.f32 %v1898, %v1905
        %v1908 = vlaneseq
        %v1909 = vshrl.u32 %v1908, 7
        %v1910 = vsub.s32 0, %v1909
        %v1911 = vrot.slane %v897, %v1910
        %v1913 = vmul.f32 %v1906, %v1911
        %v1914 = vpack.c.bf16 %v1913, %v1913
        %v1919 = vunpack.c.l.b16 %v893
        %v1920 = vunpack.c.l.b16 %v894
        %v1921 = vunpack.c.l.b16 %v895
        %v1922 = vunpack.c.l.b16 %v896
        %v1923 = vpack.c.b16 %v1920, %v1919
        %v1924 = vpack.c.b16 %v1922, %v1921
        %v1928 = vsel %vm831, %v1914, 0
        %1930 = vmatprep.subr.bf16.mxu0 0
        %1931 = vmatpush1.bf16.msra.mxu0 %v1923
        %1932 = vmatprep.subr.bf16.mxu0 0
        %1933 = vmatpush1.bf16.msra.mxu0 %v1924
        %1934 = vmatprep.subr.bf16.mxu0 0
        %1935 = vmatpush1.bf16.msra.mxu0 0
        %1936 = vmatprep.subr.bf16.mxu0 0
        %1937 = vmatpush1.bf16.msra.mxu0 0
        %1938 = vmatprep.subr.bf16.mxu0 0
        %1939 = vmatpush1.bf16.msra.mxu0 0
        %1940 = vmatprep.subr.bf16.mxu0 0
        %1941 = vmatpush1.bf16.msra.mxu0 0
        %1942 = vmatprep.subr.bf16.mxu0 0
        %1943 = vmatpush1.bf16.msra.mxu0 0
        %1944 = vmatprep.subr.bf16.mxu0 0
        %1945 = vmatpush1.bf16.msra.mxu0 0
        %1946 = vmatprep.subr.bf16.mxu0 0
        %1947 = vmatpush1.bf16.msra.mxu0 0
        %1948 = vmatprep.subr.bf16.mxu0 0
        %1949 = vmatpush1.bf16.msra.mxu0 0
        %1950 = vmatprep.subr.bf16.mxu0 0
        %1951 = vmatpush1.bf16.msra.mxu0 0
        %1952 = vmatprep.subr.bf16.mxu0 0
        %1953 = vmatpush1.bf16.msra.mxu0 0
        %1954 = vmatprep.subr.bf16.mxu0 0
        %1955 = vmatpush1.bf16.msra.mxu0 0
        %1956 = vmatprep.subr.bf16.mxu0 0
        %1957 = vmatpush1.bf16.msra.mxu0 0
        %1958 = vmatprep.subr.bf16.mxu0 0
        %1959 = vmatpush1.bf16.msra.mxu0 0
        %1960 = vmatprep.subr.bf16.mxu0 0
        %1961 = vmatpush1.bf16.msra.mxu0 0
        %1962 = vmatprep.mubr.bf16.mxu0 0
        %1963 = vmatmul.mubr.bf16.gmra.mrb[0].mxu0 %v1928
        %v1964 = vpop.f32.mrb[0].mxu0
        %v1965 = vadd.f32 0.0, %v1964
        %v1966 = vpop.f32.mrb[0].mxu0
        %v1967 = vpop.f32.mrb[0].mxu0
        %v1968 = vpop.f32.mrb[0].mxu0
        %1969 = vdwg.mxu0
        %v1970 = vadd.f32 %v827, %v846
        %v1971 = vadd.f32 %v1970, %v1965
        %v1972 = vld [vmem:[%s3] sm:$0x1]
        %v1973 = vmul.f32 %v1971, %v1971
        %v1974 = vsel %vm831, %v1973, 0.0
        %1975 = vadd.xlane.f32.xlu0 %v1974
        %v1976 = vpop.xlane.xlu0 %1975
        %v1977 = vmul.f32 %v1976, %v835
        %v1978 = vadd.f32 %v1977, 1e-06
        %v1979 = vrsqrt.pop %v1978
        %v1980 = vmul.f32 %v1971, %v1979
        %v1982 = vlaneseq
        %v1983 = vshrl.u32 %v1982, 7
        %v1984 = vsub.s32 0, %v1983
        %v1985 = vrot.slane %v1972, %v1984
        %v1987 = vmul.f32 %v1980, %v1985
        %v1988 = vld [vmem:[%s12] sm:$0xf]
        %v1989 = vld [vmem:[%s12 + $0x4] sm:$0xf]
        %v1990 = vld [vmem:[%s12 + $0x8] sm:$0xf]
        %v1991 = vld [vmem:[%s12 + $0xc] sm:$0xf]
        %v1992 = vld [vmem:[%s13] sm:$0xf]
        %v1993 = vld [vmem:[%s13 + $0x4] sm:$0xf]
        %v1994 = vld [vmem:[%s13 + $0x8] sm:$0xf]
        %v1995 = vld [vmem:[%s13 + $0xc] sm:$0xf]
        %v1996 = vld [vmem:[%s14] sm:$0xf]
        %v1997 = vld [vmem:[%s14 + $0x4] sm:$0xf]
        %v1998 = vld [vmem:[%s14 + $0x8] sm:$0xf]
        %v1999 = vld [vmem:[%s14 + $0xc] sm:$0xf]
        %v2000 = vld [vmem:[%s15] sm:$0xf]
        %v2001 = vld [vmem:[%s15 + $0x4] sm:$0xf]
        %v2002 = vld [vmem:[%s15 + $0x8] sm:$0xf]
        %v2003 = vld [vmem:[%s15 + $0xc] sm:$0xf]
        %v2004 = vld [vmem:[%s16] sm:$0x1]
        %v2005 = vld [vmem:[%s17] sm:$0x1]
        %v2006 = vld [vmem:[%s17 + $0x1] sm:$0x1]
        %v2007 = vld [vmem:[%s17 + $0x2] sm:$0x1]
        %v2008 = vld [vmem:[%s17 + $0x3] sm:$0x1]
        %v2009 = vpack.c.bf16 %v1987, %v1987
        %v2014 = vunpack.c.l.b16 %v1988
        %v2015 = vunpack.c.l.b16 %v1989
        %v2016 = vunpack.c.l.b16 %v1990
        %v2017 = vunpack.c.l.b16 %v1991
        %v2018 = vpack.c.b16 %v2015, %v2014
        %v2019 = vpack.c.b16 %v2017, %v2016
        %v2023 = vsel %vm831, %v2009, 0
        %2025 = vmatprep.subr.bf16.mxu0 0
        %2026 = vmatpush1.bf16.msra.mxu0 %v2018
        %2027 = vmatprep.subr.bf16.mxu0 0
        %2028 = vmatpush1.bf16.msra.mxu0 %v2019
        %2029 = vmatprep.subr.bf16.mxu0 0
        %2030 = vmatpush1.bf16.msra.mxu0 0
        %2031 = vmatprep.subr.bf16.mxu0 0
        %2032 = vmatpush1.bf16.msra.mxu0 0
        %2033 = vmatprep.subr.bf16.mxu0 0
        %2034 = vmatpush1.bf16.msra.mxu0 0
        %2035 = vmatprep.subr.bf16.mxu0 0
        %2036 = vmatpush1.bf16.msra.mxu0 0
        %2037 = vmatprep.subr.bf16.mxu0 0
        %2038 = vmatpush1.bf16.msra.mxu0 0
        %2039 = vmatprep.subr.bf16.mxu0 0
        %2040 = vmatpush1.bf16.msra.mxu0 0
        %2041 = vmatprep.subr.bf16.mxu0 0
        %2042 = vmatpush1.bf16.msra.mxu0 0
        %2043 = vmatprep.subr.bf16.mxu0 0
        %2044 = vmatpush1.bf16.msra.mxu0 0
        %2045 = vmatprep.subr.bf16.mxu0 0
        %2046 = vmatpush1.bf16.msra.mxu0 0
        %2047 = vmatprep.subr.bf16.mxu0 0
        %2048 = vmatpush1.bf16.msra.mxu0 0
        %2049 = vmatprep.subr.bf16.mxu0 0
        %2050 = vmatpush1.bf16.msra.mxu0 0
        %2051 = vmatprep.subr.bf16.mxu0 0
        %2052 = vmatpush1.bf16.msra.mxu0 0
        %2053 = vmatprep.subr.bf16.mxu0 0
        %2054 = vmatpush1.bf16.msra.mxu0 0
        %2055 = vmatprep.subr.bf16.mxu0 0
        %2056 = vmatpush1.bf16.msra.mxu0 0
        %2057 = vmatprep.mubr.bf16.mxu0 0
        %2058 = vmatmul.mubr.bf16.gmra.mrb[0].mxu0 %v2023
        %v2059 = vpop.f32.mrb[0].mxu0
        %v2060 = vadd.f32 0.0, %v2059
        %v2061 = vpop.f32.mrb[0].mxu0
        %v2062 = vpop.f32.mrb[0].mxu0
        %v2063 = vpop.f32.mrb[0].mxu0
        %2064 = vdwg.mxu0
        %v2065 = vpack.c.bf16 %v828, %v828
        %v2070 = vunpack.c.l.b16 %v1992
        %v2071 = vunpack.c.l.b16 %v1993
        %v2072 = vunpack.c.l.b16 %v1994
        %v2073 = vunpack.c.l.b16 %v1995
        %v2074 = vpack.c.b16 %v2071, %v2070
        %v2075 = vpack.c.b16 %v2073, %v2072
        %v2079 = vsel %vm831, %v2065, 0
        %2081 = vmatprep.subr.bf16.mxu0 0
        %2082 = vmatpush1.bf16.msra.mxu0 %v2074
        %2083 = vmatprep.subr.bf16.mxu0 0
        %2084 = vmatpush1.bf16.msra.mxu0 %v2075
        %2085 = vmatprep.subr.bf16.mxu0 0
        %2086 = vmatpush1.bf16.msra.mxu0 0
        %2087 = vmatprep.subr.bf16.mxu0 0
        %2088 = vmatpush1.bf16.msra.mxu0 0
        %2089 = vmatprep.subr.bf16.mxu0 0
        %2090 = vmatpush1.bf16.msra.mxu0 0
        %2091 = vmatprep.subr.bf16.mxu0 0
        %2092 = vmatpush1.bf16.msra.mxu0 0
        %2093 = vmatprep.subr.bf16.mxu0 0
        %2094 = vmatpush1.bf16.msra.mxu0 0
        %2095 = vmatprep.subr.bf16.mxu0 0
        %2096 = vmatpush1.bf16.msra.mxu0 0
        %2097 = vmatprep.subr.bf16.mxu0 0
        %2098 = vmatpush1.bf16.msra.mxu0 0
        %2099 = vmatprep.subr.bf16.mxu0 0
        %2100 = vmatpush1.bf16.msra.mxu0 0
        %2101 = vmatprep.subr.bf16.mxu0 0
        %2102 = vmatpush1.bf16.msra.mxu0 0
        %2103 = vmatprep.subr.bf16.mxu0 0
        %2104 = vmatpush1.bf16.msra.mxu0 0
        %2105 = vmatprep.subr.bf16.mxu0 0
        %2106 = vmatpush1.bf16.msra.mxu0 0
        %2107 = vmatprep.subr.bf16.mxu0 0
        %2108 = vmatpush1.bf16.msra.mxu0 0
        %2109 = vmatprep.subr.bf16.mxu0 0
        %2110 = vmatpush1.bf16.msra.mxu0 0
        %2111 = vmatprep.subr.bf16.mxu0 0
        %2112 = vmatpush1.bf16.msra.mxu0 0
        %2113 = vmatprep.mubr.bf16.mxu0 0
        %2114 = vmatmul.mubr.bf16.gmra.mrb[0].mxu0 %v2079
        %v2115 = vpop.f32.mrb[0].mxu0
        %v2116 = vadd.f32 0.0, %v2115
        %v2117 = vpop.f32.mrb[0].mxu0
        %v2118 = vpop.f32.mrb[0].mxu0
        %v2119 = vpop.f32.mrb[0].mxu0
        %2120 = vdwg.mxu0
        %v2125 = vunpack.c.l.b16 %v1996
        %v2126 = vunpack.c.l.b16 %v1997
        %v2127 = vunpack.c.l.b16 %v1998
        %v2128 = vunpack.c.l.b16 %v1999
        %v2129 = vpack.c.b16 %v2126, %v2125
        %v2130 = vpack.c.b16 %v2128, %v2127
        %2133 = vmatprep.subr.bf16.mxu0 0
        %2134 = vmatpush1.bf16.msra.mxu0 %v2129
        %2135 = vmatprep.subr.bf16.mxu0 0
        %2136 = vmatpush1.bf16.msra.mxu0 %v2130
        %2137 = vmatprep.subr.bf16.mxu0 0
        %2138 = vmatpush1.bf16.msra.mxu0 0
        %2139 = vmatprep.subr.bf16.mxu0 0
        %2140 = vmatpush1.bf16.msra.mxu0 0
        %2141 = vmatprep.subr.bf16.mxu0 0
        %2142 = vmatpush1.bf16.msra.mxu0 0
        %2143 = vmatprep.subr.bf16.mxu0 0
        %2144 = vmatpush1.bf16.msra.mxu0 0
        %2145 = vmatprep.subr.bf16.mxu0 0
        %2146 = vmatpush1.bf16.msra.mxu0 0
        %2147 = vmatprep.subr.bf16.mxu0 0
        %2148 = vmatpush1.bf16.msra.mxu0 0
        %2149 = vmatprep.subr.bf16.mxu0 0
        %2150 = vmatpush1.bf16.msra.mxu0 0
        %2151 = vmatprep.subr.bf16.mxu0 0
        %2152 = vmatpush1.bf16.msra.mxu0 0
        %2153 = vmatprep.subr.bf16.mxu0 0
        %2154 = vmatpush1.bf16.msra.mxu0 0
        %2155 = vmatprep.subr.bf16.mxu0 0
        %2156 = vmatpush1.bf16.msra.mxu0 0
        %2157 = vmatprep.subr.bf16.mxu0 0
        %2158 = vmatpush1.bf16.msra.mxu0 0
        %2159 = vmatprep.subr.bf16.mxu0 0
        %2160 = vmatpush1.bf16.msra.mxu0 0
        %2161 = vmatprep.subr.bf16.mxu0 0
        %2162 = vmatpush1.bf16.msra.mxu0 0
        %2163 = vmatprep.subr.bf16.mxu0 0
        %2164 = vmatpush1.bf16.msra.mxu0 0
        %2165 = vmatprep.mubr.bf16.mxu0 0
        %2166 = vmatmul.mubr.bf16.gmra.mrb[0].mxu0 %v2079
        %v2167 = vpop.f32.mrb[0].mxu0
        %v2168 = vadd.f32 0.0, %v2167
        %v2169 = vpop.f32.mrb[0].mxu0
        %v2170 = vpop.f32.mrb[0].mxu0
        %v2171 = vpop.f32.mrb[0].mxu0
        %2172 = vdwg.mxu0
        %2174 = vrot.lane.b32.xlu0 %v2060, 120
        %v2175 = vpop.permute.xlu0 %2174
        %2177 = vrot.lane.b32.xlu0 %v2060, 112
        %v2178 = vpop.permute.xlu0 %2177
        %2180 = vrot.lane.b32.xlu0 %v2060, 104
        %v2181 = vpop.permute.xlu0 %2180
        %2183 = vrot.lane.b32.xlu0 %v2060, 96
        %v2184 = vpop.permute.xlu0 %2183
        %2186 = vrot.lane.b32.xlu0 %v2060, 88
        %v2187 = vpop.permute.xlu0 %2186
        %2189 = vrot.lane.b32.xlu0 %v2060, 80
        %v2190 = vpop.permute.xlu0 %2189
        %2192 = vrot.lane.b32.xlu0 %v2060, 72
        %v2193 = vpop.permute.xlu0 %2192
        %2196 = vrot.lane.b32.xlu0 %v2116, 120
        %v2197 = vpop.permute.xlu0 %2196
        %2199 = vrot.lane.b32.xlu0 %v2116, 112
        %v2200 = vpop.permute.xlu0 %2199
        %2202 = vrot.lane.b32.xlu0 %v2116, 104
        %v2203 = vpop.permute.xlu0 %2202
        %2205 = vrot.lane.b32.xlu0 %v2116, 96
        %v2206 = vpop.permute.xlu0 %2205
        %2208 = vrot.lane.b32.xlu0 %v2116, 88
        %v2209 = vpop.permute.xlu0 %2208
        %2211 = vrot.lane.b32.xlu0 %v2116, 80
        %v2212 = vpop.permute.xlu0 %2211
        %2214 = vrot.lane.b32.xlu0 %v2116, 72
        %v2215 = vpop.permute.xlu0 %2214
        %2218 = vrot.lane.b32.xlu0 %v2168, 120
        %v2219 = vpop.permute.xlu0 %2218
        %2221 = vrot.lane.b32.xlu0 %v2168, 112
        %v2222 = vpop.permute.xlu0 %2221
        %2224 = vrot.lane.b32.xlu0 %v2168, 104
        %v2225 = vpop.permute.xlu0 %2224
        %v2227 = vpack.c.bf16 %v2060, %v2060
        %v2228 = vpack.c.bf16 %v2175, %v2175
        %v2229 = vpack.c.bf16 %v2178, %v2178
        %v2230 = vpack.c.bf16 %v2181, %v2181
        %v2231 = vpack.c.bf16 %v2184, %v2184
        %v2232 = vpack.c.bf16 %v2187, %v2187
        %v2233 = vpack.c.bf16 %v2190, %v2190
        %v2234 = vpack.c.bf16 %v2193, %v2193
        %v2235 = vpack.c.bf16 %v2116, %v2116
        %v2236 = vpack.c.bf16 %v2197, %v2197
        %v2237 = vpack.c.bf16 %v2200, %v2200
        %v2238 = vpack.c.bf16 %v2203, %v2203
        %v2239 = vpack.c.bf16 %v2206, %v2206
        %v2240 = vpack.c.bf16 %v2209, %v2209
        %v2241 = vpack.c.bf16 %v2212, %v2212
        %v2242 = vpack.c.bf16 %v2215, %v2215
        %v2244 = vsel %vm1136, %v2227, 0
        %v2247 = vsel %vm1136, %v2235, 0
        %2249 = vmatprep.subr.bf16.mxu0 0
        %2250 = vmatpush1.bf16.xpose.msra.mxu0 %v2247
        %2251 = vmatprep.subr.bf16.mxu0 0
        %2252 = vmatpush1.bf16.xpose.msra.mxu0 0
        %2253 = vmatprep.subr.bf16.mxu0 0
        %2254 = vmatpush1.bf16.xpose.msra.mxu0 0
        %2255 = vmatprep.subr.bf16.mxu0 0
        %2256 = vmatpush1.bf16.xpose.msra.mxu0 0
        %2257 = vmatprep.subr.bf16.mxu0 0
        %2258 = vmatpush1.bf16.xpose.msra.mxu0 0
        %2259 = vmatprep.subr.bf16.mxu0 0
        %2260 = vmatpush1.bf16.xpose.msra.mxu0 0
        %2261 = vmatprep.subr.bf16.mxu0 0
        %2262 = vmatpush1.bf16.xpose.msra.mxu0 0
        %2263 = vmatprep.subr.bf16.mxu0 0
        %2264 = vmatpush1.bf16.xpose.msra.mxu0 0
        %2265 = vmatprep.subr.bf16.mxu0 0
        %2266 = vmatpush1.bf16.xpose.msra.mxu0 0
        %2267 = vmatprep.subr.bf16.mxu0 0
        %2268 = vmatpush1.bf16.xpose.msra.mxu0 0
        %2269 = vmatprep.subr.bf16.mxu0 0
        %2270 = vmatpush1.bf16.xpose.msra.mxu0 0
        %2271 = vmatprep.subr.bf16.mxu0 0
        %2272 = vmatpush1.bf16.xpose.msra.mxu0 0
        %2273 = vmatprep.subr.bf16.mxu0 0
        %2274 = vmatpush1.bf16.xpose.msra.mxu0 0
        %2275 = vmatprep.subr.bf16.mxu0 0
        %2276 = vmatpush1.bf16.xpose.msra.mxu0 0
        %2277 = vmatprep.subr.bf16.mxu0 0
        %2278 = vmatpush1.bf16.xpose.msra.mxu0 0
        %2279 = vmatprep.subr.bf16.mxu0 0
        %2280 = vmatpush1.bf16.xpose.msra.mxu0 0
        %2281 = vmatprep.mubr.bf16.mxu0 0
        %2282 = vmatmul.mubr.bf16.gmra.mrb[0].mxu0 %v2244
        %v2283 = vpop.f32.mrb[0].mxu0
        %v2284 = vadd.f32 0.0, %v2283
        %v2285 = vpop.f32.mrb[0].mxu0
        %v2286 = vpop.f32.mrb[0].mxu0
        %v2287 = vpop.f32.mrb[0].mxu0
        %2288 = vdwg.mxu0
        %v2290 = vsel %vm1136, %v2228, 0
        %v2293 = vsel %vm1136, %v2236, 0
        %2295 = vmatprep.subr.bf16.mxu0 0
        %2296 = vmatpush1.bf16.xpose.msra.mxu0 %v2293
        %2297 = vmatprep.subr.bf16.mxu0 0
        %2298 = vmatpush1.bf16.xpose.msra.mxu0 0
        %2299 = vmatprep.subr.bf16.mxu0 0
        %2300 = vmatpush1.bf16.xpose.msra.mxu0 0
        %2301 = vmatprep.subr.bf16.mxu0 0
        %2302 = vmatpush1.bf16.xpose.msra.mxu0 0
        %2303 = vmatprep.subr.bf16.mxu0 0
        %2304 = vmatpush1.bf16.xpose.msra.mxu0 0
        %2305 = vmatprep.subr.bf16.mxu0 0
        %2306 = vmatpush1.bf16.xpose.msra.mxu0 0
        %2307 = vmatprep.subr.bf16.mxu0 0
        %2308 = vmatpush1.bf16.xpose.msra.mxu0 0
        %2309 = vmatprep.subr.bf16.mxu0 0
        %2310 = vmatpush1.bf16.xpose.msra.mxu0 0
        %2311 = vmatprep.subr.bf16.mxu0 0
        %2312 = vmatpush1.bf16.xpose.msra.mxu0 0
        %2313 = vmatprep.subr.bf16.mxu0 0
        %2314 = vmatpush1.bf16.xpose.msra.mxu0 0
        %2315 = vmatprep.subr.bf16.mxu0 0
        %2316 = vmatpush1.bf16.xpose.msra.mxu0 0
        %2317 = vmatprep.subr.bf16.mxu0 0
        %2318 = vmatpush1.bf16.xpose.msra.mxu0 0
        %2319 = vmatprep.subr.bf16.mxu0 0
        %2320 = vmatpush1.bf16.xpose.msra.mxu0 0
        %2321 = vmatprep.subr.bf16.mxu0 0
        %2322 = vmatpush1.bf16.xpose.msra.mxu0 0
        %2323 = vmatprep.subr.bf16.mxu0 0
        %2324 = vmatpush1.bf16.xpose.msra.mxu0 0
        %2325 = vmatprep.subr.bf16.mxu0 0
        %2326 = vmatpush1.bf16.xpose.msra.mxu0 0
        %2327 = vmatprep.mubr.bf16.mxu0 0
        %2328 = vmatmul.mubr.bf16.gmra.mrb[0].mxu0 %v2290
        %v2329 = vpop.f32.mrb[0].mxu0
        %v2330 = vadd.f32 0.0, %v2329
        %v2331 = vpop.f32.mrb[0].mxu0
        %v2332 = vpop.f32.mrb[0].mxu0
        %v2333 = vpop.f32.mrb[0].mxu0
        %2334 = vdwg.mxu0
        %v2336 = vsel %vm1136, %v2229, 0
        %v2339 = vsel %vm1136, %v2237, 0
        %2341 = vmatprep.subr.bf16.mxu0 0
        %2342 = vmatpush1.bf16.xpose.msra.mxu0 %v2339
        %2343 = vmatprep.subr.bf16.mxu0 0
        %2344 = vmatpush1.bf16.xpose.msra.mxu0 0
        %2345 = vmatprep.subr.bf16.mxu0 0
        %2346 = vmatpush1.bf16.xpose.msra.mxu0 0
        %2347 = vmatprep.subr.bf16.mxu0 0
        %2348 = vmatpush1.bf16.xpose.msra.mxu0 0
        %2349 = vmatprep.subr.bf16.mxu0 0
        %2350 = vmatpush1.bf16.xpose.msra.mxu0 0
        %2351 = vmatprep.subr.bf16.mxu0 0
        %2352 = vmatpush1.bf16.xpose.msra.mxu0 0
        %2353 = vmatprep.subr.bf16.mxu0 0
        %2354 = vmatpush1.bf16.xpose.msra.mxu0 0
        %2355 = vmatprep.subr.bf16.mxu0 0
        %2356 = vmatpush1.bf16.xpose.msra.mxu0 0
        %2357 = vmatprep.subr.bf16.mxu0 0
        %2358 = vmatpush1.bf16.xpose.msra.mxu0 0
        %2359 = vmatprep.subr.bf16.mxu0 0
        %2360 = vmatpush1.bf16.xpose.msra.mxu0 0
        %2361 = vmatprep.subr.bf16.mxu0 0
        %2362 = vmatpush1.bf16.xpose.msra.mxu0 0
        %2363 = vmatprep.subr.bf16.mxu0 0
        %2364 = vmatpush1.bf16.xpose.msra.mxu0 0
        %2365 = vmatprep.subr.bf16.mxu0 0
        %2366 = vmatpush1.bf16.xpose.msra.mxu0 0
        %2367 = vmatprep.subr.bf16.mxu0 0
        %2368 = vmatpush1.bf16.xpose.msra.mxu0 0
        %2369 = vmatprep.subr.bf16.mxu0 0
        %2370 = vmatpush1.bf16.xpose.msra.mxu0 0
        %2371 = vmatprep.subr.bf16.mxu0 0
        %2372 = vmatpush1.bf16.xpose.msra.mxu0 0
        %2373 = vmatprep.mubr.bf16.mxu0 0
        %2374 = vmatmul.mubr.bf16.gmra.mrb[0].mxu0 %v2336
        %v2375 = vpop.f32.mrb[0].mxu0
        %v2376 = vadd.f32 0.0, %v2375
        %v2377 = vpop.f32.mrb[0].mxu0
        %v2378 = vpop.f32.mrb[0].mxu0
        %v2379 = vpop.f32.mrb[0].mxu0
        %2380 = vdwg.mxu0
        %v2382 = vsel %vm1136, %v2230, 0
        %v2385 = vsel %vm1136, %v2238, 0
        %2387 = vmatprep.subr.bf16.mxu0 0
        %2388 = vmatpush1.bf16.xpose.msra.mxu0 %v2385
        %2389 = vmatprep.subr.bf16.mxu0 0
        %2390 = vmatpush1.bf16.xpose.msra.mxu0 0
        %2391 = vmatprep.subr.bf16.mxu0 0
        %2392 = vmatpush1.bf16.xpose.msra.mxu0 0
        %2393 = vmatprep.subr.bf16.mxu0 0
        %2394 = vmatpush1.bf16.xpose.msra.mxu0 0
        %2395 = vmatprep.subr.bf16.mxu0 0
        %2396 = vmatpush1.bf16.xpose.msra.mxu0 0
        %2397 = vmatprep.subr.bf16.mxu0 0
        %2398 = vmatpush1.bf16.xpose.msra.mxu0 0
        %2399 = vmatprep.subr.bf16.mxu0 0
        %2400 = vmatpush1.bf16.xpose.msra.mxu0 0
        %2401 = vmatprep.subr.bf16.mxu0 0
        %2402 = vmatpush1.bf16.xpose.msra.mxu0 0
        %2403 = vmatprep.subr.bf16.mxu0 0
        %2404 = vmatpush1.bf16.xpose.msra.mxu0 0
        %2405 = vmatprep.subr.bf16.mxu0 0
        %2406 = vmatpush1.bf16.xpose.msra.mxu0 0
        %2407 = vmatprep.subr.bf16.mxu0 0
        %2408 = vmatpush1.bf16.xpose.msra.mxu0 0
        %2409 = vmatprep.subr.bf16.mxu0 0
        %2410 = vmatpush1.bf16.xpose.msra.mxu0 0
        %2411 = vmatprep.subr.bf16.mxu0 0
        %2412 = vmatpush1.bf16.xpose.msra.mxu0 0
        %2413 = vmatprep.subr.bf16.mxu0 0
        %2414 = vmatpush1.bf16.xpose.msra.mxu0 0
        %2415 = vmatprep.subr.bf16.mxu0 0
        %2416 = vmatpush1.bf16.xpose.msra.mxu0 0
        %2417 = vmatprep.subr.bf16.mxu0 0
        %2418 = vmatpush1.bf16.xpose.msra.mxu0 0
        %2419 = vmatprep.mubr.bf16.mxu0 0
        %2420 = vmatmul.mubr.bf16.gmra.mrb[0].mxu0 %v2382
        %v2421 = vpop.f32.mrb[0].mxu0
        %v2422 = vadd.f32 0.0, %v2421
        %v2423 = vpop.f32.mrb[0].mxu0
        %v2424 = vpop.f32.mrb[0].mxu0
        %v2425 = vpop.f32.mrb[0].mxu0
        %2426 = vdwg.mxu0
        %v2428 = vsel %vm1136, %v2231, 0
        %v2431 = vsel %vm1136, %v2239, 0
        %2433 = vmatprep.subr.bf16.mxu0 0
        %2434 = vmatpush1.bf16.xpose.msra.mxu0 %v2431
        %2435 = vmatprep.subr.bf16.mxu0 0
        %2436 = vmatpush1.bf16.xpose.msra.mxu0 0
        %2437 = vmatprep.subr.bf16.mxu0 0
        %2438 = vmatpush1.bf16.xpose.msra.mxu0 0
        %2439 = vmatprep.subr.bf16.mxu0 0
        %2440 = vmatpush1.bf16.xpose.msra.mxu0 0
        %2441 = vmatprep.subr.bf16.mxu0 0
        %2442 = vmatpush1.bf16.xpose.msra.mxu0 0
        %2443 = vmatprep.subr.bf16.mxu0 0
        %2444 = vmatpush1.bf16.xpose.msra.mxu0 0
        %2445 = vmatprep.subr.bf16.mxu0 0
        %2446 = vmatpush1.bf16.xpose.msra.mxu0 0
        %2447 = vmatprep.subr.bf16.mxu0 0
        %2448 = vmatpush1.bf16.xpose.msra.mxu0 0
        %2449 = vmatprep.subr.bf16.mxu0 0
        %2450 = vmatpush1.bf16.xpose.msra.mxu0 0
        %2451 = vmatprep.subr.bf16.mxu0 0
        %2452 = vmatpush1.bf16.xpose.msra.mxu0 0
        %2453 = vmatprep.subr.bf16.mxu0 0
        %2454 = vmatpush1.bf16.xpose.msra.mxu0 0
        %2455 = vmatprep.subr.bf16.mxu0 0
        %2456 = vmatpush1.bf16.xpose.msra.mxu0 0
        %2457 = vmatprep.subr.bf16.mxu0 0
        %2458 = vmatpush1.bf16.xpose.msra.mxu0 0
        %2459 = vmatprep.subr.bf16.mxu0 0
        %2460 = vmatpush1.bf16.xpose.msra.mxu0 0
        %2461 = vmatprep.subr.bf16.mxu0 0
        %2462 = vmatpush1.bf16.xpose.msra.mxu0 0
        %2463 = vmatprep.subr.bf16.mxu0 0
        %2464 = vmatpush1.bf16.xpose.msra.mxu0 0
        %2465 = vmatprep.mubr.bf16.mxu0 0
        %2466 = vmatmul.mubr.bf16.gmra.mrb[0].mxu0 %v2428
        %v2467 = vpop.f32.mrb[0].mxu0
        %v2468 = vadd.f32 0.0, %v2467
        %v2469 = vpop.f32.mrb[0].mxu0
        %v2470 = vpop.f32.mrb[0].mxu0
        %v2471 = vpop.f32.mrb[0].mxu0
        %2472 = vdwg.mxu0
        %v2474 = vsel %vm1136, %v2232, 0
        %v2477 = vsel %vm1136, %v2240, 0
        %2479 = vmatprep.subr.bf16.mxu0 0
        %2480 = vmatpush1.bf16.xpose.msra.mxu0 %v2477
        %2481 = vmatprep.subr.bf16.mxu0 0
        %2482 = vmatpush1.bf16.xpose.msra.mxu0 0
        %2483 = vmatprep.subr.bf16.mxu0 0
        %2484 = vmatpush1.bf16.xpose.msra.mxu0 0
        %2485 = vmatprep.subr.bf16.mxu0 0
        %2486 = vmatpush1.bf16.xpose.msra.mxu0 0
        %2487 = vmatprep.subr.bf16.mxu0 0
        %2488 = vmatpush1.bf16.xpose.msra.mxu0 0
        %2489 = vmatprep.subr.bf16.mxu0 0
        %2490 = vmatpush1.bf16.xpose.msra.mxu0 0
        %2491 = vmatprep.subr.bf16.mxu0 0
        %2492 = vmatpush1.bf16.xpose.msra.mxu0 0
        %2493 = vmatprep.subr.bf16.mxu0 0
        %2494 = vmatpush1.bf16.xpose.msra.mxu0 0
        %2495 = vmatprep.subr.bf16.mxu0 0
        %2496 = vmatpush1.bf16.xpose.msra.mxu0 0
        %2497 = vmatprep.subr.bf16.mxu0 0
        %2498 = vmatpush1.bf16.xpose.msra.mxu0 0
        %2499 = vmatprep.subr.bf16.mxu0 0
        %2500 = vmatpush1.bf16.xpose.msra.mxu0 0
        %2501 = vmatprep.subr.bf16.mxu0 0
        %2502 = vmatpush1.bf16.xpose.msra.mxu0 0
        %2503 = vmatprep.subr.bf16.mxu0 0
        %2504 = vmatpush1.bf16.xpose.msra.mxu0 0
        %2505 = vmatprep.subr.bf16.mxu0 0
        %2506 = vmatpush1.bf16.xpose.msra.mxu0 0
        %2507 = vmatprep.subr.bf16.mxu0 0
        %2508 = vmatpush1.bf16.xpose.msra.mxu0 0
        %2509 = vmatprep.subr.bf16.mxu0 0
        %2510 = vmatpush1.bf16.xpose.msra.mxu0 0
        %2511 = vmatprep.mubr.bf16.mxu0 0
        %2512 = vmatmul.mubr.bf16.gmra.mrb[0].mxu0 %v2474
        %v2513 = vpop.f32.mrb[0].mxu0
        %v2514 = vadd.f32 0.0, %v2513
        %v2515 = vpop.f32.mrb[0].mxu0
        %v2516 = vpop.f32.mrb[0].mxu0
        %v2517 = vpop.f32.mrb[0].mxu0
        %2518 = vdwg.mxu0
        %v2520 = vsel %vm1136, %v2233, 0
        %v2523 = vsel %vm1136, %v2241, 0
        %2525 = vmatprep.subr.bf16.mxu0 0
        %2526 = vmatpush1.bf16.xpose.msra.mxu0 %v2523
        %2527 = vmatprep.subr.bf16.mxu0 0
        %2528 = vmatpush1.bf16.xpose.msra.mxu0 0
        %2529 = vmatprep.subr.bf16.mxu0 0
        %2530 = vmatpush1.bf16.xpose.msra.mxu0 0
        %2531 = vmatprep.subr.bf16.mxu0 0
        %2532 = vmatpush1.bf16.xpose.msra.mxu0 0
        %2533 = vmatprep.subr.bf16.mxu0 0
        %2534 = vmatpush1.bf16.xpose.msra.mxu0 0
        %2535 = vmatprep.subr.bf16.mxu0 0
        %2536 = vmatpush1.bf16.xpose.msra.mxu0 0
        %2537 = vmatprep.subr.bf16.mxu0 0
        %2538 = vmatpush1.bf16.xpose.msra.mxu0 0
        %2539 = vmatprep.subr.bf16.mxu0 0
        %2540 = vmatpush1.bf16.xpose.msra.mxu0 0
        %2541 = vmatprep.subr.bf16.mxu0 0
        %2542 = vmatpush1.bf16.xpose.msra.mxu0 0
        %2543 = vmatprep.subr.bf16.mxu0 0
        %2544 = vmatpush1.bf16.xpose.msra.mxu0 0
        %2545 = vmatprep.subr.bf16.mxu0 0
        %2546 = vmatpush1.bf16.xpose.msra.mxu0 0
        %2547 = vmatprep.subr.bf16.mxu0 0
        %2548 = vmatpush1.bf16.xpose.msra.mxu0 0
        %2549 = vmatprep.subr.bf16.mxu0 0
        %2550 = vmatpush1.bf16.xpose.msra.mxu0 0
        %2551 = vmatprep.subr.bf16.mxu0 0
        %2552 = vmatpush1.bf16.xpose.msra.mxu0 0
        %2553 = vmatprep.subr.bf16.mxu0 0
        %2554 = vmatpush1.bf16.xpose.msra.mxu0 0
        %2555 = vmatprep.subr.bf16.mxu0 0
        %2556 = vmatpush1.bf16.xpose.msra.mxu0 0
        %2557 = vmatprep.mubr.bf16.mxu0 0
        %2558 = vmatmul.mubr.bf16.gmra.mrb[0].mxu0 %v2520
        %v2559 = vpop.f32.mrb[0].mxu0
        %v2560 = vadd.f32 0.0, %v2559
        %v2561 = vpop.f32.mrb[0].mxu0
        %v2562 = vpop.f32.mrb[0].mxu0
        %v2563 = vpop.f32.mrb[0].mxu0
        %2564 = vdwg.mxu0
        %v2566 = vsel %vm1136, %v2234, 0
        %v2569 = vsel %vm1136, %v2242, 0
        %2571 = vmatprep.subr.bf16.mxu0 0
        %2572 = vmatpush1.bf16.xpose.msra.mxu0 %v2569
        %2573 = vmatprep.subr.bf16.mxu0 0
        %2574 = vmatpush1.bf16.xpose.msra.mxu0 0
        %2575 = vmatprep.subr.bf16.mxu0 0
        %2576 = vmatpush1.bf16.xpose.msra.mxu0 0
        %2577 = vmatprep.subr.bf16.mxu0 0
        %2578 = vmatpush1.bf16.xpose.msra.mxu0 0
        %2579 = vmatprep.subr.bf16.mxu0 0
        %2580 = vmatpush1.bf16.xpose.msra.mxu0 0
        %2581 = vmatprep.subr.bf16.mxu0 0
        %2582 = vmatpush1.bf16.xpose.msra.mxu0 0
        %2583 = vmatprep.subr.bf16.mxu0 0
        %2584 = vmatpush1.bf16.xpose.msra.mxu0 0
        %2585 = vmatprep.subr.bf16.mxu0 0
        %2586 = vmatpush1.bf16.xpose.msra.mxu0 0
        %2587 = vmatprep.subr.bf16.mxu0 0
        %2588 = vmatpush1.bf16.xpose.msra.mxu0 0
        %2589 = vmatprep.subr.bf16.mxu0 0
        %2590 = vmatpush1.bf16.xpose.msra.mxu0 0
        %2591 = vmatprep.subr.bf16.mxu0 0
        %2592 = vmatpush1.bf16.xpose.msra.mxu0 0
        %2593 = vmatprep.subr.bf16.mxu0 0
        %2594 = vmatpush1.bf16.xpose.msra.mxu0 0
        %2595 = vmatprep.subr.bf16.mxu0 0
        %2596 = vmatpush1.bf16.xpose.msra.mxu0 0
        %2597 = vmatprep.subr.bf16.mxu0 0
        %2598 = vmatpush1.bf16.xpose.msra.mxu0 0
        %2599 = vmatprep.subr.bf16.mxu0 0
        %2600 = vmatpush1.bf16.xpose.msra.mxu0 0
        %2601 = vmatprep.subr.bf16.mxu0 0
        %2602 = vmatpush1.bf16.xpose.msra.mxu0 0
        %2603 = vmatprep.mubr.bf16.mxu0 0
        %2604 = vmatmul.mubr.bf16.gmra.mrb[0].mxu0 %v2566
        %v2605 = vpop.f32.mrb[0].mxu0
        %v2606 = vadd.f32 0.0, %v2605
        %v2607 = vpop.f32.mrb[0].mxu0
        %v2608 = vpop.f32.mrb[0].mxu0
        %v2609 = vpop.f32.mrb[0].mxu0
        %2610 = vdwg.mxu0
        %v2611 = vmul.f32 %v2284, 0.35355338
        %v2612 = vmul.f32 %v2330, 0.35355338
        %v2613 = vmul.f32 %v2376, 0.35355338
        %v2614 = vmul.f32 %v2422, 0.35355338
        %v2615 = vmul.f32 %v2468, 0.35355338
        %v2616 = vmul.f32 %v2514, 0.35355338
        %v2617 = vmul.f32 %v2560, 0.35355338
        %v2618 = vmul.f32 %v2606, 0.35355338
        %v2619 = vsel %vm1136, %v2611, -inf
        %2620 = vmax.xlane.f32.xlu0 %v2619
        %v2621 = vpop.xlane.xlu0 %2620
        %v2622 = vsel %vm1136, %v2612, -inf
        %2623 = vmax.xlane.f32.xlu0 %v2622
        %v2624 = vpop.xlane.xlu0 %2623
        %v2625 = vsel %vm1136, %v2613, -inf
        %2626 = vmax.xlane.f32.xlu0 %v2625
        %v2627 = vpop.xlane.xlu0 %2626
        %v2628 = vsel %vm1136, %v2614, -inf
        %2629 = vmax.xlane.f32.xlu0 %v2628
        %v2630 = vpop.xlane.xlu0 %2629
        %v2631 = vsel %vm1136, %v2615, -inf
        %2632 = vmax.xlane.f32.xlu0 %v2631
        %v2633 = vpop.xlane.xlu0 %2632
        %v2634 = vsel %vm1136, %v2616, -inf
        %2635 = vmax.xlane.f32.xlu0 %v2634
        %v2636 = vpop.xlane.xlu0 %2635
        %v2637 = vsel %vm1136, %v2617, -inf
        %2638 = vmax.xlane.f32.xlu0 %v2637
        %v2639 = vpop.xlane.xlu0 %2638
        %v2640 = vsel %vm1136, %v2618, -inf
        %2641 = vmax.xlane.f32.xlu0 %v2640
        %v2642 = vpop.xlane.xlu0 %2641
        %v2643 = vsub.f32 %v2611, %v2621
        %v2644 = vsub.f32 %v2612, %v2624
        %v2645 = vsub.f32 %v2613, %v2627
        %v2646 = vsub.f32 %v2614, %v2630
        %v2647 = vsub.f32 %v2615, %v2633
        %v2648 = vsub.f32 %v2616, %v2636
        %v2649 = vsub.f32 %v2617, %v2639
        %v2650 = vsub.f32 %v2618, %v2642
        %v2651 = vmul.f32 %v2643, 1.442695
        %v2652 = vpow.pop %v2651
        %v2653 = vmul.f32 %v2644, 1.442695
        %v2654 = vpow.pop %v2653
        %v2655 = vmul.f32 %v2645, 1.442695
        %v2656 = vpow.pop %v2655
        %v2657 = vmul.f32 %v2646, 1.442695
        %v2658 = vpow.pop %v2657
        %v2659 = vmul.f32 %v2647, 1.442695
        %v2660 = vpow.pop %v2659
        %v2661 = vmul.f32 %v2648, 1.442695
        %v2662 = vpow.pop %v2661
        %v2663 = vmul.f32 %v2649, 1.442695
        %v2664 = vpow.pop %v2663
        %v2665 = vmul.f32 %v2650, 1.442695
        %v2666 = vpow.pop %v2665
        %v2667 = vsel %vm1136, %v2652, 0.0
        %2668 = vadd.xlane.f32.xlu0 %v2667
        %v2669 = vpop.xlane.xlu0 %2668
        %v2670 = vsel %vm1136, %v2654, 0.0
        %2671 = vadd.xlane.f32.xlu0 %v2670
        %v2672 = vpop.xlane.xlu0 %2671
        %v2673 = vsel %vm1136, %v2656, 0.0
        %2674 = vadd.xlane.f32.xlu0 %v2673
        %v2675 = vpop.xlane.xlu0 %2674
        %v2676 = vsel %vm1136, %v2658, 0.0
        %2677 = vadd.xlane.f32.xlu0 %v2676
        %v2678 = vpop.xlane.xlu0 %2677
        %v2679 = vsel %vm1136, %v2660, 0.0
        %2680 = vadd.xlane.f32.xlu0 %v2679
        %v2681 = vpop.xlane.xlu0 %2680
        %v2682 = vsel %vm1136, %v2662, 0.0
        %2683 = vadd.xlane.f32.xlu0 %v2682
        %v2684 = vpop.xlane.xlu0 %2683
        %v2685 = vsel %vm1136, %v2664, 0.0
        %2686 = vadd.xlane.f32.xlu0 %v2685
        %v2687 = vpop.xlane.xlu0 %2686
        %v2688 = vsel %vm1136, %v2666, 0.0
        %2689 = vadd.xlane.f32.xlu0 %v2688
        %v2690 = vpop.xlane.xlu0 %2689
        %v2691 = vrcp.pop %v2669
        %v2692 = vrcp.pop %v2672
        %v2693 = vrcp.pop %v2675
        %v2694 = vrcp.pop %v2678
        %v2695 = vrcp.pop %v2681
        %v2696 = vrcp.pop %v2684
        %v2697 = vrcp.pop %v2687
        %v2698 = vrcp.pop %v2690
        %v2699 = vmul.f32 %v2652, %v2691
        %v2700 = vmul.f32 %v2654, %v2692
        %v2701 = vmul.f32 %v2656, %v2693
        %v2702 = vmul.f32 %v2658, %v2694
        %v2703 = vmul.f32 %v2660, %v2695
        %v2704 = vmul.f32 %v2662, %v2696
        %v2705 = vmul.f32 %v2664, %v2697
        %v2706 = vmul.f32 %v2666, %v2698
        %v2711 = vlaneseq
        %v2712 = vshrl.u32 %v2711, 7
        %v2713 = vsub.s32 0, %v2712
        %v2714 = vrot.slane %v2005, %v2713
        %v2715 = vlaneseq
        %v2716 = vshrl.u32 %v2715, 7
        %v2717 = vsub.s32 0, %v2716
        %v2718 = vrot.slane %v2006, %v2717
        %v2719 = vlaneseq
        %v2720 = vshrl.u32 %v2719, 7
        %v2721 = vsub.s32 0, %v2720
        %v2722 = vrot.slane %v2007, %v2721
        %v2723 = vlaneseq
        %v2724 = vshrl.u32 %v2723, 7
        %v2725 = vsub.s32 0, %v2724
        %v2726 = vrot.slane %v2008, %v2725
        %2727 = vset.pattern.permute.xlu0 0
        %2728 = vperm.xlu0 %2727, %v2714
        %v2729 = vpop.permute.xlu0 %2728
        %2731 = vset.pattern.permute.xlu0 0
        %2732 = vperm.xlu0 %2731, %v2718
        %v2733 = vpop.permute.xlu0 %2732
        %2735 = vset.pattern.permute.xlu0 0
        %2736 = vperm.xlu0 %2735, %v2722
        %v2737 = vpop.permute.xlu0 %2736
        %2739 = vset.pattern.permute.xlu0 0
        %2740 = vperm.xlu0 %2739, %v2726
        %v2741 = vpop.permute.xlu0 %2740
        %v2743 = vmul.f32 %v2729, %v2703
        %v2744 = vmul.f32 %v2733, %v2704
        %v2745 = vmul.f32 %v2737, %v2705
        %v2746 = vmul.f32 %v2741, %v2706
        %v2747 = vsub.f32 %v2699, %v2743
        %v2748 = vsub.f32 %v2700, %v2744
        %v2749 = vsub.f32 %v2701, %v2745
        %v2750 = vsub.f32 %v2702, %v2746
        %v2751 = vsel %vm1136, %v2747, -inf
        %2752 = vmax.xlane.f32.xlu0 %v2751
        %v2753 = vpop.xlane.xlu0 %2752
        %v2754 = vsel %vm1136, %v2748, -inf
        %2755 = vmax.xlane.f32.xlu0 %v2754
        %v2756 = vpop.xlane.xlu0 %2755
        %v2757 = vsel %vm1136, %v2749, -inf
        %2758 = vmax.xlane.f32.xlu0 %v2757
        %v2759 = vpop.xlane.xlu0 %2758
        %v2760 = vsel %vm1136, %v2750, -inf
        %2761 = vmax.xlane.f32.xlu0 %v2760
        %v2762 = vpop.xlane.xlu0 %2761
        %v2763 = vsub.f32 %v2747, %v2753
        %v2764 = vsub.f32 %v2748, %v2756
        %v2765 = vsub.f32 %v2749, %v2759
        %v2766 = vsub.f32 %v2750, %v2762
        %v2767 = vmul.f32 %v2763, 1.442695
        %v2768 = vpow.pop %v2767
        %v2769 = vmul.f32 %v2764, 1.442695
        %v2770 = vpow.pop %v2769
        %v2771 = vmul.f32 %v2765, 1.442695
        %v2772 = vpow.pop %v2771
        %v2773 = vmul.f32 %v2766, 1.442695
        %v2774 = vpow.pop %v2773
        %v2775 = vsel %vm1136, %v2768, 0.0
        %2776 = vadd.xlane.f32.xlu0 %v2775
        %v2777 = vpop.xlane.xlu0 %2776
        %v2778 = vsel %vm1136, %v2770, 0.0
        %2779 = vadd.xlane.f32.xlu0 %v2778
        %v2780 = vpop.xlane.xlu0 %2779
        %v2781 = vsel %vm1136, %v2772, 0.0
        %2782 = vadd.xlane.f32.xlu0 %v2781
        %v2783 = vpop.xlane.xlu0 %2782
        %v2784 = vsel %vm1136, %v2774, 0.0
        %2785 = vadd.xlane.f32.xlu0 %v2784
        %v2786 = vpop.xlane.xlu0 %2785
        %v2787 = vrcp.pop %v2777
        %v2788 = vrcp.pop %v2780
        %v2789 = vrcp.pop %v2783
        %v2790 = vrcp.pop %v2786
        %v2791 = vmul.f32 %v2768, %v2787
        %v2792 = vmul.f32 %v2770, %v2788
        %v2793 = vmul.f32 %v2772, %v2789
        %v2794 = vmul.f32 %v2774, %v2790
        %v2795 = vpack.c.bf16 %v2791, %v2791
        %v2796 = vpack.c.bf16 %v2792, %v2792
        %v2797 = vpack.c.bf16 %v2793, %v2793
        %v2798 = vpack.c.bf16 %v2794, %v2794
        %v2799 = vpack.c.bf16 %v2168, %v2168
        %v2800 = vpack.c.bf16 %v2219, %v2219
        %v2801 = vpack.c.bf16 %v2222, %v2222
        %v2802 = vpack.c.bf16 %v2225, %v2225
        %v2804 = vsel %vm1136, %v2795, 0
        %v2807 = vsel %vm1700, %v2799, 0
        %2809 = vmatprep.subr.bf16.mxu0 0
        %2810 = vmatpush1.bf16.msra.mxu0 %v2807
        %2811 = vmatprep.subr.bf16.mxu0 0
        %2812 = vmatpush1.bf16.msra.mxu0 0
        %2813 = vmatprep.subr.bf16.mxu0 0
        %2814 = vmatpush1.bf16.msra.mxu0 0
        %2815 = vmatprep.subr.bf16.mxu0 0
        %2816 = vmatpush1.bf16.msra.mxu0 0
        %2817 = vmatprep.subr.bf16.mxu0 0
        %2818 = vmatpush1.bf16.msra.mxu0 0
        %2819 = vmatprep.subr.bf16.mxu0 0
        %2820 = vmatpush1.bf16.msra.mxu0 0
        %2821 = vmatprep.subr.bf16.mxu0 0
        %2822 = vmatpush1.bf16.msra.mxu0 0
        %2823 = vmatprep.subr.bf16.mxu0 0
        %2824 = vmatpush1.bf16.msra.mxu0 0
        %2825 = vmatprep.subr.bf16.mxu0 0
        %2826 = vmatpush1.bf16.msra.mxu0 0
        %2827 = vmatprep.subr.bf16.mxu0 0
        %2828 = vmatpush1.bf16.msra.mxu0 0
        %2829 = vmatprep.subr.bf16.mxu0 0
        %2830 = vmatpush1.bf16.msra.mxu0 0
        %2831 = vmatprep.subr.bf16.mxu0 0
        %2832 = vmatpush1.bf16.msra.mxu0 0
        %2833 = vmatprep.subr.bf16.mxu0 0
        %2834 = vmatpush1.bf16.msra.mxu0 0
        %2835 = vmatprep.subr.bf16.mxu0 0
        %2836 = vmatpush1.bf16.msra.mxu0 0
        %2837 = vmatprep.subr.bf16.mxu0 0
        %2838 = vmatpush1.bf16.msra.mxu0 0
        %2839 = vmatprep.subr.bf16.mxu0 0
        %2840 = vmatpush1.bf16.msra.mxu0 0
        %2841 = vmatprep.mubr.bf16.mxu0 0
        %2842 = vmatmul.mubr.bf16.gmra.mrb[0].mxu0 %v2804
        %v2843 = vpop.f32.mrb[0].mxu0
        %v2844 = vadd.f32 0.0, %v2843
        %v2845 = vpop.f32.mrb[0].mxu0
        %v2846 = vpop.f32.mrb[0].mxu0
        %v2847 = vpop.f32.mrb[0].mxu0
        %2848 = vdwg.mxu0
        %v2850 = vsel %vm1136, %v2796, 0
        %v2853 = vsel %vm1700, %v2800, 0
        %2855 = vmatprep.subr.bf16.mxu0 0
        %2856 = vmatpush1.bf16.msra.mxu0 %v2853
        %2857 = vmatprep.subr.bf16.mxu0 0
        %2858 = vmatpush1.bf16.msra.mxu0 0
        %2859 = vmatprep.subr.bf16.mxu0 0
        %2860 = vmatpush1.bf16.msra.mxu0 0
        %2861 = vmatprep.subr.bf16.mxu0 0
        %2862 = vmatpush1.bf16.msra.mxu0 0
        %2863 = vmatprep.subr.bf16.mxu0 0
        %2864 = vmatpush1.bf16.msra.mxu0 0
        %2865 = vmatprep.subr.bf16.mxu0 0
        %2866 = vmatpush1.bf16.msra.mxu0 0
        %2867 = vmatprep.subr.bf16.mxu0 0
        %2868 = vmatpush1.bf16.msra.mxu0 0
        %2869 = vmatprep.subr.bf16.mxu0 0
        %2870 = vmatpush1.bf16.msra.mxu0 0
        %2871 = vmatprep.subr.bf16.mxu0 0
        %2872 = vmatpush1.bf16.msra.mxu0 0
        %2873 = vmatprep.subr.bf16.mxu0 0
        %2874 = vmatpush1.bf16.msra.mxu0 0
        %2875 = vmatprep.subr.bf16.mxu0 0
        %2876 = vmatpush1.bf16.msra.mxu0 0
        %2877 = vmatprep.subr.bf16.mxu0 0
        %2878 = vmatpush1.bf16.msra.mxu0 0
        %2879 = vmatprep.subr.bf16.mxu0 0
        %2880 = vmatpush1.bf16.msra.mxu0 0
        %2881 = vmatprep.subr.bf16.mxu0 0
        %2882 = vmatpush1.bf16.msra.mxu0 0
        %2883 = vmatprep.subr.bf16.mxu0 0
        %2884 = vmatpush1.bf16.msra.mxu0 0
        %2885 = vmatprep.subr.bf16.mxu0 0
        %2886 = vmatpush1.bf16.msra.mxu0 0
        %2887 = vmatprep.mubr.bf16.mxu0 0
        %2888 = vmatmul.mubr.bf16.gmra.mrb[0].mxu0 %v2850
        %v2889 = vpop.f32.mrb[0].mxu0
        %v2890 = vadd.f32 0.0, %v2889
        %v2891 = vpop.f32.mrb[0].mxu0
        %v2892 = vpop.f32.mrb[0].mxu0
        %v2893 = vpop.f32.mrb[0].mxu0
        %2894 = vdwg.mxu0
        %v2896 = vsel %vm1136, %v2797, 0
        %v2899 = vsel %vm1700, %v2801, 0
        %2901 = vmatprep.subr.bf16.mxu0 0
        %2902 = vmatpush1.bf16.msra.mxu0 %v2899
        %2903 = vmatprep.subr.bf16.mxu0 0
        %2904 = vmatpush1.bf16.msra.mxu0 0
        %2905 = vmatprep.subr.bf16.mxu0 0
        %2906 = vmatpush1.bf16.msra.mxu0 0
        %2907 = vmatprep.subr.bf16.mxu0 0
        %2908 = vmatpush1.bf16.msra.mxu0 0
        %2909 = vmatprep.subr.bf16.mxu0 0
        %2910 = vmatpush1.bf16.msra.mxu0 0
        %2911 = vmatprep.subr.bf16.mxu0 0
        %2912 = vmatpush1.bf16.msra.mxu0 0
        %2913 = vmatprep.subr.bf16.mxu0 0
        %2914 = vmatpush1.bf16.msra.mxu0 0
        %2915 = vmatprep.subr.bf16.mxu0 0
        %2916 = vmatpush1.bf16.msra.mxu0 0
        %2917 = vmatprep.subr.bf16.mxu0 0
        %2918 = vmatpush1.bf16.msra.mxu0 0
        %2919 = vmatprep.subr.bf16.mxu0 0
        %2920 = vmatpush1.bf16.msra.mxu0 0
        %2921 = vmatprep.subr.bf16.mxu0 0
        %2922 = vmatpush1.bf16.msra.mxu0 0
        %2923 = vmatprep.subr.bf16.mxu0 0
        %2924 = vmatpush1.bf16.msra.mxu0 0
        %2925 = vmatprep.subr.bf16.mxu0 0
        %2926 = vmatpush1.bf16.msra.mxu0 0
        %2927 = vmatprep.subr.bf16.mxu0 0
        %2928 = vmatpush1.bf16.msra.mxu0 0
        %2929 = vmatprep.subr.bf16.mxu0 0
        %2930 = vmatpush1.bf16.msra.mxu0 0
        %2931 = vmatprep.subr.bf16.mxu0 0
        %2932 = vmatpush1.bf16.msra.mxu0 0
        %2933 = vmatprep.mubr.bf16.mxu0 0
        %2934 = vmatmul.mubr.bf16.gmra.mrb[0].mxu0 %v2896
        %v2935 = vpop.f32.mrb[0].mxu0
        %v2936 = vadd.f32 0.0, %v2935
        %v2937 = vpop.f32.mrb[0].mxu0
        %v2938 = vpop.f32.mrb[0].mxu0
        %v2939 = vpop.f32.mrb[0].mxu0
        %2940 = vdwg.mxu0
        %v2942 = vsel %vm1136, %v2798, 0
        %v2945 = vsel %vm1700, %v2802, 0
        %2947 = vmatprep.subr.bf16.mxu0 0
        %2948 = vmatpush1.bf16.msra.mxu0 %v2945
        %2949 = vmatprep.subr.bf16.mxu0 0
        %2950 = vmatpush1.bf16.msra.mxu0 0
        %2951 = vmatprep.subr.bf16.mxu0 0
        %2952 = vmatpush1.bf16.msra.mxu0 0
        %2953 = vmatprep.subr.bf16.mxu0 0
        %2954 = vmatpush1.bf16.msra.mxu0 0
        %2955 = vmatprep.subr.bf16.mxu0 0
        %2956 = vmatpush1.bf16.msra.mxu0 0
        %2957 = vmatprep.subr.bf16.mxu0 0
        %2958 = vmatpush1.bf16.msra.mxu0 0
        %2959 = vmatprep.subr.bf16.mxu0 0
        %2960 = vmatpush1.bf16.msra.mxu0 0
        %2961 = vmatprep.subr.bf16.mxu0 0
        %2962 = vmatpush1.bf16.msra.mxu0 0
        %2963 = vmatprep.subr.bf16.mxu0 0
        %2964 = vmatpush1.bf16.msra.mxu0 0
        %2965 = vmatprep.subr.bf16.mxu0 0
        %2966 = vmatpush1.bf16.msra.mxu0 0
        %2967 = vmatprep.subr.bf16.mxu0 0
        %2968 = vmatpush1.bf16.msra.mxu0 0
        %2969 = vmatprep.subr.bf16.mxu0 0
        %2970 = vmatpush1.bf16.msra.mxu0 0
        %2971 = vmatprep.subr.bf16.mxu0 0
        %2972 = vmatpush1.bf16.msra.mxu0 0
        %2973 = vmatprep.subr.bf16.mxu0 0
        %2974 = vmatpush1.bf16.msra.mxu0 0
        %2975 = vmatprep.subr.bf16.mxu0 0
        %2976 = vmatpush1.bf16.msra.mxu0 0
        %2977 = vmatprep.subr.bf16.mxu0 0
        %2978 = vmatpush1.bf16.msra.mxu0 0
        %2979 = vmatprep.mubr.bf16.mxu0 0
        %2980 = vmatmul.mubr.bf16.gmra.mrb[0].mxu0 %v2942
        %v2981 = vpop.f32.mrb[0].mxu0
        %v2982 = vadd.f32 0.0, %v2981
        %v2983 = vpop.f32.mrb[0].mxu0
        %v2984 = vpop.f32.mrb[0].mxu0
        %v2985 = vpop.f32.mrb[0].mxu0
        %2986 = vdwg.mxu0
        %2988 = vrot.lane.b32.xlu0 %v2890, 8
        %v2989 = vpop.permute.xlu0 %2988
        %2992 = vrot.lane.b32.xlu0 %v2936, 16
        %v2993 = vpop.permute.xlu0 %2992
        %2996 = vrot.lane.b32.xlu0 %v2982, 24
        %v2997 = vpop.permute.xlu0 %2996
        %v2999 = vsel %vm1136, %v2844, %v2989
        %v3000 = vsel %vm1895, %v2999, %v2993
        %v3001 = vsel %vm1897, %v3000, %v2997
        %v3002 = vmul.f32 %v3001, %v3001
        %v3003 = vsel %vm831, %v3002, 0.0
        %3004 = vadd.xlane.f32.xlu0 %v3003
        %v3005 = vpop.xlane.xlu0 %3004
        %v3006 = vmul.f32 %v3005, %v835
        %v3007 = vadd.f32 %v3006, 1e-06
        %v3008 = vrsqrt.pop %v3007
        %v3009 = vmul.f32 %v3001, %v3008
        %v3011 = vlaneseq
        %v3012 = vshrl.u32 %v3011, 7
        %v3013 = vsub.s32 0, %v3012
        %v3014 = vrot.slane %v2004, %v3013
        %v3016 = vmul.f32 %v3009, %v3014
        %v3017 = vpack.c.bf16 %v3016, %v3016
        %v3022 = vunpack.c.l.b16 %v2000
        %v3023 = vunpack.c.l.b16 %v2001
        %v3024 = vunpack.c.l.b16 %v2002
        %v3025 = vunpack.c.l.b16 %v2003
        %v3026 = vpack.c.b16 %v3023, %v3022
        %v3027 = vpack.c.b16 %v3025, %v3024
        %v3031 = vsel %vm831, %v3017, 0
        %3033 = vmatprep.subr.bf16.mxu0 0
        %3034 = vmatpush1.bf16.msra.mxu0 %v3026
        %3035 = vmatprep.subr.bf16.mxu0 0
        %3036 = vmatpush1.bf16.msra.mxu0 %v3027
        %3037 = vmatprep.subr.bf16.mxu0 0
        %3038 = vmatpush1.bf16.msra.mxu0 0
        %3039 = vmatprep.subr.bf16.mxu0 0
        %3040 = vmatpush1.bf16.msra.mxu0 0
        %3041 = vmatprep.subr.bf16.mxu0 0
        %3042 = vmatpush1.bf16.msra.mxu0 0
        %3043 = vmatprep.subr.bf16.mxu0 0
        %3044 = vmatpush1.bf16.msra.mxu0 0
        %3045 = vmatprep.subr.bf16.mxu0 0
        %3046 = vmatpush1.bf16.msra.mxu0 0
        %3047 = vmatprep.subr.bf16.mxu0 0
        %3048 = vmatpush1.bf16.msra.mxu0 0
        %3049 = vmatprep.subr.bf16.mxu0 0
        %3050 = vmatpush1.bf16.msra.mxu0 0
        %3051 = vmatprep.subr.bf16.mxu0 0
        %3052 = vmatpush1.bf16.msra.mxu0 0
        %3053 = vmatprep.subr.bf16.mxu0 0
        %3054 = vmatpush1.bf16.msra.mxu0 0
        %3055 = vmatprep.subr.bf16.mxu0 0
        %3056 = vmatpush1.bf16.msra.mxu0 0
        %3057 = vmatprep.subr.bf16.mxu0 0
        %3058 = vmatpush1.bf16.msra.mxu0 0
        %3059 = vmatprep.subr.bf16.mxu0 0
        %3060 = vmatpush1.bf16.msra.mxu0 0
        %3061 = vmatprep.subr.bf16.mxu0 0
        %3062 = vmatpush1.bf16.msra.mxu0 0
        %3063 = vmatprep.subr.bf16.mxu0 0
        %3064 = vmatpush1.bf16.msra.mxu0 0
        %3065 = vmatprep.mubr.bf16.mxu0 0
        %3066 = vmatmul.mubr.bf16.gmra.mrb[0].mxu0 %v3031
        %v3067 = vpop.f32.mrb[0].mxu0
        %v3068 = vadd.f32 0.0, %v3067
        %v3069 = vpop.f32.mrb[0].mxu0
        %v3070 = vpop.f32.mrb[0].mxu0
        %v3071 = vpop.f32.mrb[0].mxu0
        %3072 = vdwg.mxu0
        %v3073 = vadd.f32 %v1971, %v3068
        %v3074 = vld [vmem:[#allocation2] sm:$0x1]
        %v3075 = vmul.f32 %v3073, %v3073
        %v3076 = vsel %vm831, %v3075, 0.0
        %3077 = vadd.xlane.f32.xlu0 %v3076
        %v3078 = vpop.xlane.xlu0 %3077
        %v3079 = vmul.f32 %v3078, %v835
        %v3080 = vadd.f32 %v3079, 1e-06
        %v3081 = vrsqrt.pop %v3080
        %v3082 = vmul.f32 %v3073, %v3081
        %v3084 = vlaneseq
        %v3085 = vshrl.u32 %v3084, 7
        %v3086 = vsub.s32 0, %v3085
        %v3087 = vrot.slane %v3074, %v3086
        %v3089 = vmul.f32 %v3082, %v3087
        %v3090 = vld [vmem:[#allocation7] sm:$0xf]
        %v3091 = vld [vmem:[#allocation7 + $0x4] sm:$0xf]
        %v3092 = vld [vmem:[#allocation7 + $0x8] sm:$0xf]
        %v3093 = vld [vmem:[#allocation7 + $0xc] sm:$0xf]
        %v3094 = vpack.c.bf16 %v3089, %v3089
        %v3095 = vld [vmem:[%s19] sm:$0x1]
        %v3097 = vlaneseq
        %v3098 = vshrl.u32 %v3097, 7
        %v3099 = vsub.s32 0, %v3098
        %v3100 = vrot.slane %v3095, %v3099
        %v3106 = vunpack.c.l.b16 %v3090
        %v3107 = vunpack.c.l.b16 %v3091
        %v3108 = vunpack.c.l.b16 %v3092
        %v3109 = vunpack.c.l.b16 %v3093
        %v3110 = vpack.c.b16 %v3107, %v3106
        %v3111 = vpack.c.b16 %v3109, %v3108
        %v3115 = vsel %vm831, %v3094, 0
        %3117 = vmatprep.subr.bf16.mxu0 0
        %3118 = vmatpush1.bf16.msra.mxu0 %v3110
        %3119 = vmatprep.subr.bf16.mxu0 0
        %3120 = vmatpush1.bf16.msra.mxu0 %v3111
        %3121 = vmatprep.subr.bf16.mxu0 0
        %3122 = vmatpush1.bf16.msra.mxu0 0
        %3123 = vmatprep.subr.bf16.mxu0 0
        %3124 = vmatpush1.bf16.msra.mxu0 0
        %3125 = vmatprep.subr.bf16.mxu0 0
        %3126 = vmatpush1.bf16.msra.mxu0 0
        %3127 = vmatprep.subr.bf16.mxu0 0
        %3128 = vmatpush1.bf16.msra.mxu0 0
        %3129 = vmatprep.subr.bf16.mxu0 0
        %3130 = vmatpush1.bf16.msra.mxu0 0
        %3131 = vmatprep.subr.bf16.mxu0 0
        %3132 = vmatpush1.bf16.msra.mxu0 0
        %3133 = vmatprep.subr.bf16.mxu0 0
        %3134 = vmatpush1.bf16.msra.mxu0 0
        %3135 = vmatprep.subr.bf16.mxu0 0
        %3136 = vmatpush1.bf16.msra.mxu0 0
        %3137 = vmatprep.subr.bf16.mxu0 0
        %3138 = vmatpush1.bf16.msra.mxu0 0
        %3139 = vmatprep.subr.bf16.mxu0 0
        %3140 = vmatpush1.bf16.msra.mxu0 0
        %3141 = vmatprep.subr.bf16.mxu0 0
        %3142 = vmatpush1.bf16.msra.mxu0 0
        %3143 = vmatprep.subr.bf16.mxu0 0
        %3144 = vmatpush1.bf16.msra.mxu0 0
        %3145 = vmatprep.subr.bf16.mxu0 0
        %3146 = vmatpush1.bf16.msra.mxu0 0
        %3147 = vmatprep.subr.bf16.mxu0 0
        %3148 = vmatpush1.bf16.msra.mxu0 0
        %3149 = vmatprep.mubr.bf16.mxu0 0
        %3150 = vmatmul.mubr.bf16.gmra.mrb[0].mxu0 %v3115
        %v3151 = vpop.f32.mrb[0].mxu0
        %v3152 = vadd.f32 %v3100, %v3151
        %v3153 = vpop.f32.mrb[0].mxu0
        %v3154 = vpop.f32.mrb[0].mxu0
        %v3155 = vpop.f32.mrb[0].mxu0
        %3156 = vdwg.mxu0
        %v3157 = vld [vmem:[%s20] sm:$0xff]
        %v3158 = vld [vmem:[%s20 + $0x8] sm:$0xf]
        %v3159 = vld [vmem:[%s20 + $0xc] sm:$0xff]
        %v3160 = vld [vmem:[%s20 + $0x14] sm:$0xf]
        %v3161 = vld [vmem:[%s20 + $0x18] sm:$0xff]
        %v3162 = vld [vmem:[%s20 + $0x20] sm:$0xf]
        %v3163 = vld [vmem:[%s20 + $0x24] sm:$0xff]
        %v3164 = vld [vmem:[%s20 + $0x2c] sm:$0xf]
        %v3165 = vld [vmem:[%s20 + $0x30] sm:$0xff]
        %v3166 = vld [vmem:[%s20 + $0x38] sm:$0xf]
        %v3167 = vld [vmem:[%s20 + $0x3c] sm:$0xff]
        %v3168 = vld [vmem:[%s20 + $0x44] sm:$0xf]
        %v3169 = vld [vmem:[%s20 + $0x48] sm:$0xff]
        %v3170 = vld [vmem:[%s20 + $0x50] sm:$0xf]
        %v3171 = vld [vmem:[%s20 + $0x54] sm:$0xff]
        %v3172 = vld [vmem:[%s20 + $0x5c] sm:$0xf]
        %v3173 = vpack.c.bf16 %v3152, %v3152
        %v3190 = vunpack.c.l.b16 %v3157
        %v3191 = vunpack.c.h.b16 %v3157
        %v3192 = vunpack.c.l.b16 %v3158
        %v3193 = vunpack.c.l.b16 %v3159
        %v3194 = vunpack.c.h.b16 %v3159
        %v3195 = vunpack.c.l.b16 %v3160
        %v3196 = vunpack.c.l.b16 %v3161
        %v3197 = vunpack.c.h.b16 %v3161
        %v3198 = vunpack.c.l.b16 %v3162
        %v3199 = vunpack.c.l.b16 %v3163
        %v3200 = vunpack.c.h.b16 %v3163
        %v3201 = vunpack.c.l.b16 %v3164
        %v3202 = vunpack.c.l.b16 %v3165
        %v3203 = vunpack.c.h.b16 %v3165
        %v3204 = vunpack.c.l.b16 %v3166
        %v3205 = vunpack.c.l.b16 %v3167
        %v3206 = vunpack.c.h.b16 %v3167
        %v3207 = vunpack.c.l.b16 %v3168
        %v3208 = vunpack.c.l.b16 %v3169
        %v3209 = vunpack.c.h.b16 %v3169
        %v3210 = vunpack.c.l.b16 %v3170
        %v3211 = vunpack.c.l.b16 %v3171
        %v3212 = vunpack.c.h.b16 %v3171
        %v3213 = vunpack.c.l.b16 %v3172
        %v3214 = vpack.c.b16 %v3193, %v3190
        %v3215 = vpack.c.b16 %v3194, %v3191
        %v3216 = vpack.c.b16 %v3195, %v3192
        %v3217 = vpack.c.b16 %v3199, %v3196
        %v3218 = vpack.c.b16 %v3200, %v3197
        %v3219 = vpack.c.b16 %v3201, %v3198
        %v3220 = vpack.c.b16 %v3205, %v3202
        %v3221 = vpack.c.b16 %v3206, %v3203
        %v3222 = vpack.c.b16 %v3207, %v3204
        %v3223 = vpack.c.b16 %v3211, %v3208
        %v3224 = vpack.c.b16 %v3212, %v3209
        %v3225 = vpack.c.b16 %v3213, %v3210
        %vm3238 = vcmask 523264
        %v3240 = vsel %vm3238, %v3173, 0
        %3242 = vmatprep.subr.bf16.mxu0 %v3215
        %3243 = vmatpush1.bf16.msra.mxu0 %v3214
        %3244 = vmatprep.subr.bf16.mxu0 %v3218
        %3245 = vmatpush1.bf16.msra.mxu0 %v3217
        %3246 = vmatprep.subr.bf16.mxu0 %v3221
        %3247 = vmatpush1.bf16.msra.mxu0 %v3220
        %3248 = vmatprep.subr.bf16.mxu0 %v3224
        %3249 = vmatpush1.bf16.msra.mxu0 %v3223
        %3250 = vmatprep.subr.bf16.mxu0 0
        %3251 = vmatpush1.bf16.msra.mxu0 0
        %3252 = vmatprep.subr.bf16.mxu0 0
        %3253 = vmatpush1.bf16.msra.mxu0 0
        %3254 = vmatprep.subr.bf16.mxu0 0
        %3255 = vmatpush1.bf16.msra.mxu0 0
        %3256 = vmatprep.subr.bf16.mxu0 0
        %3257 = vmatpush1.bf16.msra.mxu0 0
        %3258 = vmatprep.subr.bf16.mxu0 0
        %3259 = vmatpush1.bf16.msra.mxu0 0
        %3260 = vmatprep.subr.bf16.mxu0 0
        %3261 = vmatpush1.bf16.msra.mxu0 0
        %3262 = vmatprep.subr.bf16.mxu0 0
        %3263 = vmatpush1.bf16.msra.mxu0 0
        %3264 = vmatprep.subr.bf16.mxu0 0
        %3265 = vmatpush1.bf16.msra.mxu0 0
        %3266 = vmatprep.subr.bf16.mxu0 0
        %3267 = vmatpush1.bf16.msra.mxu0 0
        %3268 = vmatprep.subr.bf16.mxu0 0
        %3269 = vmatpush1.bf16.msra.mxu0 0
        %3270 = vmatprep.subr.bf16.mxu0 0
        %3271 = vmatpush1.bf16.msra.mxu0 0
        %3272 = vmatprep.subr.bf16.mxu0 0
        %3273 = vmatpush1.bf16.msra.mxu0 0
        %3274 = vmatprep.mubr.bf16.mxu0 0
        %3275 = vmatmul.mubr.bf16.gmra.mrb[0].mxu0 %v3240
        %v3276 = vpop.f32.mrb[0].mxu0
        %v3277 = vadd.f32 0.0, %v3276
        %v3278 = vpop.f32.mrb[0].mxu0
        %v3279 = vadd.f32 0.0, %v3278
        %v3280 = vpop.f32.mrb[0].mxu0
        %v3281 = vpop.f32.mrb[0].mxu0
        %3282 = vdwg.mxu0
        %3283 = vmatprep.subr.bf16.mxu0 0
        %3284 = vmatpush1.bf16.msra.mxu0 %v3216
        %3285 = vmatprep.subr.bf16.mxu0 0
        %3286 = vmatpush1.bf16.msra.mxu0 %v3219
        %3287 = vmatprep.subr.bf16.mxu0 0
        %3288 = vmatpush1.bf16.msra.mxu0 %v3222
        %3289 = vmatprep.subr.bf16.mxu0 0
        %3290 = vmatpush1.bf16.msra.mxu0 %v3225
        %3291 = vmatprep.subr.bf16.mxu0 0
        %3292 = vmatpush1.bf16.msra.mxu0 0
        %3293 = vmatprep.subr.bf16.mxu0 0
        %3294 = vmatpush1.bf16.msra.mxu0 0
        %3295 = vmatprep.subr.bf16.mxu0 0
        %3296 = vmatpush1.bf16.msra.mxu0 0
        %3297 = vmatprep.subr.bf16.mxu0 0
        %3298 = vmatpush1.bf16.msra.mxu0 0
        %3299 = vmatprep.subr.bf16.mxu0 0
        %3300 = vmatpush1.bf16.msra.mxu0 0
        %3301 = vmatprep.subr.bf16.mxu0 0
        %3302 = vmatpush1.bf16.msra.mxu0 0
        %3303 = vmatprep.subr.bf16.mxu0 0
        %3304 = vmatpush1.bf16.msra.mxu0 0
        %3305 = vmatprep.subr.bf16.mxu0 0
        %3306 = vmatpush1.bf16.msra.mxu0 0
        %3307 = vmatprep.subr.bf16.mxu0 0
        %3308 = vmatpush1.bf16.msra.mxu0 0
        %3309 = vmatprep.subr.bf16.mxu0 0
        %3310 = vmatpush1.bf16.msra.mxu0 0
        %3311 = vmatprep.subr.bf16.mxu0 0
        %3312 = vmatpush1.bf16.msra.mxu0 0
        %3313 = vmatprep.subr.bf16.mxu0 0
        %3314 = vmatpush1.bf16.msra.mxu0 0
        %3315 = vmatprep.mubr.bf16.mxu0 0
        %3316 = vmatmul.mubr.bf16.gmra.mrb[0].mxu0 %v3240
        %v3317 = vpop.f32.mrb[0].mxu0
        %v3318 = vadd.f32 0.0, %v3317
        %v3319 = vpop.f32.mrb[0].mxu0
        %v3320 = vpop.f32.mrb[0].mxu0
        %v3321 = vpop.f32.mrb[0].mxu0
        %3322 = vdwg.mxu0
        %v3323 = vsub.f32 0.0, %v3277
        %v3324 = vsub.f32 0.0, %v3279
        %v3325 = vmul.f32 %v3323, 1.442695
        %v3326 = vpow.pop %v3325
        %v3327 = vmul.f32 %v3324, 1.442695
        %v3328 = vpow.pop %v3327
        %v3329 = vadd.f32 %v3326, 1.0
        %v3330 = vadd.f32 %v3328, 1.0
        %v3331 = vrcp.pop %v3329
        %v3332 = vrcp.pop %v3330
        %v3333 = vmul.f32 %v3277, %v3331
        %v3334 = vmul.f32 %v3279, %v3332
        %3337 = vrot.lane.b32.xlu0 %v3279, 86
        %v3338 = vpop.permute.xlu0 %3337
        %3339 = vrot.lane.b32.xlu0 %v3318, 86
        %v3340 = vpop.permute.xlu0 %3339
        %vm3341 = vcmask 703488
        %v3342 = vsel %vm3341, %v3338, %v3340
        %v3345 = vmul.f32 %v3333, %v3342
        %v3346 = vmul.f32 %v3334, %v3340
        %v3347 = vld [vmem:[%s21] sm:$0xf]
        %v3348 = vld [vmem:[%s21 + $0x4] sm:$0xf]
        %v3349 = vld [vmem:[%s21 + $0x8] sm:$0xf]
        %v3350 = vld [vmem:[%s21 + $0xc] sm:$0xf]
        %v3351 = vld [vmem:[%s21 + $0x10] sm:$0xf]
        %v3352 = vld [vmem:[%s21 + $0x14] sm:$0xf]
        %v3353 = vld [vmem:[%s21 + $0x18] sm:$0xf]
        %v3354 = vld [vmem:[%s21 + $0x1c] sm:$0xf]
        %v3355 = vld [vmem:[%s21 + $0x20] sm:$0xf]
        %v3356 = vld [vmem:[%s21 + $0x24] sm:$0xf]
        %v3357 = vld [vmem:[%s21 + $0x28] sm:$0xf]
        %v3358 = vld [vmem:[%s21 + $0x2c] sm:$0xf]
        %v3359 = vld [vmem:[%s21 + $0x30] sm:$0xf]
        %v3360 = vld [vmem:[%s21 + $0x34] sm:$0xf]
        %v3361 = vld [vmem:[%s21 + $0x38] sm:$0xf]
        %v3362 = vld [vmem:[%s21 + $0x3c] sm:$0xf]
        %v3363 = vld [vmem:[%s21 + $0x40] sm:$0xf]
        %v3364 = vld [vmem:[%s21 + $0x44] sm:$0xf]
        %v3365 = vld [vmem:[%s21 + $0x48] sm:$0xf]
        %v3366 = vld [vmem:[%s21 + $0x4c] sm:$0xf]
        %v3367 = vld [vmem:[%s21 + $0x50] sm:$0xf]
        %v3368 = vld [vmem:[%s21 + $0x54] sm:$0x1]
        %v3369 = vpack.c.bf16 %v3345, %v3345
        %v3370 = vpack.c.bf16 %v3346, %v3346
        %v3393 = vunpack.c.l.b16 %v3347
        %v3394 = vunpack.c.l.b16 %v3348
        %v3395 = vunpack.c.l.b16 %v3349
        %v3396 = vunpack.c.l.b16 %v3350
        %v3397 = vunpack.c.l.b16 %v3351
        %v3398 = vunpack.c.l.b16 %v3352
        %v3399 = vunpack.c.l.b16 %v3353
        %v3400 = vunpack.c.l.b16 %v3354
        %v3401 = vunpack.c.l.b16 %v3355
        %v3402 = vunpack.c.l.b16 %v3356
        %v3403 = vunpack.c.l.b16 %v3357
        %v3404 = vunpack.c.l.b16 %v3358
        %v3405 = vunpack.c.l.b16 %v3359
        %v3406 = vunpack.c.l.b16 %v3360
        %v3407 = vunpack.c.l.b16 %v3361
        %v3408 = vunpack.c.l.b16 %v3362
        %v3409 = vunpack.c.l.b16 %v3363
        %v3410 = vunpack.c.l.b16 %v3364
        %v3411 = vunpack.c.l.b16 %v3365
        %v3412 = vunpack.c.l.b16 %v3366
        %v3413 = vunpack.c.l.b16 %v3367
        %v3414 = vunpack.c.l.b16 %v3368
        %v3415 = vpack.c.b16 %v3394, %v3393
        %v3416 = vpack.c.b16 %v3396, %v3395
        %v3417 = vpack.c.b16 %v3398, %v3397
        %v3418 = vpack.c.b16 %v3400, %v3399
        %v3419 = vpack.c.b16 %v3402, %v3401
        %v3420 = vpack.c.b16 %v3404, %v3403
        %v3421 = vpack.c.b16 %v3406, %v3405
        %v3422 = vpack.c.b16 %v3408, %v3407
        %v3423 = vpack.c.b16 %v3410, %v3409
        %v3424 = vpack.c.b16 %v3412, %v3411
        %v3425 = vpack.c.b16 %v3414, %v3413
        %vm3436 = vcmask 343040
        %v3438 = vsel %vm3436, %v3370, 0
        %vm3440 = vcmask 1044480
        %v3442 = vsel %vm3440, %v3425, 0
        %3444 = vmatprep.subr.bf16.mxu0 0
        %3445 = vmatpush1.bf16.msra.mxu0 %v3415
        %3446 = vmatprep.subr.bf16.mxu0 0
        %3447 = vmatpush1.bf16.msra.mxu0 %v3416
        %3448 = vmatprep.subr.bf16.mxu0 0
        %3449 = vmatpush1.bf16.msra.mxu0 %v3417
        %3450 = vmatprep.subr.bf16.mxu0 0
        %3451 = vmatpush1.bf16.msra.mxu0 %v3418
        %3452 = vmatprep.subr.bf16.mxu0 0
        %3453 = vmatpush1.bf16.msra.mxu0 %v3419
        %3454 = vmatprep.subr.bf16.mxu0 0
        %3455 = vmatpush1.bf16.msra.mxu0 %v3420
        %3456 = vmatprep.subr.bf16.mxu0 0
        %3457 = vmatpush1.bf16.msra.mxu0 %v3421
        %3458 = vmatprep.subr.bf16.mxu0 0
        %3459 = vmatpush1.bf16.msra.mxu0 %v3422
        %3460 = vmatprep.subr.bf16.mxu0 0
        %3461 = vmatpush1.bf16.msra.mxu0 %v3423
        %3462 = vmatprep.subr.bf16.mxu0 0
        %3463 = vmatpush1.bf16.msra.mxu0 %v3424
        %3464 = vmatprep.subr.bf16.mxu0 0
        %3465 = vmatpush1.bf16.msra.mxu0 %v3442
        %3466 = vmatprep.subr.bf16.mxu0 0
        %3467 = vmatpush1.bf16.msra.mxu0 0
        %3468 = vmatprep.subr.bf16.mxu0 0
        %3469 = vmatpush1.bf16.msra.mxu0 0
        %3470 = vmatprep.subr.bf16.mxu0 0
        %3471 = vmatpush1.bf16.msra.mxu0 0
        %3472 = vmatprep.subr.bf16.mxu0 0
        %3473 = vmatpush1.bf16.msra.mxu0 0
        %3474 = vmatprep.subr.bf16.mxu0 0
        %3475 = vmatpush1.bf16.msra.mxu0 0
        %3476 = vmatprep.mubr.bf16.mxu0 %v3438
        %3477 = vmatmul.mubr.bf16.gmra.mrb[0].mxu0 %v3369
        %v3478 = vpop.f32.mrb[0].mxu0
        %v3479 = vadd.f32 0.0, %v3478
        %v3480 = vpop.f32.mrb[0].mxu0
        %v3481 = vpop.f32.mrb[0].mxu0
        %v3482 = vpop.f32.mrb[0].mxu0
        %3483 = vdwg.mxu0
        %v3484 = vld [vmem:[%s22] sm:$0xf]
        %v3485 = vld [vmem:[%s22 + $0x4] sm:$0xf]
        %v3486 = vld [vmem:[%s22 + $0x8] sm:$0xf]
        %v3487 = vld [vmem:[%s22 + $0xc] sm:$0xf]
        %v3488 = vld [vmem:[%s22 + $0x10] sm:$0xf]
        %v3489 = vld [vmem:[%s22 + $0x14] sm:$0xf]
        %v3490 = vld [vmem:[%s22 + $0x18] sm:$0xf]
        %v3491 = vld [vmem:[%s22 + $0x1c] sm:$0xf]
        %v3492 = vpack.c.bf16 %v3479, %v3479
        %v3493 = vld [vmem:[%s23] sm:$0x1]
        %v3495 = vlaneseq
        %v3496 = vshrl.u32 %v3495, 7
        %v3497 = vsub.s32 0, %v3496
        %v3498 = vrot.slane %v3493, %v3497
        %v3508 = vunpack.c.l.b16 %v3484
        %v3509 = vunpack.c.l.b16 %v3485
        %v3510 = vunpack.c.l.b16 %v3486
        %v3511 = vunpack.c.l.b16 %v3487
        %v3512 = vunpack.c.l.b16 %v3488
        %v3513 = vunpack.c.l.b16 %v3489
        %v3514 = vunpack.c.l.b16 %v3490
        %v3515 = vunpack.c.l.b16 %v3491
        %v3516 = vpack.c.b16 %v3509, %v3508
        %v3517 = vpack.c.b16 %v3511, %v3510
        %v3518 = vpack.c.b16 %v3513, %v3512
        %v3519 = vpack.c.b16 %v3515, %v3514
        %v3525 = vsel %vm3238, %v3492, 0
        %3527 = vmatprep.subr.bf16.mxu0 0
        %3528 = vmatpush1.bf16.msra.mxu0 %v3516
        %3529 = vmatprep.subr.bf16.mxu0 0
        %3530 = vmatpush1.bf16.msra.mxu0 %v3517
        %3531 = vmatprep.subr.bf16.mxu0 0
        %3532 = vmatpush1.bf16.msra.mxu0 %v3518
        %3533 = vmatprep.subr.bf16.mxu0 0
        %3534 = vmatpush1.bf16.msra.mxu0 %v3519
        %3535 = vmatprep.subr.bf16.mxu0 0
        %3536 = vmatpush1.bf16.msra.mxu0 0
        %3537 = vmatprep.subr.bf16.mxu0 0
        %3538 = vmatpush1.bf16.msra.mxu0 0
        %3539 = vmatprep.subr.bf16.mxu0 0
        %3540 = vmatpush1.bf16.msra.mxu0 0
        %3541 = vmatprep.subr.bf16.mxu0 0
        %3542 = vmatpush1.bf16.msra.mxu0 0
        %3543 = vmatprep.subr.bf16.mxu0 0
        %3544 = vmatpush1.bf16.msra.mxu0 0
        %3545 = vmatprep.subr.bf16.mxu0 0
        %3546 = vmatpush1.bf16.msra.mxu0 0
        %3547 = vmatprep.subr.bf16.mxu0 0
        %3548 = vmatpush1.bf16.msra.mxu0 0
        %3549 = vmatprep.subr.bf16.mxu0 0
        %3550 = vmatpush1.bf16.msra.mxu0 0
        %3551 = vmatprep.subr.bf16.mxu0 0
        %3552 = vmatpush1.bf16.msra.mxu0 0
        %3553 = vmatprep.subr.bf16.mxu0 0
        %3554 = vmatpush1.bf16.msra.mxu0 0
        %3555 = vmatprep.subr.bf16.mxu0 0
        %3556 = vmatpush1.bf16.msra.mxu0 0
        %3557 = vmatprep.subr.bf16.mxu0 0
        %3558 = vmatpush1.bf16.msra.mxu0 0
        %3559 = vmatprep.mubr.bf16.mxu0 0
        %3560 = vmatmul.mubr.bf16.gmra.mrb[0].mxu0 %v3525
        %v3561 = vpop.f32.mrb[0].mxu0
        %v3562 = vadd.f32 %v3498, %v3561
        %v3563 = vpop.f32.mrb[0].mxu0
        %v3564 = vpop.f32.mrb[0].mxu0
        %v3565 = vpop.f32.mrb[0].mxu0
        %3566 = vdwg.mxu0
        %v3567 = vadd.f32 %v3073, %v3562
        %3568 = vst.msk [vmem:[%s822] sm:$0xff] %vm831, %v3567
        %p3569 = scmp.lt.s32.totalorder %s42, 1
        %s3570 = scalar_select %p3569, %s42, 1
        %p3571 = scmp.lt.s32.totalorder %s43, 0
        %s3572 = scalar_select %p3571, %s43, 0
        %s3573 = sadd.s32 %s3572, %s3570
        %s3574 = smul.addr %s3573, 8
        %s3575 = scalar_lea.vmem %s24, %s3574
        // Predicated region
        $region133: #{decoder_forward.2} parent=115 // pred_check
          %p3576 = pneg %p584
        $region134: #{decoder_forward.2} parent=115 // pred_check_branch
          %3578 = sbr.rel (%p3576) target = $region136
        $region135: #{decoder_forward.2} parent=115 // pred_region
          _
        $region136: #{decoder_forward.2} parent=115 // pred_fallthru
          _
      $region116: #{decoder_forward.2} parent=5 // pred_fallthru
        _
      %p3579 = scmp.le.s32.totalorder 2, %s33
      // Predicated region
      $region137: #{decoder_forward.2} parent=5 // pred_check
        %p3580 = pneg %p3579
      $region138: #{decoder_forward.2} parent=5 // pred_check_branch
        %3582 = sbr.rel (%p3580) target = $region140
      $region139: #{decoder_forward.2} parent=5 // pred_region
        %s3583 = ssub.s32 %s33, 2
        // Predicated region
        $region141: #{decoder_forward.2} parent=139 // pred_check
          %p3584 = pneg %p590
        $region142: #{decoder_forward.2} parent=139 // pred_check_branch
          %3586 = sbr.rel (%p3584) target = $region144
        $region143: #{decoder_forward.2} parent=139 // pred_region
          %p3587 = scmp.lt.s32.totalorder %s44, 1
          %s3588 = scalar_select %p3587, %s44, 1
          %p3589 = scmp.lt.s32.totalorder %s45, 0
          %s3590 = scalar_select %p3589, %s45, 0
          %s3591 = sadd.s32 %s3590, %s3588
          %s3592 = smul.addr %s3591, 8
          %s3593 = scalar_lea.vmem %s24, %s3592
        $region144: #{decoder_forward.2} parent=139 // pred_fallthru
          _
      $region140: #{decoder_forward.2} parent=5 // pred_fallthru
        _
    $region6: #{decoder_forward.2} parent=1 // loop_footer
      %s37 = sadd.s32 1, %s33
    $region7: #{decoder_forward.2} parent=1 // loop_footer_branch
      %32 = sbr.rel target = $region3
    $region8: #{decoder_forward.2} parent=1 // loop_exit
      _
    %3594 = vsyncpa [#allocation3], 1
    %s3595 = scalar_lea.sflag [#allocation3], 1
    %3596 = vsyncpa %s3595, 1
    %3597 = vsyncpa [#allocation5], 1
    %3598 = vsyncpa [#allocation8], 1

</llo_original>
